<compile_context>
chip_gen: v5e
topology: v5e:2x2
jax: 0.10.0
libtpu: 0.0.40
codegen_flags: <defaults>
</compile_context>

<pallas_src>
import jax
import jax.numpy as jnp
from jax.experimental import pallas as pl
from jax.experimental.pallas import tpu as pltpu

LANE = 128


def _round_up(n, m):
    return ((n + m - 1) // m) * m


# ---------------------------------------------------------------------------
# Fused Pallas kernel (all LSTM layers + FC) — single grid point.
# ---------------------------------------------------------------------------
def make_fused_kernel(num_layers, T, Hp):
    def kernel(*refs):
        # Layout of refs (inputs, outputs, scratch):
        #   refs[0]                      : x        (T, B, Ip0)
        #   refs[1 + 2*l], refs[2 + 2*l] : W_l (Ip_l+Hp, 4Hp), b_l (1, 4Hp)
        #   refs[1 + 2*L]                : fc_w     (Hp, Op)
        #   refs[2 + 2*L]                : fc_b     (1, Op)
        #   refs[3 + 2*L]                : out      (B, Op)
        #   refs[4 + 2*L], refs[5 + 2*L] : h_scr, c_scr  (num_layers, B, Hp)
        x_ref = refs[0]
        layer_refs = refs[1:1 + 2 * num_layers]
        fc_w_ref = refs[1 + 2 * num_layers]
        fc_b_ref = refs[2 + 2 * num_layers]
        out_ref = refs[3 + 2 * num_layers]
        h_scr = refs[4 + 2 * num_layers]
        c_scr = refs[5 + 2 * num_layers]

        h_scr[...] = jnp.zeros_like(h_scr)
        c_scr[...] = jnp.zeros_like(c_scr)

        def step(t, carry):
            inp = x_ref[t]                                    # (B, Ip)
            for l in range(num_layers):
                w_ref = layer_refs[2 * l]                     # (Ip_l+Hp, 4Hp)
                b_ref = layer_refs[2 * l + 1]                 # (1, 4Hp)
                h = h_scr[l]                                  # (B, Hp)
                c = c_scr[l]                                  # (B, Hp)

                # Fused input+recurrent gate matmul. Both pieces are 128-lane
                # multiples, so the concat and the gate slices below are
                # tile-aligned (no cross-lane shuffles).
                xh = jnp.concatenate([inp, h], axis=-1)       # (B, Ip_l+Hp)
                gates = (
                    jnp.dot(xh, w_ref[...],
                            preferred_element_type=jnp.float32)
                    + b_ref[...]
                )                                             # (B, 4Hp)

                i_g = jax.nn.sigmoid(gates[:, 0 * Hp:1 * Hp])
                f_g = jax.nn.sigmoid(gates[:, 1 * Hp:2 * Hp])
                g_g = jnp.tanh(gates[:, 2 * Hp:3 * Hp])
                o_g = jax.nn.sigmoid(gates[:, 3 * Hp:4 * Hp])

                c_new = f_g * c + i_g * g_g
                h_new = o_g * jnp.tanh(c_new)

                h_scr[l] = h_new
                c_scr[l] = c_new
                inp = h_new
            return carry

        jax.lax.fori_loop(0, T, step, 0, unroll=True)

        # Final Linear on the last layer's hidden state at t == T-1.
        h_last = h_scr[num_layers - 1]                        # (B, Hp)
        out_ref[...] = (
            jnp.dot(h_last, fc_w_ref[...],
                    preferred_element_type=jnp.float32)
            + fc_b_ref[...]
        )

    return kernel


# ---------------------------------------------------------------------------
# One-time parameter preparation (pad to lane width, fuse W_ih/W_hh, fuse bias)
# ---------------------------------------------------------------------------
def prepare_params(lstm_params, fc_w, fc_b, hidden_size):
    H = hidden_size
    Hp = _round_up(H, LANE)

    layers = []
    for (w_ih, w_hh, b_ih, b_hh) in lstm_params:
        w_ih = jnp.asarray(w_ih, jnp.float32)                 # (4H, in_dim)
        w_hh = jnp.asarray(w_hh, jnp.float32)                 # (4H, H)
        b = jnp.asarray(b_ih, jnp.float32) + jnp.asarray(b_hh, jnp.float32)

        in_dim = w_ih.shape[1]
        Ip = _round_up(in_dim, LANE)

        w_ih_p = jnp.zeros((4 * Hp, Ip), jnp.float32)
        w_hh_p = jnp.zeros((4 * Hp, Hp), jnp.float32)
        b_p = jnp.zeros((4 * Hp,), jnp.float32)
        for g in range(4):
            w_ih_p = w_ih_p.at[g * Hp:g * Hp + H, :in_dim].set(
                w_ih[g * H:(g + 1) * H, :])
            w_hh_p = w_hh_p.at[g * Hp:g * Hp + H, :H].set(
                w_hh[g * H:(g + 1) * H, :])
            b_p = b_p.at[g * Hp:g * Hp + H].set(b[g * H:(g + 1) * H])

        # Fused weight: [x_t, h] @ W  with W = [W_ih^T ; W_hh^T]
        w_fused = jnp.concatenate([w_ih_p.T, w_hh_p.T], axis=0)  # (Ip+Hp, 4Hp)
        layers.append((w_fused, b_p[None, :], Ip))

    O, _ = fc_w.shape
    Op = _round_up(O, LANE)
    fc_w_p = jnp.zeros((Op, Hp), jnp.float32).at[:O, :H].set(
        jnp.asarray(fc_w, jnp.float32))
    fc_b_p = jnp.zeros((1, Op), jnp.float32).at[0, :O].set(
        jnp.asarray(fc_b, jnp.float32))

    return {
        "layers": layers,            # list of (w_fused, bias, Ip)
        "fc_w": fc_w_p.T,            # (Hp, Op)
        "fc_b": fc_b_p,              # (1, Op)
        "Hp": Hp,
        "Op": Op,
        "output_size": O,
    }


# ---------------------------------------------------------------------------
# Forward pass (single fused pallas_call)
# ---------------------------------------------------------------------------
def lstm_forecaster_forward(x_btI, params):
    """x_btI: (B, T, input_size), batch_first like PyTorch. Returns (B, O)."""
    B, T, I = x_btI.shape
    Hp = params["Hp"]
    Op = params["Op"]
    layers = params["layers"]
    num_layers = len(layers)
    Ip0 = layers[0][2]

    # Time-major + zero-pad features to the lane width (done once, tiny).
    x_tbi = jnp.transpose(x_btI, (1, 0, 2)).astype(jnp.float32)   # (T, B, I)
    x_p = jnp.zeros((T, B, Ip0), jnp.float32).at[:, :, :I].set(x_tbi)

    flat_inputs = [x_p]
    in_specs = [pl.BlockSpec((T, B, Ip0), lambda i: (0, 0, 0))]
    for (w_fused, bias, _ip) in layers:
        flat_inputs += [w_fused, bias]
        in_specs.append(pl.BlockSpec(w_fused.shape, lambda i: (0, 0)))
        in_specs.append(pl.BlockSpec(bias.shape, lambda i: (0, 0)))
    flat_inputs += [params["fc_w"], params["fc_b"]]
    in_specs.append(pl.BlockSpec(params["fc_w"].shape, lambda i: (0, 0)))
    in_specs.append(pl.BlockSpec(params["fc_b"].shape, lambda i: (0, 0)))

    kernel = make_fused_kernel(num_layers, T, Hp)

    out = pl.pallas_call(
        kernel,
        out_shape=jax.ShapeDtypeStruct((B, Op), jnp.float32),
        grid_spec=pltpu.PrefetchScalarGridSpec(
            num_scalar_prefetch=0,
            grid=(1,),
            in_specs=in_specs,
            out_specs=pl.BlockSpec((B, Op), lambda i: (0, 0)),
            scratch_shapes=[
                pltpu.VMEM((num_layers, B, Hp), jnp.float32),   # h state
                pltpu.VMEM((num_layers, B, Hp), jnp.float32),   # c state
            ],
        ),
        compiler_params=pltpu.CompilerParams(
            dimension_semantics=("arbitrary",)),
    )(*flat_inputs)

    return out[:, :params["output_size"]]


# ---------------------------------------------------------------------------
# Pure-JAX reference (PyTorch semantics) for correctness check
# ---------------------------------------------------------------------------
def lstm_forecaster_ref(x_btI, lstm_params, fc_w, fc_b):
    seq = jnp.transpose(x_btI, (1, 0, 2)).astype(jnp.float32)    # (T, B, I)
    B = seq.shape[1]
    for (w_ih, w_hh, b_ih, b_hh) in lstm_params:
        H = w_hh.shape[1]

        def step(carry, x_t):
            h, c = carry
            gates = x_t @ w_ih.T + b_ih + h @ w_hh.T + b_hh
            i_g, f_g, g_g, o_g = jnp.split(gates, 4, axis=-1)
            i_g = jax.nn.sigmoid(i_g)
            f_g = jax.nn.sigmoid(f_g)
            g_g = jnp.tanh(g_g)
            o_g = jax.nn.sigmoid(o_g)
            c = f_g * c + i_g * g_g
            h = o_g * jnp.tanh(c)
            return (h, c), h

        init = (jnp.zeros((B, H), jnp.float32), jnp.zeros((B, H), jnp.float32))
        _, seq = jax.lax.scan(step, init, seq)
    return seq[-1] @ fc_w.T + fc_b


# ---------------------------------------------------------------------------
# Deterministic parameter init (mimics PyTorch U(-1/sqrt(H), 1/sqrt(H)))
# ---------------------------------------------------------------------------
def init_params(key, input_size, output_size, hidden_size, num_layers):
    k = 1.0 / jnp.sqrt(hidden_size)
    lstm_params = []
    for layer in range(num_layers):
        in_sz = input_size if layer == 0 else hidden_size
        key, k1, k2, k3, k4 = jax.random.split(key, 5)
        w_ih = jax.random.uniform(k1, (4 * hidden_size, in_sz),
                                  jnp.float32, -k, k)
        w_hh = jax.random.uniform(k2, (4 * hidden_size, hidden_size),
                                  jnp.float32, -k, k)
        b_ih = jax.random.uniform(k3, (4 * hidden_size,), jnp.float32, -k, k)
        b_hh = jax.random.uniform(k4, (4 * hidden_size,), jnp.float32, -k, k)
        lstm_params.append((w_ih, w_hh, b_ih, b_hh))
    key, k5, k6 = jax.random.split(key, 3)
    fc_w = jax.random.uniform(k5, (output_size, hidden_size),
                              jnp.float32, -k, k)
    fc_b = jax.random.uniform(k6, (output_size,), jnp.float32, -k, k)
    return lstm_params, fc_w, fc_b


# ---------------------------------------------------------------------------
if __name__ == "__main__":
    B, T = 2, 8
    input_size, output_size, hidden_size, num_layers = 4, 1, 32, 2

    key = jax.random.PRNGKey(0)
    key, xk = jax.random.split(key)
    x = jax.random.normal(xk, (B, T, input_size), jnp.float32)

    lstm_params, fc_w, fc_b = init_params(
        key, input_size, output_size, hidden_size, num_layers)

    # One-time parameter prep (padding / fusion / transposes hoisted here).
    params = prepare_params(lstm_params, fc_w, fc_b, hidden_size)

    out = lstm_forecaster_forward(x, params)
    out = jax.block_until_ready(out)

    ref = lstm_forecaster_ref(x, lstm_params, fc_w, fc_b)
    ref = jax.block_until_ready(ref)

    assert out.shape == (B, output_size), out.shape
    assert jnp.allclose(out, ref, atol=2e-5, rtol=1e-4), (out, ref)

    print("KERNEL_OK")
</pallas_src>

<mosaic_0001>
module attributes {stable_mosaic.version = 11 : i64} {
  func.func @kernel(%arg0: i32, %arg1: memref<8x2x128xf32, #tpu.memory_space<vmem>>, %arg2: memref<256x512xf32, #tpu.memory_space<vmem>>, %arg3: memref<1x512xf32, #tpu.memory_space<vmem>>, %arg4: memref<256x512xf32, #tpu.memory_space<vmem>>, %arg5: memref<1x512xf32, #tpu.memory_space<vmem>>, %arg6: memref<128x128xf32, #tpu.memory_space<vmem>>, %arg7: memref<1x128xf32, #tpu.memory_space<vmem>>, %arg8: memref<2x128xf32, #tpu.memory_space<vmem>>, %arg9: memref<2x2x128xf32, #tpu.memory_space<vmem>>, %arg10: memref<2x2x128xf32, #tpu.memory_space<vmem>>) attributes {dimension_semantics = [#tpu.dimension_semantics<arbitrary>], iteration_bounds = array<i64: 1>, scalar_prefetch = 0 : i64, scratch_operands = 2 : i64, tpu.core_type = #tpu.core_type<tc>, window_params = [{pipeline_mode = #tpu.pipeline_mode<synchronous>, transform_indices = @transform_0, window_bounds = array<i64: 8, 2, 128>}, {pipeline_mode = #tpu.pipeline_mode<synchronous>, transform_indices = @transform_1, window_bounds = array<i64: 256, 512>}, {pipeline_mode = #tpu.pipeline_mode<synchronous>, transform_indices = @transform_2, window_bounds = array<i64: 1, 512>}, {pipeline_mode = #tpu.pipeline_mode<synchronous>, transform_indices = @transform_3, window_bounds = array<i64: 256, 512>}, {pipeline_mode = #tpu.pipeline_mode<synchronous>, transform_indices = @transform_4, window_bounds = array<i64: 1, 512>}, {pipeline_mode = #tpu.pipeline_mode<synchronous>, transform_indices = @transform_5, window_bounds = array<i64: 128, 128>}, {pipeline_mode = #tpu.pipeline_mode<synchronous>, transform_indices = @transform_6, window_bounds = array<i64: 1, 128>}, {pipeline_mode = #tpu.pipeline_mode<synchronous>, transform_indices = @transform_7, window_bounds = array<i64: 2, 128>}]} {
    %cst = arith.constant 0.000000e+00 : f32
    %0 = vector.broadcast %cst : f32 to vector<2x2x128xf32>
    %c0 = arith.constant 0 : index
    %c0_0 = arith.constant 0 : index
    %c0_1 = arith.constant 0 : index
    %1 = vector.load %arg9[%c0, %c0_0, %c0_1] : memref<2x2x128xf32, #tpu.memory_space<vmem>>, vector<2x2x128xf32>
    tpu.vector_store %arg9[%c0, %c0_0, %c0_1], %0 {strides = array<i32>} : memref<2x2x128xf32, #tpu.memory_space<vmem>>, vector<2x2x128xf32>,
    %cst_2 = arith.constant 0.000000e+00 : f32
    %2 = vector.broadcast %cst_2 : f32 to vector<2x2x128xf32>
    %c0_3 = arith.constant 0 : index
    %c0_4 = arith.constant 0 : index
    %c0_5 = arith.constant 0 : index
    %3 = vector.load %arg10[%c0_3, %c0_4, %c0_5] : memref<2x2x128xf32, #tpu.memory_space<vmem>>, vector<2x2x128xf32>
    tpu.vector_store %arg10[%c0_3, %c0_4, %c0_5], %2 {strides = array<i32>} : memref<2x2x128xf32, #tpu.memory_space<vmem>>, vector<2x2x128xf32>,
    %c0_i32 = arith.constant 0 : i32
    %4 = arith.index_cast %c0_i32 : i32 to index
    %c0_6 = arith.constant 0 : index
    %c0_7 = arith.constant 0 : index
    %5 = vector.load %arg1[%4, %c0_6, %c0_7] : memref<8x2x128xf32, #tpu.memory_space<vmem>>, vector<1x2x128xf32>
    %6 = vector.shape_cast %5 : vector<1x2x128xf32> to vector<2x128xf32>
    %c0_8 = arith.constant 0 : index
    %c0_9 = arith.constant 0 : index
    %c0_10 = arith.constant 0 : index
    %7 = vector.load %arg9[%c0_8, %c0_9, %c0_10] : memref<2x2x128xf32, #tpu.memory_space<vmem>>, vector<1x2x128xf32>
    %8 = vector.shape_cast %7 : vector<1x2x128xf32> to vector<2x128xf32>
    %c0_11 = arith.constant 0 : index
    %c0_12 = arith.constant 0 : index
    %c0_13 = arith.constant 0 : index
    %9 = vector.load %arg10[%c0_11, %c0_12, %c0_13] : memref<2x2x128xf32, #tpu.memory_space<vmem>>, vector<1x2x128xf32>
    %10 = vector.shape_cast %9 : vector<1x2x128xf32> to vector<2x128xf32>
    %11 = tpu.concatenate %6, %8 in 1 : vector<2x128xf32>, vector<2x128xf32> -> vector<2x256xf32>
    %c0_14 = arith.constant 0 : index
    %c0_15 = arith.constant 0 : index
    %12 = vector.load %arg2[%c0_14, %c0_15] : memref<256x512xf32, #tpu.memory_space<vmem>>, vector<256x512xf32>
    %cst_16 = arith.constant dense<0.000000e+00> : vector<2x512xf32>
    %13 = tpu.matmul %11, %12, %cst_16 {dimension_numbers = #tpu.dot_dimension_numbers<[1], [0], [0], [1], [0, 0, 1, 1], [], []>} : vector<2x256xf32>, vector<256x512xf32>, vector<2x512xf32> -> vector<2x512xf32>
    %c0_17 = arith.constant 0 : index
    %c0_18 = arith.constant 0 : index
    %14 = vector.load %arg3[%c0_17, %c0_18] : memref<1x512xf32, #tpu.memory_space<vmem>>, vector<1x512xf32>
    %15 = vector.broadcast %14 : vector<1x512xf32> to vector<2x512xf32>
    %16 = arith.addf %13, %15 : vector<2x512xf32>
    %17 = vector.extract_strided_slice %16 {offsets = [0, 0], sizes = [2, 128], strides = [1, 1]} : vector<2x512xf32> to vector<2x128xf32>
    %18 = arith.negf %17 : vector<2x128xf32>
    %19 = math.exp %18 : vector<2x128xf32>
    %cst_19 = arith.constant 1.000000e+00 : f32
    %20 = vector.broadcast %cst_19 : f32 to vector<2x128xf32>
    %21 = arith.addf %20, %19 : vector<2x128xf32>
    %22 = arith.divf %20, %21 : vector<2x128xf32>
    %23 = vector.extract_strided_slice %16 {offsets = [0, 128], sizes = [2, 128], strides = [1, 1]} : vector<2x512xf32> to vector<2x128xf32>
    %24 = arith.negf %23 : vector<2x128xf32>
    %25 = math.exp %24 : vector<2x128xf32>
    %cst_20 = arith.constant 1.000000e+00 : f32
    %26 = vector.broadcast %cst_20 : f32 to vector<2x128xf32>
    %27 = arith.addf %26, %25 : vector<2x128xf32>
    %28 = arith.divf %26, %27 : vector<2x128xf32>
    %29 = vector.extract_strided_slice %16 {offsets = [0, 256], sizes = [2, 128], strides = [1, 1]} : vector<2x512xf32> to vector<2x128xf32>
    %30 = math.tanh %29 : vector<2x128xf32>
    %31 = vector.extract_strided_slice %16 {offsets = [0, 384], sizes = [2, 128], strides = [1, 1]} : vector<2x512xf32> to vector<2x128xf32>
    %32 = arith.negf %31 : vector<2x128xf32>
    %33 = math.exp %32 : vector<2x128xf32>
    %cst_21 = arith.constant 1.000000e+00 : f32
    %34 = vector.broadcast %cst_21 : f32 to vector<2x128xf32>
    %35 = arith.addf %34, %33 : vector<2x128xf32>
    %36 = arith.divf %34, %35 : vector<2x128xf32>
    %37 = arith.mulf %28, %10 : vector<2x128xf32>
    %38 = arith.mulf %22, %30 : vector<2x128xf32>
    %39 = arith.addf %37, %38 : vector<2x128xf32>
    %40 = math.tanh %39 : vector<2x128xf32>
    %41 = arith.mulf %36, %40 : vector<2x128xf32>
    %c0_22 = arith.constant 0 : index
    %c0_23 = arith.constant 0 : index
    %c0_24 = arith.constant 0 : index
    %42 = vector.load %arg9[%c0_22, %c0_23, %c0_24] : memref<2x2x128xf32, #tpu.memory_space<vmem>>, vector<1x2x128xf32>
    %43 = vector.shape_cast %42 : vector<1x2x128xf32> to vector<2x128xf32>
    %44 = vector.shape_cast %41 : vector<2x128xf32> to vector<1x2x128xf32>
    tpu.vector_store %arg9[%c0_22, %c0_23, %c0_24], %44 {strides = array<i32>} : memref<2x2x128xf32, #tpu.memory_space<vmem>>, vector<1x2x128xf32>,
    %c0_25 = arith.constant 0 : index
    %c0_26 = arith.constant 0 : index
    %c0_27 = arith.constant 0 : index
    %45 = vector.load %arg10[%c0_25, %c0_26, %c0_27] : memref<2x2x128xf32, #tpu.memory_space<vmem>>, vector<1x2x128xf32>
    %46 = vector.shape_cast %45 : vector<1x2x128xf32> to vector<2x128xf32>
    %47 = vector.shape_cast %39 : vector<2x128xf32> to vector<1x2x128xf32>
    tpu.vector_store %arg10[%c0_25, %c0_26, %c0_27], %47 {strides = array<i32>} : memref<2x2x128xf32, #tpu.memory_space<vmem>>, vector<1x2x128xf32>,
    %c1 = arith.constant 1 : index
    %c0_28 = arith.constant 0 : index
    %c0_29 = arith.constant 0 : index
    %48 = vector.load %arg9[%c1, %c0_28, %c0_29] : memref<2x2x128xf32, #tpu.memory_space<vmem>>, vector<1x2x128xf32>
    %49 = vector.shape_cast %48 : vector<1x2x128xf32> to vector<2x128xf32>
    %c1_30 = arith.constant 1 : index
    %c0_31 = arith.constant 0 : index
    %c0_32 = arith.constant 0 : index
    %50 = vector.load %arg10[%c1_30, %c0_31, %c0_32] : memref<2x2x128xf32, #tpu.memory_space<vmem>>, vector<1x2x128xf32>
    %51 = vector.shape_cast %50 : vector<1x2x128xf32> to vector<2x128xf32>
    %52 = tpu.concatenate %41, %49 in 1 : vector<2x128xf32>, vector<2x128xf32> -> vector<2x256xf32>
    %c0_33 = arith.constant 0 : index
    %c0_34 = arith.constant 0 : index
    %53 = vector.load %arg4[%c0_33, %c0_34] : memref<256x512xf32, #tpu.memory_space<vmem>>, vector<256x512xf32>
    %cst_35 = arith.constant dense<0.000000e+00> : vector<2x512xf32>
    %54 = tpu.matmul %52, %53, %cst_35 {dimension_numbers = #tpu.dot_dimension_numbers<[1], [0], [0], [1], [0, 0, 1, 1], [], []>} : vector<2x256xf32>, vector<256x512xf32>, vector<2x512xf32> -> vector<2x512xf32>
    %c0_36 = arith.constant 0 : index
    %c0_37 = arith.constant 0 : index
    %55 = vector.load %arg5[%c0_36, %c0_37] : memref<1x512xf32, #tpu.memory_space<vmem>>, vector<1x512xf32>
    %56 = vector.broadcast %55 : vector<1x512xf32> to vector<2x512xf32>
    %57 = arith.addf %54, %56 : vector<2x512xf32>
    %58 = vector.extract_strided_slice %57 {offsets = [0, 0], sizes = [2, 128], strides = [1, 1]} : vector<2x512xf32> to vector<2x128xf32>
    %59 = arith.negf %58 : vector<2x128xf32>
    %60 = math.exp %59 : vector<2x128xf32>
    %cst_38 = arith.constant 1.000000e+00 : f32
    %61 = vector.broadcast %cst_38 : f32 to vector<2x128xf32>
    %62 = arith.addf %61, %60 : vector<2x128xf32>
    %63 = arith.divf %61, %62 : vector<2x128xf32>
    %64 = vector.extract_strided_slice %57 {offsets = [0, 128], sizes = [2, 128], strides = [1, 1]} : vector<2x512xf32> to vector<2x128xf32>
    %65 = arith.negf %64 : vector<2x128xf32>
    %66 = math.exp %65 : vector<2x128xf32>
    %cst_39 = arith.constant 1.000000e+00 : f32
    %67 = vector.broadcast %cst_39 : f32 to vector<2x128xf32>
    %68 = arith.addf %67, %66 : vector<2x128xf32>
    %69 = arith.divf %67, %68 : vector<2x128xf32>
    %70 = vector.extract_strided_slice %57 {offsets = [0, 256], sizes = [2, 128], strides = [1, 1]} : vector<2x512xf32> to vector<2x128xf32>
    %71 = math.tanh %70 : vector<2x128xf32>
    %72 = vector.extract_strided_slice %57 {offsets = [0, 384], sizes = [2, 128], strides = [1, 1]} : vector<2x512xf32> to vector<2x128xf32>
    %73 = arith.negf %72 : vector<2x128xf32>
    %74 = math.exp %73 : vector<2x128xf32>
    %cst_40 = arith.constant 1.000000e+00 : f32
    %75 = vector.broadcast %cst_40 : f32 to vector<2x128xf32>
    %76 = arith.addf %75, %74 : vector<2x128xf32>
    %77 = arith.divf %75, %76 : vector<2x128xf32>
    %78 = arith.mulf %69, %51 : vector<2x128xf32>
    %79 = arith.mulf %63, %71 : vector<2x128xf32>
    %80 = arith.addf %78, %79 : vector<2x128xf32>
    %81 = math.tanh %80 : vector<2x128xf32>
    %82 = arith.mulf %77, %81 : vector<2x128xf32>
    %c1_41 = arith.constant 1 : index
    %c0_42 = arith.constant 0 : index
    %c0_43 = arith.constant 0 : index
    %83 = vector.load %arg9[%c1_41, %c0_42, %c0_43] : memref<2x2x128xf32, #tpu.memory_space<vmem>>, vector<1x2x128xf32>
    %84 = vector.shape_cast %83 : vector<1x2x128xf32> to vector<2x128xf32>
    %85 = vector.shape_cast %82 : vector<2x128xf32> to vector<1x2x128xf32>
    tpu.vector_store %arg9[%c1_41, %c0_42, %c0_43], %85 {strides = array<i32>} : memref<2x2x128xf32, #tpu.memory_space<vmem>>, vector<1x2x128xf32>,
    %c1_44 = arith.constant 1 : index
    %c0_45 = arith.constant 0 : index
    %c0_46 = arith.constant 0 : index
    %86 = vector.load %arg10[%c1_44, %c0_45, %c0_46] : memref<2x2x128xf32, #tpu.memory_space<vmem>>, vector<1x2x128xf32>
    %87 = vector.shape_cast %86 : vector<1x2x128xf32> to vector<2x128xf32>
    %88 = vector.shape_cast %80 : vector<2x128xf32> to vector<1x2x128xf32>
    tpu.vector_store %arg10[%c1_44, %c0_45, %c0_46], %88 {strides = array<i32>} : memref<2x2x128xf32, #tpu.memory_space<vmem>>, vector<1x2x128xf32>,
    %c1_i32 = arith.constant 1 : i32
    %89 = arith.index_cast %c1_i32 : i32 to index
    %c0_47 = arith.constant 0 : index
    %c0_48 = arith.constant 0 : index
    %90 = vector.load %arg1[%89, %c0_47, %c0_48] : memref<8x2x128xf32, #tpu.memory_space<vmem>>, vector<1x2x128xf32>
    %91 = vector.shape_cast %90 : vector<1x2x128xf32> to vector<2x128xf32>
    %c0_49 = arith.constant 0 : index
    %c0_50 = arith.constant 0 : index
    %c0_51 = arith.constant 0 : index
    %92 = vector.load %arg9[%c0_49, %c0_50, %c0_51] : memref<2x2x128xf32, #tpu.memory_space<vmem>>, vector<1x2x128xf32>
    %93 = vector.shape_cast %92 : vector<1x2x128xf32> to vector<2x128xf32>
    %c0_52 = arith.constant 0 : index
    %c0_53 = arith.constant 0 : index
    %c0_54 = arith.constant 0 : index
    %94 = vector.load %arg10[%c0_52, %c0_53, %c0_54] : memref<2x2x128xf32, #tpu.memory_space<vmem>>, vector<1x2x128xf32>
    %95 = vector.shape_cast %94 : vector<1x2x128xf32> to vector<2x128xf32>
    %96 = tpu.concatenate %91, %93 in 1 : vector<2x128xf32>, vector<2x128xf32> -> vector<2x256xf32>
    %c0_55 = arith.constant 0 : index
    %c0_56 = arith.constant 0 : index
    %97 = vector.load %arg2[%c0_55, %c0_56] : memref<256x512xf32, #tpu.memory_space<vmem>>, vector<256x512xf32>
    %cst_57 = arith.constant dense<0.000000e+00> : vector<2x512xf32>
    %98 = tpu.matmul %96, %97, %cst_57 {dimension_numbers = #tpu.dot_dimension_numbers<[1], [0], [0], [1], [0, 0, 1, 1], [], []>} : vector<2x256xf32>, vector<256x512xf32>, vector<2x512xf32> -> vector<2x512xf32>
    %c0_58 = arith.constant 0 : index
    %c0_59 = arith.constant 0 : index
    %99 = vector.load %arg3[%c0_58, %c0_59] : memref<1x512xf32, #tpu.memory_space<vmem>>, vector<1x512xf32>
    %100 = vector.broadcast %99 : vector<1x512xf32> to vector<2x512xf32>
    %101 = arith.addf %98, %100 : vector<2x512xf32>
    %102 = vector.extract_strided_slice %101 {offsets = [0, 0], sizes = [2, 128], strides = [1, 1]} : vector<2x512xf32> to vector<2x128xf32>
    %103 = arith.negf %102 : vector<2x128xf32>
    %104 = math.exp %103 : vector<2x128xf32>
    %cst_60 = arith.constant 1.000000e+00 : f32
    %105 = vector.broadcast %cst_60 : f32 to vector<2x128xf32>
    %106 = arith.addf %105, %104 : vector<2x128xf32>
    %107 = arith.divf %105, %106 : vector<2x128xf32>
    %108 = vector.extract_strided_slice %101 {offsets = [0, 128], sizes = [2, 128], strides = [1, 1]} : vector<2x512xf32> to vector<2x128xf32>
    %109 = arith.negf %108 : vector<2x128xf32>
    %110 = math.exp %109 : vector<2x128xf32>
    %cst_61 = arith.constant 1.000000e+00 : f32
    %111 = vector.broadcast %cst_61 : f32 to vector<2x128xf32>
    %112 = arith.addf %111, %110 : vector<2x128xf32>
    %113 = arith.divf %111, %112 : vector<2x128xf32>
    %114 = vector.extract_strided_slice %101 {offsets = [0, 256], sizes = [2, 128], strides = [1, 1]} : vector<2x512xf32> to vector<2x128xf32>
    %115 = math.tanh %114 : vector<2x128xf32>
    %116 = vector.extract_strided_slice %101 {offsets = [0, 384], sizes = [2, 128], strides = [1, 1]} : vector<2x512xf32> to vector<2x128xf32>
    %117 = arith.negf %116 : vector<2x128xf32>
    %118 = math.exp %117 : vector<2x128xf32>
    %cst_62 = arith.constant 1.000000e+00 : f32
    %119 = vector.broadcast %cst_62 : f32 to vector<2x128xf32>
    %120 = arith.addf %119, %118 : vector<2x128xf32>
    %121 = arith.divf %119, %120 : vector<2x128xf32>
    %122 = arith.mulf %113, %95 : vector<2x128xf32>
    %123 = arith.mulf %107, %115 : vector<2x128xf32>
    %124 = arith.addf %122, %123 : vector<2x128xf32>
    %125 = math.tanh %124 : vector<2x128xf32>
    %126 = arith.mulf %121, %125 : vector<2x128xf32>
    %c0_63 = arith.constant 0 : index
    %c0_64 = arith.constant 0 : index
    %c0_65 = arith.constant 0 : index
    %127 = vector.load %arg9[%c0_63, %c0_64, %c0_65] : memref<2x2x128xf32, #tpu.memory_space<vmem>>, vector<1x2x128xf32>
    %128 = vector.shape_cast %127 : vector<1x2x128xf32> to vector<2x128xf32>
    %129 = vector.shape_cast %126 : vector<2x128xf32> to vector<1x2x128xf32>
    tpu.vector_store %arg9[%c0_63, %c0_64, %c0_65], %129 {strides = array<i32>} : memref<2x2x128xf32, #tpu.memory_space<vmem>>, vector<1x2x128xf32>,
    %c0_66 = arith.constant 0 : index
    %c0_67 = arith.constant 0 : index
    %c0_68 = arith.constant 0 : index
    %130 = vector.load %arg10[%c0_66, %c0_67, %c0_68] : memref<2x2x128xf32, #tpu.memory_space<vmem>>, vector<1x2x128xf32>
    %131 = vector.shape_cast %130 : vector<1x2x128xf32> to vector<2x128xf32>
    %132 = vector.shape_cast %124 : vector<2x128xf32> to vector<1x2x128xf32>
    tpu.vector_store %arg10[%c0_66, %c0_67, %c0_68], %132 {strides = array<i32>} : memref<2x2x128xf32, #tpu.memory_space<vmem>>, vector<1x2x128xf32>,
    %c1_69 = arith.constant 1 : index
    %c0_70 = arith.constant 0 : index
    %c0_71 = arith.constant 0 : index
    %133 = vector.load %arg9[%c1_69, %c0_70, %c0_71] : memref<2x2x128xf32, #tpu.memory_space<vmem>>, vector<1x2x128xf32>
    %134 = vector.shape_cast %133 : vector<1x2x128xf32> to vector<2x128xf32>
    %c1_72 = arith.constant 1 : index
    %c0_73 = arith.constant 0 : index
    %c0_74 = arith.constant 0 : index
    %135 = vector.load %arg10[%c1_72, %c0_73, %c0_74] : memref<2x2x128xf32, #tpu.memory_space<vmem>>, vector<1x2x128xf32>
    %136 = vector.shape_cast %135 : vector<1x2x128xf32> to vector<2x128xf32>
    %137 = tpu.concatenate %126, %134 in 1 : vector<2x128xf32>, vector<2x128xf32> -> vector<2x256xf32>
    %c0_75 = arith.constant 0 : index
    %c0_76 = arith.constant 0 : index
    %138 = vector.load %arg4[%c0_75, %c0_76] : memref<256x512xf32, #tpu.memory_space<vmem>>, vector<256x512xf32>
    %cst_77 = arith.constant dense<0.000000e+00> : vector<2x512xf32>
    %139 = tpu.matmul %137, %138, %cst_77 {dimension_numbers = #tpu.dot_dimension_numbers<[1], [0], [0], [1], [0, 0, 1, 1], [], []>} : vector<2x256xf32>, vector<256x512xf32>, vector<2x512xf32> -> vector<2x512xf32>
    %c0_78 = arith.constant 0 : index
    %c0_79 = arith.constant 0 : index
    %140 = vector.load %arg5[%c0_78, %c0_79] : memref<1x512xf32, #tpu.memory_space<vmem>>, vector<1x512xf32>
    %141 = vector.broadcast %140 : vector<1x512xf32> to vector<2x512xf32>
    %142 = arith.addf %139, %141 : vector<2x512xf32>
    %143 = vector.extract_strided_slice %142 {offsets = [0, 0], sizes = [2, 128], strides = [1, 1]} : vector<2x512xf32> to vector<2x128xf32>
    %144 = arith.negf %143 : vector<2x128xf32>
    %145 = math.exp %144 : vector<2x128xf32>
    %cst_80 = arith.constant 1.000000e+00 : f32
    %146 = vector.broadcast %cst_80 : f32 to vector<2x128xf32>
    %147 = arith.addf %146, %145 : vector<2x128xf32>
    %148 = arith.divf %146, %147 : vector<2x128xf32>
    %149 = vector.extract_strided_slice %142 {offsets = [0, 128], sizes = [2, 128], strides = [1, 1]} : vector<2x512xf32> to vector<2x128xf32>
    %150 = arith.negf %149 : vector<2x128xf32>
    %151 = math.exp %150 : vector<2x128xf32>
    %cst_81 = arith.constant 1.000000e+00 : f32
    %152 = vector.broadcast %cst_81 : f32 to vector<2x128xf32>
    %153 = arith.addf %152, %151 : vector<2x128xf32>
    %154 = arith.divf %152, %153 : vector<2x128xf32>
    %155 = vector.extract_strided_slice %142 {offsets = [0, 256], sizes = [2, 128], strides = [1, 1]} : vector<2x512xf32> to vector<2x128xf32>
    %156 = math.tanh %155 : vector<2x128xf32>
    %157 = vector.extract_strided_slice %142 {offsets = [0, 384], sizes = [2, 128], strides = [1, 1]} : vector<2x512xf32> to vector<2x128xf32>
    %158 = arith.negf %157 : vector<2x128xf32>
    %159 = math.exp %158 : vector<2x128xf32>
    %cst_82 = arith.constant 1.000000e+00 : f32
    %160 = vector.broadcast %cst_82 : f32 to vector<2x128xf32>
    %161 = arith.addf %160, %159 : vector<2x128xf32>
    %162 = arith.divf %160, %161 : vector<2x128xf32>
    %163 = arith.mulf %154, %136 : vector<2x128xf32>
    %164 = arith.mulf %148, %156 : vector<2x128xf32>
    %165 = arith.addf %163, %164 : vector<2x128xf32>
    %166 = math.tanh %165 : vector<2x128xf32>
    %167 = arith.mulf %162, %166 : vector<2x128xf32>
    %c1_83 = arith.constant 1 : index
    %c0_84 = arith.constant 0 : index
    %c0_85 = arith.constant 0 : index
    %168 = vector.load %arg9[%c1_83, %c0_84, %c0_85] : memref<2x2x128xf32, #tpu.memory_space<vmem>>, vector<1x2x128xf32>
    %169 = vector.shape_cast %168 : vector<1x2x128xf32> to vector<2x128xf32>
    %170 = vector.shape_cast %167 : vector<2x128xf32> to vector<1x2x128xf32>
    tpu.vector_store %arg9[%c1_83, %c0_84, %c0_85], %170 {strides = array<i32>} : memref<2x2x128xf32, #tpu.memory_space<vmem>>, vector<1x2x128xf32>,
    %c1_86 = arith.constant 1 : index
    %c0_87 = arith.constant 0 : index
    %c0_88 = arith.constant 0 : index
    %171 = vector.load %arg10[%c1_86, %c0_87, %c0_88] : memref<2x2x128xf32, #tpu.memory_space<vmem>>, vector<1x2x128xf32>
    %172 = vector.shape_cast %171 : vector<1x2x128xf32> to vector<2x128xf32>
    %173 = vector.shape_cast %165 : vector<2x128xf32> to vector<1x2x128xf32>
    tpu.vector_store %arg10[%c1_86, %c0_87, %c0_88], %173 {strides = array<i32>} : memref<2x2x128xf32, #tpu.memory_space<vmem>>, vector<1x2x128xf32>,
    %c2_i32 = arith.constant 2 : i32
    %174 = arith.index_cast %c2_i32 : i32 to index
    %c0_89 = arith.constant 0 : index
    %c0_90 = arith.constant 0 : index
    %175 = vector.load %arg1[%174, %c0_89, %c0_90] : memref<8x2x128xf32, #tpu.memory_space<vmem>>, vector<1x2x128xf32>
    %176 = vector.shape_cast %175 : vector<1x2x128xf32> to vector<2x128xf32>
    %c0_91 = arith.constant 0 : index
    %c0_92 = arith.constant 0 : index
    %c0_93 = arith.constant 0 : index
    %177 = vector.load %arg9[%c0_91, %c0_92, %c0_93] : memref<2x2x128xf32, #tpu.memory_space<vmem>>, vector<1x2x128xf32>
    %178 = vector.shape_cast %177 : vector<1x2x128xf32> to vector<2x128xf32>
    %c0_94 = arith.constant 0 : index
    %c0_95 = arith.constant 0 : index
    %c0_96 = arith.constant 0 : index
    %179 = vector.load %arg10[%c0_94, %c0_95, %c0_96] : memref<2x2x128xf32, #tpu.memory_space<vmem>>, vector<1x2x128xf32>
    %180 = vector.shape_cast %179 : vector<1x2x128xf32> to vector<2x128xf32>
    %181 = tpu.concatenate %176, %178 in 1 : vector<2x128xf32>, vector<2x128xf32> -> vector<2x256xf32>
    %c0_97 = arith.constant 0 : index
    %c0_98 = arith.constant 0 : index
    %182 = vector.load %arg2[%c0_97, %c0_98] : memref<256x512xf32, #tpu.memory_space<vmem>>, vector<256x512xf32>
    %cst_99 = arith.constant dense<0.000000e+00> : vector<2x512xf32>
    %183 = tpu.matmul %181, %182, %cst_99 {dimension_numbers = #tpu.dot_dimension_numbers<[1], [0], [0], [1], [0, 0, 1, 1], [], []>} : vector<2x256xf32>, vector<256x512xf32>, vector<2x512xf32> -> vector<2x512xf32>
    %c0_100 = arith.constant 0 : index
    %c0_101 = arith.constant 0 : index
    %184 = vector.load %arg3[%c0_100, %c0_101] : memref<1x512xf32, #tpu.memory_space<vmem>>, vector<1x512xf32>
    %185 = vector.broadcast %184 : vector<1x512xf32> to vector<2x512xf32>
    %186 = arith.addf %183, %185 : vector<2x512xf32>
    %187 = vector.extract_strided_slice %186 {offsets = [0, 0], sizes = [2, 128], strides = [1, 1]} : vector<2x512xf32> to vector<2x128xf32>
    %188 = arith.negf %187 : vector<2x128xf32>
    %189 = math.exp %188 : vector<2x128xf32>
    %cst_102 = arith.constant 1.000000e+00 : f32
    %190 = vector.broadcast %cst_102 : f32 to vector<2x128xf32>
    %191 = arith.addf %190, %189 : vector<2x128xf32>
    %192 = arith.divf %190, %191 : vector<2x128xf32>
    %193 = vector.extract_strided_slice %186 {offsets = [0, 128], sizes = [2, 128], strides = [1, 1]} : vector<2x512xf32> to vector<2x128xf32>
    %194 = arith.negf %193 : vector<2x128xf32>
    %195 = math.exp %194 : vector<2x128xf32>
    %cst_103 = arith.constant 1.000000e+00 : f32
    %196 = vector.broadcast %cst_103 : f32 to vector<2x128xf32>
    %197 = arith.addf %196, %195 : vector<2x128xf32>
    %198 = arith.divf %196, %197 : vector<2x128xf32>
    %199 = vector.extract_strided_slice %186 {offsets = [0, 256], sizes = [2, 128], strides = [1, 1]} : vector<2x512xf32> to vector<2x128xf32>
    %200 = math.tanh %199 : vector<2x128xf32>
    %201 = vector.extract_strided_slice %186 {offsets = [0, 384], sizes = [2, 128], strides = [1, 1]} : vector<2x512xf32> to vector<2x128xf32>
    %202 = arith.negf %201 : vector<2x128xf32>
    %203 = math.exp %202 : vector<2x128xf32>
    %cst_104 = arith.constant 1.000000e+00 : f32
    %204 = vector.broadcast %cst_104 : f32 to vector<2x128xf32>
    %205 = arith.addf %204, %203 : vector<2x128xf32>
    %206 = arith.divf %204, %205 : vector<2x128xf32>
    %207 = arith.mulf %198, %180 : vector<2x128xf32>
    %208 = arith.mulf %192, %200 : vector<2x128xf32>
    %209 = arith.addf %207, %208 : vector<2x128xf32>
    %210 = math.tanh %209 : vector<2x128xf32>
    %211 = arith.mulf %206, %210 : vector<2x128xf32>
    %c0_105 = arith.constant 0 : index
    %c0_106 = arith.constant 0 : index
    %c0_107 = arith.constant 0 : index
    %212 = vector.load %arg9[%c0_105, %c0_106, %c0_107] : memref<2x2x128xf32, #tpu.memory_space<vmem>>, vector<1x2x128xf32>
    %213 = vector.shape_cast %212 : vector<1x2x128xf32> to vector<2x128xf32>
    %214 = vector.shape_cast %211 : vector<2x128xf32> to vector<1x2x128xf32>
    tpu.vector_store %arg9[%c0_105, %c0_106, %c0_107], %214 {strides = array<i32>} : memref<2x2x128xf32, #tpu.memory_space<vmem>>, vector<1x2x128xf32>,
    %c0_108 = arith.constant 0 : index
    %c0_109 = arith.constant 0 : index
    %c0_110 = arith.constant 0 : index
    %215 = vector.load %arg10[%c0_108, %c0_109, %c0_110] : memref<2x2x128xf32, #tpu.memory_space<vmem>>, vector<1x2x128xf32>
    %216 = vector.shape_cast %215 : vector<1x2x128xf32> to vector<2x128xf32>
    %217 = vector.shape_cast %209 : vector<2x128xf32> to vector<1x2x128xf32>
    tpu.vector_store %arg10[%c0_108, %c0_109, %c0_110], %217 {strides = array<i32>} : memref<2x2x128xf32, #tpu.memory_space<vmem>>, vector<1x2x128xf32>,
    %c1_111 = arith.constant 1 : index
    %c0_112 = arith.constant 0 : index
    %c0_113 = arith.constant 0 : index
    %218 = vector.load %arg9[%c1_111, %c0_112, %c0_113] : memref<2x2x128xf32, #tpu.memory_space<vmem>>, vector<1x2x128xf32>
    %219 = vector.shape_cast %218 : vector<1x2x128xf32> to vector<2x128xf32>
    %c1_114 = arith.constant 1 : index
    %c0_115 = arith.constant 0 : index
    %c0_116 = arith.constant 0 : index
    %220 = vector.load %arg10[%c1_114, %c0_115, %c0_116] : memref<2x2x128xf32, #tpu.memory_space<vmem>>, vector<1x2x128xf32>
    %221 = vector.shape_cast %220 : vector<1x2x128xf32> to vector<2x128xf32>
    %222 = tpu.concatenate %211, %219 in 1 : vector<2x128xf32>, vector<2x128xf32> -> vector<2x256xf32>
    %c0_117 = arith.constant 0 : index
    %c0_118 = arith.constant 0 : index
    %223 = vector.load %arg4[%c0_117, %c0_118] : memref<256x512xf32, #tpu.memory_space<vmem>>, vector<256x512xf32>
    %cst_119 = arith.constant dense<0.000000e+00> : vector<2x512xf32>
    %224 = tpu.matmul %222, %223, %cst_119 {dimension_numbers = #tpu.dot_dimension_numbers<[1], [0], [0], [1], [0, 0, 1, 1], [], []>} : vector<2x256xf32>, vector<256x512xf32>, vector<2x512xf32> -> vector<2x512xf32>
    %c0_120 = arith.constant 0 : index
    %c0_121 = arith.constant 0 : index
    %225 = vector.load %arg5[%c0_120, %c0_121] : memref<1x512xf32, #tpu.memory_space<vmem>>, vector<1x512xf32>
    %226 = vector.broadcast %225 : vector<1x512xf32> to vector<2x512xf32>
    %227 = arith.addf %224, %226 : vector<2x512xf32>
    %228 = vector.extract_strided_slice %227 {offsets = [0, 0], sizes = [2, 128], strides = [1, 1]} : vector<2x512xf32> to vector<2x128xf32>
    %229 = arith.negf %228 : vector<2x128xf32>
    %230 = math.exp %229 : vector<2x128xf32>
    %cst_122 = arith.constant 1.000000e+00 : f32
    %231 = vector.broadcast %cst_122 : f32 to vector<2x128xf32>
    %232 = arith.addf %231, %230 : vector<2x128xf32>
    %233 = arith.divf %231, %232 : vector<2x128xf32>
    %234 = vector.extract_strided_slice %227 {offsets = [0, 128], sizes = [2, 128], strides = [1, 1]} : vector<2x512xf32> to vector<2x128xf32>
    %235 = arith.negf %234 : vector<2x128xf32>
    %236 = math.exp %235 : vector<2x128xf32>
    %cst_123 = arith.constant 1.000000e+00 : f32
    %237 = vector.broadcast %cst_123 : f32 to vector<2x128xf32>
    %238 = arith.addf %237, %236 : vector<2x128xf32>
    %239 = arith.divf %237, %238 : vector<2x128xf32>
    %240 = vector.extract_strided_slice %227 {offsets = [0, 256], sizes = [2, 128], strides = [1, 1]} : vector<2x512xf32> to vector<2x128xf32>
    %241 = math.tanh %240 : vector<2x128xf32>
    %242 = vector.extract_strided_slice %227 {offsets = [0, 384], sizes = [2, 128], strides = [1, 1]} : vector<2x512xf32> to vector<2x128xf32>
    %243 = arith.negf %242 : vector<2x128xf32>
    %244 = math.exp %243 : vector<2x128xf32>
    %cst_124 = arith.constant 1.000000e+00 : f32
    %245 = vector.broadcast %cst_124 : f32 to vector<2x128xf32>
    %246 = arith.addf %245, %244 : vector<2x128xf32>
    %247 = arith.divf %245, %246 : vector<2x128xf32>
    %248 = arith.mulf %239, %221 : vector<2x128xf32>
    %249 = arith.mulf %233, %241 : vector<2x128xf32>
    %250 = arith.addf %248, %249 : vector<2x128xf32>
    %251 = math.tanh %250 : vector<2x128xf32>
    %252 = arith.mulf %247, %251 : vector<2x128xf32>
    %c1_125 = arith.constant 1 : index
    %c0_126 = arith.constant 0 : index
    %c0_127 = arith.constant 0 : index
    %253 = vector.load %arg9[%c1_125, %c0_126, %c0_127] : memref<2x2x128xf32, #tpu.memory_space<vmem>>, vector<1x2x128xf32>
    %254 = vector.shape_cast %253 : vector<1x2x128xf32> to vector<2x128xf32>
    %255 = vector.shape_cast %252 : vector<2x128xf32> to vector<1x2x128xf32>
    tpu.vector_store %arg9[%c1_125, %c0_126, %c0_127], %255 {strides = array<i32>} : memref<2x2x128xf32, #tpu.memory_space<vmem>>, vector<1x2x128xf32>,
    %c1_128 = arith.constant 1 : index
    %c0_129 = arith.constant 0 : index
    %c0_130 = arith.constant 0 : index
    %256 = vector.load %arg10[%c1_128, %c0_129, %c0_130] : memref<2x2x128xf32, #tpu.memory_space<vmem>>, vector<1x2x128xf32>
    %257 = vector.shape_cast %256 : vector<1x2x128xf32> to vector<2x128xf32>
    %258 = vector.shape_cast %250 : vector<2x128xf32> to vector<1x2x128xf32>
    tpu.vector_store %arg10[%c1_128, %c0_129, %c0_130], %258 {strides = array<i32>} : memref<2x2x128xf32, #tpu.memory_space<vmem>>, vector<1x2x128xf32>,
    %c3_i32 = arith.constant 3 : i32
    %259 = arith.index_cast %c3_i32 : i32 to index
    %c0_131 = arith.constant 0 : index
    %c0_132 = arith.constant 0 : index
    %260 = vector.load %arg1[%259, %c0_131, %c0_132] : memref<8x2x128xf32, #tpu.memory_space<vmem>>, vector<1x2x128xf32>
    %261 = vector.shape_cast %260 : vector<1x2x128xf32> to vector<2x128xf32>
    %c0_133 = arith.constant 0 : index
    %c0_134 = arith.constant 0 : index
    %c0_135 = arith.constant 0 : index
    %262 = vector.load %arg9[%c0_133, %c0_134, %c0_135] : memref<2x2x128xf32, #tpu.memory_space<vmem>>, vector<1x2x128xf32>
    %263 = vector.shape_cast %262 : vector<1x2x128xf32> to vector<2x128xf32>
    %c0_136 = arith.constant 0 : index
    %c0_137 = arith.constant 0 : index
    %c0_138 = arith.constant 0 : index
    %264 = vector.load %arg10[%c0_136, %c0_137, %c0_138] : memref<2x2x128xf32, #tpu.memory_space<vmem>>, vector<1x2x128xf32>
    %265 = vector.shape_cast %264 : vector<1x2x128xf32> to vector<2x128xf32>
    %266 = tpu.concatenate %261, %263 in 1 : vector<2x128xf32>, vector<2x128xf32> -> vector<2x256xf32>
    %c0_139 = arith.constant 0 : index
    %c0_140 = arith.constant 0 : index
    %267 = vector.load %arg2[%c0_139, %c0_140] : memref<256x512xf32, #tpu.memory_space<vmem>>, vector<256x512xf32>
    %cst_141 = arith.constant dense<0.000000e+00> : vector<2x512xf32>
    %268 = tpu.matmul %266, %267, %cst_141 {dimension_numbers = #tpu.dot_dimension_numbers<[1], [0], [0], [1], [0, 0, 1, 1], [], []>} : vector<2x256xf32>, vector<256x512xf32>, vector<2x512xf32> -> vector<2x512xf32>
    %c0_142 = arith.constant 0 : index
    %c0_143 = arith.constant 0 : index
    %269 = vector.load %arg3[%c0_142, %c0_143] : memref<1x512xf32, #tpu.memory_space<vmem>>, vector<1x512xf32>
    %270 = vector.broadcast %269 : vector<1x512xf32> to vector<2x512xf32>
    %271 = arith.addf %268, %270 : vector<2x512xf32>
    %272 = vector.extract_strided_slice %271 {offsets = [0, 0], sizes = [2, 128], strides = [1, 1]} : vector<2x512xf32> to vector<2x128xf32>
    %273 = arith.negf %272 : vector<2x128xf32>
    %274 = math.exp %273 : vector<2x128xf32>
    %cst_144 = arith.constant 1.000000e+00 : f32
    %275 = vector.broadcast %cst_144 : f32 to vector<2x128xf32>
    %276 = arith.addf %275, %274 : vector<2x128xf32>
    %277 = arith.divf %275, %276 : vector<2x128xf32>
    %278 = vector.extract_strided_slice %271 {offsets = [0, 128], sizes = [2, 128], strides = [1, 1]} : vector<2x512xf32> to vector<2x128xf32>
    %279 = arith.negf %278 : vector<2x128xf32>
    %280 = math.exp %279 : vector<2x128xf32>
    %cst_145 = arith.constant 1.000000e+00 : f32
    %281 = vector.broadcast %cst_145 : f32 to vector<2x128xf32>
    %282 = arith.addf %281, %280 : vector<2x128xf32>
    %283 = arith.divf %281, %282 : vector<2x128xf32>
    %284 = vector.extract_strided_slice %271 {offsets = [0, 256], sizes = [2, 128], strides = [1, 1]} : vector<2x512xf32> to vector<2x128xf32>
    %285 = math.tanh %284 : vector<2x128xf32>
    %286 = vector.extract_strided_slice %271 {offsets = [0, 384], sizes = [2, 128], strides = [1, 1]} : vector<2x512xf32> to vector<2x128xf32>
    %287 = arith.negf %286 : vector<2x128xf32>
    %288 = math.exp %287 : vector<2x128xf32>
    %cst_146 = arith.constant 1.000000e+00 : f32
    %289 = vector.broadcast %cst_146 : f32 to vector<2x128xf32>
    %290 = arith.addf %289, %288 : vector<2x128xf32>
    %291 = arith.divf %289, %290 : vector<2x128xf32>
    %292 = arith.mulf %283, %265 : vector<2x128xf32>
    %293 = arith.mulf %277, %285 : vector<2x128xf32>
    %294 = arith.addf %292, %293 : vector<2x128xf32>
    %295 = math.tanh %294 : vector<2x128xf32>
    %296 = arith.mulf %291, %295 : vector<2x128xf32>
    %c0_147 = arith.constant 0 : index
    %c0_148 = arith.constant 0 : index
    %c0_149 = arith.constant 0 : index
    %297 = vector.load %arg9[%c0_147, %c0_148, %c0_149] : memref<2x2x128xf32, #tpu.memory_space<vmem>>, vector<1x2x128xf32>
    %298 = vector.shape_cast %297 : vector<1x2x128xf32> to vector<2x128xf32>
    %299 = vector.shape_cast %296 : vector<2x128xf32> to vector<1x2x128xf32>
    tpu.vector_store %arg9[%c0_147, %c0_148, %c0_149], %299 {strides = array<i32>} : memref<2x2x128xf32, #tpu.memory_space<vmem>>, vector<1x2x128xf32>,
    %c0_150 = arith.constant 0 : index
    %c0_151 = arith.constant 0 : index
    %c0_152 = arith.constant 0 : index
    %300 = vector.load %arg10[%c0_150, %c0_151, %c0_152] : memref<2x2x128xf32, #tpu.memory_space<vmem>>, vector<1x2x128xf32>
    %301 = vector.shape_cast %300 : vector<1x2x128xf32> to vector<2x128xf32>
    %302 = vector.shape_cast %294 : vector<2x128xf32> to vector<1x2x128xf32>
    tpu.vector_store %arg10[%c0_150, %c0_151, %c0_152], %302 {strides = array<i32>} : memref<2x2x128xf32, #tpu.memory_space<vmem>>, vector<1x2x128xf32>,
    %c1_153 = arith.constant 1 : index
    %c0_154 = arith.constant 0 : index
    %c0_155 = arith.constant 0 : index
    %303 = vector.load %arg9[%c1_153, %c0_154, %c0_155] : memref<2x2x128xf32, #tpu.memory_space<vmem>>, vector<1x2x128xf32>
    %304 = vector.shape_cast %303 : vector<1x2x128xf32> to vector<2x128xf32>
    %c1_156 = arith.constant 1 : index
    %c0_157 = arith.constant 0 : index
    %c0_158 = arith.constant 0 : index
    %305 = vector.load %arg10[%c1_156, %c0_157, %c0_158] : memref<2x2x128xf32, #tpu.memory_space<vmem>>, vector<1x2x128xf32>
    %306 = vector.shape_cast %305 : vector<1x2x128xf32> to vector<2x128xf32>
    %307 = tpu.concatenate %296, %304 in 1 : vector<2x128xf32>, vector<2x128xf32> -> vector<2x256xf32>
    %c0_159 = arith.constant 0 : index
    %c0_160 = arith.constant 0 : index
    %308 = vector.load %arg4[%c0_159, %c0_160] : memref<256x512xf32, #tpu.memory_space<vmem>>, vector<256x512xf32>
    %cst_161 = arith.constant dense<0.000000e+00> : vector<2x512xf32>
    %309 = tpu.matmul %307, %308, %cst_161 {dimension_numbers = #tpu.dot_dimension_numbers<[1], [0], [0], [1], [0, 0, 1, 1], [], []>} : vector<2x256xf32>, vector<256x512xf32>, vector<2x512xf32> -> vector<2x512xf32>
    %c0_162 = arith.constant 0 : index
    %c0_163 = arith.constant 0 : index
    %310 = vector.load %arg5[%c0_162, %c0_163] : memref<1x512xf32, #tpu.memory_space<vmem>>, vector<1x512xf32>
    %311 = vector.broadcast %310 : vector<1x512xf32> to vector<2x512xf32>
    %312 = arith.addf %309, %311 : vector<2x512xf32>
    %313 = vector.extract_strided_slice %312 {offsets = [0, 0], sizes = [2, 128], strides = [1, 1]} : vector<2x512xf32> to vector<2x128xf32>
    %314 = arith.negf %313 : vector<2x128xf32>
    %315 = math.exp %314 : vector<2x128xf32>
    %cst_164 = arith.constant 1.000000e+00 : f32
    %316 = vector.broadcast %cst_164 : f32 to vector<2x128xf32>
    %317 = arith.addf %316, %315 : vector<2x128xf32>
    %318 = arith.divf %316, %317 : vector<2x128xf32>
    %319 = vector.extract_strided_slice %312 {offsets = [0, 128], sizes = [2, 128], strides = [1, 1]} : vector<2x512xf32> to vector<2x128xf32>
    %320 = arith.negf %319 : vector<2x128xf32>
    %321 = math.exp %320 : vector<2x128xf32>
    %cst_165 = arith.constant 1.000000e+00 : f32
    %322 = vector.broadcast %cst_165 : f32 to vector<2x128xf32>
    %323 = arith.addf %322, %321 : vector<2x128xf32>
    %324 = arith.divf %322, %323 : vector<2x128xf32>
    %325 = vector.extract_strided_slice %312 {offsets = [0, 256], sizes = [2, 128], strides = [1, 1]} : vector<2x512xf32> to vector<2x128xf32>
    %326 = math.tanh %325 : vector<2x128xf32>
    %327 = vector.extract_strided_slice %312 {offsets = [0, 384], sizes = [2, 128], strides = [1, 1]} : vector<2x512xf32> to vector<2x128xf32>
    %328 = arith.negf %327 : vector<2x128xf32>
    %329 = math.exp %328 : vector<2x128xf32>
    %cst_166 = arith.constant 1.000000e+00 : f32
    %330 = vector.broadcast %cst_166 : f32 to vector<2x128xf32>
    %331 = arith.addf %330, %329 : vector<2x128xf32>
    %332 = arith.divf %330, %331 : vector<2x128xf32>
    %333 = arith.mulf %324, %306 : vector<2x128xf32>
    %334 = arith.mulf %318, %326 : vector<2x128xf32>
    %335 = arith.addf %333, %334 : vector<2x128xf32>
    %336 = math.tanh %335 : vector<2x128xf32>
    %337 = arith.mulf %332, %336 : vector<2x128xf32>
    %c1_167 = arith.constant 1 : index
    %c0_168 = arith.constant 0 : index
    %c0_169 = arith.constant 0 : index
    %338 = vector.load %arg9[%c1_167, %c0_168, %c0_169] : memref<2x2x128xf32, #tpu.memory_space<vmem>>, vector<1x2x128xf32>
    %339 = vector.shape_cast %338 : vector<1x2x128xf32> to vector<2x128xf32>
    %340 = vector.shape_cast %337 : vector<2x128xf32> to vector<1x2x128xf32>
    tpu.vector_store %arg9[%c1_167, %c0_168, %c0_169], %340 {strides = array<i32>} : memref<2x2x128xf32, #tpu.memory_space<vmem>>, vector<1x2x128xf32>,
    %c1_170 = arith.constant 1 : index
    %c0_171 = arith.constant 0 : index
    %c0_172 = arith.constant 0 : index
    %341 = vector.load %arg10[%c1_170, %c0_171, %c0_172] : memref<2x2x128xf32, #tpu.memory_space<vmem>>, vector<1x2x128xf32>
    %342 = vector.shape_cast %341 : vector<1x2x128xf32> to vector<2x128xf32>
    %343 = vector.shape_cast %335 : vector<2x128xf32> to vector<1x2x128xf32>
    tpu.vector_store %arg10[%c1_170, %c0_171, %c0_172], %343 {strides = array<i32>} : memref<2x2x128xf32, #tpu.memory_space<vmem>>, vector<1x2x128xf32>,
    %c4_i32 = arith.constant 4 : i32
    %344 = arith.index_cast %c4_i32 : i32 to index
    %c0_173 = arith.constant 0 : index
    %c0_174 = arith.constant 0 : index
    %345 = vector.load %arg1[%344, %c0_173, %c0_174] : memref<8x2x128xf32, #tpu.memory_space<vmem>>, vector<1x2x128xf32>
    %346 = vector.shape_cast %345 : vector<1x2x128xf32> to vector<2x128xf32>
    %c0_175 = arith.constant 0 : index
    %c0_176 = arith.constant 0 : index
    %c0_177 = arith.constant 0 : index
    %347 = vector.load %arg9[%c0_175, %c0_176, %c0_177] : memref<2x2x128xf32, #tpu.memory_space<vmem>>, vector<1x2x128xf32>
    %348 = vector.shape_cast %347 : vector<1x2x128xf32> to vector<2x128xf32>
    %c0_178 = arith.constant 0 : index
    %c0_179 = arith.constant 0 : index
    %c0_180 = arith.constant 0 : index
    %349 = vector.load %arg10[%c0_178, %c0_179, %c0_180] : memref<2x2x128xf32, #tpu.memory_space<vmem>>, vector<1x2x128xf32>
    %350 = vector.shape_cast %349 : vector<1x2x128xf32> to vector<2x128xf32>
    %351 = tpu.concatenate %346, %348 in 1 : vector<2x128xf32>, vector<2x128xf32> -> vector<2x256xf32>
    %c0_181 = arith.constant 0 : index
    %c0_182 = arith.constant 0 : index
    %352 = vector.load %arg2[%c0_181, %c0_182] : memref<256x512xf32, #tpu.memory_space<vmem>>, vector<256x512xf32>
    %cst_183 = arith.constant dense<0.000000e+00> : vector<2x512xf32>
    %353 = tpu.matmul %351, %352, %cst_183 {dimension_numbers = #tpu.dot_dimension_numbers<[1], [0], [0], [1], [0, 0, 1, 1], [], []>} : vector<2x256xf32>, vector<256x512xf32>, vector<2x512xf32> -> vector<2x512xf32>
    %c0_184 = arith.constant 0 : index
    %c0_185 = arith.constant 0 : index
    %354 = vector.load %arg3[%c0_184, %c0_185] : memref<1x512xf32, #tpu.memory_space<vmem>>, vector<1x512xf32>
    %355 = vector.broadcast %354 : vector<1x512xf32> to vector<2x512xf32>
    %356 = arith.addf %353, %355 : vector<2x512xf32>
    %357 = vector.extract_strided_slice %356 {offsets = [0, 0], sizes = [2, 128], strides = [1, 1]} : vector<2x512xf32> to vector<2x128xf32>
    %358 = arith.negf %357 : vector<2x128xf32>
    %359 = math.exp %358 : vector<2x128xf32>
    %cst_186 = arith.constant 1.000000e+00 : f32
    %360 = vector.broadcast %cst_186 : f32 to vector<2x128xf32>
    %361 = arith.addf %360, %359 : vector<2x128xf32>
    %362 = arith.divf %360, %361 : vector<2x128xf32>
    %363 = vector.extract_strided_slice %356 {offsets = [0, 128], sizes = [2, 128], strides = [1, 1]} : vector<2x512xf32> to vector<2x128xf32>
    %364 = arith.negf %363 : vector<2x128xf32>
    %365 = math.exp %364 : vector<2x128xf32>
    %cst_187 = arith.constant 1.000000e+00 : f32
    %366 = vector.broadcast %cst_187 : f32 to vector<2x128xf32>
    %367 = arith.addf %366, %365 : vector<2x128xf32>
    %368 = arith.divf %366, %367 : vector<2x128xf32>
    %369 = vector.extract_strided_slice %356 {offsets = [0, 256], sizes = [2, 128], strides = [1, 1]} : vector<2x512xf32> to vector<2x128xf32>
    %370 = math.tanh %369 : vector<2x128xf32>
    %371 = vector.extract_strided_slice %356 {offsets = [0, 384], sizes = [2, 128], strides = [1, 1]} : vector<2x512xf32> to vector<2x128xf32>
    %372 = arith.negf %371 : vector<2x128xf32>
    %373 = math.exp %372 : vector<2x128xf32>
    %cst_188 = arith.constant 1.000000e+00 : f32
    %374 = vector.broadcast %cst_188 : f32 to vector<2x128xf32>
    %375 = arith.addf %374, %373 : vector<2x128xf32>
    %376 = arith.divf %374, %375 : vector<2x128xf32>
    %377 = arith.mulf %368, %350 : vector<2x128xf32>
    %378 = arith.mulf %362, %370 : vector<2x128xf32>
    %379 = arith.addf %377, %378 : vector<2x128xf32>
    %380 = math.tanh %379 : vector<2x128xf32>
    %381 = arith.mulf %376, %380 : vector<2x128xf32>
    %c0_189 = arith.constant 0 : index
    %c0_190 = arith.constant 0 : index
    %c0_191 = arith.constant 0 : index
    %382 = vector.load %arg9[%c0_189, %c0_190, %c0_191] : memref<2x2x128xf32, #tpu.memory_space<vmem>>, vector<1x2x128xf32>
    %383 = vector.shape_cast %382 : vector<1x2x128xf32> to vector<2x128xf32>
    %384 = vector.shape_cast %381 : vector<2x128xf32> to vector<1x2x128xf32>
    tpu.vector_store %arg9[%c0_189, %c0_190, %c0_191], %384 {strides = array<i32>} : memref<2x2x128xf32, #tpu.memory_space<vmem>>, vector<1x2x128xf32>,
    %c0_192 = arith.constant 0 : index
    %c0_193 = arith.constant 0 : index
    %c0_194 = arith.constant 0 : index
    %385 = vector.load %arg10[%c0_192, %c0_193, %c0_194] : memref<2x2x128xf32, #tpu.memory_space<vmem>>, vector<1x2x128xf32>
    %386 = vector.shape_cast %385 : vector<1x2x128xf32> to vector<2x128xf32>
    %387 = vector.shape_cast %379 : vector<2x128xf32> to vector<1x2x128xf32>
    tpu.vector_store %arg10[%c0_192, %c0_193, %c0_194], %387 {strides = array<i32>} : memref<2x2x128xf32, #tpu.memory_space<vmem>>, vector<1x2x128xf32>,
    %c1_195 = arith.constant 1 : index
    %c0_196 = arith.constant 0 : index
    %c0_197 = arith.constant 0 : index
    %388 = vector.load %arg9[%c1_195, %c0_196, %c0_197] : memref<2x2x128xf32, #tpu.memory_space<vmem>>, vector<1x2x128xf32>
    %389 = vector.shape_cast %388 : vector<1x2x128xf32> to vector<2x128xf32>
    %c1_198 = arith.constant 1 : index
    %c0_199 = arith.constant 0 : index
    %c0_200 = arith.constant 0 : index
    %390 = vector.load %arg10[%c1_198, %c0_199, %c0_200] : memref<2x2x128xf32, #tpu.memory_space<vmem>>, vector<1x2x128xf32>
    %391 = vector.shape_cast %390 : vector<1x2x128xf32> to vector<2x128xf32>
    %392 = tpu.concatenate %381, %389 in 1 : vector<2x128xf32>, vector<2x128xf32> -> vector<2x256xf32>
    %c0_201 = arith.constant 0 : index
    %c0_202 = arith.constant 0 : index
    %393 = vector.load %arg4[%c0_201, %c0_202] : memref<256x512xf32, #tpu.memory_space<vmem>>, vector<256x512xf32>
    %cst_203 = arith.constant dense<0.000000e+00> : vector<2x512xf32>
    %394 = tpu.matmul %392, %393, %cst_203 {dimension_numbers = #tpu.dot_dimension_numbers<[1], [0], [0], [1], [0, 0, 1, 1], [], []>} : vector<2x256xf32>, vector<256x512xf32>, vector<2x512xf32> -> vector<2x512xf32>
    %c0_204 = arith.constant 0 : index
    %c0_205 = arith.constant 0 : index
    %395 = vector.load %arg5[%c0_204, %c0_205] : memref<1x512xf32, #tpu.memory_space<vmem>>, vector<1x512xf32>
    %396 = vector.broadcast %395 : vector<1x512xf32> to vector<2x512xf32>
    %397 = arith.addf %394, %396 : vector<2x512xf32>
    %398 = vector.extract_strided_slice %397 {offsets = [0, 0], sizes = [2, 128], strides = [1, 1]} : vector<2x512xf32> to vector<2x128xf32>
    %399 = arith.negf %398 : vector<2x128xf32>
    %400 = math.exp %399 : vector<2x128xf32>
    %cst_206 = arith.constant 1.000000e+00 : f32
    %401 = vector.broadcast %cst_206 : f32 to vector<2x128xf32>
    %402 = arith.addf %401, %400 : vector<2x128xf32>
    %403 = arith.divf %401, %402 : vector<2x128xf32>
    %404 = vector.extract_strided_slice %397 {offsets = [0, 128], sizes = [2, 128], strides = [1, 1]} : vector<2x512xf32> to vector<2x128xf32>
    %405 = arith.negf %404 : vector<2x128xf32>
    %406 = math.exp %405 : vector<2x128xf32>
    %cst_207 = arith.constant 1.000000e+00 : f32
    %407 = vector.broadcast %cst_207 : f32 to vector<2x128xf32>
    %408 = arith.addf %407, %406 : vector<2x128xf32>
    %409 = arith.divf %407, %408 : vector<2x128xf32>
    %410 = vector.extract_strided_slice %397 {offsets = [0, 256], sizes = [2, 128], strides = [1, 1]} : vector<2x512xf32> to vector<2x128xf32>
    %411 = math.tanh %410 : vector<2x128xf32>
    %412 = vector.extract_strided_slice %397 {offsets = [0, 384], sizes = [2, 128], strides = [1, 1]} : vector<2x512xf32> to vector<2x128xf32>
    %413 = arith.negf %412 : vector<2x128xf32>
    %414 = math.exp %413 : vector<2x128xf32>
    %cst_208 = arith.constant 1.000000e+00 : f32
    %415 = vector.broadcast %cst_208 : f32 to vector<2x128xf32>
    %416 = arith.addf %415, %414 : vector<2x128xf32>
    %417 = arith.divf %415, %416 : vector<2x128xf32>
    %418 = arith.mulf %409, %391 : vector<2x128xf32>
    %419 = arith.mulf %403, %411 : vector<2x128xf32>
    %420 = arith.addf %418, %419 : vector<2x128xf32>
    %421 = math.tanh %420 : vector<2x128xf32>
    %422 = arith.mulf %417, %421 : vector<2x128xf32>
    %c1_209 = arith.constant 1 : index
    %c0_210 = arith.constant 0 : index
    %c0_211 = arith.constant 0 : index
    %423 = vector.load %arg9[%c1_209, %c0_210, %c0_211] : memref<2x2x128xf32, #tpu.memory_space<vmem>>, vector<1x2x128xf32>
    %424 = vector.shape_cast %423 : vector<1x2x128xf32> to vector<2x128xf32>
    %425 = vector.shape_cast %422 : vector<2x128xf32> to vector<1x2x128xf32>
    tpu.vector_store %arg9[%c1_209, %c0_210, %c0_211], %425 {strides = array<i32>} : memref<2x2x128xf32, #tpu.memory_space<vmem>>, vector<1x2x128xf32>,
    %c1_212 = arith.constant 1 : index
    %c0_213 = arith.constant 0 : index
    %c0_214 = arith.constant 0 : index
    %426 = vector.load %arg10[%c1_212, %c0_213, %c0_214] : memref<2x2x128xf32, #tpu.memory_space<vmem>>, vector<1x2x128xf32>
    %427 = vector.shape_cast %426 : vector<1x2x128xf32> to vector<2x128xf32>
    %428 = vector.shape_cast %420 : vector<2x128xf32> to vector<1x2x128xf32>
    tpu.vector_store %arg10[%c1_212, %c0_213, %c0_214], %428 {strides = array<i32>} : memref<2x2x128xf32, #tpu.memory_space<vmem>>, vector<1x2x128xf32>,
    %c5_i32 = arith.constant 5 : i32
    %429 = arith.index_cast %c5_i32 : i32 to index
    %c0_215 = arith.constant 0 : index
    %c0_216 = arith.constant 0 : index
    %430 = vector.load %arg1[%429, %c0_215, %c0_216] : memref<8x2x128xf32, #tpu.memory_space<vmem>>, vector<1x2x128xf32>
    %431 = vector.shape_cast %430 : vector<1x2x128xf32> to vector<2x128xf32>
    %c0_217 = arith.constant 0 : index
    %c0_218 = arith.constant 0 : index
    %c0_219 = arith.constant 0 : index
    %432 = vector.load %arg9[%c0_217, %c0_218, %c0_219] : memref<2x2x128xf32, #tpu.memory_space<vmem>>, vector<1x2x128xf32>
    %433 = vector.shape_cast %432 : vector<1x2x128xf32> to vector<2x128xf32>
    %c0_220 = arith.constant 0 : index
    %c0_221 = arith.constant 0 : index
    %c0_222 = arith.constant 0 : index
    %434 = vector.load %arg10[%c0_220, %c0_221, %c0_222] : memref<2x2x128xf32, #tpu.memory_space<vmem>>, vector<1x2x128xf32>
    %435 = vector.shape_cast %434 : vector<1x2x128xf32> to vector<2x128xf32>
    %436 = tpu.concatenate %431, %433 in 1 : vector<2x128xf32>, vector<2x128xf32> -> vector<2x256xf32>
    %c0_223 = arith.constant 0 : index
    %c0_224 = arith.constant 0 : index
    %437 = vector.load %arg2[%c0_223, %c0_224] : memref<256x512xf32, #tpu.memory_space<vmem>>, vector<256x512xf32>
    %cst_225 = arith.constant dense<0.000000e+00> : vector<2x512xf32>
    %438 = tpu.matmul %436, %437, %cst_225 {dimension_numbers = #tpu.dot_dimension_numbers<[1], [0], [0], [1], [0, 0, 1, 1], [], []>} : vector<2x256xf32>, vector<256x512xf32>, vector<2x512xf32> -> vector<2x512xf32>
    %c0_226 = arith.constant 0 : index
    %c0_227 = arith.constant 0 : index
    %439 = vector.load %arg3[%c0_226, %c0_227] : memref<1x512xf32, #tpu.memory_space<vmem>>, vector<1x512xf32>
    %440 = vector.broadcast %439 : vector<1x512xf32> to vector<2x512xf32>
    %441 = arith.addf %438, %440 : vector<2x512xf32>
    %442 = vector.extract_strided_slice %441 {offsets = [0, 0], sizes = [2, 128], strides = [1, 1]} : vector<2x512xf32> to vector<2x128xf32>
    %443 = arith.negf %442 : vector<2x128xf32>
    %444 = math.exp %443 : vector<2x128xf32>
    %cst_228 = arith.constant 1.000000e+00 : f32
    %445 = vector.broadcast %cst_228 : f32 to vector<2x128xf32>
    %446 = arith.addf %445, %444 : vector<2x128xf32>
    %447 = arith.divf %445, %446 : vector<2x128xf32>
    %448 = vector.extract_strided_slice %441 {offsets = [0, 128], sizes = [2, 128], strides = [1, 1]} : vector<2x512xf32> to vector<2x128xf32>
    %449 = arith.negf %448 : vector<2x128xf32>
    %450 = math.exp %449 : vector<2x128xf32>
    %cst_229 = arith.constant 1.000000e+00 : f32
    %451 = vector.broadcast %cst_229 : f32 to vector<2x128xf32>
    %452 = arith.addf %451, %450 : vector<2x128xf32>
    %453 = arith.divf %451, %452 : vector<2x128xf32>
    %454 = vector.extract_strided_slice %441 {offsets = [0, 256], sizes = [2, 128], strides = [1, 1]} : vector<2x512xf32> to vector<2x128xf32>
    %455 = math.tanh %454 : vector<2x128xf32>
    %456 = vector.extract_strided_slice %441 {offsets = [0, 384], sizes = [2, 128], strides = [1, 1]} : vector<2x512xf32> to vector<2x128xf32>
    %457 = arith.negf %456 : vector<2x128xf32>
    %458 = math.exp %457 : vector<2x128xf32>
    %cst_230 = arith.constant 1.000000e+00 : f32
    %459 = vector.broadcast %cst_230 : f32 to vector<2x128xf32>
    %460 = arith.addf %459, %458 : vector<2x128xf32>
    %461 = arith.divf %459, %460 : vector<2x128xf32>
    %462 = arith.mulf %453, %435 : vector<2x128xf32>
    %463 = arith.mulf %447, %455 : vector<2x128xf32>
    %464 = arith.addf %462, %463 : vector<2x128xf32>
    %465 = math.tanh %464 : vector<2x128xf32>
    %466 = arith.mulf %461, %465 : vector<2x128xf32>
    %c0_231 = arith.constant 0 : index
    %c0_232 = arith.constant 0 : index
    %c0_233 = arith.constant 0 : index
    %467 = vector.load %arg9[%c0_231, %c0_232, %c0_233] : memref<2x2x128xf32, #tpu.memory_space<vmem>>, vector<1x2x128xf32>
    %468 = vector.shape_cast %467 : vector<1x2x128xf32> to vector<2x128xf32>
    %469 = vector.shape_cast %466 : vector<2x128xf32> to vector<1x2x128xf32>
    tpu.vector_store %arg9[%c0_231, %c0_232, %c0_233], %469 {strides = array<i32>} : memref<2x2x128xf32, #tpu.memory_space<vmem>>, vector<1x2x128xf32>,
    %c0_234 = arith.constant 0 : index
    %c0_235 = arith.constant 0 : index
    %c0_236 = arith.constant 0 : index
    %470 = vector.load %arg10[%c0_234, %c0_235, %c0_236] : memref<2x2x128xf32, #tpu.memory_space<vmem>>, vector<1x2x128xf32>
    %471 = vector.shape_cast %470 : vector<1x2x128xf32> to vector<2x128xf32>
    %472 = vector.shape_cast %464 : vector<2x128xf32> to vector<1x2x128xf32>
    tpu.vector_store %arg10[%c0_234, %c0_235, %c0_236], %472 {strides = array<i32>} : memref<2x2x128xf32, #tpu.memory_space<vmem>>, vector<1x2x128xf32>,
    %c1_237 = arith.constant 1 : index
    %c0_238 = arith.constant 0 : index
    %c0_239 = arith.constant 0 : index
    %473 = vector.load %arg9[%c1_237, %c0_238, %c0_239] : memref<2x2x128xf32, #tpu.memory_space<vmem>>, vector<1x2x128xf32>
    %474 = vector.shape_cast %473 : vector<1x2x128xf32> to vector<2x128xf32>
    %c1_240 = arith.constant 1 : index
    %c0_241 = arith.constant 0 : index
    %c0_242 = arith.constant 0 : index
    %475 = vector.load %arg10[%c1_240, %c0_241, %c0_242] : memref<2x2x128xf32, #tpu.memory_space<vmem>>, vector<1x2x128xf32>
    %476 = vector.shape_cast %475 : vector<1x2x128xf32> to vector<2x128xf32>
    %477 = tpu.concatenate %466, %474 in 1 : vector<2x128xf32>, vector<2x128xf32> -> vector<2x256xf32>
    %c0_243 = arith.constant 0 : index
    %c0_244 = arith.constant 0 : index
    %478 = vector.load %arg4[%c0_243, %c0_244] : memref<256x512xf32, #tpu.memory_space<vmem>>, vector<256x512xf32>
    %cst_245 = arith.constant dense<0.000000e+00> : vector<2x512xf32>
    %479 = tpu.matmul %477, %478, %cst_245 {dimension_numbers = #tpu.dot_dimension_numbers<[1], [0], [0], [1], [0, 0, 1, 1], [], []>} : vector<2x256xf32>, vector<256x512xf32>, vector<2x512xf32> -> vector<2x512xf32>
    %c0_246 = arith.constant 0 : index
    %c0_247 = arith.constant 0 : index
    %480 = vector.load %arg5[%c0_246, %c0_247] : memref<1x512xf32, #tpu.memory_space<vmem>>, vector<1x512xf32>
    %481 = vector.broadcast %480 : vector<1x512xf32> to vector<2x512xf32>
    %482 = arith.addf %479, %481 : vector<2x512xf32>
    %483 = vector.extract_strided_slice %482 {offsets = [0, 0], sizes = [2, 128], strides = [1, 1]} : vector<2x512xf32> to vector<2x128xf32>
    %484 = arith.negf %483 : vector<2x128xf32>
    %485 = math.exp %484 : vector<2x128xf32>
    %cst_248 = arith.constant 1.000000e+00 : f32
    %486 = vector.broadcast %cst_248 : f32 to vector<2x128xf32>
    %487 = arith.addf %486, %485 : vector<2x128xf32>
    %488 = arith.divf %486, %487 : vector<2x128xf32>
    %489 = vector.extract_strided_slice %482 {offsets = [0, 128], sizes = [2, 128], strides = [1, 1]} : vector<2x512xf32> to vector<2x128xf32>
    %490 = arith.negf %489 : vector<2x128xf32>
    %491 = math.exp %490 : vector<2x128xf32>
    %cst_249 = arith.constant 1.000000e+00 : f32
    %492 = vector.broadcast %cst_249 : f32 to vector<2x128xf32>
    %493 = arith.addf %492, %491 : vector<2x128xf32>
    %494 = arith.divf %492, %493 : vector<2x128xf32>
    %495 = vector.extract_strided_slice %482 {offsets = [0, 256], sizes = [2, 128], strides = [1, 1]} : vector<2x512xf32> to vector<2x128xf32>
    %496 = math.tanh %495 : vector<2x128xf32>
    %497 = vector.extract_strided_slice %482 {offsets = [0, 384], sizes = [2, 128], strides = [1, 1]} : vector<2x512xf32> to vector<2x128xf32>
    %498 = arith.negf %497 : vector<2x128xf32>
    %499 = math.exp %498 : vector<2x128xf32>
    %cst_250 = arith.constant 1.000000e+00 : f32
    %500 = vector.broadcast %cst_250 : f32 to vector<2x128xf32>
    %501 = arith.addf %500, %499 : vector<2x128xf32>
    %502 = arith.divf %500, %501 : vector<2x128xf32>
    %503 = arith.mulf %494, %476 : vector<2x128xf32>
    %504 = arith.mulf %488, %496 : vector<2x128xf32>
    %505 = arith.addf %503, %504 : vector<2x128xf32>
    %506 = math.tanh %505 : vector<2x128xf32>
    %507 = arith.mulf %502, %506 : vector<2x128xf32>
    %c1_251 = arith.constant 1 : index
    %c0_252 = arith.constant 0 : index
    %c0_253 = arith.constant 0 : index
    %508 = vector.load %arg9[%c1_251, %c0_252, %c0_253] : memref<2x2x128xf32, #tpu.memory_space<vmem>>, vector<1x2x128xf32>
    %509 = vector.shape_cast %508 : vector<1x2x128xf32> to vector<2x128xf32>
    %510 = vector.shape_cast %507 : vector<2x128xf32> to vector<1x2x128xf32>
    tpu.vector_store %arg9[%c1_251, %c0_252, %c0_253], %510 {strides = array<i32>} : memref<2x2x128xf32, #tpu.memory_space<vmem>>, vector<1x2x128xf32>,
    %c1_254 = arith.constant 1 : index
    %c0_255 = arith.constant 0 : index
    %c0_256 = arith.constant 0 : index
    %511 = vector.load %arg10[%c1_254, %c0_255, %c0_256] : memref<2x2x128xf32, #tpu.memory_space<vmem>>, vector<1x2x128xf32>
    %512 = vector.shape_cast %511 : vector<1x2x128xf32> to vector<2x128xf32>
    %513 = vector.shape_cast %505 : vector<2x128xf32> to vector<1x2x128xf32>
    tpu.vector_store %arg10[%c1_254, %c0_255, %c0_256], %513 {strides = array<i32>} : memref<2x2x128xf32, #tpu.memory_space<vmem>>, vector<1x2x128xf32>,
    %c6_i32 = arith.constant 6 : i32
    %514 = arith.index_cast %c6_i32 : i32 to index
    %c0_257 = arith.constant 0 : index
    %c0_258 = arith.constant 0 : index
    %515 = vector.load %arg1[%514, %c0_257, %c0_258] : memref<8x2x128xf32, #tpu.memory_space<vmem>>, vector<1x2x128xf32>
    %516 = vector.shape_cast %515 : vector<1x2x128xf32> to vector<2x128xf32>
    %c0_259 = arith.constant 0 : index
    %c0_260 = arith.constant 0 : index
    %c0_261 = arith.constant 0 : index
    %517 = vector.load %arg9[%c0_259, %c0_260, %c0_261] : memref<2x2x128xf32, #tpu.memory_space<vmem>>, vector<1x2x128xf32>
    %518 = vector.shape_cast %517 : vector<1x2x128xf32> to vector<2x128xf32>
    %c0_262 = arith.constant 0 : index
    %c0_263 = arith.constant 0 : index
    %c0_264 = arith.constant 0 : index
    %519 = vector.load %arg10[%c0_262, %c0_263, %c0_264] : memref<2x2x128xf32, #tpu.memory_space<vmem>>, vector<1x2x128xf32>
    %520 = vector.shape_cast %519 : vector<1x2x128xf32> to vector<2x128xf32>
    %521 = tpu.concatenate %516, %518 in 1 : vector<2x128xf32>, vector<2x128xf32> -> vector<2x256xf32>
    %c0_265 = arith.constant 0 : index
    %c0_266 = arith.constant 0 : index
    %522 = vector.load %arg2[%c0_265, %c0_266] : memref<256x512xf32, #tpu.memory_space<vmem>>, vector<256x512xf32>
    %cst_267 = arith.constant dense<0.000000e+00> : vector<2x512xf32>
    %523 = tpu.matmul %521, %522, %cst_267 {dimension_numbers = #tpu.dot_dimension_numbers<[1], [0], [0], [1], [0, 0, 1, 1], [], []>} : vector<2x256xf32>, vector<256x512xf32>, vector<2x512xf32> -> vector<2x512xf32>
    %c0_268 = arith.constant 0 : index
    %c0_269 = arith.constant 0 : index
    %524 = vector.load %arg3[%c0_268, %c0_269] : memref<1x512xf32, #tpu.memory_space<vmem>>, vector<1x512xf32>
    %525 = vector.broadcast %524 : vector<1x512xf32> to vector<2x512xf32>
    %526 = arith.addf %523, %525 : vector<2x512xf32>
    %527 = vector.extract_strided_slice %526 {offsets = [0, 0], sizes = [2, 128], strides = [1, 1]} : vector<2x512xf32> to vector<2x128xf32>
    %528 = arith.negf %527 : vector<2x128xf32>
    %529 = math.exp %528 : vector<2x128xf32>
    %cst_270 = arith.constant 1.000000e+00 : f32
    %530 = vector.broadcast %cst_270 : f32 to vector<2x128xf32>
    %531 = arith.addf %530, %529 : vector<2x128xf32>
    %532 = arith.divf %530, %531 : vector<2x128xf32>
    %533 = vector.extract_strided_slice %526 {offsets = [0, 128], sizes = [2, 128], strides = [1, 1]} : vector<2x512xf32> to vector<2x128xf32>
    %534 = arith.negf %533 : vector<2x128xf32>
    %535 = math.exp %534 : vector<2x128xf32>
    %cst_271 = arith.constant 1.000000e+00 : f32
    %536 = vector.broadcast %cst_271 : f32 to vector<2x128xf32>
    %537 = arith.addf %536, %535 : vector<2x128xf32>
    %538 = arith.divf %536, %537 : vector<2x128xf32>
    %539 = vector.extract_strided_slice %526 {offsets = [0, 256], sizes = [2, 128], strides = [1, 1]} : vector<2x512xf32> to vector<2x128xf32>
    %540 = math.tanh %539 : vector<2x128xf32>
    %541 = vector.extract_strided_slice %526 {offsets = [0, 384], sizes = [2, 128], strides = [1, 1]} : vector<2x512xf32> to vector<2x128xf32>
    %542 = arith.negf %541 : vector<2x128xf32>
    %543 = math.exp %542 : vector<2x128xf32>
    %cst_272 = arith.constant 1.000000e+00 : f32
    %544 = vector.broadcast %cst_272 : f32 to vector<2x128xf32>
    %545 = arith.addf %544, %543 : vector<2x128xf32>
    %546 = arith.divf %544, %545 : vector<2x128xf32>
    %547 = arith.mulf %538, %520 : vector<2x128xf32>
    %548 = arith.mulf %532, %540 : vector<2x128xf32>
    %549 = arith.addf %547, %548 : vector<2x128xf32>
    %550 = math.tanh %549 : vector<2x128xf32>
    %551 = arith.mulf %546, %550 : vector<2x128xf32>
    %c0_273 = arith.constant 0 : index
    %c0_274 = arith.constant 0 : index
    %c0_275 = arith.constant 0 : index
    %552 = vector.load %arg9[%c0_273, %c0_274, %c0_275] : memref<2x2x128xf32, #tpu.memory_space<vmem>>, vector<1x2x128xf32>
    %553 = vector.shape_cast %552 : vector<1x2x128xf32> to vector<2x128xf32>
    %554 = vector.shape_cast %551 : vector<2x128xf32> to vector<1x2x128xf32>
    tpu.vector_store %arg9[%c0_273, %c0_274, %c0_275], %554 {strides = array<i32>} : memref<2x2x128xf32, #tpu.memory_space<vmem>>, vector<1x2x128xf32>,
    %c0_276 = arith.constant 0 : index
    %c0_277 = arith.constant 0 : index
    %c0_278 = arith.constant 0 : index
    %555 = vector.load %arg10[%c0_276, %c0_277, %c0_278] : memref<2x2x128xf32, #tpu.memory_space<vmem>>, vector<1x2x128xf32>
    %556 = vector.shape_cast %555 : vector<1x2x128xf32> to vector<2x128xf32>
    %557 = vector.shape_cast %549 : vector<2x128xf32> to vector<1x2x128xf32>
    tpu.vector_store %arg10[%c0_276, %c0_277, %c0_278], %557 {strides = array<i32>} : memref<2x2x128xf32, #tpu.memory_space<vmem>>, vector<1x2x128xf32>,
    %c1_279 = arith.constant 1 : index
    %c0_280 = arith.constant 0 : index
    %c0_281 = arith.constant 0 : index
    %558 = vector.load %arg9[%c1_279, %c0_280, %c0_281] : memref<2x2x128xf32, #tpu.memory_space<vmem>>, vector<1x2x128xf32>
    %559 = vector.shape_cast %558 : vector<1x2x128xf32> to vector<2x128xf32>
    %c1_282 = arith.constant 1 : index
    %c0_283 = arith.constant 0 : index
    %c0_284 = arith.constant 0 : index
    %560 = vector.load %arg10[%c1_282, %c0_283, %c0_284] : memref<2x2x128xf32, #tpu.memory_space<vmem>>, vector<1x2x128xf32>
    %561 = vector.shape_cast %560 : vector<1x2x128xf32> to vector<2x128xf32>
    %562 = tpu.concatenate %551, %559 in 1 : vector<2x128xf32>, vector<2x128xf32> -> vector<2x256xf32>
    %c0_285 = arith.constant 0 : index
    %c0_286 = arith.constant 0 : index
    %563 = vector.load %arg4[%c0_285, %c0_286] : memref<256x512xf32, #tpu.memory_space<vmem>>, vector<256x512xf32>
    %cst_287 = arith.constant dense<0.000000e+00> : vector<2x512xf32>
    %564 = tpu.matmul %562, %563, %cst_287 {dimension_numbers = #tpu.dot_dimension_numbers<[1], [0], [0], [1], [0, 0, 1, 1], [], []>} : vector<2x256xf32>, vector<256x512xf32>, vector<2x512xf32> -> vector<2x512xf32>
    %c0_288 = arith.constant 0 : index
    %c0_289 = arith.constant 0 : index
    %565 = vector.load %arg5[%c0_288, %c0_289] : memref<1x512xf32, #tpu.memory_space<vmem>>, vector<1x512xf32>
    %566 = vector.broadcast %565 : vector<1x512xf32> to vector<2x512xf32>
    %567 = arith.addf %564, %566 : vector<2x512xf32>
    %568 = vector.extract_strided_slice %567 {offsets = [0, 0], sizes = [2, 128], strides = [1, 1]} : vector<2x512xf32> to vector<2x128xf32>
    %569 = arith.negf %568 : vector<2x128xf32>
    %570 = math.exp %569 : vector<2x128xf32>
    %cst_290 = arith.constant 1.000000e+00 : f32
    %571 = vector.broadcast %cst_290 : f32 to vector<2x128xf32>
    %572 = arith.addf %571, %570 : vector<2x128xf32>
    %573 = arith.divf %571, %572 : vector<2x128xf32>
    %574 = vector.extract_strided_slice %567 {offsets = [0, 128], sizes = [2, 128], strides = [1, 1]} : vector<2x512xf32> to vector<2x128xf32>
    %575 = arith.negf %574 : vector<2x128xf32>
    %576 = math.exp %575 : vector<2x128xf32>
    %cst_291 = arith.constant 1.000000e+00 : f32
    %577 = vector.broadcast %cst_291 : f32 to vector<2x128xf32>
    %578 = arith.addf %577, %576 : vector<2x128xf32>
    %579 = arith.divf %577, %578 : vector<2x128xf32>
    %580 = vector.extract_strided_slice %567 {offsets = [0, 256], sizes = [2, 128], strides = [1, 1]} : vector<2x512xf32> to vector<2x128xf32>
    %581 = math.tanh %580 : vector<2x128xf32>
    %582 = vector.extract_strided_slice %567 {offsets = [0, 384], sizes = [2, 128], strides = [1, 1]} : vector<2x512xf32> to vector<2x128xf32>
    %583 = arith.negf %582 : vector<2x128xf32>
    %584 = math.exp %583 : vector<2x128xf32>
    %cst_292 = arith.constant 1.000000e+00 : f32
    %585 = vector.broadcast %cst_292 : f32 to vector<2x128xf32>
    %586 = arith.addf %585, %584 : vector<2x128xf32>
    %587 = arith.divf %585, %586 : vector<2x128xf32>
    %588 = arith.mulf %579, %561 : vector<2x128xf32>
    %589 = arith.mulf %573, %581 : vector<2x128xf32>
    %590 = arith.addf %588, %589 : vector<2x128xf32>
    %591 = math.tanh %590 : vector<2x128xf32>
    %592 = arith.mulf %587, %591 : vector<2x128xf32>
    %c1_293 = arith.constant 1 : index
    %c0_294 = arith.constant 0 : index
    %c0_295 = arith.constant 0 : index
    %593 = vector.load %arg9[%c1_293, %c0_294, %c0_295] : memref<2x2x128xf32, #tpu.memory_space<vmem>>, vector<1x2x128xf32>
    %594 = vector.shape_cast %593 : vector<1x2x128xf32> to vector<2x128xf32>
    %595 = vector.shape_cast %592 : vector<2x128xf32> to vector<1x2x128xf32>
    tpu.vector_store %arg9[%c1_293, %c0_294, %c0_295], %595 {strides = array<i32>} : memref<2x2x128xf32, #tpu.memory_space<vmem>>, vector<1x2x128xf32>,
    %c1_296 = arith.constant 1 : index
    %c0_297 = arith.constant 0 : index
    %c0_298 = arith.constant 0 : index
    %596 = vector.load %arg10[%c1_296, %c0_297, %c0_298] : memref<2x2x128xf32, #tpu.memory_space<vmem>>, vector<1x2x128xf32>
    %597 = vector.shape_cast %596 : vector<1x2x128xf32> to vector<2x128xf32>
    %598 = vector.shape_cast %590 : vector<2x128xf32> to vector<1x2x128xf32>
    tpu.vector_store %arg10[%c1_296, %c0_297, %c0_298], %598 {strides = array<i32>} : memref<2x2x128xf32, #tpu.memory_space<vmem>>, vector<1x2x128xf32>,
    %c7_i32 = arith.constant 7 : i32
    %599 = arith.index_cast %c7_i32 : i32 to index
    %c0_299 = arith.constant 0 : index
    %c0_300 = arith.constant 0 : index
    %600 = vector.load %arg1[%599, %c0_299, %c0_300] : memref<8x2x128xf32, #tpu.memory_space<vmem>>, vector<1x2x128xf32>
    %601 = vector.shape_cast %600 : vector<1x2x128xf32> to vector<2x128xf32>
    %c0_301 = arith.constant 0 : index
    %c0_302 = arith.constant 0 : index
    %c0_303 = arith.constant 0 : index
    %602 = vector.load %arg9[%c0_301, %c0_302, %c0_303] : memref<2x2x128xf32, #tpu.memory_space<vmem>>, vector<1x2x128xf32>
    %603 = vector.shape_cast %602 : vector<1x2x128xf32> to vector<2x128xf32>
    %c0_304 = arith.constant 0 : index
    %c0_305 = arith.constant 0 : index
    %c0_306 = arith.constant 0 : index
    %604 = vector.load %arg10[%c0_304, %c0_305, %c0_306] : memref<2x2x128xf32, #tpu.memory_space<vmem>>, vector<1x2x128xf32>
    %605 = vector.shape_cast %604 : vector<1x2x128xf32> to vector<2x128xf32>
    %606 = tpu.concatenate %601, %603 in 1 : vector<2x128xf32>, vector<2x128xf32> -> vector<2x256xf32>
    %c0_307 = arith.constant 0 : index
    %c0_308 = arith.constant 0 : index
    %607 = vector.load %arg2[%c0_307, %c0_308] : memref<256x512xf32, #tpu.memory_space<vmem>>, vector<256x512xf32>
    %cst_309 = arith.constant dense<0.000000e+00> : vector<2x512xf32>
    %608 = tpu.matmul %606, %607, %cst_309 {dimension_numbers = #tpu.dot_dimension_numbers<[1], [0], [0], [1], [0, 0, 1, 1], [], []>} : vector<2x256xf32>, vector<256x512xf32>, vector<2x512xf32> -> vector<2x512xf32>
    %c0_310 = arith.constant 0 : index
    %c0_311 = arith.constant 0 : index
    %609 = vector.load %arg3[%c0_310, %c0_311] : memref<1x512xf32, #tpu.memory_space<vmem>>, vector<1x512xf32>
    %610 = vector.broadcast %609 : vector<1x512xf32> to vector<2x512xf32>
    %611 = arith.addf %608, %610 : vector<2x512xf32>
    %612 = vector.extract_strided_slice %611 {offsets = [0, 0], sizes = [2, 128], strides = [1, 1]} : vector<2x512xf32> to vector<2x128xf32>
    %613 = arith.negf %612 : vector<2x128xf32>
    %614 = math.exp %613 : vector<2x128xf32>
    %cst_312 = arith.constant 1.000000e+00 : f32
    %615 = vector.broadcast %cst_312 : f32 to vector<2x128xf32>
    %616 = arith.addf %615, %614 : vector<2x128xf32>
    %617 = arith.divf %615, %616 : vector<2x128xf32>
    %618 = vector.extract_strided_slice %611 {offsets = [0, 128], sizes = [2, 128], strides = [1, 1]} : vector<2x512xf32> to vector<2x128xf32>
    %619 = arith.negf %618 : vector<2x128xf32>
    %620 = math.exp %619 : vector<2x128xf32>
    %cst_313 = arith.constant 1.000000e+00 : f32
    %621 = vector.broadcast %cst_313 : f32 to vector<2x128xf32>
    %622 = arith.addf %621, %620 : vector<2x128xf32>
    %623 = arith.divf %621, %622 : vector<2x128xf32>
    %624 = vector.extract_strided_slice %611 {offsets = [0, 256], sizes = [2, 128], strides = [1, 1]} : vector<2x512xf32> to vector<2x128xf32>
    %625 = math.tanh %624 : vector<2x128xf32>
    %626 = vector.extract_strided_slice %611 {offsets = [0, 384], sizes = [2, 128], strides = [1, 1]} : vector<2x512xf32> to vector<2x128xf32>
    %627 = arith.negf %626 : vector<2x128xf32>
    %628 = math.exp %627 : vector<2x128xf32>
    %cst_314 = arith.constant 1.000000e+00 : f32
    %629 = vector.broadcast %cst_314 : f32 to vector<2x128xf32>
    %630 = arith.addf %629, %628 : vector<2x128xf32>
    %631 = arith.divf %629, %630 : vector<2x128xf32>
    %632 = arith.mulf %623, %605 : vector<2x128xf32>
    %633 = arith.mulf %617, %625 : vector<2x128xf32>
    %634 = arith.addf %632, %633 : vector<2x128xf32>
    %635 = math.tanh %634 : vector<2x128xf32>
    %636 = arith.mulf %631, %635 : vector<2x128xf32>
    %c0_315 = arith.constant 0 : index
    %c0_316 = arith.constant 0 : index
    %c0_317 = arith.constant 0 : index
    %637 = vector.load %arg9[%c0_315, %c0_316, %c0_317] : memref<2x2x128xf32, #tpu.memory_space<vmem>>, vector<1x2x128xf32>
    %638 = vector.shape_cast %637 : vector<1x2x128xf32> to vector<2x128xf32>
    %639 = vector.shape_cast %636 : vector<2x128xf32> to vector<1x2x128xf32>
    tpu.vector_store %arg9[%c0_315, %c0_316, %c0_317], %639 {strides = array<i32>} : memref<2x2x128xf32, #tpu.memory_space<vmem>>, vector<1x2x128xf32>,
    %c0_318 = arith.constant 0 : index
    %c0_319 = arith.constant 0 : index
    %c0_320 = arith.constant 0 : index
    %640 = vector.load %arg10[%c0_318, %c0_319, %c0_320] : memref<2x2x128xf32, #tpu.memory_space<vmem>>, vector<1x2x128xf32>
    %641 = vector.shape_cast %640 : vector<1x2x128xf32> to vector<2x128xf32>
    %642 = vector.shape_cast %634 : vector<2x128xf32> to vector<1x2x128xf32>
    tpu.vector_store %arg10[%c0_318, %c0_319, %c0_320], %642 {strides = array<i32>} : memref<2x2x128xf32, #tpu.memory_space<vmem>>, vector<1x2x128xf32>,
    %c1_321 = arith.constant 1 : index
    %c0_322 = arith.constant 0 : index
    %c0_323 = arith.constant 0 : index
    %643 = vector.load %arg9[%c1_321, %c0_322, %c0_323] : memref<2x2x128xf32, #tpu.memory_space<vmem>>, vector<1x2x128xf32>
    %644 = vector.shape_cast %643 : vector<1x2x128xf32> to vector<2x128xf32>
    %c1_324 = arith.constant 1 : index
    %c0_325 = arith.constant 0 : index
    %c0_326 = arith.constant 0 : index
    %645 = vector.load %arg10[%c1_324, %c0_325, %c0_326] : memref<2x2x128xf32, #tpu.memory_space<vmem>>, vector<1x2x128xf32>
    %646 = vector.shape_cast %645 : vector<1x2x128xf32> to vector<2x128xf32>
    %647 = tpu.concatenate %636, %644 in 1 : vector<2x128xf32>, vector<2x128xf32> -> vector<2x256xf32>
    %c0_327 = arith.constant 0 : index
    %c0_328 = arith.constant 0 : index
    %648 = vector.load %arg4[%c0_327, %c0_328] : memref<256x512xf32, #tpu.memory_space<vmem>>, vector<256x512xf32>
    %cst_329 = arith.constant dense<0.000000e+00> : vector<2x512xf32>
    %649 = tpu.matmul %647, %648, %cst_329 {dimension_numbers = #tpu.dot_dimension_numbers<[1], [0], [0], [1], [0, 0, 1, 1], [], []>} : vector<2x256xf32>, vector<256x512xf32>, vector<2x512xf32> -> vector<2x512xf32>
    %c0_330 = arith.constant 0 : index
    %c0_331 = arith.constant 0 : index
    %650 = vector.load %arg5[%c0_330, %c0_331] : memref<1x512xf32, #tpu.memory_space<vmem>>, vector<1x512xf32>
    %651 = vector.broadcast %650 : vector<1x512xf32> to vector<2x512xf32>
    %652 = arith.addf %649, %651 : vector<2x512xf32>
    %653 = vector.extract_strided_slice %652 {offsets = [0, 0], sizes = [2, 128], strides = [1, 1]} : vector<2x512xf32> to vector<2x128xf32>
    %654 = arith.negf %653 : vector<2x128xf32>
    %655 = math.exp %654 : vector<2x128xf32>
    %cst_332 = arith.constant 1.000000e+00 : f32
    %656 = vector.broadcast %cst_332 : f32 to vector<2x128xf32>
    %657 = arith.addf %656, %655 : vector<2x128xf32>
    %658 = arith.divf %656, %657 : vector<2x128xf32>
    %659 = vector.extract_strided_slice %652 {offsets = [0, 128], sizes = [2, 128], strides = [1, 1]} : vector<2x512xf32> to vector<2x128xf32>
    %660 = arith.negf %659 : vector<2x128xf32>
    %661 = math.exp %660 : vector<2x128xf32>
    %cst_333 = arith.constant 1.000000e+00 : f32
    %662 = vector.broadcast %cst_333 : f32 to vector<2x128xf32>
    %663 = arith.addf %662, %661 : vector<2x128xf32>
    %664 = arith.divf %662, %663 : vector<2x128xf32>
    %665 = vector.extract_strided_slice %652 {offsets = [0, 256], sizes = [2, 128], strides = [1, 1]} : vector<2x512xf32> to vector<2x128xf32>
    %666 = math.tanh %665 : vector<2x128xf32>
    %667 = vector.extract_strided_slice %652 {offsets = [0, 384], sizes = [2, 128], strides = [1, 1]} : vector<2x512xf32> to vector<2x128xf32>
    %668 = arith.negf %667 : vector<2x128xf32>
    %669 = math.exp %668 : vector<2x128xf32>
    %cst_334 = arith.constant 1.000000e+00 : f32
    %670 = vector.broadcast %cst_334 : f32 to vector<2x128xf32>
    %671 = arith.addf %670, %669 : vector<2x128xf32>
    %672 = arith.divf %670, %671 : vector<2x128xf32>
    %673 = arith.mulf %664, %646 : vector<2x128xf32>
    %674 = arith.mulf %658, %666 : vector<2x128xf32>
    %675 = arith.addf %673, %674 : vector<2x128xf32>
    %676 = math.tanh %675 : vector<2x128xf32>
    %677 = arith.mulf %672, %676 : vector<2x128xf32>
    %c1_335 = arith.constant 1 : index
    %c0_336 = arith.constant 0 : index
    %c0_337 = arith.constant 0 : index
    %678 = vector.load %arg9[%c1_335, %c0_336, %c0_337] : memref<2x2x128xf32, #tpu.memory_space<vmem>>, vector<1x2x128xf32>
    %679 = vector.shape_cast %678 : vector<1x2x128xf32> to vector<2x128xf32>
    %680 = vector.shape_cast %677 : vector<2x128xf32> to vector<1x2x128xf32>
    tpu.vector_store %arg9[%c1_335, %c0_336, %c0_337], %680 {strides = array<i32>} : memref<2x2x128xf32, #tpu.memory_space<vmem>>, vector<1x2x128xf32>,
    %c1_338 = arith.constant 1 : index
    %c0_339 = arith.constant 0 : index
    %c0_340 = arith.constant 0 : index
    %681 = vector.load %arg10[%c1_338, %c0_339, %c0_340] : memref<2x2x128xf32, #tpu.memory_space<vmem>>, vector<1x2x128xf32>
    %682 = vector.shape_cast %681 : vector<1x2x128xf32> to vector<2x128xf32>
    %683 = vector.shape_cast %675 : vector<2x128xf32> to vector<1x2x128xf32>
    tpu.vector_store %arg10[%c1_338, %c0_339, %c0_340], %683 {strides = array<i32>} : memref<2x2x128xf32, #tpu.memory_space<vmem>>, vector<1x2x128xf32>,
    %c8_i32 = arith.constant 8 : i32
    %c1_341 = arith.constant 1 : index
    %c0_342 = arith.constant 0 : index
    %c0_343 = arith.constant 0 : index
    %684 = vector.load %arg9[%c1_341, %c0_342, %c0_343] : memref<2x2x128xf32, #tpu.memory_space<vmem>>, vector<1x2x128xf32>
    %685 = vector.shape_cast %684 : vector<1x2x128xf32> to vector<2x128xf32>
    %c0_344 = arith.constant 0 : index
    %c0_345 = arith.constant 0 : index
    %686 = vector.load %arg6[%c0_344, %c0_345] : memref<128x128xf32, #tpu.memory_space<vmem>>, vector<128x128xf32>
    %cst_346 = arith.constant dense<0.000000e+00> : vector<2x128xf32>
    %687 = tpu.matmul %685, %686, %cst_346 {dimension_numbers = #tpu.dot_dimension_numbers<[1], [0], [0], [1], [0, 0, 1, 1], [], []>} : vector<2x128xf32>, vector<128x128xf32>, vector<2x128xf32> -> vector<2x128xf32>
    %c0_347 = arith.constant 0 : index
    %c0_348 = arith.constant 0 : index
    %688 = vector.load %arg7[%c0_347, %c0_348] : memref<1x128xf32, #tpu.memory_space<vmem>>, vector<1x128xf32>
    %689 = vector.broadcast %688 : vector<1x128xf32> to vector<2x128xf32>
    %690 = arith.addf %687, %689 : vector<2x128xf32>
    %c0_349 = arith.constant 0 : index
    %c0_350 = arith.constant 0 : index
    %691 = vector.load %arg8[%c0_349, %c0_350] : memref<2x128xf32, #tpu.memory_space<vmem>>, vector<2x128xf32>
    tpu.vector_store %arg8[%c0_349, %c0_350], %690 {strides = array<i32>} : memref<2x128xf32, #tpu.memory_space<vmem>>, vector<2x128xf32>,
    return
  }
  func.func @transform_0(%arg0: i32) -> (i32, i32, i32) {
    %c0_i32 = arith.constant 0 : i32
    %c0_i32_0 = arith.constant 0 : i32
    %c0_i32_1 = arith.constant 0 : i32
    %c0_i32_2 = arith.constant 0 : i32
    return %c0_i32, %c0_i32_0, %c0_i32_1 : i32, i32, i32
  }
  func.func @transform_1(%arg0: i32) -> (i32, i32) {
    %c0_i32 = arith.constant 0 : i32
    %c0_i32_0 = arith.constant 0 : i32
    %c0_i32_1 = arith.constant 0 : i32
    return %c0_i32, %c0_i32_0 : i32, i32
  }
  func.func @transform_2(%arg0: i32) -> (i32, i32) {
    %c0_i32 = arith.constant 0 : i32
    %c0_i32_0 = arith.constant 0 : i32
    %c0_i32_1 = arith.constant 0 : i32
    return %c0_i32, %c0_i32_0 : i32, i32
  }
  func.func @transform_3(%arg0: i32) -> (i32, i32) {
    %c0_i32 = arith.constant 0 : i32
    %c0_i32_0 = arith.constant 0 : i32
    %c0_i32_1 = arith.constant 0 : i32
    return %c0_i32, %c0_i32_0 : i32, i32
  }
  func.func @transform_4(%arg0: i32) -> (i32, i32) {
    %c0_i32 = arith.constant 0 : i32
    %c0_i32_0 = arith.constant 0 : i32
    %c0_i32_1 = arith.constant 0 : i32
    return %c0_i32, %c0_i32_0 : i32, i32
  }
  func.func @transform_5(%arg0: i32) -> (i32, i32) {
    %c0_i32 = arith.constant 0 : i32
    %c0_i32_0 = arith.constant 0 : i32
    %c0_i32_1 = arith.constant 0 : i32
    return %c0_i32, %c0_i32_0 : i32, i32
  }
  func.func @transform_6(%arg0: i32) -> (i32, i32) {
    %c0_i32 = arith.constant 0 : i32
    %c0_i32_0 = arith.constant 0 : i32
    %c0_i32_1 = arith.constant 0 : i32
    return %c0_i32, %c0_i32_0 : i32, i32
  }
  func.func @transform_7(%arg0: i32) -> (i32, i32) {
    %c0_i32 = arith.constant 0 : i32
    %c0_i32_0 = arith.constant 0 : i32
    %c0_i32_1 = arith.constant 0 : i32
    return %c0_i32, %c0_i32_0 : i32, i32
  }
}

</mosaic_0001>

<llo_original>
// kernel: tpu_custom_call.1
$region0: #{tpu_custom_call.1}
  #allocation0 [shape = 'u32[]', space=smem, size = 0x4, offset = 0x4, fixed_abs, tag = 'smem constant byte address 0x4 - core index']
  #allocation1 [shape = 'u32[72,128]{1,0:T(1,128)}', space=vmem, size = 0x9000, scoped, tag = 'internal scratch']
  #allocation2 [shape = 'f32[2,2,128]{2,1,0:T(2,128)}', space=vmem, size = 0x800, scoped, tag = 'scratch operand']
  #allocation3 [shape = 'f32[2,2,128]{2,1,0:T(2,128)}', space=vmem, size = 0x800, scoped, tag = 'scratch operand']
  %s0 = inlined_call_operand.hbm [shape: f32[8,2,128], index: 0, kind: input, shape index: {}]
  %s1 = inlined_call_operand.hbm [shape: f32[256,512], index: 1, kind: input, shape index: {}]
  %s2 = inlined_call_operand.hbm [shape: f32[1,512], index: 2, kind: input, shape index: {}]
  %s3 = inlined_call_operand.hbm [shape: f32[256,512], index: 3, kind: input, shape index: {}]
  %s4 = inlined_call_operand.hbm [shape: f32[1,512], index: 4, kind: input, shape index: {}]
  %s5 = inlined_call_operand.hbm [shape: f32[128,128], index: 5, kind: input, shape index: {}]
  %s6 = inlined_call_operand.vmem [shape: f32[1,128], index: 6, kind: input, shape index: {}]
  %s7 = inlined_call_operand.hbm [shape: f32[2,128], index: 7, kind: output, shape index: {}]
  %s8 = sld [smem:[#allocation0]]
  $region62: #{tpu_custom_call.1} parent=0
    _
  %s10 = ssub.s32 1, %s8
  %s11 = scalar_select 0, %s10, %s8
  $region1: #{tpu_custom_call.1} parent=0
    #allocation4 [shape = 'u8[8192]{0}', space=vmem, size = 0x2000, scoped, tag = 'input window, operand 0, single buffered']
    #allocation5 [shape = 's32[1]{0}', space=sflag, size = 0x4, scoped, tag = 'scoped memory for tpu_custom_call.1']
    #allocation6 [shape = 's32[1]{0}', space=sflag, size = 0x4, scoped, tag = 'scoped memory for tpu_custom_call.1']
    #allocation7 [shape = 'u8[524288]{0}', space=vmem, size = 0x80000, scoped, tag = 'input window, operand 1, single buffered']
    #allocation8 [shape = 's32[1]{0}', space=sflag, size = 0x4, scoped, tag = 'scoped memory for tpu_custom_call.1']
    #allocation9 [shape = 'u8[2048]{0}', space=vmem, size = 0x800, scoped, tag = 'input window, operand 2, single buffered']
    #allocation10 [shape = 'u8[524288]{0}', space=vmem, size = 0x80000, scoped, tag = 'input window, operand 3, single buffered']
    #allocation11 [shape = 's32[1]{0}', space=sflag, size = 0x4, scoped, tag = 'scoped memory for tpu_custom_call.1']
    #allocation12 [shape = 'u8[2048]{0}', space=vmem, size = 0x800, scoped, tag = 'input window, operand 4, single buffered']
    #allocation13 [shape = 'u8[65536]{0}', space=vmem, size = 0x10000, scoped, tag = 'input window, operand 5, single buffered']
    #allocation14 [shape = 's32[1]{0}', space=sflag, size = 0x4, scoped, tag = 'scoped memory for tpu_custom_call.1']
    #allocation15 [shape = 'u8[1024]{0}', space=vmem, size = 0x400, scoped, tag = 'output window, operand 0, single buffered']
    %12 = vsyncpa [#allocation5], 0
    %13 = vsyncpa [#allocation8], 0
    %14 = vsyncpa [#allocation11], 0
    %15 = vsyncpa [#allocation14], 0
    %16 = vsyncpa [#allocation6], 0
    // Predicated region
    $region2: #{tpu_custom_call.1} parent=1 // pred_check
      _
    $region3: #{tpu_custom_call.1} parent=1 // pred_check_branch
      %18 = sbr.rel (0) target = $region5
    $region4: #{tpu_custom_call.1} parent=1 // pred_region
      %20 = vsyncadd [#allocation5], 0
      %s21 = sshll.u32 %s0, 4
      %s22 = int_to_ptr.hbm [resolvable:$true] %s21
      %s23 = sshll.u32 [#allocation4], 4
      %s24 = int_to_ptr.vmem [resolvable:$true] %s23
      %29 = dma.hbm_to_vmem [thread:$0]  %s22, 256, %s24, [#allocation5], 32, 32, 2
    $region5: #{tpu_custom_call.1} parent=1 // pred_fallthru
      _
    // Predicated region
    $region6: #{tpu_custom_call.1} parent=1 // pred_check
      _
    $region7: #{tpu_custom_call.1} parent=1 // pred_check_branch
      %31 = sbr.rel (0) target = $region9
    $region8: #{tpu_custom_call.1} parent=1 // pred_region
      %33 = vsyncadd [#allocation8], 0
      %s34 = sshll.u32 %s1, 4
      %s35 = int_to_ptr.hbm [resolvable:$true] %s34
      %s36 = sshll.u32 [#allocation7], 4
      %s37 = int_to_ptr.vmem [resolvable:$true] %s36
      %42 = dma.hbm_to_vmem [thread:$0]  %s35, 16384, %s37, [#allocation8], 512, 512, 32
    $region9: #{tpu_custom_call.1} parent=1 // pred_fallthru
      _
    // Predicated region
    $region10: #{tpu_custom_call.1} parent=1 // pred_check
      _
    $region11: #{tpu_custom_call.1} parent=1 // pred_check_branch
      %44 = sbr.rel (0) target = $region13
    $region12: #{tpu_custom_call.1} parent=1 // pred_region
      %46 = vsyncadd [#allocation8], 0
      %s48 = sshll.u32 %s2, 4
      %s49 = int_to_ptr.hbm [resolvable:$true] %s48
      %s50 = sshll.u32 [#allocation9], 4
      %s51 = int_to_ptr.vmem [resolvable:$true] %s50
      %53 = dma.hbm_to_vmem [thread:$0]  %s49, 64, %s51, [#allocation8]
    $region13: #{tpu_custom_call.1} parent=1 // pred_fallthru
      _
    // Predicated region
    $region14: #{tpu_custom_call.1} parent=1 // pred_check
      _
    $region15: #{tpu_custom_call.1} parent=1 // pred_check_branch
      %55 = sbr.rel (0) target = $region17
    $region16: #{tpu_custom_call.1} parent=1 // pred_region
      %57 = vsyncadd [#allocation11], 0
      %s58 = sshll.u32 %s3, 4
      %s59 = int_to_ptr.hbm [resolvable:$true] %s58
      %s60 = sshll.u32 [#allocation10], 4
      %s61 = int_to_ptr.vmem [resolvable:$true] %s60
      %66 = dma.hbm_to_vmem [thread:$0]  %s59, 16384, %s61, [#allocation11], 512, 512, 32
    $region17: #{tpu_custom_call.1} parent=1 // pred_fallthru
      _
    // Predicated region
    $region18: #{tpu_custom_call.1} parent=1 // pred_check
      _
    $region19: #{tpu_custom_call.1} parent=1 // pred_check_branch
      %68 = sbr.rel (0) target = $region21
    $region20: #{tpu_custom_call.1} parent=1 // pred_region
      %70 = vsyncadd [#allocation11], 0
      %s72 = sshll.u32 %s4, 4
      %s73 = int_to_ptr.hbm [resolvable:$true] %s72
      %s74 = sshll.u32 [#allocation12], 4
      %s75 = int_to_ptr.vmem [resolvable:$true] %s74
      %77 = dma.hbm_to_vmem [thread:$0]  %s73, 64, %s75, [#allocation11]
    $region21: #{tpu_custom_call.1} parent=1 // pred_fallthru
      _
    // Predicated region
    $region22: #{tpu_custom_call.1} parent=1 // pred_check
      _
    $region23: #{tpu_custom_call.1} parent=1 // pred_check_branch
      %79 = sbr.rel (0) target = $region25
    $region24: #{tpu_custom_call.1} parent=1 // pred_region
      %81 = vsyncadd [#allocation14], 0
      %s82 = sshll.u32 %s5, 4
      %s83 = int_to_ptr.hbm [resolvable:$true] %s82
      %s84 = sshll.u32 [#allocation13], 4
      %s85 = int_to_ptr.vmem [resolvable:$true] %s84
      %90 = dma.hbm_to_vmem [thread:$0]  %s83, 2048, %s85, [#allocation14], 128, 128, 8
    $region25: #{tpu_custom_call.1} parent=1 // pred_fallthru
      _
    // Predicated region
    $region26: #{tpu_custom_call.1} parent=1 // pred_check
      _
    $region27: #{tpu_custom_call.1} parent=1 // pred_check_branch
      %92 = sbr.rel (0) target = $region29
    $region28: #{tpu_custom_call.1} parent=1 // pred_region
      _
    $region29: #{tpu_custom_call.1} parent=1 // pred_fallthru
      _
    // Predicated region
    $region30: #{tpu_custom_call.1} parent=1 // pred_check
      _
    $region31: #{tpu_custom_call.1} parent=1 // pred_check_branch
      %94 = sbr.rel (0) target = $region33
    $region32: #{tpu_custom_call.1} parent=1 // pred_region
      %96 = dma.done [#allocation5], 256
    $region33: #{tpu_custom_call.1} parent=1 // pred_fallthru
      _
    // Predicated region
    $region34: #{tpu_custom_call.1} parent=1 // pred_check
      _
    $region35: #{tpu_custom_call.1} parent=1 // pred_check_branch
      %98 = sbr.rel (0) target = $region37
    $region36: #{tpu_custom_call.1} parent=1 // pred_region
      %100 = dma.done [#allocation8], 16384
    $region37: #{tpu_custom_call.1} parent=1 // pred_fallthru
      _
    // Predicated region
    $region38: #{tpu_custom_call.1} parent=1 // pred_check
      _
    $region39: #{tpu_custom_call.1} parent=1 // pred_check_branch
      %102 = sbr.rel (0) target = $region41
    $region40: #{tpu_custom_call.1} parent=1 // pred_region
      %104 = dma.done [#allocation8], 64
    $region41: #{tpu_custom_call.1} parent=1 // pred_fallthru
      _
    // Predicated region
    $region42: #{tpu_custom_call.1} parent=1 // pred_check
      _
    $region43: #{tpu_custom_call.1} parent=1 // pred_check_branch
      %106 = sbr.rel (0) target = $region45
    $region44: #{tpu_custom_call.1} parent=1 // pred_region
      %108 = dma.done [#allocation11], 16384
    $region45: #{tpu_custom_call.1} parent=1 // pred_fallthru
      _
    // Predicated region
    $region46: #{tpu_custom_call.1} parent=1 // pred_check
      _
    $region47: #{tpu_custom_call.1} parent=1 // pred_check_branch
      %110 = sbr.rel (0) target = $region49
    $region48: #{tpu_custom_call.1} parent=1 // pred_region
      %112 = dma.done [#allocation11], 64
    $region49: #{tpu_custom_call.1} parent=1 // pred_fallthru
      _
    // Predicated region
    $region50: #{tpu_custom_call.1} parent=1 // pred_check
      _
    $region51: #{tpu_custom_call.1} parent=1 // pred_check_branch
      %114 = sbr.rel (0) target = $region53
    $region52: #{tpu_custom_call.1} parent=1 // pred_region
      %116 = dma.done [#allocation14], 2048
    $region53: #{tpu_custom_call.1} parent=1 // pred_fallthru
      _
    %117 = vst [vmem:[#allocation2] sm:$0x3] 0.0
    %118 = vst [vmem:[#allocation2 + $0x2] sm:$0x3] 0.0
    %119 = vst [vmem:[#allocation3] sm:$0x3] 0.0
    %120 = vst [vmem:[#allocation3 + $0x2] sm:$0x3] 0.0
    %v121 = vld [vmem:[#allocation4] sm:$0x3]
    %v122 = vld [vmem:[#allocation2] sm:$0x3]
    %v123 = vld [vmem:[#allocation3] sm:$0x3]
    %v124 = vld [vmem:[#allocation7] sm:$0xff]
    %v125 = vld [vmem:[#allocation7 + $0x8] sm:$0xff]
    %v126 = vld [vmem:[#allocation7 + $0x10] sm:$0xff]
    %v127 = vld [vmem:[#allocation7 + $0x18] sm:$0xff]
    %v128 = vld [vmem:[#allocation7 + $0x20] sm:$0xff]
    %v129 = vld [vmem:[#allocation7 + $0x28] sm:$0xff]
    %v130 = vld [vmem:[#allocation7 + $0x30] sm:$0xff]
    %v131 = vld [vmem:[#allocation7 + $0x38] sm:$0xff]
    %v132 = vld [vmem:[#allocation7 + $0x40] sm:$0xff]
    %v133 = vld [vmem:[#allocation7 + $0x48] sm:$0xff]
    %v134 = vld [vmem:[#allocation7 + $0x50] sm:$0xff]
    %v135 = vld [vmem:[#allocation7 + $0x58] sm:$0xff]
    %v136 = vld [vmem:[#allocation7 + $0x60] sm:$0xff]
    %v137 = vld [vmem:[#allocation7 + $0x68] sm:$0xff]
    %v138 = vld [vmem:[#allocation7 + $0x70] sm:$0xff]
    %v139 = vld [vmem:[#allocation7 + $0x78] sm:$0xff]
    %v140 = vld [vmem:[#allocation7 + $0x80] sm:$0xff]
    %v141 = vld [vmem:[#allocation7 + $0x88] sm:$0xff]
    %v142 = vld [vmem:[#allocation7 + $0x90] sm:$0xff]
    %v143 = vld [vmem:[#allocation7 + $0x98] sm:$0xff]
    %v144 = vld [vmem:[#allocation7 + $0xa0] sm:$0xff]
    %v145 = vld [vmem:[#allocation7 + $0xa8] sm:$0xff]
    %v146 = vld [vmem:[#allocation7 + $0xb0] sm:$0xff]
    %v147 = vld [vmem:[#allocation7 + $0xb8] sm:$0xff]
    %v148 = vld [vmem:[#allocation7 + $0xc0] sm:$0xff]
    %v149 = vld [vmem:[#allocation7 + $0xc8] sm:$0xff]
    %v150 = vld [vmem:[#allocation7 + $0xd0] sm:$0xff]
    %v151 = vld [vmem:[#allocation7 + $0xd8] sm:$0xff]
    %v152 = vld [vmem:[#allocation7 + $0xe0] sm:$0xff]
    %v153 = vld [vmem:[#allocation7 + $0xe8] sm:$0xff]
    %v154 = vld [vmem:[#allocation7 + $0xf0] sm:$0xff]
    %v155 = vld [vmem:[#allocation7 + $0xf8] sm:$0xff]
    %v156 = vld [vmem:[#allocation7 + $0x100] sm:$0xff]
    %v157 = vld [vmem:[#allocation7 + $0x108] sm:$0xff]
    %v158 = vld [vmem:[#allocation7 + $0x110] sm:$0xff]
    %v159 = vld [vmem:[#allocation7 + $0x118] sm:$0xff]
    %v160 = vld [vmem:[#allocation7 + $0x120] sm:$0xff]
    %v161 = vld [vmem:[#allocation7 + $0x128] sm:$0xff]
    %v162 = vld [vmem:[#allocation7 + $0x130] sm:$0xff]
    %v163 = vld [vmem:[#allocation7 + $0x138] sm:$0xff]
    %v164 = vld [vmem:[#allocation7 + $0x140] sm:$0xff]
    %v165 = vld [vmem:[#allocation7 + $0x148] sm:$0xff]
    %v166 = vld [vmem:[#allocation7 + $0x150] sm:$0xff]
    %v167 = vld [vmem:[#allocation7 + $0x158] sm:$0xff]
    %v168 = vld [vmem:[#allocation7 + $0x160] sm:$0xff]
    %v169 = vld [vmem:[#allocation7 + $0x168] sm:$0xff]
    %v170 = vld [vmem:[#allocation7 + $0x170] sm:$0xff]
    %v171 = vld [vmem:[#allocation7 + $0x178] sm:$0xff]
    %v172 = vld [vmem:[#allocation7 + $0x180] sm:$0xff]
    %v173 = vld [vmem:[#allocation7 + $0x188] sm:$0xff]
    %v174 = vld [vmem:[#allocation7 + $0x190] sm:$0xff]
    %v175 = vld [vmem:[#allocation7 + $0x198] sm:$0xff]
    %v176 = vld [vmem:[#allocation7 + $0x1a0] sm:$0xff]
    %v177 = vld [vmem:[#allocation7 + $0x1a8] sm:$0xff]
    %v178 = vld [vmem:[#allocation7 + $0x1b0] sm:$0xff]
    %v179 = vld [vmem:[#allocation7 + $0x1b8] sm:$0xff]
    %v180 = vld [vmem:[#allocation7 + $0x1c0] sm:$0xff]
    %v181 = vld [vmem:[#allocation7 + $0x1c8] sm:$0xff]
    %v182 = vld [vmem:[#allocation7 + $0x1d0] sm:$0xff]
    %v183 = vld [vmem:[#allocation7 + $0x1d8] sm:$0xff]
    %v184 = vld [vmem:[#allocation7 + $0x1e0] sm:$0xff]
    %v185 = vld [vmem:[#allocation7 + $0x1e8] sm:$0xff]
    %v186 = vld [vmem:[#allocation7 + $0x1f0] sm:$0xff]
    %v187 = vld [vmem:[#allocation7 + $0x1f8] sm:$0xff]
    %v188 = vld [vmem:[#allocation7 + $0x200] sm:$0xff]
    %v189 = vld [vmem:[#allocation7 + $0x208] sm:$0xff]
    %v190 = vld [vmem:[#allocation7 + $0x210] sm:$0xff]
    %v191 = vld [vmem:[#allocation7 + $0x218] sm:$0xff]
    %v192 = vld [vmem:[#allocation7 + $0x220] sm:$0xff]
    %v193 = vld [vmem:[#allocation7 + $0x228] sm:$0xff]
    %v194 = vld [vmem:[#allocation7 + $0x230] sm:$0xff]
    %v195 = vld [vmem:[#allocation7 + $0x238] sm:$0xff]
    %v196 = vld [vmem:[#allocation7 + $0x240] sm:$0xff]
    %v197 = vld [vmem:[#allocation7 + $0x248] sm:$0xff]
    %v198 = vld [vmem:[#allocation7 + $0x250] sm:$0xff]
    %v199 = vld [vmem:[#allocation7 + $0x258] sm:$0xff]
    %v200 = vld [vmem:[#allocation7 + $0x260] sm:$0xff]
    %v201 = vld [vmem:[#allocation7 + $0x268] sm:$0xff]
    %v202 = vld [vmem:[#allocation7 + $0x270] sm:$0xff]
    %v203 = vld [vmem:[#allocation7 + $0x278] sm:$0xff]
    %v204 = vld [vmem:[#allocation7 + $0x280] sm:$0xff]
    %v205 = vld [vmem:[#allocation7 + $0x288] sm:$0xff]
    %v206 = vld [vmem:[#allocation7 + $0x290] sm:$0xff]
    %v207 = vld [vmem:[#allocation7 + $0x298] sm:$0xff]
    %v208 = vld [vmem:[#allocation7 + $0x2a0] sm:$0xff]
    %v209 = vld [vmem:[#allocation7 + $0x2a8] sm:$0xff]
    %v210 = vld [vmem:[#allocation7 + $0x2b0] sm:$0xff]
    %v211 = vld [vmem:[#allocation7 + $0x2b8] sm:$0xff]
    %v212 = vld [vmem:[#allocation7 + $0x2c0] sm:$0xff]
    %v213 = vld [vmem:[#allocation7 + $0x2c8] sm:$0xff]
    %v214 = vld [vmem:[#allocation7 + $0x2d0] sm:$0xff]
    %v215 = vld [vmem:[#allocation7 + $0x2d8] sm:$0xff]
    %v216 = vld [vmem:[#allocation7 + $0x2e0] sm:$0xff]
    %v217 = vld [vmem:[#allocation7 + $0x2e8] sm:$0xff]
    %v218 = vld [vmem:[#allocation7 + $0x2f0] sm:$0xff]
    %v219 = vld [vmem:[#allocation7 + $0x2f8] sm:$0xff]
    %v220 = vld [vmem:[#allocation7 + $0x300] sm:$0xff]
    %v221 = vld [vmem:[#allocation7 + $0x308] sm:$0xff]
    %v222 = vld [vmem:[#allocation7 + $0x310] sm:$0xff]
    %v223 = vld [vmem:[#allocation7 + $0x318] sm:$0xff]
    %v224 = vld [vmem:[#allocation7 + $0x320] sm:$0xff]
    %v225 = vld [vmem:[#allocation7 + $0x328] sm:$0xff]
    %v226 = vld [vmem:[#allocation7 + $0x330] sm:$0xff]
    %v227 = vld [vmem:[#allocation7 + $0x338] sm:$0xff]
    %v228 = vld [vmem:[#allocation7 + $0x340] sm:$0xff]
    %v229 = vld [vmem:[#allocation7 + $0x348] sm:$0xff]
    %v230 = vld [vmem:[#allocation7 + $0x350] sm:$0xff]
    %v231 = vld [vmem:[#allocation7 + $0x358] sm:$0xff]
    %v232 = vld [vmem:[#allocation7 + $0x360] sm:$0xff]
    %v233 = vld [vmem:[#allocation7 + $0x368] sm:$0xff]
    %v234 = vld [vmem:[#allocation7 + $0x370] sm:$0xff]
    %v235 = vld [vmem:[#allocation7 + $0x378] sm:$0xff]
    %v236 = vld [vmem:[#allocation7 + $0x380] sm:$0xff]
    %v237 = vld [vmem:[#allocation7 + $0x388] sm:$0xff]
    %v238 = vld [vmem:[#allocation7 + $0x390] sm:$0xff]
    %v239 = vld [vmem:[#allocation7 + $0x398] sm:$0xff]
    %v240 = vld [vmem:[#allocation7 + $0x3a0] sm:$0xff]
    %v241 = vld [vmem:[#allocation7 + $0x3a8] sm:$0xff]
    %v242 = vld [vmem:[#allocation7 + $0x3b0] sm:$0xff]
    %v243 = vld [vmem:[#allocation7 + $0x3b8] sm:$0xff]
    %v244 = vld [vmem:[#allocation7 + $0x3c0] sm:$0xff]
    %v245 = vld [vmem:[#allocation7 + $0x3c8] sm:$0xff]
    %v246 = vld [vmem:[#allocation7 + $0x3d0] sm:$0xff]
    %v247 = vld [vmem:[#allocation7 + $0x3d8] sm:$0xff]
    %v248 = vld [vmem:[#allocation7 + $0x3e0] sm:$0xff]
    %v249 = vld [vmem:[#allocation7 + $0x3e8] sm:$0xff]
    %v250 = vld [vmem:[#allocation7 + $0x3f0] sm:$0xff]
    %v251 = vld [vmem:[#allocation7 + $0x3f8] sm:$0xff]
    %v252 = vld [vmem:[#allocation9] sm:$0xf]
    %v254 = vperm.slane %v252, 0
    %v255 = vperm.slane %v252, 1
    %v256 = vperm.slane %v252, 2
    %v257 = vperm.slane %v252, 3
    %262 = vmatpush.msra.mxu0 %v184
    %263 = vmatpush.msra.mxu0 %v180
    %264 = vmatpush.msra.mxu0 %v176
    %265 = vmatpush.msra.mxu0 %v172
    %266 = vmatpush.msra.mxu0 %v168
    %267 = vmatpush.msra.mxu0 %v164
    %268 = vmatpush.msra.mxu0 %v160
    %269 = vmatpush.msra.mxu0 %v156
    %270 = vmatpush.msra.mxu0 %v152
    %271 = vmatpush.msra.mxu0 %v148
    %272 = vmatpush.msra.mxu0 %v144
    %273 = vmatpush.msra.mxu0 %v140
    %274 = vmatpush.msra.mxu0 %v136
    %275 = vmatpush.msra.mxu0 %v132
    %276 = vmatpush.msra.mxu0 %v128
    %277 = vmatpush.msra.mxu0 %v124
    %278 = vmatmul.f32.gmra.mxu0 %v121
    %v279 = vpop.f32.mrf.mxu0
    %v280 = vadd.f32 %v254, %v279
    %281 = vdwg.mxu0
    %282 = vmatpush.msra.mxu0 %v248
    %283 = vmatpush.msra.mxu0 %v244
    %284 = vmatpush.msra.mxu0 %v240
    %285 = vmatpush.msra.mxu0 %v236
    %286 = vmatpush.msra.mxu0 %v232
    %287 = vmatpush.msra.mxu0 %v228
    %288 = vmatpush.msra.mxu0 %v224
    %289 = vmatpush.msra.mxu0 %v220
    %290 = vmatpush.msra.mxu0 %v216
    %291 = vmatpush.msra.mxu0 %v212
    %292 = vmatpush.msra.mxu0 %v208
    %293 = vmatpush.msra.mxu0 %v204
    %294 = vmatpush.msra.mxu0 %v200
    %295 = vmatpush.msra.mxu0 %v196
    %296 = vmatpush.msra.mxu0 %v192
    %297 = vmatpush.msra.mxu0 %v188
    %298 = vmatmul.f32.gmra.mxu0 %v122
    %v299 = vpop.f32.mrf.mxu0
    %v300 = vadd.f32 %v280, %v299
    %301 = vdwg.mxu0
    %302 = vmatpush.msra.mxu0 %v185
    %303 = vmatpush.msra.mxu0 %v181
    %304 = vmatpush.msra.mxu0 %v177
    %305 = vmatpush.msra.mxu0 %v173
    %306 = vmatpush.msra.mxu0 %v169
    %307 = vmatpush.msra.mxu0 %v165
    %308 = vmatpush.msra.mxu0 %v161
    %309 = vmatpush.msra.mxu0 %v157
    %310 = vmatpush.msra.mxu0 %v153
    %311 = vmatpush.msra.mxu0 %v149
    %312 = vmatpush.msra.mxu0 %v145
    %313 = vmatpush.msra.mxu0 %v141
    %314 = vmatpush.msra.mxu0 %v137
    %315 = vmatpush.msra.mxu0 %v133
    %316 = vmatpush.msra.mxu0 %v129
    %317 = vmatpush.msra.mxu0 %v125
    %318 = vmatmul.f32.gmra.mxu0 %v121
    %v319 = vpop.f32.mrf.mxu0
    %v320 = vadd.f32 %v255, %v319
    %321 = vdwg.mxu0
    %322 = vmatpush.msra.mxu0 %v249
    %323 = vmatpush.msra.mxu0 %v245
    %324 = vmatpush.msra.mxu0 %v241
    %325 = vmatpush.msra.mxu0 %v237
    %326 = vmatpush.msra.mxu0 %v233
    %327 = vmatpush.msra.mxu0 %v229
    %328 = vmatpush.msra.mxu0 %v225
    %329 = vmatpush.msra.mxu0 %v221
    %330 = vmatpush.msra.mxu0 %v217
    %331 = vmatpush.msra.mxu0 %v213
    %332 = vmatpush.msra.mxu0 %v209
    %333 = vmatpush.msra.mxu0 %v205
    %334 = vmatpush.msra.mxu0 %v201
    %335 = vmatpush.msra.mxu0 %v197
    %336 = vmatpush.msra.mxu0 %v193
    %337 = vmatpush.msra.mxu0 %v189
    %338 = vmatmul.f32.gmra.mxu0 %v122
    %v339 = vpop.f32.mrf.mxu0
    %v340 = vadd.f32 %v320, %v339
    %341 = vdwg.mxu0
    %342 = vmatpush.msra.mxu0 %v186
    %343 = vmatpush.msra.mxu0 %v182
    %344 = vmatpush.msra.mxu0 %v178
    %345 = vmatpush.msra.mxu0 %v174
    %346 = vmatpush.msra.mxu0 %v170
    %347 = vmatpush.msra.mxu0 %v166
    %348 = vmatpush.msra.mxu0 %v162
    %349 = vmatpush.msra.mxu0 %v158
    %350 = vmatpush.msra.mxu0 %v154
    %351 = vmatpush.msra.mxu0 %v150
    %352 = vmatpush.msra.mxu0 %v146
    %353 = vmatpush.msra.mxu0 %v142
    %354 = vmatpush.msra.mxu0 %v138
    %355 = vmatpush.msra.mxu0 %v134
    %356 = vmatpush.msra.mxu0 %v130
    %357 = vmatpush.msra.mxu0 %v126
    %358 = vmatmul.f32.gmra.mxu0 %v121
    %v359 = vpop.f32.mrf.mxu0
    %v360 = vadd.f32 %v256, %v359
    %361 = vdwg.mxu0
    %362 = vmatpush.msra.mxu0 %v250
    %363 = vmatpush.msra.mxu0 %v246
    %364 = vmatpush.msra.mxu0 %v242
    %365 = vmatpush.msra.mxu0 %v238
    %366 = vmatpush.msra.mxu0 %v234
    %367 = vmatpush.msra.mxu0 %v230
    %368 = vmatpush.msra.mxu0 %v226
    %369 = vmatpush.msra.mxu0 %v222
    %370 = vmatpush.msra.mxu0 %v218
    %371 = vmatpush.msra.mxu0 %v214
    %372 = vmatpush.msra.mxu0 %v210
    %373 = vmatpush.msra.mxu0 %v206
    %374 = vmatpush.msra.mxu0 %v202
    %375 = vmatpush.msra.mxu0 %v198
    %376 = vmatpush.msra.mxu0 %v194
    %377 = vmatpush.msra.mxu0 %v190
    %378 = vmatmul.f32.gmra.mxu0 %v122
    %v379 = vpop.f32.mrf.mxu0
    %v380 = vadd.f32 %v360, %v379
    %381 = vdwg.mxu0
    %382 = vmatpush.msra.mxu0 %v187
    %383 = vmatpush.msra.mxu0 %v183
    %384 = vmatpush.msra.mxu0 %v179
    %385 = vmatpush.msra.mxu0 %v175
    %386 = vmatpush.msra.mxu0 %v171
    %387 = vmatpush.msra.mxu0 %v167
    %388 = vmatpush.msra.mxu0 %v163
    %389 = vmatpush.msra.mxu0 %v159
    %390 = vmatpush.msra.mxu0 %v155
    %391 = vmatpush.msra.mxu0 %v151
    %392 = vmatpush.msra.mxu0 %v147
    %393 = vmatpush.msra.mxu0 %v143
    %394 = vmatpush.msra.mxu0 %v139
    %395 = vmatpush.msra.mxu0 %v135
    %396 = vmatpush.msra.mxu0 %v131
    %397 = vmatpush.msra.mxu0 %v127
    %398 = vmatmul.f32.gmra.mxu0 %v121
    %v399 = vpop.f32.mrf.mxu0
    %v400 = vadd.f32 %v257, %v399
    %401 = vdwg.mxu0
    %402 = vmatpush.msra.mxu0 %v251
    %403 = vmatpush.msra.mxu0 %v247
    %404 = vmatpush.msra.mxu0 %v243
    %405 = vmatpush.msra.mxu0 %v239
    %406 = vmatpush.msra.mxu0 %v235
    %407 = vmatpush.msra.mxu0 %v231
    %408 = vmatpush.msra.mxu0 %v227
    %409 = vmatpush.msra.mxu0 %v223
    %410 = vmatpush.msra.mxu0 %v219
    %411 = vmatpush.msra.mxu0 %v215
    %412 = vmatpush.msra.mxu0 %v211
    %413 = vmatpush.msra.mxu0 %v207
    %414 = vmatpush.msra.mxu0 %v203
    %415 = vmatpush.msra.mxu0 %v199
    %416 = vmatpush.msra.mxu0 %v195
    %417 = vmatpush.msra.mxu0 %v191
    %418 = vmatmul.f32.gmra.mxu0 %v122
    %v419 = vpop.f32.mrf.mxu0
    %v420 = vadd.f32 %v400, %v419
    %421 = vdwg.mxu0
    %v422 = vxor.u32 %v300, 2147483648
    %v423 = vmul.f32 %v422, 1.442695
    %v424 = vpow.pop %v423
    %v425 = vadd.f32 %v424, 1.0
    %v426 = vrcp.pop %v425
    %v427 = vmul.f32 %v425, %v426
    %v428 = vsub.f32 1.0, %v427
    %v429 = vmul.f32 %v426, %v428
    %v430 = vadd.f32 %v426, %v429
    %vm431 = vweird.f32 %v425
    %vm432 = vweird.f32 %v426
    %vm433 = vmor %vm431, %vm432
    %v434 = vsel %vm433, %v426, %v430
    %v435 = vand.u32 2147483647, %v425
    %vm436 = vcmp.eq.f32.partialorder %v435, 8.507059e+37
    %v437 = vand.u32 %v425, 2147483648
    %v438 = vor.u32 1.1754944e-38, %v437
    %v439 = vsel %vm436, %v438, %v434
    %v440 = vmul.f32 1.0, %v439
    %v441 = vxor.u32 %v340, 2147483648
    %v442 = vmul.f32 %v441, 1.442695
    %v443 = vpow.pop %v442
    %v444 = vadd.f32 %v443, 1.0
    %v445 = vrcp.pop %v444
    %v446 = vmul.f32 %v444, %v445
    %v447 = vsub.f32 1.0, %v446
    %v448 = vmul.f32 %v445, %v447
    %v449 = vadd.f32 %v445, %v448
    %vm450 = vweird.f32 %v444
    %vm451 = vweird.f32 %v445
    %vm452 = vmor %vm450, %vm451
    %v453 = vsel %vm452, %v445, %v449
    %v454 = vand.u32 2147483647, %v444
    %vm455 = vcmp.eq.f32.partialorder %v454, 8.507059e+37
    %v456 = vand.u32 %v444, 2147483648
    %v457 = vor.u32 1.1754944e-38, %v456
    %v458 = vsel %vm455, %v457, %v453
    %v459 = vmul.f32 1.0, %v458
    %v460 = vtanh.pop %v380
    %v461 = vxor.u32 %v420, 2147483648
    %v462 = vmul.f32 %v461, 1.442695
    %v463 = vpow.pop %v462
    %v464 = vadd.f32 %v463, 1.0
    %v465 = vrcp.pop %v464
    %v466 = vmul.f32 %v464, %v465
    %v467 = vsub.f32 1.0, %v466
    %v468 = vmul.f32 %v465, %v467
    %v469 = vadd.f32 %v465, %v468
    %vm470 = vweird.f32 %v464
    %vm471 = vweird.f32 %v465
    %vm472 = vmor %vm470, %vm471
    %v473 = vsel %vm472, %v465, %v469
    %v474 = vand.u32 2147483647, %v464
    %vm475 = vcmp.eq.f32.partialorder %v474, 8.507059e+37
    %v476 = vand.u32 %v464, 2147483648
    %v477 = vor.u32 1.1754944e-38, %v476
    %v478 = vsel %vm475, %v477, %v473
    %v479 = vmul.f32 1.0, %v478
    %v480 = vmul.f32 %v459, %v123
    %v481 = vmul.f32 %v440, %v460
    %v482 = vadd.f32 %v480, %v481
    %v483 = vtanh.pop %v482
    %v484 = vmul.f32 %v479, %v483
    %485 = vst [vmem:[#allocation2] sm:$0x3] %v484
    %486 = vst [vmem:[#allocation3] sm:$0x3] %v482
    %s487 = scalar_lea.vmem [#allocation2], 2
    %v488 = vld [vmem:[%s487] sm:$0x3]
    %s489 = scalar_lea.vmem [#allocation3], 2
    %v490 = vld [vmem:[%s489] sm:$0x3]
    %v491 = vld [vmem:[#allocation10] sm:$0xff]
    %v492 = vld [vmem:[#allocation10 + $0x8] sm:$0xff]
    %v493 = vld [vmem:[#allocation10 + $0x10] sm:$0xff]
    %v494 = vld [vmem:[#allocation10 + $0x18] sm:$0xff]
    %v495 = vld [vmem:[#allocation10 + $0x20] sm:$0xff]
    %v496 = vld [vmem:[#allocation10 + $0x28] sm:$0xff]
    %v497 = vld [vmem:[#allocation10 + $0x30] sm:$0xff]
    %v498 = vld [vmem:[#allocation10 + $0x38] sm:$0xff]
    %v499 = vld [vmem:[#allocation10 + $0x40] sm:$0xff]
    %v500 = vld [vmem:[#allocation10 + $0x48] sm:$0xff]
    %v501 = vld [vmem:[#allocation10 + $0x50] sm:$0xff]
    %v502 = vld [vmem:[#allocation10 + $0x58] sm:$0xff]
    %v503 = vld [vmem:[#allocation10 + $0x60] sm:$0xff]
    %v504 = vld [vmem:[#allocation10 + $0x68] sm:$0xff]
    %v505 = vld [vmem:[#allocation10 + $0x70] sm:$0xff]
    %v506 = vld [vmem:[#allocation10 + $0x78] sm:$0xff]
    %v507 = vld [vmem:[#allocation10 + $0x80] sm:$0xff]
    %v508 = vld [vmem:[#allocation10 + $0x88] sm:$0xff]
    %v509 = vld [vmem:[#allocation10 + $0x90] sm:$0xff]
    %v510 = vld [vmem:[#allocation10 + $0x98] sm:$0xff]
    %v511 = vld [vmem:[#allocation10 + $0xa0] sm:$0xff]
    %v512 = vld [vmem:[#allocation10 + $0xa8] sm:$0xff]
    %v513 = vld [vmem:[#allocation10 + $0xb0] sm:$0xff]
    %v514 = vld [vmem:[#allocation10 + $0xb8] sm:$0xff]
    %v515 = vld [vmem:[#allocation10 + $0xc0] sm:$0xff]
    %v516 = vld [vmem:[#allocation10 + $0xc8] sm:$0xff]
    %v517 = vld [vmem:[#allocation10 + $0xd0] sm:$0xff]
    %v518 = vld [vmem:[#allocation10 + $0xd8] sm:$0xff]
    %v519 = vld [vmem:[#allocation10 + $0xe0] sm:$0xff]
    %v520 = vld [vmem:[#allocation10 + $0xe8] sm:$0xff]
    %v521 = vld [vmem:[#allocation10 + $0xf0] sm:$0xff]
    %v522 = vld [vmem:[#allocation10 + $0xf8] sm:$0xff]
    %v523 = vld [vmem:[#allocation10 + $0x100] sm:$0xff]
    %v524 = vld [vmem:[#allocation10 + $0x108] sm:$0xff]
    %v525 = vld [vmem:[#allocation10 + $0x110] sm:$0xff]
    %v526 = vld [vmem:[#allocation10 + $0x118] sm:$0xff]
    %v527 = vld [vmem:[#allocation10 + $0x120] sm:$0xff]
    %v528 = vld [vmem:[#allocation10 + $0x128] sm:$0xff]
    %v529 = vld [vmem:[#allocation10 + $0x130] sm:$0xff]
    %v530 = vld [vmem:[#allocation10 + $0x138] sm:$0xff]
    %v531 = vld [vmem:[#allocation10 + $0x140] sm:$0xff]
    %v532 = vld [vmem:[#allocation10 + $0x148] sm:$0xff]
    %v533 = vld [vmem:[#allocation10 + $0x150] sm:$0xff]
    %v534 = vld [vmem:[#allocation10 + $0x158] sm:$0xff]
    %v535 = vld [vmem:[#allocation10 + $0x160] sm:$0xff]
    %v536 = vld [vmem:[#allocation10 + $0x168] sm:$0xff]
    %v537 = vld [vmem:[#allocation10 + $0x170] sm:$0xff]
    %v538 = vld [vmem:[#allocation10 + $0x178] sm:$0xff]
    %v539 = vld [vmem:[#allocation10 + $0x180] sm:$0xff]
    %v540 = vld [vmem:[#allocation10 + $0x188] sm:$0xff]
    %v541 = vld [vmem:[#allocation10 + $0x190] sm:$0xff]
    %v542 = vld [vmem:[#allocation10 + $0x198] sm:$0xff]
    %v543 = vld [vmem:[#allocation10 + $0x1a0] sm:$0xff]
    %v544 = vld [vmem:[#allocation10 + $0x1a8] sm:$0xff]
    %v545 = vld [vmem:[#allocation10 + $0x1b0] sm:$0xff]
    %v546 = vld [vmem:[#allocation10 + $0x1b8] sm:$0xff]
    %v547 = vld [vmem:[#allocation10 + $0x1c0] sm:$0xff]
    %v548 = vld [vmem:[#allocation10 + $0x1c8] sm:$0xff]
    %v549 = vld [vmem:[#allocation10 + $0x1d0] sm:$0xff]
    %v550 = vld [vmem:[#allocation10 + $0x1d8] sm:$0xff]
    %v551 = vld [vmem:[#allocation10 + $0x1e0] sm:$0xff]
    %v552 = vld [vmem:[#allocation10 + $0x1e8] sm:$0xff]
    %v553 = vld [vmem:[#allocation10 + $0x1f0] sm:$0xff]
    %v554 = vld [vmem:[#allocation10 + $0x1f8] sm:$0xff]
    %v555 = vld [vmem:[#allocation10 + $0x200] sm:$0xff]
    %v556 = vld [vmem:[#allocation10 + $0x208] sm:$0xff]
    %v557 = vld [vmem:[#allocation10 + $0x210] sm:$0xff]
    %v558 = vld [vmem:[#allocation10 + $0x218] sm:$0xff]
    %v559 = vld [vmem:[#allocation10 + $0x220] sm:$0xff]
    %v560 = vld [vmem:[#allocation10 + $0x228] sm:$0xff]
    %v561 = vld [vmem:[#allocation10 + $0x230] sm:$0xff]
    %v562 = vld [vmem:[#allocation10 + $0x238] sm:$0xff]
    %v563 = vld [vmem:[#allocation10 + $0x240] sm:$0xff]
    %v564 = vld [vmem:[#allocation10 + $0x248] sm:$0xff]
    %v565 = vld [vmem:[#allocation10 + $0x250] sm:$0xff]
    %v566 = vld [vmem:[#allocation10 + $0x258] sm:$0xff]
    %v567 = vld [vmem:[#allocation10 + $0x260] sm:$0xff]
    %v568 = vld [vmem:[#allocation10 + $0x268] sm:$0xff]
    %v569 = vld [vmem:[#allocation10 + $0x270] sm:$0xff]
    %v570 = vld [vmem:[#allocation10 + $0x278] sm:$0xff]
    %v571 = vld [vmem:[#allocation10 + $0x280] sm:$0xff]
    %v572 = vld [vmem:[#allocation10 + $0x288] sm:$0xff]
    %v573 = vld [vmem:[#allocation10 + $0x290] sm:$0xff]
    %v574 = vld [vmem:[#allocation10 + $0x298] sm:$0xff]
    %v575 = vld [vmem:[#allocation10 + $0x2a0] sm:$0xff]
    %v576 = vld [vmem:[#allocation10 + $0x2a8] sm:$0xff]
    %v577 = vld [vmem:[#allocation10 + $0x2b0] sm:$0xff]
    %v578 = vld [vmem:[#allocation10 + $0x2b8] sm:$0xff]
    %v579 = vld [vmem:[#allocation10 + $0x2c0] sm:$0xff]
    %v580 = vld [vmem:[#allocation10 + $0x2c8] sm:$0xff]
    %v581 = vld [vmem:[#allocation10 + $0x2d0] sm:$0xff]
    %v582 = vld [vmem:[#allocation10 + $0x2d8] sm:$0xff]
    %v583 = vld [vmem:[#allocation10 + $0x2e0] sm:$0xff]
    %v584 = vld [vmem:[#allocation10 + $0x2e8] sm:$0xff]
    %v585 = vld [vmem:[#allocation10 + $0x2f0] sm:$0xff]
    %v586 = vld [vmem:[#allocation10 + $0x2f8] sm:$0xff]
    %v587 = vld [vmem:[#allocation10 + $0x300] sm:$0xff]
    %v588 = vld [vmem:[#allocation10 + $0x308] sm:$0xff]
    %v589 = vld [vmem:[#allocation10 + $0x310] sm:$0xff]
    %v590 = vld [vmem:[#allocation10 + $0x318] sm:$0xff]
    %v591 = vld [vmem:[#allocation10 + $0x320] sm:$0xff]
    %v592 = vld [vmem:[#allocation10 + $0x328] sm:$0xff]
    %v593 = vld [vmem:[#allocation10 + $0x330] sm:$0xff]
    %v594 = vld [vmem:[#allocation10 + $0x338] sm:$0xff]
    %v595 = vld [vmem:[#allocation10 + $0x340] sm:$0xff]
    %v596 = vld [vmem:[#allocation10 + $0x348] sm:$0xff]
    %v597 = vld [vmem:[#allocation10 + $0x350] sm:$0xff]
    %v598 = vld [vmem:[#allocation10 + $0x358] sm:$0xff]
    %v599 = vld [vmem:[#allocation10 + $0x360] sm:$0xff]
    %v600 = vld [vmem:[#allocation10 + $0x368] sm:$0xff]
    %v601 = vld [vmem:[#allocation10 + $0x370] sm:$0xff]
    %v602 = vld [vmem:[#allocation10 + $0x378] sm:$0xff]
    %v603 = vld [vmem:[#allocation10 + $0x380] sm:$0xff]
    %v604 = vld [vmem:[#allocation10 + $0x388] sm:$0xff]
    %v605 = vld [vmem:[#allocation10 + $0x390] sm:$0xff]
    %v606 = vld [vmem:[#allocation10 + $0x398] sm:$0xff]
    %v607 = vld [vmem:[#allocation10 + $0x3a0] sm:$0xff]
    %v608 = vld [vmem:[#allocation10 + $0x3a8] sm:$0xff]
    %v609 = vld [vmem:[#allocation10 + $0x3b0] sm:$0xff]
    %v610 = vld [vmem:[#allocation10 + $0x3b8] sm:$0xff]
    %v611 = vld [vmem:[#allocation10 + $0x3c0] sm:$0xff]
    %v612 = vld [vmem:[#allocation10 + $0x3c8] sm:$0xff]
    %v613 = vld [vmem:[#allocation10 + $0x3d0] sm:$0xff]
    %v614 = vld [vmem:[#allocation10 + $0x3d8] sm:$0xff]
    %v615 = vld [vmem:[#allocation10 + $0x3e0] sm:$0xff]
    %v616 = vld [vmem:[#allocation10 + $0x3e8] sm:$0xff]
    %v617 = vld [vmem:[#allocation10 + $0x3f0] sm:$0xff]
    %v618 = vld [vmem:[#allocation10 + $0x3f8] sm:$0xff]
    %v619 = vld [vmem:[#allocation12] sm:$0xf]
    %v621 = vperm.slane %v619, 0
    %v622 = vperm.slane %v619, 1
    %v623 = vperm.slane %v619, 2
    %v624 = vperm.slane %v619, 3
    %629 = vmatpush.msra.mxu0 %v551
    %630 = vmatpush.msra.mxu0 %v547
    %631 = vmatpush.msra.mxu0 %v543
    %632 = vmatpush.msra.mxu0 %v539
    %633 = vmatpush.msra.mxu0 %v535
    %634 = vmatpush.msra.mxu0 %v531
    %635 = vmatpush.msra.mxu0 %v527
    %636 = vmatpush.msra.mxu0 %v523
    %637 = vmatpush.msra.mxu0 %v519
    %638 = vmatpush.msra.mxu0 %v515
    %639 = vmatpush.msra.mxu0 %v511
    %640 = vmatpush.msra.mxu0 %v507
    %641 = vmatpush.msra.mxu0 %v503
    %642 = vmatpush.msra.mxu0 %v499
    %643 = vmatpush.msra.mxu0 %v495
    %644 = vmatpush.msra.mxu0 %v491
    %645 = vmatmul.f32.gmra.mxu0 %v484
    %v646 = vpop.f32.mrf.mxu0
    %v647 = vadd.f32 %v621, %v646
    %648 = vdwg.mxu0
    %649 = vmatpush.msra.mxu0 %v615
    %650 = vmatpush.msra.mxu0 %v611
    %651 = vmatpush.msra.mxu0 %v607
    %652 = vmatpush.msra.mxu0 %v603
    %653 = vmatpush.msra.mxu0 %v599
    %654 = vmatpush.msra.mxu0 %v595
    %655 = vmatpush.msra.mxu0 %v591
    %656 = vmatpush.msra.mxu0 %v587
    %657 = vmatpush.msra.mxu0 %v583
    %658 = vmatpush.msra.mxu0 %v579
    %659 = vmatpush.msra.mxu0 %v575
    %660 = vmatpush.msra.mxu0 %v571
    %661 = vmatpush.msra.mxu0 %v567
    %662 = vmatpush.msra.mxu0 %v563
    %663 = vmatpush.msra.mxu0 %v559
    %664 = vmatpush.msra.mxu0 %v555
    %665 = vmatmul.f32.gmra.mxu0 %v488
    %v666 = vpop.f32.mrf.mxu0
    %v667 = vadd.f32 %v647, %v666
    %668 = vdwg.mxu0
    %669 = vmatpush.msra.mxu0 %v552
    %670 = vmatpush.msra.mxu0 %v548
    %671 = vmatpush.msra.mxu0 %v544
    %672 = vmatpush.msra.mxu0 %v540
    %673 = vmatpush.msra.mxu0 %v536
    %674 = vmatpush.msra.mxu0 %v532
    %675 = vmatpush.msra.mxu0 %v528
    %676 = vmatpush.msra.mxu0 %v524
    %677 = vmatpush.msra.mxu0 %v520
    %678 = vmatpush.msra.mxu0 %v516
    %679 = vmatpush.msra.mxu0 %v512
    %680 = vmatpush.msra.mxu0 %v508
    %681 = vmatpush.msra.mxu0 %v504
    %682 = vmatpush.msra.mxu0 %v500
    %683 = vmatpush.msra.mxu0 %v496
    %684 = vmatpush.msra.mxu0 %v492
    %685 = vmatmul.f32.gmra.mxu0 %v484
    %v686 = vpop.f32.mrf.mxu0
    %v687 = vadd.f32 %v622, %v686
    %688 = vdwg.mxu0
    %689 = vmatpush.msra.mxu0 %v616
    %690 = vmatpush.msra.mxu0 %v612
    %691 = vmatpush.msra.mxu0 %v608
    %692 = vmatpush.msra.mxu0 %v604
    %693 = vmatpush.msra.mxu0 %v600
    %694 = vmatpush.msra.mxu0 %v596
    %695 = vmatpush.msra.mxu0 %v592
    %696 = vmatpush.msra.mxu0 %v588
    %697 = vmatpush.msra.mxu0 %v584
    %698 = vmatpush.msra.mxu0 %v580
    %699 = vmatpush.msra.mxu0 %v576
    %700 = vmatpush.msra.mxu0 %v572
    %701 = vmatpush.msra.mxu0 %v568
    %702 = vmatpush.msra.mxu0 %v564
    %703 = vmatpush.msra.mxu0 %v560
    %704 = vmatpush.msra.mxu0 %v556
    %705 = vmatmul.f32.gmra.mxu0 %v488
    %v706 = vpop.f32.mrf.mxu0
    %v707 = vadd.f32 %v687, %v706
    %708 = vdwg.mxu0
    %709 = vmatpush.msra.mxu0 %v553
    %710 = vmatpush.msra.mxu0 %v549
    %711 = vmatpush.msra.mxu0 %v545
    %712 = vmatpush.msra.mxu0 %v541
    %713 = vmatpush.msra.mxu0 %v537
    %714 = vmatpush.msra.mxu0 %v533
    %715 = vmatpush.msra.mxu0 %v529
    %716 = vmatpush.msra.mxu0 %v525
    %717 = vmatpush.msra.mxu0 %v521
    %718 = vmatpush.msra.mxu0 %v517
    %719 = vmatpush.msra.mxu0 %v513
    %720 = vmatpush.msra.mxu0 %v509
    %721 = vmatpush.msra.mxu0 %v505
    %722 = vmatpush.msra.mxu0 %v501
    %723 = vmatpush.msra.mxu0 %v497
    %724 = vmatpush.msra.mxu0 %v493
    %725 = vmatmul.f32.gmra.mxu0 %v484
    %v726 = vpop.f32.mrf.mxu0
    %v727 = vadd.f32 %v623, %v726
    %728 = vdwg.mxu0
    %729 = vmatpush.msra.mxu0 %v617
    %730 = vmatpush.msra.mxu0 %v613
    %731 = vmatpush.msra.mxu0 %v609
    %732 = vmatpush.msra.mxu0 %v605
    %733 = vmatpush.msra.mxu0 %v601
    %734 = vmatpush.msra.mxu0 %v597
    %735 = vmatpush.msra.mxu0 %v593
    %736 = vmatpush.msra.mxu0 %v589
    %737 = vmatpush.msra.mxu0 %v585
    %738 = vmatpush.msra.mxu0 %v581
    %739 = vmatpush.msra.mxu0 %v577
    %740 = vmatpush.msra.mxu0 %v573
    %741 = vmatpush.msra.mxu0 %v569
    %742 = vmatpush.msra.mxu0 %v565
    %743 = vmatpush.msra.mxu0 %v561
    %744 = vmatpush.msra.mxu0 %v557
    %745 = vmatmul.f32.gmra.mxu0 %v488
    %v746 = vpop.f32.mrf.mxu0
    %v747 = vadd.f32 %v727, %v746
    %748 = vdwg.mxu0
    %749 = vmatpush.msra.mxu0 %v554
    %750 = vmatpush.msra.mxu0 %v550
    %751 = vmatpush.msra.mxu0 %v546
    %752 = vmatpush.msra.mxu0 %v542
    %753 = vmatpush.msra.mxu0 %v538
    %754 = vmatpush.msra.mxu0 %v534
    %755 = vmatpush.msra.mxu0 %v530
    %756 = vmatpush.msra.mxu0 %v526
    %757 = vmatpush.msra.mxu0 %v522
    %758 = vmatpush.msra.mxu0 %v518
    %759 = vmatpush.msra.mxu0 %v514
    %760 = vmatpush.msra.mxu0 %v510
    %761 = vmatpush.msra.mxu0 %v506
    %762 = vmatpush.msra.mxu0 %v502
    %763 = vmatpush.msra.mxu0 %v498
    %764 = vmatpush.msra.mxu0 %v494
    %765 = vmatmul.f32.gmra.mxu0 %v484
    %v766 = vpop.f32.mrf.mxu0
    %v767 = vadd.f32 %v624, %v766
    %768 = vdwg.mxu0
    %769 = vmatpush.msra.mxu0 %v618
    %770 = vmatpush.msra.mxu0 %v614
    %771 = vmatpush.msra.mxu0 %v610
    %772 = vmatpush.msra.mxu0 %v606
    %773 = vmatpush.msra.mxu0 %v602
    %774 = vmatpush.msra.mxu0 %v598
    %775 = vmatpush.msra.mxu0 %v594
    %776 = vmatpush.msra.mxu0 %v590
    %777 = vmatpush.msra.mxu0 %v586
    %778 = vmatpush.msra.mxu0 %v582
    %779 = vmatpush.msra.mxu0 %v578
    %780 = vmatpush.msra.mxu0 %v574
    %781 = vmatpush.msra.mxu0 %v570
    %782 = vmatpush.msra.mxu0 %v566
    %783 = vmatpush.msra.mxu0 %v562
    %784 = vmatpush.msra.mxu0 %v558
    %785 = vmatmul.f32.gmra.mxu0 %v488
    %v786 = vpop.f32.mrf.mxu0
    %v787 = vadd.f32 %v767, %v786
    %788 = vdwg.mxu0
    %v789 = vxor.u32 %v667, 2147483648
    %v790 = vmul.f32 %v789, 1.442695
    %v791 = vpow.pop %v790
    %v792 = vadd.f32 %v791, 1.0
    %v793 = vrcp.pop %v792
    %v794 = vmul.f32 %v792, %v793
    %v795 = vsub.f32 1.0, %v794
    %v796 = vmul.f32 %v793, %v795
    %v797 = vadd.f32 %v793, %v796
    %vm798 = vweird.f32 %v792
    %vm799 = vweird.f32 %v793
    %vm800 = vmor %vm798, %vm799
    %v801 = vsel %vm800, %v793, %v797
    %v802 = vand.u32 2147483647, %v792
    %vm803 = vcmp.eq.f32.partialorder %v802, 8.507059e+37
    %v804 = vand.u32 %v792, 2147483648
    %v805 = vor.u32 1.1754944e-38, %v804
    %v806 = vsel %vm803, %v805, %v801
    %v807 = vmul.f32 1.0, %v806
    %v808 = vxor.u32 %v707, 2147483648
    %v809 = vmul.f32 %v808, 1.442695
    %v810 = vpow.pop %v809
    %v811 = vadd.f32 %v810, 1.0
    %v812 = vrcp.pop %v811
    %v813 = vmul.f32 %v811, %v812
    %v814 = vsub.f32 1.0, %v813
    %v815 = vmul.f32 %v812, %v814
    %v816 = vadd.f32 %v812, %v815
    %vm817 = vweird.f32 %v811
    %vm818 = vweird.f32 %v812
    %vm819 = vmor %vm817, %vm818
    %v820 = vsel %vm819, %v812, %v816
    %v821 = vand.u32 2147483647, %v811
    %vm822 = vcmp.eq.f32.partialorder %v821, 8.507059e+37
    %v823 = vand.u32 %v811, 2147483648
    %v824 = vor.u32 1.1754944e-38, %v823
    %v825 = vsel %vm822, %v824, %v820
    %v826 = vmul.f32 1.0, %v825
    %v827 = vtanh.pop %v747
    %v828 = vxor.u32 %v787, 2147483648
    %v829 = vmul.f32 %v828, 1.442695
    %v830 = vpow.pop %v829
    %v831 = vadd.f32 %v830, 1.0
    %v832 = vrcp.pop %v831
    %v833 = vmul.f32 %v831, %v832
    %v834 = vsub.f32 1.0, %v833
    %v835 = vmul.f32 %v832, %v834
    %v836 = vadd.f32 %v832, %v835
    %vm837 = vweird.f32 %v831
    %vm838 = vweird.f32 %v832
    %vm839 = vmor %vm837, %vm838
    %v840 = vsel %vm839, %v832, %v836
    %v841 = vand.u32 2147483647, %v831
    %vm842 = vcmp.eq.f32.partialorder %v841, 8.507059e+37
    %v843 = vand.u32 %v831, 2147483648
    %v844 = vor.u32 1.1754944e-38, %v843
    %v845 = vsel %vm842, %v844, %v840
    %v846 = vmul.f32 1.0, %v845
    %v847 = vmul.f32 %v826, %v490
    %v848 = vmul.f32 %v807, %v827
    %v849 = vadd.f32 %v847, %v848
    %v850 = vtanh.pop %v849
    %v851 = vmul.f32 %v846, %v850
    %852 = vst [vmem:[%s487] sm:$0x3] %v851
    %853 = vst [vmem:[%s489] sm:$0x3] %v849
    %s854 = scalar_lea.vmem [#allocation4], 2
    %v855 = vld [vmem:[%s854] sm:$0x3]
    %v856 = vld [vmem:[#allocation2] sm:$0x3]
    %v857 = vld [vmem:[#allocation3] sm:$0x3]
    %v858 = vld [vmem:[#allocation7] sm:$0xff]
    %v859 = vld [vmem:[#allocation7 + $0x8] sm:$0xff]
    %v860 = vld [vmem:[#allocation7 + $0x10] sm:$0xff]
    %v861 = vld [vmem:[#allocation7 + $0x18] sm:$0xff]
    %v862 = vld [vmem:[#allocation7 + $0x20] sm:$0xff]
    %v863 = vld [vmem:[#allocation7 + $0x28] sm:$0xff]
    %v864 = vld [vmem:[#allocation7 + $0x30] sm:$0xff]
    %v865 = vld [vmem:[#allocation7 + $0x38] sm:$0xff]
    %v866 = vld [vmem:[#allocation7 + $0x40] sm:$0xff]
    %v867 = vld [vmem:[#allocation7 + $0x48] sm:$0xff]
    %v868 = vld [vmem:[#allocation7 + $0x50] sm:$0xff]
    %v869 = vld [vmem:[#allocation7 + $0x58] sm:$0xff]
    %v870 = vld [vmem:[#allocation7 + $0x60] sm:$0xff]
    %v871 = vld [vmem:[#allocation7 + $0x68] sm:$0xff]
    %v872 = vld [vmem:[#allocation7 + $0x70] sm:$0xff]
    %v873 = vld [vmem:[#allocation7 + $0x78] sm:$0xff]
    %v874 = vld [vmem:[#allocation7 + $0x80] sm:$0xff]
    %v875 = vld [vmem:[#allocation7 + $0x88] sm:$0xff]
    %v876 = vld [vmem:[#allocation7 + $0x90] sm:$0xff]
    %v877 = vld [vmem:[#allocation7 + $0x98] sm:$0xff]
    %v878 = vld [vmem:[#allocation7 + $0xa0] sm:$0xff]
    %v879 = vld [vmem:[#allocation7 + $0xa8] sm:$0xff]
    %v880 = vld [vmem:[#allocation7 + $0xb0] sm:$0xff]
    %v881 = vld [vmem:[#allocation7 + $0xb8] sm:$0xff]
    %v882 = vld [vmem:[#allocation7 + $0xc0] sm:$0xff]
    %v883 = vld [vmem:[#allocation7 + $0xc8] sm:$0xff]
    %v884 = vld [vmem:[#allocation7 + $0xd0] sm:$0xff]
    %v885 = vld [vmem:[#allocation7 + $0xd8] sm:$0xff]
    %v886 = vld [vmem:[#allocation7 + $0xe0] sm:$0xff]
    %v887 = vld [vmem:[#allocation7 + $0xe8] sm:$0xff]
    %v888 = vld [vmem:[#allocation7 + $0xf0] sm:$0xff]
    %v889 = vld [vmem:[#allocation7 + $0xf8] sm:$0xff]
    %v890 = vld [vmem:[#allocation7 + $0x100] sm:$0xff]
    %v891 = vld [vmem:[#allocation7 + $0x108] sm:$0xff]
    %v892 = vld [vmem:[#allocation7 + $0x110] sm:$0xff]
    %v893 = vld [vmem:[#allocation7 + $0x118] sm:$0xff]
    %v894 = vld [vmem:[#allocation7 + $0x120] sm:$0xff]
    %v895 = vld [vmem:[#allocation7 + $0x128] sm:$0xff]
    %v896 = vld [vmem:[#allocation7 + $0x130] sm:$0xff]
    %v897 = vld [vmem:[#allocation7 + $0x138] sm:$0xff]
    %v898 = vld [vmem:[#allocation7 + $0x140] sm:$0xff]
    %v899 = vld [vmem:[#allocation7 + $0x148] sm:$0xff]
    %v900 = vld [vmem:[#allocation7 + $0x150] sm:$0xff]
    %v901 = vld [vmem:[#allocation7 + $0x158] sm:$0xff]
    %v902 = vld [vmem:[#allocation7 + $0x160] sm:$0xff]
    %v903 = vld [vmem:[#allocation7 + $0x168] sm:$0xff]
    %v904 = vld [vmem:[#allocation7 + $0x170] sm:$0xff]
    %v905 = vld [vmem:[#allocation7 + $0x178] sm:$0xff]
    %v906 = vld [vmem:[#allocation7 + $0x180] sm:$0xff]
    %v907 = vld [vmem:[#allocation7 + $0x188] sm:$0xff]
    %v908 = vld [vmem:[#allocation7 + $0x190] sm:$0xff]
    %v909 = vld [vmem:[#allocation7 + $0x198] sm:$0xff]
    %v910 = vld [vmem:[#allocation7 + $0x1a0] sm:$0xff]
    %v911 = vld [vmem:[#allocation7 + $0x1a8] sm:$0xff]
    %v912 = vld [vmem:[#allocation7 + $0x1b0] sm:$0xff]
    %v913 = vld [vmem:[#allocation7 + $0x1b8] sm:$0xff]
    %v914 = vld [vmem:[#allocation7 + $0x1c0] sm:$0xff]
    %v915 = vld [vmem:[#allocation7 + $0x1c8] sm:$0xff]
    %v916 = vld [vmem:[#allocation7 + $0x1d0] sm:$0xff]
    %v917 = vld [vmem:[#allocation7 + $0x1d8] sm:$0xff]
    %v918 = vld [vmem:[#allocation7 + $0x1e0] sm:$0xff]
    %v919 = vld [vmem:[#allocation7 + $0x1e8] sm:$0xff]
    %v920 = vld [vmem:[#allocation7 + $0x1f0] sm:$0xff]
    %v921 = vld [vmem:[#allocation7 + $0x1f8] sm:$0xff]
    %v922 = vld [vmem:[#allocation7 + $0x200] sm:$0xff]
    %v923 = vld [vmem:[#allocation7 + $0x208] sm:$0xff]
    %v924 = vld [vmem:[#allocation7 + $0x210] sm:$0xff]
    %v925 = vld [vmem:[#allocation7 + $0x218] sm:$0xff]
    %v926 = vld [vmem:[#allocation7 + $0x220] sm:$0xff]
    %v927 = vld [vmem:[#allocation7 + $0x228] sm:$0xff]
    %v928 = vld [vmem:[#allocation7 + $0x230] sm:$0xff]
    %v929 = vld [vmem:[#allocation7 + $0x238] sm:$0xff]
    %v930 = vld [vmem:[#allocation7 + $0x240] sm:$0xff]
    %v931 = vld [vmem:[#allocation7 + $0x248] sm:$0xff]
    %v932 = vld [vmem:[#allocation7 + $0x250] sm:$0xff]
    %v933 = vld [vmem:[#allocation7 + $0x258] sm:$0xff]
    %v934 = vld [vmem:[#allocation7 + $0x260] sm:$0xff]
    %v935 = vld [vmem:[#allocation7 + $0x268] sm:$0xff]
    %v936 = vld [vmem:[#allocation7 + $0x270] sm:$0xff]
    %v937 = vld [vmem:[#allocation7 + $0x278] sm:$0xff]
    %v938 = vld [vmem:[#allocation7 + $0x280] sm:$0xff]
    %v939 = vld [vmem:[#allocation7 + $0x288] sm:$0xff]
    %v940 = vld [vmem:[#allocation7 + $0x290] sm:$0xff]
    %v941 = vld [vmem:[#allocation7 + $0x298] sm:$0xff]
    %v942 = vld [vmem:[#allocation7 + $0x2a0] sm:$0xff]
    %v943 = vld [vmem:[#allocation7 + $0x2a8] sm:$0xff]
    %v944 = vld [vmem:[#allocation7 + $0x2b0] sm:$0xff]
    %v945 = vld [vmem:[#allocation7 + $0x2b8] sm:$0xff]
    %v946 = vld [vmem:[#allocation7 + $0x2c0] sm:$0xff]
    %v947 = vld [vmem:[#allocation7 + $0x2c8] sm:$0xff]
    %v948 = vld [vmem:[#allocation7 + $0x2d0] sm:$0xff]
    %v949 = vld [vmem:[#allocation7 + $0x2d8] sm:$0xff]
    %v950 = vld [vmem:[#allocation7 + $0x2e0] sm:$0xff]
    %v951 = vld [vmem:[#allocation7 + $0x2e8] sm:$0xff]
    %v952 = vld [vmem:[#allocation7 + $0x2f0] sm:$0xff]
    %v953 = vld [vmem:[#allocation7 + $0x2f8] sm:$0xff]
    %v954 = vld [vmem:[#allocation7 + $0x300] sm:$0xff]
    %v955 = vld [vmem:[#allocation7 + $0x308] sm:$0xff]
    %v956 = vld [vmem:[#allocation7 + $0x310] sm:$0xff]
    %v957 = vld [vmem:[#allocation7 + $0x318] sm:$0xff]
    %v958 = vld [vmem:[#allocation7 + $0x320] sm:$0xff]
    %v959 = vld [vmem:[#allocation7 + $0x328] sm:$0xff]
    %v960 = vld [vmem:[#allocation7 + $0x330] sm:$0xff]
    %v961 = vld [vmem:[#allocation7 + $0x338] sm:$0xff]
    %v962 = vld [vmem:[#allocation7 + $0x340] sm:$0xff]
    %v963 = vld [vmem:[#allocation7 + $0x348] sm:$0xff]
    %v964 = vld [vmem:[#allocation7 + $0x350] sm:$0xff]
    %v965 = vld [vmem:[#allocation7 + $0x358] sm:$0xff]
    %v966 = vld [vmem:[#allocation7 + $0x360] sm:$0xff]
    %v967 = vld [vmem:[#allocation7 + $0x368] sm:$0xff]
    %v968 = vld [vmem:[#allocation7 + $0x370] sm:$0xff]
    %v969 = vld [vmem:[#allocation7 + $0x378] sm:$0xff]
    %v970 = vld [vmem:[#allocation7 + $0x380] sm:$0xff]
    %v971 = vld [vmem:[#allocation7 + $0x388] sm:$0xff]
    %v972 = vld [vmem:[#allocation7 + $0x390] sm:$0xff]
    %v973 = vld [vmem:[#allocation7 + $0x398] sm:$0xff]
    %v974 = vld [vmem:[#allocation7 + $0x3a0] sm:$0xff]
    %v975 = vld [vmem:[#allocation7 + $0x3a8] sm:$0xff]
    %v976 = vld [vmem:[#allocation7 + $0x3b0] sm:$0xff]
    %v977 = vld [vmem:[#allocation7 + $0x3b8] sm:$0xff]
    %v978 = vld [vmem:[#allocation7 + $0x3c0] sm:$0xff]
    %v979 = vld [vmem:[#allocation7 + $0x3c8] sm:$0xff]
    %v980 = vld [vmem:[#allocation7 + $0x3d0] sm:$0xff]
    %v981 = vld [vmem:[#allocation7 + $0x3d8] sm:$0xff]
    %v982 = vld [vmem:[#allocation7 + $0x3e0] sm:$0xff]
    %v983 = vld [vmem:[#allocation7 + $0x3e8] sm:$0xff]
    %v984 = vld [vmem:[#allocation7 + $0x3f0] sm:$0xff]
    %v985 = vld [vmem:[#allocation7 + $0x3f8] sm:$0xff]
    %v986 = vld [vmem:[#allocation9] sm:$0xf]
    %v988 = vperm.slane %v986, 0
    %v989 = vperm.slane %v986, 1
    %v990 = vperm.slane %v986, 2
    %v991 = vperm.slane %v986, 3
    %996 = vmatpush.msra.mxu0 %v918
    %997 = vmatpush.msra.mxu0 %v914
    %998 = vmatpush.msra.mxu0 %v910
    %999 = vmatpush.msra.mxu0 %v906
    %1000 = vmatpush.msra.mxu0 %v902
    %1001 = vmatpush.msra.mxu0 %v898
    %1002 = vmatpush.msra.mxu0 %v894
    %1003 = vmatpush.msra.mxu0 %v890
    %1004 = vmatpush.msra.mxu0 %v886
    %1005 = vmatpush.msra.mxu0 %v882
    %1006 = vmatpush.msra.mxu0 %v878
    %1007 = vmatpush.msra.mxu0 %v874
    %1008 = vmatpush.msra.mxu0 %v870
    %1009 = vmatpush.msra.mxu0 %v866
    %1010 = vmatpush.msra.mxu0 %v862
    %1011 = vmatpush.msra.mxu0 %v858
    %1012 = vmatmul.f32.gmra.mxu0 %v855
    %v1013 = vpop.f32.mrf.mxu0
    %v1014 = vadd.f32 %v988, %v1013
    %1015 = vdwg.mxu0
    %1016 = vmatpush.msra.mxu0 %v982
    %1017 = vmatpush.msra.mxu0 %v978
    %1018 = vmatpush.msra.mxu0 %v974
    %1019 = vmatpush.msra.mxu0 %v970
    %1020 = vmatpush.msra.mxu0 %v966
    %1021 = vmatpush.msra.mxu0 %v962
    %1022 = vmatpush.msra.mxu0 %v958
    %1023 = vmatpush.msra.mxu0 %v954
    %1024 = vmatpush.msra.mxu0 %v950
    %1025 = vmatpush.msra.mxu0 %v946
    %1026 = vmatpush.msra.mxu0 %v942
    %1027 = vmatpush.msra.mxu0 %v938
    %1028 = vmatpush.msra.mxu0 %v934
    %1029 = vmatpush.msra.mxu0 %v930
    %1030 = vmatpush.msra.mxu0 %v926
    %1031 = vmatpush.msra.mxu0 %v922
    %1032 = vmatmul.f32.gmra.mxu0 %v856
    %v1033 = vpop.f32.mrf.mxu0
    %v1034 = vadd.f32 %v1014, %v1033
    %1035 = vdwg.mxu0
    %1036 = vmatpush.msra.mxu0 %v919
    %1037 = vmatpush.msra.mxu0 %v915
    %1038 = vmatpush.msra.mxu0 %v911
    %1039 = vmatpush.msra.mxu0 %v907
    %1040 = vmatpush.msra.mxu0 %v903
    %1041 = vmatpush.msra.mxu0 %v899
    %1042 = vmatpush.msra.mxu0 %v895
    %1043 = vmatpush.msra.mxu0 %v891
    %1044 = vmatpush.msra.mxu0 %v887
    %1045 = vmatpush.msra.mxu0 %v883
    %1046 = vmatpush.msra.mxu0 %v879
    %1047 = vmatpush.msra.mxu0 %v875
    %1048 = vmatpush.msra.mxu0 %v871
    %1049 = vmatpush.msra.mxu0 %v867
    %1050 = vmatpush.msra.mxu0 %v863
    %1051 = vmatpush.msra.mxu0 %v859
    %1052 = vmatmul.f32.gmra.mxu0 %v855
    %v1053 = vpop.f32.mrf.mxu0
    %v1054 = vadd.f32 %v989, %v1053
    %1055 = vdwg.mxu0
    %1056 = vmatpush.msra.mxu0 %v983
    %1057 = vmatpush.msra.mxu0 %v979
    %1058 = vmatpush.msra.mxu0 %v975
    %1059 = vmatpush.msra.mxu0 %v971
    %1060 = vmatpush.msra.mxu0 %v967
    %1061 = vmatpush.msra.mxu0 %v963
    %1062 = vmatpush.msra.mxu0 %v959
    %1063 = vmatpush.msra.mxu0 %v955
    %1064 = vmatpush.msra.mxu0 %v951
    %1065 = vmatpush.msra.mxu0 %v947
    %1066 = vmatpush.msra.mxu0 %v943
    %1067 = vmatpush.msra.mxu0 %v939
    %1068 = vmatpush.msra.mxu0 %v935
    %1069 = vmatpush.msra.mxu0 %v931
    %1070 = vmatpush.msra.mxu0 %v927
    %1071 = vmatpush.msra.mxu0 %v923
    %1072 = vmatmul.f32.gmra.mxu0 %v856
    %v1073 = vpop.f32.mrf.mxu0
    %v1074 = vadd.f32 %v1054, %v1073
    %1075 = vdwg.mxu0
    %1076 = vmatpush.msra.mxu0 %v920
    %1077 = vmatpush.msra.mxu0 %v916
    %1078 = vmatpush.msra.mxu0 %v912
    %1079 = vmatpush.msra.mxu0 %v908
    %1080 = vmatpush.msra.mxu0 %v904
    %1081 = vmatpush.msra.mxu0 %v900
    %1082 = vmatpush.msra.mxu0 %v896
    %1083 = vmatpush.msra.mxu0 %v892
    %1084 = vmatpush.msra.mxu0 %v888
    %1085 = vmatpush.msra.mxu0 %v884
    %1086 = vmatpush.msra.mxu0 %v880
    %1087 = vmatpush.msra.mxu0 %v876
    %1088 = vmatpush.msra.mxu0 %v872
    %1089 = vmatpush.msra.mxu0 %v868
    %1090 = vmatpush.msra.mxu0 %v864
    %1091 = vmatpush.msra.mxu0 %v860
    %1092 = vmatmul.f32.gmra.mxu0 %v855
    %v1093 = vpop.f32.mrf.mxu0
    %v1094 = vadd.f32 %v990, %v1093
    %1095 = vdwg.mxu0
    %1096 = vmatpush.msra.mxu0 %v984
    %1097 = vmatpush.msra.mxu0 %v980
    %1098 = vmatpush.msra.mxu0 %v976
    %1099 = vmatpush.msra.mxu0 %v972
    %1100 = vmatpush.msra.mxu0 %v968
    %1101 = vmatpush.msra.mxu0 %v964
    %1102 = vmatpush.msra.mxu0 %v960
    %1103 = vmatpush.msra.mxu0 %v956
    %1104 = vmatpush.msra.mxu0 %v952
    %1105 = vmatpush.msra.mxu0 %v948
    %1106 = vmatpush.msra.mxu0 %v944
    %1107 = vmatpush.msra.mxu0 %v940
    %1108 = vmatpush.msra.mxu0 %v936
    %1109 = vmatpush.msra.mxu0 %v932
    %1110 = vmatpush.msra.mxu0 %v928
    %1111 = vmatpush.msra.mxu0 %v924
    %1112 = vmatmul.f32.gmra.mxu0 %v856
    %v1113 = vpop.f32.mrf.mxu0
    %v1114 = vadd.f32 %v1094, %v1113
    %1115 = vdwg.mxu0
    %1116 = vmatpush.msra.mxu0 %v921
    %1117 = vmatpush.msra.mxu0 %v917
    %1118 = vmatpush.msra.mxu0 %v913
    %1119 = vmatpush.msra.mxu0 %v909
    %1120 = vmatpush.msra.mxu0 %v905
    %1121 = vmatpush.msra.mxu0 %v901
    %1122 = vmatpush.msra.mxu0 %v897
    %1123 = vmatpush.msra.mxu0 %v893
    %1124 = vmatpush.msra.mxu0 %v889
    %1125 = vmatpush.msra.mxu0 %v885
    %1126 = vmatpush.msra.mxu0 %v881
    %1127 = vmatpush.msra.mxu0 %v877
    %1128 = vmatpush.msra.mxu0 %v873
    %1129 = vmatpush.msra.mxu0 %v869
    %1130 = vmatpush.msra.mxu0 %v865
    %1131 = vmatpush.msra.mxu0 %v861
    %1132 = vmatmul.f32.gmra.mxu0 %v855
    %v1133 = vpop.f32.mrf.mxu0
    %v1134 = vadd.f32 %v991, %v1133
    %1135 = vdwg.mxu0
    %1136 = vmatpush.msra.mxu0 %v985
    %1137 = vmatpush.msra.mxu0 %v981
    %1138 = vmatpush.msra.mxu0 %v977
    %1139 = vmatpush.msra.mxu0 %v973
    %1140 = vmatpush.msra.mxu0 %v969
    %1141 = vmatpush.msra.mxu0 %v965
    %1142 = vmatpush.msra.mxu0 %v961
    %1143 = vmatpush.msra.mxu0 %v957
    %1144 = vmatpush.msra.mxu0 %v953
    %1145 = vmatpush.msra.mxu0 %v949
    %1146 = vmatpush.msra.mxu0 %v945
    %1147 = vmatpush.msra.mxu0 %v941
    %1148 = vmatpush.msra.mxu0 %v937
    %1149 = vmatpush.msra.mxu0 %v933
    %1150 = vmatpush.msra.mxu0 %v929
    %1151 = vmatpush.msra.mxu0 %v925
    %1152 = vmatmul.f32.gmra.mxu0 %v856
    %v1153 = vpop.f32.mrf.mxu0
    %v1154 = vadd.f32 %v1134, %v1153
    %1155 = vdwg.mxu0
    %v1156 = vxor.u32 %v1034, 2147483648
    %v1157 = vmul.f32 %v1156, 1.442695
    %v1158 = vpow.pop %v1157
    %v1159 = vadd.f32 %v1158, 1.0
    %v1160 = vrcp.pop %v1159
    %v1161 = vmul.f32 %v1159, %v1160
    %v1162 = vsub.f32 1.0, %v1161
    %v1163 = vmul.f32 %v1160, %v1162
    %v1164 = vadd.f32 %v1160, %v1163
    %vm1165 = vweird.f32 %v1159
    %vm1166 = vweird.f32 %v1160
    %vm1167 = vmor %vm1165, %vm1166
    %v1168 = vsel %vm1167, %v1160, %v1164
    %v1169 = vand.u32 2147483647, %v1159
    %vm1170 = vcmp.eq.f32.partialorder %v1169, 8.507059e+37
    %v1171 = vand.u32 %v1159, 2147483648
    %v1172 = vor.u32 1.1754944e-38, %v1171
    %v1173 = vsel %vm1170, %v1172, %v1168
    %v1174 = vmul.f32 1.0, %v1173
    %v1175 = vxor.u32 %v1074, 2147483648
    %v1176 = vmul.f32 %v1175, 1.442695
    %v1177 = vpow.pop %v1176
    %v1178 = vadd.f32 %v1177, 1.0
    %v1179 = vrcp.pop %v1178
    %v1180 = vmul.f32 %v1178, %v1179
    %v1181 = vsub.f32 1.0, %v1180
    %v1182 = vmul.f32 %v1179, %v1181
    %v1183 = vadd.f32 %v1179, %v1182
    %vm1184 = vweird.f32 %v1178
    %vm1185 = vweird.f32 %v1179
    %vm1186 = vmor %vm1184, %vm1185
    %v1187 = vsel %vm1186, %v1179, %v1183
    %v1188 = vand.u32 2147483647, %v1178
    %vm1189 = vcmp.eq.f32.partialorder %v1188, 8.507059e+37
    %v1190 = vand.u32 %v1178, 2147483648
    %v1191 = vor.u32 1.1754944e-38, %v1190
    %v1192 = vsel %vm1189, %v1191, %v1187
    %v1193 = vmul.f32 1.0, %v1192
    %v1194 = vtanh.pop %v1114
    %v1195 = vxor.u32 %v1154, 2147483648
    %v1196 = vmul.f32 %v1195, 1.442695
    %v1197 = vpow.pop %v1196
    %v1198 = vadd.f32 %v1197, 1.0
    %v1199 = vrcp.pop %v1198
    %v1200 = vmul.f32 %v1198, %v1199
    %v1201 = vsub.f32 1.0, %v1200
    %v1202 = vmul.f32 %v1199, %v1201
    %v1203 = vadd.f32 %v1199, %v1202
    %vm1204 = vweird.f32 %v1198
    %vm1205 = vweird.f32 %v1199
    %vm1206 = vmor %vm1204, %vm1205
    %v1207 = vsel %vm1206, %v1199, %v1203
    %v1208 = vand.u32 2147483647, %v1198
    %vm1209 = vcmp.eq.f32.partialorder %v1208, 8.507059e+37
    %v1210 = vand.u32 %v1198, 2147483648
    %v1211 = vor.u32 1.1754944e-38, %v1210
    %v1212 = vsel %vm1209, %v1211, %v1207
    %v1213 = vmul.f32 1.0, %v1212
    %v1214 = vmul.f32 %v1193, %v857
    %v1215 = vmul.f32 %v1174, %v1194
    %v1216 = vadd.f32 %v1214, %v1215
    %v1217 = vtanh.pop %v1216
    %v1218 = vmul.f32 %v1213, %v1217
    %1219 = vst [vmem:[#allocation2] sm:$0x3] %v1218
    %1220 = vst [vmem:[#allocation3] sm:$0x3] %v1216
    %v1221 = vld [vmem:[%s487] sm:$0x3]
    %v1222 = vld [vmem:[%s489] sm:$0x3]
    %v1223 = vld [vmem:[#allocation10] sm:$0xff]
    %v1224 = vld [vmem:[#allocation10 + $0x8] sm:$0xff]
    %v1225 = vld [vmem:[#allocation10 + $0x10] sm:$0xff]
    %v1226 = vld [vmem:[#allocation10 + $0x18] sm:$0xff]
    %v1227 = vld [vmem:[#allocation10 + $0x20] sm:$0xff]
    %v1228 = vld [vmem:[#allocation10 + $0x28] sm:$0xff]
    %v1229 = vld [vmem:[#allocation10 + $0x30] sm:$0xff]
    %v1230 = vld [vmem:[#allocation10 + $0x38] sm:$0xff]
    %v1231 = vld [vmem:[#allocation10 + $0x40] sm:$0xff]
    %v1232 = vld [vmem:[#allocation10 + $0x48] sm:$0xff]
    %v1233 = vld [vmem:[#allocation10 + $0x50] sm:$0xff]
    %v1234 = vld [vmem:[#allocation10 + $0x58] sm:$0xff]
    %v1235 = vld [vmem:[#allocation10 + $0x60] sm:$0xff]
    %v1236 = vld [vmem:[#allocation10 + $0x68] sm:$0xff]
    %v1237 = vld [vmem:[#allocation10 + $0x70] sm:$0xff]
    %v1238 = vld [vmem:[#allocation10 + $0x78] sm:$0xff]
    %v1239 = vld [vmem:[#allocation10 + $0x80] sm:$0xff]
    %v1240 = vld [vmem:[#allocation10 + $0x88] sm:$0xff]
    %v1241 = vld [vmem:[#allocation10 + $0x90] sm:$0xff]
    %v1242 = vld [vmem:[#allocation10 + $0x98] sm:$0xff]
    %v1243 = vld [vmem:[#allocation10 + $0xa0] sm:$0xff]
    %v1244 = vld [vmem:[#allocation10 + $0xa8] sm:$0xff]
    %v1245 = vld [vmem:[#allocation10 + $0xb0] sm:$0xff]
    %v1246 = vld [vmem:[#allocation10 + $0xb8] sm:$0xff]
    %v1247 = vld [vmem:[#allocation10 + $0xc0] sm:$0xff]
    %v1248 = vld [vmem:[#allocation10 + $0xc8] sm:$0xff]
    %v1249 = vld [vmem:[#allocation10 + $0xd0] sm:$0xff]
    %v1250 = vld [vmem:[#allocation10 + $0xd8] sm:$0xff]
    %v1251 = vld [vmem:[#allocation10 + $0xe0] sm:$0xff]
    %v1252 = vld [vmem:[#allocation10 + $0xe8] sm:$0xff]
    %v1253 = vld [vmem:[#allocation10 + $0xf0] sm:$0xff]
    %v1254 = vld [vmem:[#allocation10 + $0xf8] sm:$0xff]
    %v1255 = vld [vmem:[#allocation10 + $0x100] sm:$0xff]
    %v1256 = vld [vmem:[#allocation10 + $0x108] sm:$0xff]
    %v1257 = vld [vmem:[#allocation10 + $0x110] sm:$0xff]
    %v1258 = vld [vmem:[#allocation10 + $0x118] sm:$0xff]
    %v1259 = vld [vmem:[#allocation10 + $0x120] sm:$0xff]
    %v1260 = vld [vmem:[#allocation10 + $0x128] sm:$0xff]
    %v1261 = vld [vmem:[#allocation10 + $0x130] sm:$0xff]
    %v1262 = vld [vmem:[#allocation10 + $0x138] sm:$0xff]
    %v1263 = vld [vmem:[#allocation10 + $0x140] sm:$0xff]
    %v1264 = vld [vmem:[#allocation10 + $0x148] sm:$0xff]
    %v1265 = vld [vmem:[#allocation10 + $0x150] sm:$0xff]
    %v1266 = vld [vmem:[#allocation10 + $0x158] sm:$0xff]
    %v1267 = vld [vmem:[#allocation10 + $0x160] sm:$0xff]
    %v1268 = vld [vmem:[#allocation10 + $0x168] sm:$0xff]
    %v1269 = vld [vmem:[#allocation10 + $0x170] sm:$0xff]
    %v1270 = vld [vmem:[#allocation10 + $0x178] sm:$0xff]
    %v1271 = vld [vmem:[#allocation10 + $0x180] sm:$0xff]
    %v1272 = vld [vmem:[#allocation10 + $0x188] sm:$0xff]
    %v1273 = vld [vmem:[#allocation10 + $0x190] sm:$0xff]
    %v1274 = vld [vmem:[#allocation10 + $0x198] sm:$0xff]
    %v1275 = vld [vmem:[#allocation10 + $0x1a0] sm:$0xff]
    %v1276 = vld [vmem:[#allocation10 + $0x1a8] sm:$0xff]
    %v1277 = vld [vmem:[#allocation10 + $0x1b0] sm:$0xff]
    %v1278 = vld [vmem:[#allocation10 + $0x1b8] sm:$0xff]
    %v1279 = vld [vmem:[#allocation10 + $0x1c0] sm:$0xff]
    %v1280 = vld [vmem:[#allocation10 + $0x1c8] sm:$0xff]
    %v1281 = vld [vmem:[#allocation10 + $0x1d0] sm:$0xff]
    %v1282 = vld [vmem:[#allocation10 + $0x1d8] sm:$0xff]
    %v1283 = vld [vmem:[#allocation10 + $0x1e0] sm:$0xff]
    %v1284 = vld [vmem:[#allocation10 + $0x1e8] sm:$0xff]
    %v1285 = vld [vmem:[#allocation10 + $0x1f0] sm:$0xff]
    %v1286 = vld [vmem:[#allocation10 + $0x1f8] sm:$0xff]
    %v1287 = vld [vmem:[#allocation10 + $0x200] sm:$0xff]
    %v1288 = vld [vmem:[#allocation10 + $0x208] sm:$0xff]
    %v1289 = vld [vmem:[#allocation10 + $0x210] sm:$0xff]
    %v1290 = vld [vmem:[#allocation10 + $0x218] sm:$0xff]
    %v1291 = vld [vmem:[#allocation10 + $0x220] sm:$0xff]
    %v1292 = vld [vmem:[#allocation10 + $0x228] sm:$0xff]
    %v1293 = vld [vmem:[#allocation10 + $0x230] sm:$0xff]
    %v1294 = vld [vmem:[#allocation10 + $0x238] sm:$0xff]
    %v1295 = vld [vmem:[#allocation10 + $0x240] sm:$0xff]
    %v1296 = vld [vmem:[#allocation10 + $0x248] sm:$0xff]
    %v1297 = vld [vmem:[#allocation10 + $0x250] sm:$0xff]
    %v1298 = vld [vmem:[#allocation10 + $0x258] sm:$0xff]
    %v1299 = vld [vmem:[#allocation10 + $0x260] sm:$0xff]
    %v1300 = vld [vmem:[#allocation10 + $0x268] sm:$0xff]
    %v1301 = vld [vmem:[#allocation10 + $0x270] sm:$0xff]
    %v1302 = vld [vmem:[#allocation10 + $0x278] sm:$0xff]
    %v1303 = vld [vmem:[#allocation10 + $0x280] sm:$0xff]
    %v1304 = vld [vmem:[#allocation10 + $0x288] sm:$0xff]
    %v1305 = vld [vmem:[#allocation10 + $0x290] sm:$0xff]
    %v1306 = vld [vmem:[#allocation10 + $0x298] sm:$0xff]
    %v1307 = vld [vmem:[#allocation10 + $0x2a0] sm:$0xff]
    %v1308 = vld [vmem:[#allocation10 + $0x2a8] sm:$0xff]
    %v1309 = vld [vmem:[#allocation10 + $0x2b0] sm:$0xff]
    %v1310 = vld [vmem:[#allocation10 + $0x2b8] sm:$0xff]
    %v1311 = vld [vmem:[#allocation10 + $0x2c0] sm:$0xff]
    %v1312 = vld [vmem:[#allocation10 + $0x2c8] sm:$0xff]
    %v1313 = vld [vmem:[#allocation10 + $0x2d0] sm:$0xff]
    %v1314 = vld [vmem:[#allocation10 + $0x2d8] sm:$0xff]
    %v1315 = vld [vmem:[#allocation10 + $0x2e0] sm:$0xff]
    %v1316 = vld [vmem:[#allocation10 + $0x2e8] sm:$0xff]
    %v1317 = vld [vmem:[#allocation10 + $0x2f0] sm:$0xff]
    %v1318 = vld [vmem:[#allocation10 + $0x2f8] sm:$0xff]
    %v1319 = vld [vmem:[#allocation10 + $0x300] sm:$0xff]
    %v1320 = vld [vmem:[#allocation10 + $0x308] sm:$0xff]
    %v1321 = vld [vmem:[#allocation10 + $0x310] sm:$0xff]
    %v1322 = vld [vmem:[#allocation10 + $0x318] sm:$0xff]
    %v1323 = vld [vmem:[#allocation10 + $0x320] sm:$0xff]
    %v1324 = vld [vmem:[#allocation10 + $0x328] sm:$0xff]
    %v1325 = vld [vmem:[#allocation10 + $0x330] sm:$0xff]
    %v1326 = vld [vmem:[#allocation10 + $0x338] sm:$0xff]
    %v1327 = vld [vmem:[#allocation10 + $0x340] sm:$0xff]
    %v1328 = vld [vmem:[#allocation10 + $0x348] sm:$0xff]
    %v1329 = vld [vmem:[#allocation10 + $0x350] sm:$0xff]
    %v1330 = vld [vmem:[#allocation10 + $0x358] sm:$0xff]
    %v1331 = vld [vmem:[#allocation10 + $0x360] sm:$0xff]
    %v1332 = vld [vmem:[#allocation10 + $0x368] sm:$0xff]
    %v1333 = vld [vmem:[#allocation10 + $0x370] sm:$0xff]
    %v1334 = vld [vmem:[#allocation10 + $0x378] sm:$0xff]
    %v1335 = vld [vmem:[#allocation10 + $0x380] sm:$0xff]
    %v1336 = vld [vmem:[#allocation10 + $0x388] sm:$0xff]
    %v1337 = vld [vmem:[#allocation10 + $0x390] sm:$0xff]
    %v1338 = vld [vmem:[#allocation10 + $0x398] sm:$0xff]
    %v1339 = vld [vmem:[#allocation10 + $0x3a0] sm:$0xff]
    %v1340 = vld [vmem:[#allocation10 + $0x3a8] sm:$0xff]
    %v1341 = vld [vmem:[#allocation10 + $0x3b0] sm:$0xff]
    %v1342 = vld [vmem:[#allocation10 + $0x3b8] sm:$0xff]
    %v1343 = vld [vmem:[#allocation10 + $0x3c0] sm:$0xff]
    %v1344 = vld [vmem:[#allocation10 + $0x3c8] sm:$0xff]
    %v1345 = vld [vmem:[#allocation10 + $0x3d0] sm:$0xff]
    %v1346 = vld [vmem:[#allocation10 + $0x3d8] sm:$0xff]
    %v1347 = vld [vmem:[#allocation10 + $0x3e0] sm:$0xff]
    %v1348 = vld [vmem:[#allocation10 + $0x3e8] sm:$0xff]
    %v1349 = vld [vmem:[#allocation10 + $0x3f0] sm:$0xff]
    %v1350 = vld [vmem:[#allocation10 + $0x3f8] sm:$0xff]
    %v1351 = vld [vmem:[#allocation12] sm:$0xf]
    %v1353 = vperm.slane %v1351, 0
    %v1354 = vperm.slane %v1351, 1
    %v1355 = vperm.slane %v1351, 2
    %v1356 = vperm.slane %v1351, 3
    %1361 = vmatpush.msra.mxu0 %v1283
    %1362 = vmatpush.msra.mxu0 %v1279
    %1363 = vmatpush.msra.mxu0 %v1275
    %1364 = vmatpush.msra.mxu0 %v1271
    %1365 = vmatpush.msra.mxu0 %v1267
    %1366 = vmatpush.msra.mxu0 %v1263
    %1367 = vmatpush.msra.mxu0 %v1259
    %1368 = vmatpush.msra.mxu0 %v1255
    %1369 = vmatpush.msra.mxu0 %v1251
    %1370 = vmatpush.msra.mxu0 %v1247
    %1371 = vmatpush.msra.mxu0 %v1243
    %1372 = vmatpush.msra.mxu0 %v1239
    %1373 = vmatpush.msra.mxu0 %v1235
    %1374 = vmatpush.msra.mxu0 %v1231
    %1375 = vmatpush.msra.mxu0 %v1227
    %1376 = vmatpush.msra.mxu0 %v1223
    %1377 = vmatmul.f32.gmra.mxu0 %v1218
    %v1378 = vpop.f32.mrf.mxu0
    %v1379 = vadd.f32 %v1353, %v1378
    %1380 = vdwg.mxu0
    %1381 = vmatpush.msra.mxu0 %v1347
    %1382 = vmatpush.msra.mxu0 %v1343
    %1383 = vmatpush.msra.mxu0 %v1339
    %1384 = vmatpush.msra.mxu0 %v1335
    %1385 = vmatpush.msra.mxu0 %v1331
    %1386 = vmatpush.msra.mxu0 %v1327
    %1387 = vmatpush.msra.mxu0 %v1323
    %1388 = vmatpush.msra.mxu0 %v1319
    %1389 = vmatpush.msra.mxu0 %v1315
    %1390 = vmatpush.msra.mxu0 %v1311
    %1391 = vmatpush.msra.mxu0 %v1307
    %1392 = vmatpush.msra.mxu0 %v1303
    %1393 = vmatpush.msra.mxu0 %v1299
    %1394 = vmatpush.msra.mxu0 %v1295
    %1395 = vmatpush.msra.mxu0 %v1291
    %1396 = vmatpush.msra.mxu0 %v1287
    %1397 = vmatmul.f32.gmra.mxu0 %v1221
    %v1398 = vpop.f32.mrf.mxu0
    %v1399 = vadd.f32 %v1379, %v1398
    %1400 = vdwg.mxu0
    %1401 = vmatpush.msra.mxu0 %v1284
    %1402 = vmatpush.msra.mxu0 %v1280
    %1403 = vmatpush.msra.mxu0 %v1276
    %1404 = vmatpush.msra.mxu0 %v1272
    %1405 = vmatpush.msra.mxu0 %v1268
    %1406 = vmatpush.msra.mxu0 %v1264
    %1407 = vmatpush.msra.mxu0 %v1260
    %1408 = vmatpush.msra.mxu0 %v1256
    %1409 = vmatpush.msra.mxu0 %v1252
    %1410 = vmatpush.msra.mxu0 %v1248
    %1411 = vmatpush.msra.mxu0 %v1244
    %1412 = vmatpush.msra.mxu0 %v1240
    %1413 = vmatpush.msra.mxu0 %v1236
    %1414 = vmatpush.msra.mxu0 %v1232
    %1415 = vmatpush.msra.mxu0 %v1228
    %1416 = vmatpush.msra.mxu0 %v1224
    %1417 = vmatmul.f32.gmra.mxu0 %v1218
    %v1418 = vpop.f32.mrf.mxu0
    %v1419 = vadd.f32 %v1354, %v1418
    %1420 = vdwg.mxu0
    %1421 = vmatpush.msra.mxu0 %v1348
    %1422 = vmatpush.msra.mxu0 %v1344
    %1423 = vmatpush.msra.mxu0 %v1340
    %1424 = vmatpush.msra.mxu0 %v1336
    %1425 = vmatpush.msra.mxu0 %v1332
    %1426 = vmatpush.msra.mxu0 %v1328
    %1427 = vmatpush.msra.mxu0 %v1324
    %1428 = vmatpush.msra.mxu0 %v1320
    %1429 = vmatpush.msra.mxu0 %v1316
    %1430 = vmatpush.msra.mxu0 %v1312
    %1431 = vmatpush.msra.mxu0 %v1308
    %1432 = vmatpush.msra.mxu0 %v1304
    %1433 = vmatpush.msra.mxu0 %v1300
    %1434 = vmatpush.msra.mxu0 %v1296
    %1435 = vmatpush.msra.mxu0 %v1292
    %1436 = vmatpush.msra.mxu0 %v1288
    %1437 = vmatmul.f32.gmra.mxu0 %v1221
    %v1438 = vpop.f32.mrf.mxu0
    %v1439 = vadd.f32 %v1419, %v1438
    %1440 = vdwg.mxu0
    %1441 = vmatpush.msra.mxu0 %v1285
    %1442 = vmatpush.msra.mxu0 %v1281
    %1443 = vmatpush.msra.mxu0 %v1277
    %1444 = vmatpush.msra.mxu0 %v1273
    %1445 = vmatpush.msra.mxu0 %v1269
    %1446 = vmatpush.msra.mxu0 %v1265
    %1447 = vmatpush.msra.mxu0 %v1261
    %1448 = vmatpush.msra.mxu0 %v1257
    %1449 = vmatpush.msra.mxu0 %v1253
    %1450 = vmatpush.msra.mxu0 %v1249
    %1451 = vmatpush.msra.mxu0 %v1245
    %1452 = vmatpush.msra.mxu0 %v1241
    %1453 = vmatpush.msra.mxu0 %v1237
    %1454 = vmatpush.msra.mxu0 %v1233
    %1455 = vmatpush.msra.mxu0 %v1229
    %1456 = vmatpush.msra.mxu0 %v1225
    %1457 = vmatmul.f32.gmra.mxu0 %v1218
    %v1458 = vpop.f32.mrf.mxu0
    %v1459 = vadd.f32 %v1355, %v1458
    %1460 = vdwg.mxu0
    %1461 = vmatpush.msra.mxu0 %v1349
    %1462 = vmatpush.msra.mxu0 %v1345
    %1463 = vmatpush.msra.mxu0 %v1341
    %1464 = vmatpush.msra.mxu0 %v1337
    %1465 = vmatpush.msra.mxu0 %v1333
    %1466 = vmatpush.msra.mxu0 %v1329
    %1467 = vmatpush.msra.mxu0 %v1325
    %1468 = vmatpush.msra.mxu0 %v1321
    %1469 = vmatpush.msra.mxu0 %v1317
    %1470 = vmatpush.msra.mxu0 %v1313
    %1471 = vmatpush.msra.mxu0 %v1309
    %1472 = vmatpush.msra.mxu0 %v1305
    %1473 = vmatpush.msra.mxu0 %v1301
    %1474 = vmatpush.msra.mxu0 %v1297
    %1475 = vmatpush.msra.mxu0 %v1293
    %1476 = vmatpush.msra.mxu0 %v1289
    %1477 = vmatmul.f32.gmra.mxu0 %v1221
    %v1478 = vpop.f32.mrf.mxu0
    %v1479 = vadd.f32 %v1459, %v1478
    %1480 = vdwg.mxu0
    %1481 = vmatpush.msra.mxu0 %v1286
    %1482 = vmatpush.msra.mxu0 %v1282
    %1483 = vmatpush.msra.mxu0 %v1278
    %1484 = vmatpush.msra.mxu0 %v1274
    %1485 = vmatpush.msra.mxu0 %v1270
    %1486 = vmatpush.msra.mxu0 %v1266
    %1487 = vmatpush.msra.mxu0 %v1262
    %1488 = vmatpush.msra.mxu0 %v1258
    %1489 = vmatpush.msra.mxu0 %v1254
    %1490 = vmatpush.msra.mxu0 %v1250
    %1491 = vmatpush.msra.mxu0 %v1246
    %1492 = vmatpush.msra.mxu0 %v1242
    %1493 = vmatpush.msra.mxu0 %v1238
    %1494 = vmatpush.msra.mxu0 %v1234
    %1495 = vmatpush.msra.mxu0 %v1230
    %1496 = vmatpush.msra.mxu0 %v1226
    %1497 = vmatmul.f32.gmra.mxu0 %v1218
    %v1498 = vpop.f32.mrf.mxu0
    %v1499 = vadd.f32 %v1356, %v1498
    %1500 = vdwg.mxu0
    %1501 = vmatpush.msra.mxu0 %v1350
    %1502 = vmatpush.msra.mxu0 %v1346
    %1503 = vmatpush.msra.mxu0 %v1342
    %1504 = vmatpush.msra.mxu0 %v1338
    %1505 = vmatpush.msra.mxu0 %v1334
    %1506 = vmatpush.msra.mxu0 %v1330
    %1507 = vmatpush.msra.mxu0 %v1326
    %1508 = vmatpush.msra.mxu0 %v1322
    %1509 = vmatpush.msra.mxu0 %v1318
    %1510 = vmatpush.msra.mxu0 %v1314
    %1511 = vmatpush.msra.mxu0 %v1310
    %1512 = vmatpush.msra.mxu0 %v1306
    %1513 = vmatpush.msra.mxu0 %v1302
    %1514 = vmatpush.msra.mxu0 %v1298
    %1515 = vmatpush.msra.mxu0 %v1294
    %1516 = vmatpush.msra.mxu0 %v1290
    %1517 = vmatmul.f32.gmra.mxu0 %v1221
    %v1518 = vpop.f32.mrf.mxu0
    %v1519 = vadd.f32 %v1499, %v1518
    %1520 = vdwg.mxu0
    %v1521 = vxor.u32 %v1399, 2147483648
    %v1522 = vmul.f32 %v1521, 1.442695
    %v1523 = vpow.pop %v1522
    %v1524 = vadd.f32 %v1523, 1.0
    %v1525 = vrcp.pop %v1524
    %v1526 = vmul.f32 %v1524, %v1525
    %v1527 = vsub.f32 1.0, %v1526
    %v1528 = vmul.f32 %v1525, %v1527
    %v1529 = vadd.f32 %v1525, %v1528
    %vm1530 = vweird.f32 %v1524
    %vm1531 = vweird.f32 %v1525
    %vm1532 = vmor %vm1530, %vm1531
    %v1533 = vsel %vm1532, %v1525, %v1529
    %v1534 = vand.u32 2147483647, %v1524
    %vm1535 = vcmp.eq.f32.partialorder %v1534, 8.507059e+37
    %v1536 = vand.u32 %v1524, 2147483648
    %v1537 = vor.u32 1.1754944e-38, %v1536
    %v1538 = vsel %vm1535, %v1537, %v1533
    %v1539 = vmul.f32 1.0, %v1538
    %v1540 = vxor.u32 %v1439, 2147483648
    %v1541 = vmul.f32 %v1540, 1.442695
    %v1542 = vpow.pop %v1541
    %v1543 = vadd.f32 %v1542, 1.0
    %v1544 = vrcp.pop %v1543
    %v1545 = vmul.f32 %v1543, %v1544
    %v1546 = vsub.f32 1.0, %v1545
    %v1547 = vmul.f32 %v1544, %v1546
    %v1548 = vadd.f32 %v1544, %v1547
    %vm1549 = vweird.f32 %v1543
    %vm1550 = vweird.f32 %v1544
    %vm1551 = vmor %vm1549, %vm1550
    %v1552 = vsel %vm1551, %v1544, %v1548
    %v1553 = vand.u32 2147483647, %v1543
    %vm1554 = vcmp.eq.f32.partialorder %v1553, 8.507059e+37
    %v1555 = vand.u32 %v1543, 2147483648
    %v1556 = vor.u32 1.1754944e-38, %v1555
    %v1557 = vsel %vm1554, %v1556, %v1552
    %v1558 = vmul.f32 1.0, %v1557
    %v1559 = vtanh.pop %v1479
    %v1560 = vxor.u32 %v1519, 2147483648
    %v1561 = vmul.f32 %v1560, 1.442695
    %v1562 = vpow.pop %v1561
    %v1563 = vadd.f32 %v1562, 1.0
    %v1564 = vrcp.pop %v1563
    %v1565 = vmul.f32 %v1563, %v1564
    %v1566 = vsub.f32 1.0, %v1565
    %v1567 = vmul.f32 %v1564, %v1566
    %v1568 = vadd.f32 %v1564, %v1567
    %vm1569 = vweird.f32 %v1563
    %vm1570 = vweird.f32 %v1564
    %vm1571 = vmor %vm1569, %vm1570
    %v1572 = vsel %vm1571, %v1564, %v1568
    %v1573 = vand.u32 2147483647, %v1563
    %vm1574 = vcmp.eq.f32.partialorder %v1573, 8.507059e+37
    %v1575 = vand.u32 %v1563, 2147483648
    %v1576 = vor.u32 1.1754944e-38, %v1575
    %v1577 = vsel %vm1574, %v1576, %v1572
    %v1578 = vmul.f32 1.0, %v1577
    %v1579 = vmul.f32 %v1558, %v1222
    %v1580 = vmul.f32 %v1539, %v1559
    %v1581 = vadd.f32 %v1579, %v1580
    %v1582 = vtanh.pop %v1581
    %v1583 = vmul.f32 %v1578, %v1582
    %1584 = vst [vmem:[%s487] sm:$0x3] %v1583
    %1585 = vst [vmem:[%s489] sm:$0x3] %v1581
    %s1586 = scalar_lea.vmem [#allocation4], 4
    %v1587 = vld [vmem:[%s1586] sm:$0x3]
    %v1588 = vld [vmem:[#allocation2] sm:$0x3]
    %v1589 = vld [vmem:[#allocation3] sm:$0x3]
    %v1590 = vld [vmem:[#allocation7] sm:$0xff]
    %v1591 = vld [vmem:[#allocation7 + $0x8] sm:$0xff]
    %v1592 = vld [vmem:[#allocation7 + $0x10] sm:$0xff]
    %v1593 = vld [vmem:[#allocation7 + $0x18] sm:$0xff]
    %v1594 = vld [vmem:[#allocation7 + $0x20] sm:$0xff]
    %v1595 = vld [vmem:[#allocation7 + $0x28] sm:$0xff]
    %v1596 = vld [vmem:[#allocation7 + $0x30] sm:$0xff]
    %v1597 = vld [vmem:[#allocation7 + $0x38] sm:$0xff]
    %v1598 = vld [vmem:[#allocation7 + $0x40] sm:$0xff]
    %v1599 = vld [vmem:[#allocation7 + $0x48] sm:$0xff]
    %v1600 = vld [vmem:[#allocation7 + $0x50] sm:$0xff]
    %v1601 = vld [vmem:[#allocation7 + $0x58] sm:$0xff]
    %v1602 = vld [vmem:[#allocation7 + $0x60] sm:$0xff]
    %v1603 = vld [vmem:[#allocation7 + $0x68] sm:$0xff]
    %v1604 = vld [vmem:[#allocation7 + $0x70] sm:$0xff]
    %v1605 = vld [vmem:[#allocation7 + $0x78] sm:$0xff]
    %v1606 = vld [vmem:[#allocation7 + $0x80] sm:$0xff]
    %v1607 = vld [vmem:[#allocation7 + $0x88] sm:$0xff]
    %v1608 = vld [vmem:[#allocation7 + $0x90] sm:$0xff]
    %v1609 = vld [vmem:[#allocation7 + $0x98] sm:$0xff]
    %v1610 = vld [vmem:[#allocation7 + $0xa0] sm:$0xff]
    %v1611 = vld [vmem:[#allocation7 + $0xa8] sm:$0xff]
    %v1612 = vld [vmem:[#allocation7 + $0xb0] sm:$0xff]
    %v1613 = vld [vmem:[#allocation7 + $0xb8] sm:$0xff]
    %v1614 = vld [vmem:[#allocation7 + $0xc0] sm:$0xff]
    %v1615 = vld [vmem:[#allocation7 + $0xc8] sm:$0xff]
    %v1616 = vld [vmem:[#allocation7 + $0xd0] sm:$0xff]
    %v1617 = vld [vmem:[#allocation7 + $0xd8] sm:$0xff]
    %v1618 = vld [vmem:[#allocation7 + $0xe0] sm:$0xff]
    %v1619 = vld [vmem:[#allocation7 + $0xe8] sm:$0xff]
    %v1620 = vld [vmem:[#allocation7 + $0xf0] sm:$0xff]
    %v1621 = vld [vmem:[#allocation7 + $0xf8] sm:$0xff]
    %v1622 = vld [vmem:[#allocation7 + $0x100] sm:$0xff]
    %v1623 = vld [vmem:[#allocation7 + $0x108] sm:$0xff]
    %v1624 = vld [vmem:[#allocation7 + $0x110] sm:$0xff]
    %v1625 = vld [vmem:[#allocation7 + $0x118] sm:$0xff]
    %v1626 = vld [vmem:[#allocation7 + $0x120] sm:$0xff]
    %v1627 = vld [vmem:[#allocation7 + $0x128] sm:$0xff]
    %v1628 = vld [vmem:[#allocation7 + $0x130] sm:$0xff]
    %v1629 = vld [vmem:[#allocation7 + $0x138] sm:$0xff]
    %v1630 = vld [vmem:[#allocation7 + $0x140] sm:$0xff]
    %v1631 = vld [vmem:[#allocation7 + $0x148] sm:$0xff]
    %v1632 = vld [vmem:[#allocation7 + $0x150] sm:$0xff]
    %v1633 = vld [vmem:[#allocation7 + $0x158] sm:$0xff]
    %v1634 = vld [vmem:[#allocation7 + $0x160] sm:$0xff]
    %v1635 = vld [vmem:[#allocation7 + $0x168] sm:$0xff]
    %v1636 = vld [vmem:[#allocation7 + $0x170] sm:$0xff]
    %v1637 = vld [vmem:[#allocation7 + $0x178] sm:$0xff]
    %v1638 = vld [vmem:[#allocation7 + $0x180] sm:$0xff]
    %v1639 = vld [vmem:[#allocation7 + $0x188] sm:$0xff]
    %v1640 = vld [vmem:[#allocation7 + $0x190] sm:$0xff]
    %v1641 = vld [vmem:[#allocation7 + $0x198] sm:$0xff]
    %v1642 = vld [vmem:[#allocation7 + $0x1a0] sm:$0xff]
    %v1643 = vld [vmem:[#allocation7 + $0x1a8] sm:$0xff]
    %v1644 = vld [vmem:[#allocation7 + $0x1b0] sm:$0xff]
    %v1645 = vld [vmem:[#allocation7 + $0x1b8] sm:$0xff]
    %v1646 = vld [vmem:[#allocation7 + $0x1c0] sm:$0xff]
    %v1647 = vld [vmem:[#allocation7 + $0x1c8] sm:$0xff]
    %v1648 = vld [vmem:[#allocation7 + $0x1d0] sm:$0xff]
    %v1649 = vld [vmem:[#allocation7 + $0x1d8] sm:$0xff]
    %v1650 = vld [vmem:[#allocation7 + $0x1e0] sm:$0xff]
    %v1651 = vld [vmem:[#allocation7 + $0x1e8] sm:$0xff]
    %v1652 = vld [vmem:[#allocation7 + $0x1f0] sm:$0xff]
    %v1653 = vld [vmem:[#allocation7 + $0x1f8] sm:$0xff]
    %v1654 = vld [vmem:[#allocation7 + $0x200] sm:$0xff]
    %v1655 = vld [vmem:[#allocation7 + $0x208] sm:$0xff]
    %v1656 = vld [vmem:[#allocation7 + $0x210] sm:$0xff]
    %v1657 = vld [vmem:[#allocation7 + $0x218] sm:$0xff]
    %v1658 = vld [vmem:[#allocation7 + $0x220] sm:$0xff]
    %v1659 = vld [vmem:[#allocation7 + $0x228] sm:$0xff]
    %v1660 = vld [vmem:[#allocation7 + $0x230] sm:$0xff]
    %v1661 = vld [vmem:[#allocation7 + $0x238] sm:$0xff]
    %v1662 = vld [vmem:[#allocation7 + $0x240] sm:$0xff]
    %v1663 = vld [vmem:[#allocation7 + $0x248] sm:$0xff]
    %v1664 = vld [vmem:[#allocation7 + $0x250] sm:$0xff]
    %v1665 = vld [vmem:[#allocation7 + $0x258] sm:$0xff]
    %v1666 = vld [vmem:[#allocation7 + $0x260] sm:$0xff]
    %v1667 = vld [vmem:[#allocation7 + $0x268] sm:$0xff]
    %v1668 = vld [vmem:[#allocation7 + $0x270] sm:$0xff]
    %v1669 = vld [vmem:[#allocation7 + $0x278] sm:$0xff]
    %v1670 = vld [vmem:[#allocation7 + $0x280] sm:$0xff]
    %v1671 = vld [vmem:[#allocation7 + $0x288] sm:$0xff]
    %v1672 = vld [vmem:[#allocation7 + $0x290] sm:$0xff]
    %v1673 = vld [vmem:[#allocation7 + $0x298] sm:$0xff]
    %v1674 = vld [vmem:[#allocation7 + $0x2a0] sm:$0xff]
    %v1675 = vld [vmem:[#allocation7 + $0x2a8] sm:$0xff]
    %v1676 = vld [vmem:[#allocation7 + $0x2b0] sm:$0xff]
    %v1677 = vld [vmem:[#allocation7 + $0x2b8] sm:$0xff]
    %v1678 = vld [vmem:[#allocation7 + $0x2c0] sm:$0xff]
    %v1679 = vld [vmem:[#allocation7 + $0x2c8] sm:$0xff]
    %v1680 = vld [vmem:[#allocation7 + $0x2d0] sm:$0xff]
    %v1681 = vld [vmem:[#allocation7 + $0x2d8] sm:$0xff]
    %v1682 = vld [vmem:[#allocation7 + $0x2e0] sm:$0xff]
    %v1683 = vld [vmem:[#allocation7 + $0x2e8] sm:$0xff]
    %v1684 = vld [vmem:[#allocation7 + $0x2f0] sm:$0xff]
    %v1685 = vld [vmem:[#allocation7 + $0x2f8] sm:$0xff]
    %v1686 = vld [vmem:[#allocation7 + $0x300] sm:$0xff]
    %v1687 = vld [vmem:[#allocation7 + $0x308] sm:$0xff]
    %v1688 = vld [vmem:[#allocation7 + $0x310] sm:$0xff]
    %v1689 = vld [vmem:[#allocation7 + $0x318] sm:$0xff]
    %v1690 = vld [vmem:[#allocation7 + $0x320] sm:$0xff]
    %v1691 = vld [vmem:[#allocation7 + $0x328] sm:$0xff]
    %v1692 = vld [vmem:[#allocation7 + $0x330] sm:$0xff]
    %v1693 = vld [vmem:[#allocation7 + $0x338] sm:$0xff]
    %v1694 = vld [vmem:[#allocation7 + $0x340] sm:$0xff]
    %v1695 = vld [vmem:[#allocation7 + $0x348] sm:$0xff]
    %v1696 = vld [vmem:[#allocation7 + $0x350] sm:$0xff]
    %v1697 = vld [vmem:[#allocation7 + $0x358] sm:$0xff]
    %v1698 = vld [vmem:[#allocation7 + $0x360] sm:$0xff]
    %v1699 = vld [vmem:[#allocation7 + $0x368] sm:$0xff]
    %v1700 = vld [vmem:[#allocation7 + $0x370] sm:$0xff]
    %v1701 = vld [vmem:[#allocation7 + $0x378] sm:$0xff]
    %v1702 = vld [vmem:[#allocation7 + $0x380] sm:$0xff]
    %v1703 = vld [vmem:[#allocation7 + $0x388] sm:$0xff]
    %v1704 = vld [vmem:[#allocation7 + $0x390] sm:$0xff]
    %v1705 = vld [vmem:[#allocation7 + $0x398] sm:$0xff]
    %v1706 = vld [vmem:[#allocation7 + $0x3a0] sm:$0xff]
    %v1707 = vld [vmem:[#allocation7 + $0x3a8] sm:$0xff]
    %v1708 = vld [vmem:[#allocation7 + $0x3b0] sm:$0xff]
    %v1709 = vld [vmem:[#allocation7 + $0x3b8] sm:$0xff]
    %v1710 = vld [vmem:[#allocation7 + $0x3c0] sm:$0xff]
    %v1711 = vld [vmem:[#allocation7 + $0x3c8] sm:$0xff]
    %v1712 = vld [vmem:[#allocation7 + $0x3d0] sm:$0xff]
    %v1713 = vld [vmem:[#allocation7 + $0x3d8] sm:$0xff]
    %v1714 = vld [vmem:[#allocation7 + $0x3e0] sm:$0xff]
    %v1715 = vld [vmem:[#allocation7 + $0x3e8] sm:$0xff]
    %v1716 = vld [vmem:[#allocation7 + $0x3f0] sm:$0xff]
    %v1717 = vld [vmem:[#allocation7 + $0x3f8] sm:$0xff]
    %v1718 = vld [vmem:[#allocation9] sm:$0xf]
    %v1720 = vperm.slane %v1718, 0
    %v1721 = vperm.slane %v1718, 1
    %v1722 = vperm.slane %v1718, 2
    %v1723 = vperm.slane %v1718, 3
    %1728 = vmatpush.msra.mxu0 %v1650
    %1729 = vmatpush.msra.mxu0 %v1646
    %1730 = vmatpush.msra.mxu0 %v1642
    %1731 = vmatpush.msra.mxu0 %v1638
    %1732 = vmatpush.msra.mxu0 %v1634
    %1733 = vmatpush.msra.mxu0 %v1630
    %1734 = vmatpush.msra.mxu0 %v1626
    %1735 = vmatpush.msra.mxu0 %v1622
    %1736 = vmatpush.msra.mxu0 %v1618
    %1737 = vmatpush.msra.mxu0 %v1614
    %1738 = vmatpush.msra.mxu0 %v1610
    %1739 = vmatpush.msra.mxu0 %v1606
    %1740 = vmatpush.msra.mxu0 %v1602
    %1741 = vmatpush.msra.mxu0 %v1598
    %1742 = vmatpush.msra.mxu0 %v1594
    %1743 = vmatpush.msra.mxu0 %v1590
    %1744 = vmatmul.f32.gmra.mxu0 %v1587
    %v1745 = vpop.f32.mrf.mxu0
    %v1746 = vadd.f32 %v1720, %v1745
    %1747 = vdwg.mxu0
    %1748 = vmatpush.msra.mxu0 %v1714
    %1749 = vmatpush.msra.mxu0 %v1710
    %1750 = vmatpush.msra.mxu0 %v1706
    %1751 = vmatpush.msra.mxu0 %v1702
    %1752 = vmatpush.msra.mxu0 %v1698
    %1753 = vmatpush.msra.mxu0 %v1694
    %1754 = vmatpush.msra.mxu0 %v1690
    %1755 = vmatpush.msra.mxu0 %v1686
    %1756 = vmatpush.msra.mxu0 %v1682
    %1757 = vmatpush.msra.mxu0 %v1678
    %1758 = vmatpush.msra.mxu0 %v1674
    %1759 = vmatpush.msra.mxu0 %v1670
    %1760 = vmatpush.msra.mxu0 %v1666
    %1761 = vmatpush.msra.mxu0 %v1662
    %1762 = vmatpush.msra.mxu0 %v1658
    %1763 = vmatpush.msra.mxu0 %v1654
    %1764 = vmatmul.f32.gmra.mxu0 %v1588
    %v1765 = vpop.f32.mrf.mxu0
    %v1766 = vadd.f32 %v1746, %v1765
    %1767 = vdwg.mxu0
    %1768 = vmatpush.msra.mxu0 %v1651
    %1769 = vmatpush.msra.mxu0 %v1647
    %1770 = vmatpush.msra.mxu0 %v1643
    %1771 = vmatpush.msra.mxu0 %v1639
    %1772 = vmatpush.msra.mxu0 %v1635
    %1773 = vmatpush.msra.mxu0 %v1631
    %1774 = vmatpush.msra.mxu0 %v1627
    %1775 = vmatpush.msra.mxu0 %v1623
    %1776 = vmatpush.msra.mxu0 %v1619
    %1777 = vmatpush.msra.mxu0 %v1615
    %1778 = vmatpush.msra.mxu0 %v1611
    %1779 = vmatpush.msra.mxu0 %v1607
    %1780 = vmatpush.msra.mxu0 %v1603
    %1781 = vmatpush.msra.mxu0 %v1599
    %1782 = vmatpush.msra.mxu0 %v1595
    %1783 = vmatpush.msra.mxu0 %v1591
    %1784 = vmatmul.f32.gmra.mxu0 %v1587
    %v1785 = vpop.f32.mrf.mxu0
    %v1786 = vadd.f32 %v1721, %v1785
    %1787 = vdwg.mxu0
    %1788 = vmatpush.msra.mxu0 %v1715
    %1789 = vmatpush.msra.mxu0 %v1711
    %1790 = vmatpush.msra.mxu0 %v1707
    %1791 = vmatpush.msra.mxu0 %v1703
    %1792 = vmatpush.msra.mxu0 %v1699
    %1793 = vmatpush.msra.mxu0 %v1695
    %1794 = vmatpush.msra.mxu0 %v1691
    %1795 = vmatpush.msra.mxu0 %v1687
    %1796 = vmatpush.msra.mxu0 %v1683
    %1797 = vmatpush.msra.mxu0 %v1679
    %1798 = vmatpush.msra.mxu0 %v1675
    %1799 = vmatpush.msra.mxu0 %v1671
    %1800 = vmatpush.msra.mxu0 %v1667
    %1801 = vmatpush.msra.mxu0 %v1663
    %1802 = vmatpush.msra.mxu0 %v1659
    %1803 = vmatpush.msra.mxu0 %v1655
    %1804 = vmatmul.f32.gmra.mxu0 %v1588
    %v1805 = vpop.f32.mrf.mxu0
    %v1806 = vadd.f32 %v1786, %v1805
    %1807 = vdwg.mxu0
    %1808 = vmatpush.msra.mxu0 %v1652
    %1809 = vmatpush.msra.mxu0 %v1648
    %1810 = vmatpush.msra.mxu0 %v1644
    %1811 = vmatpush.msra.mxu0 %v1640
    %1812 = vmatpush.msra.mxu0 %v1636
    %1813 = vmatpush.msra.mxu0 %v1632
    %1814 = vmatpush.msra.mxu0 %v1628
    %1815 = vmatpush.msra.mxu0 %v1624
    %1816 = vmatpush.msra.mxu0 %v1620
    %1817 = vmatpush.msra.mxu0 %v1616
    %1818 = vmatpush.msra.mxu0 %v1612
    %1819 = vmatpush.msra.mxu0 %v1608
    %1820 = vmatpush.msra.mxu0 %v1604
    %1821 = vmatpush.msra.mxu0 %v1600
    %1822 = vmatpush.msra.mxu0 %v1596
    %1823 = vmatpush.msra.mxu0 %v1592
    %1824 = vmatmul.f32.gmra.mxu0 %v1587
    %v1825 = vpop.f32.mrf.mxu0
    %v1826 = vadd.f32 %v1722, %v1825
    %1827 = vdwg.mxu0
    %1828 = vmatpush.msra.mxu0 %v1716
    %1829 = vmatpush.msra.mxu0 %v1712
    %1830 = vmatpush.msra.mxu0 %v1708
    %1831 = vmatpush.msra.mxu0 %v1704
    %1832 = vmatpush.msra.mxu0 %v1700
    %1833 = vmatpush.msra.mxu0 %v1696
    %1834 = vmatpush.msra.mxu0 %v1692
    %1835 = vmatpush.msra.mxu0 %v1688
    %1836 = vmatpush.msra.mxu0 %v1684
    %1837 = vmatpush.msra.mxu0 %v1680
    %1838 = vmatpush.msra.mxu0 %v1676
    %1839 = vmatpush.msra.mxu0 %v1672
    %1840 = vmatpush.msra.mxu0 %v1668
    %1841 = vmatpush.msra.mxu0 %v1664
    %1842 = vmatpush.msra.mxu0 %v1660
    %1843 = vmatpush.msra.mxu0 %v1656
    %1844 = vmatmul.f32.gmra.mxu0 %v1588
    %v1845 = vpop.f32.mrf.mxu0
    %v1846 = vadd.f32 %v1826, %v1845
    %1847 = vdwg.mxu0
    %1848 = vmatpush.msra.mxu0 %v1653
    %1849 = vmatpush.msra.mxu0 %v1649
    %1850 = vmatpush.msra.mxu0 %v1645
    %1851 = vmatpush.msra.mxu0 %v1641
    %1852 = vmatpush.msra.mxu0 %v1637
    %1853 = vmatpush.msra.mxu0 %v1633
    %1854 = vmatpush.msra.mxu0 %v1629
    %1855 = vmatpush.msra.mxu0 %v1625
    %1856 = vmatpush.msra.mxu0 %v1621
    %1857 = vmatpush.msra.mxu0 %v1617
    %1858 = vmatpush.msra.mxu0 %v1613
    %1859 = vmatpush.msra.mxu0 %v1609
    %1860 = vmatpush.msra.mxu0 %v1605
    %1861 = vmatpush.msra.mxu0 %v1601
    %1862 = vmatpush.msra.mxu0 %v1597
    %1863 = vmatpush.msra.mxu0 %v1593
    %1864 = vmatmul.f32.gmra.mxu0 %v1587
    %v1865 = vpop.f32.mrf.mxu0
    %v1866 = vadd.f32 %v1723, %v1865
    %1867 = vdwg.mxu0
    %1868 = vmatpush.msra.mxu0 %v1717
    %1869 = vmatpush.msra.mxu0 %v1713
    %1870 = vmatpush.msra.mxu0 %v1709
    %1871 = vmatpush.msra.mxu0 %v1705
    %1872 = vmatpush.msra.mxu0 %v1701
    %1873 = vmatpush.msra.mxu0 %v1697
    %1874 = vmatpush.msra.mxu0 %v1693
    %1875 = vmatpush.msra.mxu0 %v1689
    %1876 = vmatpush.msra.mxu0 %v1685
    %1877 = vmatpush.msra.mxu0 %v1681
    %1878 = vmatpush.msra.mxu0 %v1677
    %1879 = vmatpush.msra.mxu0 %v1673
    %1880 = vmatpush.msra.mxu0 %v1669
    %1881 = vmatpush.msra.mxu0 %v1665
    %1882 = vmatpush.msra.mxu0 %v1661
    %1883 = vmatpush.msra.mxu0 %v1657
    %1884 = vmatmul.f32.gmra.mxu0 %v1588
    %v1885 = vpop.f32.mrf.mxu0
    %v1886 = vadd.f32 %v1866, %v1885
    %1887 = vdwg.mxu0
    %v1888 = vxor.u32 %v1766, 2147483648
    %v1889 = vmul.f32 %v1888, 1.442695
    %v1890 = vpow.pop %v1889
    %v1891 = vadd.f32 %v1890, 1.0
    %v1892 = vrcp.pop %v1891
    %v1893 = vmul.f32 %v1891, %v1892
    %v1894 = vsub.f32 1.0, %v1893
    %v1895 = vmul.f32 %v1892, %v1894
    %v1896 = vadd.f32 %v1892, %v1895
    %vm1897 = vweird.f32 %v1891
    %vm1898 = vweird.f32 %v1892
    %vm1899 = vmor %vm1897, %vm1898
    %v1900 = vsel %vm1899, %v1892, %v1896
    %v1901 = vand.u32 2147483647, %v1891
    %vm1902 = vcmp.eq.f32.partialorder %v1901, 8.507059e+37
    %v1903 = vand.u32 %v1891, 2147483648
    %v1904 = vor.u32 1.1754944e-38, %v1903
    %v1905 = vsel %vm1902, %v1904, %v1900
    %v1906 = vmul.f32 1.0, %v1905
    %v1907 = vxor.u32 %v1806, 2147483648
    %v1908 = vmul.f32 %v1907, 1.442695
    %v1909 = vpow.pop %v1908
    %v1910 = vadd.f32 %v1909, 1.0
    %v1911 = vrcp.pop %v1910
    %v1912 = vmul.f32 %v1910, %v1911
    %v1913 = vsub.f32 1.0, %v1912
    %v1914 = vmul.f32 %v1911, %v1913
    %v1915 = vadd.f32 %v1911, %v1914
    %vm1916 = vweird.f32 %v1910
    %vm1917 = vweird.f32 %v1911
    %vm1918 = vmor %vm1916, %vm1917
    %v1919 = vsel %vm1918, %v1911, %v1915
    %v1920 = vand.u32 2147483647, %v1910
    %vm1921 = vcmp.eq.f32.partialorder %v1920, 8.507059e+37
    %v1922 = vand.u32 %v1910, 2147483648
    %v1923 = vor.u32 1.1754944e-38, %v1922
    %v1924 = vsel %vm1921, %v1923, %v1919
    %v1925 = vmul.f32 1.0, %v1924
    %v1926 = vtanh.pop %v1846
    %v1927 = vxor.u32 %v1886, 2147483648
    %v1928 = vmul.f32 %v1927, 1.442695
    %v1929 = vpow.pop %v1928
    %v1930 = vadd.f32 %v1929, 1.0
    %v1931 = vrcp.pop %v1930
    %v1932 = vmul.f32 %v1930, %v1931
    %v1933 = vsub.f32 1.0, %v1932
    %v1934 = vmul.f32 %v1931, %v1933
    %v1935 = vadd.f32 %v1931, %v1934
    %vm1936 = vweird.f32 %v1930
    %vm1937 = vweird.f32 %v1931
    %vm1938 = vmor %vm1936, %vm1937
    %v1939 = vsel %vm1938, %v1931, %v1935
    %v1940 = vand.u32 2147483647, %v1930
    %vm1941 = vcmp.eq.f32.partialorder %v1940, 8.507059e+37
    %v1942 = vand.u32 %v1930, 2147483648
    %v1943 = vor.u32 1.1754944e-38, %v1942
    %v1944 = vsel %vm1941, %v1943, %v1939
    %v1945 = vmul.f32 1.0, %v1944
    %v1946 = vmul.f32 %v1925, %v1589
    %v1947 = vmul.f32 %v1906, %v1926
    %v1948 = vadd.f32 %v1946, %v1947
    %v1949 = vtanh.pop %v1948
    %v1950 = vmul.f32 %v1945, %v1949
    %1951 = vst [vmem:[#allocation2] sm:$0x3] %v1950
    %1952 = vst [vmem:[#allocation3] sm:$0x3] %v1948
    %v1953 = vld [vmem:[%s487] sm:$0x3]
    %v1954 = vld [vmem:[%s489] sm:$0x3]
    %v1955 = vld [vmem:[#allocation10] sm:$0xff]
    %v1956 = vld [vmem:[#allocation10 + $0x8] sm:$0xff]
    %v1957 = vld [vmem:[#allocation10 + $0x10] sm:$0xff]
    %v1958 = vld [vmem:[#allocation10 + $0x18] sm:$0xff]
    %v1959 = vld [vmem:[#allocation10 + $0x20] sm:$0xff]
    %v1960 = vld [vmem:[#allocation10 + $0x28] sm:$0xff]
    %v1961 = vld [vmem:[#allocation10 + $0x30] sm:$0xff]
    %v1962 = vld [vmem:[#allocation10 + $0x38] sm:$0xff]
    %v1963 = vld [vmem:[#allocation10 + $0x40] sm:$0xff]
    %v1964 = vld [vmem:[#allocation10 + $0x48] sm:$0xff]
    %v1965 = vld [vmem:[#allocation10 + $0x50] sm:$0xff]
    %v1966 = vld [vmem:[#allocation10 + $0x58] sm:$0xff]
    %v1967 = vld [vmem:[#allocation10 + $0x60] sm:$0xff]
    %v1968 = vld [vmem:[#allocation10 + $0x68] sm:$0xff]
    %v1969 = vld [vmem:[#allocation10 + $0x70] sm:$0xff]
    %v1970 = vld [vmem:[#allocation10 + $0x78] sm:$0xff]
    %v1971 = vld [vmem:[#allocation10 + $0x80] sm:$0xff]
    %v1972 = vld [vmem:[#allocation10 + $0x88] sm:$0xff]
    %v1973 = vld [vmem:[#allocation10 + $0x90] sm:$0xff]
    %v1974 = vld [vmem:[#allocation10 + $0x98] sm:$0xff]
    %v1975 = vld [vmem:[#allocation10 + $0xa0] sm:$0xff]
    %v1976 = vld [vmem:[#allocation10 + $0xa8] sm:$0xff]
    %v1977 = vld [vmem:[#allocation10 + $0xb0] sm:$0xff]
    %v1978 = vld [vmem:[#allocation10 + $0xb8] sm:$0xff]
    %v1979 = vld [vmem:[#allocation10 + $0xc0] sm:$0xff]
    %v1980 = vld [vmem:[#allocation10 + $0xc8] sm:$0xff]
    %v1981 = vld [vmem:[#allocation10 + $0xd0] sm:$0xff]
    %v1982 = vld [vmem:[#allocation10 + $0xd8] sm:$0xff]
    %v1983 = vld [vmem:[#allocation10 + $0xe0] sm:$0xff]
    %v1984 = vld [vmem:[#allocation10 + $0xe8] sm:$0xff]
    %v1985 = vld [vmem:[#allocation10 + $0xf0] sm:$0xff]
    %v1986 = vld [vmem:[#allocation10 + $0xf8] sm:$0xff]
    %v1987 = vld [vmem:[#allocation10 + $0x100] sm:$0xff]
    %v1988 = vld [vmem:[#allocation10 + $0x108] sm:$0xff]
    %v1989 = vld [vmem:[#allocation10 + $0x110] sm:$0xff]
    %v1990 = vld [vmem:[#allocation10 + $0x118] sm:$0xff]
    %v1991 = vld [vmem:[#allocation10 + $0x120] sm:$0xff]
    %v1992 = vld [vmem:[#allocation10 + $0x128] sm:$0xff]
    %v1993 = vld [vmem:[#allocation10 + $0x130] sm:$0xff]
    %v1994 = vld [vmem:[#allocation10 + $0x138] sm:$0xff]
    %v1995 = vld [vmem:[#allocation10 + $0x140] sm:$0xff]
    %v1996 = vld [vmem:[#allocation10 + $0x148] sm:$0xff]
    %v1997 = vld [vmem:[#allocation10 + $0x150] sm:$0xff]
    %v1998 = vld [vmem:[#allocation10 + $0x158] sm:$0xff]
    %v1999 = vld [vmem:[#allocation10 + $0x160] sm:$0xff]
    %v2000 = vld [vmem:[#allocation10 + $0x168] sm:$0xff]
    %v2001 = vld [vmem:[#allocation10 + $0x170] sm:$0xff]
    %v2002 = vld [vmem:[#allocation10 + $0x178] sm:$0xff]
    %v2003 = vld [vmem:[#allocation10 + $0x180] sm:$0xff]
    %v2004 = vld [vmem:[#allocation10 + $0x188] sm:$0xff]
    %v2005 = vld [vmem:[#allocation10 + $0x190] sm:$0xff]
    %v2006 = vld [vmem:[#allocation10 + $0x198] sm:$0xff]
    %v2007 = vld [vmem:[#allocation10 + $0x1a0] sm:$0xff]
    %v2008 = vld [vmem:[#allocation10 + $0x1a8] sm:$0xff]
    %v2009 = vld [vmem:[#allocation10 + $0x1b0] sm:$0xff]
    %v2010 = vld [vmem:[#allocation10 + $0x1b8] sm:$0xff]
    %v2011 = vld [vmem:[#allocation10 + $0x1c0] sm:$0xff]
    %v2012 = vld [vmem:[#allocation10 + $0x1c8] sm:$0xff]
    %v2013 = vld [vmem:[#allocation10 + $0x1d0] sm:$0xff]
    %v2014 = vld [vmem:[#allocation10 + $0x1d8] sm:$0xff]
    %v2015 = vld [vmem:[#allocation10 + $0x1e0] sm:$0xff]
    %v2016 = vld [vmem:[#allocation10 + $0x1e8] sm:$0xff]
    %v2017 = vld [vmem:[#allocation10 + $0x1f0] sm:$0xff]
    %v2018 = vld [vmem:[#allocation10 + $0x1f8] sm:$0xff]
    %v2019 = vld [vmem:[#allocation10 + $0x200] sm:$0xff]
    %v2020 = vld [vmem:[#allocation10 + $0x208] sm:$0xff]
    %v2021 = vld [vmem:[#allocation10 + $0x210] sm:$0xff]
    %v2022 = vld [vmem:[#allocation10 + $0x218] sm:$0xff]
    %v2023 = vld [vmem:[#allocation10 + $0x220] sm:$0xff]
    %v2024 = vld [vmem:[#allocation10 + $0x228] sm:$0xff]
    %v2025 = vld [vmem:[#allocation10 + $0x230] sm:$0xff]
    %v2026 = vld [vmem:[#allocation10 + $0x238] sm:$0xff]
    %v2027 = vld [vmem:[#allocation10 + $0x240] sm:$0xff]
    %v2028 = vld [vmem:[#allocation10 + $0x248] sm:$0xff]
    %v2029 = vld [vmem:[#allocation10 + $0x250] sm:$0xff]
    %v2030 = vld [vmem:[#allocation10 + $0x258] sm:$0xff]
    %v2031 = vld [vmem:[#allocation10 + $0x260] sm:$0xff]
    %v2032 = vld [vmem:[#allocation10 + $0x268] sm:$0xff]
    %v2033 = vld [vmem:[#allocation10 + $0x270] sm:$0xff]
    %v2034 = vld [vmem:[#allocation10 + $0x278] sm:$0xff]
    %v2035 = vld [vmem:[#allocation10 + $0x280] sm:$0xff]
    %v2036 = vld [vmem:[#allocation10 + $0x288] sm:$0xff]
    %v2037 = vld [vmem:[#allocation10 + $0x290] sm:$0xff]
    %v2038 = vld [vmem:[#allocation10 + $0x298] sm:$0xff]
    %v2039 = vld [vmem:[#allocation10 + $0x2a0] sm:$0xff]
    %v2040 = vld [vmem:[#allocation10 + $0x2a8] sm:$0xff]
    %v2041 = vld [vmem:[#allocation10 + $0x2b0] sm:$0xff]
    %v2042 = vld [vmem:[#allocation10 + $0x2b8] sm:$0xff]
    %v2043 = vld [vmem:[#allocation10 + $0x2c0] sm:$0xff]
    %v2044 = vld [vmem:[#allocation10 + $0x2c8] sm:$0xff]
    %v2045 = vld [vmem:[#allocation10 + $0x2d0] sm:$0xff]
    %v2046 = vld [vmem:[#allocation10 + $0x2d8] sm:$0xff]
    %v2047 = vld [vmem:[#allocation10 + $0x2e0] sm:$0xff]
    %v2048 = vld [vmem:[#allocation10 + $0x2e8] sm:$0xff]
    %v2049 = vld [vmem:[#allocation10 + $0x2f0] sm:$0xff]
    %v2050 = vld [vmem:[#allocation10 + $0x2f8] sm:$0xff]
    %v2051 = vld [vmem:[#allocation10 + $0x300] sm:$0xff]
    %v2052 = vld [vmem:[#allocation10 + $0x308] sm:$0xff]
    %v2053 = vld [vmem:[#allocation10 + $0x310] sm:$0xff]
    %v2054 = vld [vmem:[#allocation10 + $0x318] sm:$0xff]
    %v2055 = vld [vmem:[#allocation10 + $0x320] sm:$0xff]
    %v2056 = vld [vmem:[#allocation10 + $0x328] sm:$0xff]
    %v2057 = vld [vmem:[#allocation10 + $0x330] sm:$0xff]
    %v2058 = vld [vmem:[#allocation10 + $0x338] sm:$0xff]
    %v2059 = vld [vmem:[#allocation10 + $0x340] sm:$0xff]
    %v2060 = vld [vmem:[#allocation10 + $0x348] sm:$0xff]
    %v2061 = vld [vmem:[#allocation10 + $0x350] sm:$0xff]
    %v2062 = vld [vmem:[#allocation10 + $0x358] sm:$0xff]
    %v2063 = vld [vmem:[#allocation10 + $0x360] sm:$0xff]
    %v2064 = vld [vmem:[#allocation10 + $0x368] sm:$0xff]
    %v2065 = vld [vmem:[#allocation10 + $0x370] sm:$0xff]
    %v2066 = vld [vmem:[#allocation10 + $0x378] sm:$0xff]
    %v2067 = vld [vmem:[#allocation10 + $0x380] sm:$0xff]
    %v2068 = vld [vmem:[#allocation10 + $0x388] sm:$0xff]
    %v2069 = vld [vmem:[#allocation10 + $0x390] sm:$0xff]
    %v2070 = vld [vmem:[#allocation10 + $0x398] sm:$0xff]
    %v2071 = vld [vmem:[#allocation10 + $0x3a0] sm:$0xff]
    %v2072 = vld [vmem:[#allocation10 + $0x3a8] sm:$0xff]
    %v2073 = vld [vmem:[#allocation10 + $0x3b0] sm:$0xff]
    %v2074 = vld [vmem:[#allocation10 + $0x3b8] sm:$0xff]
    %v2075 = vld [vmem:[#allocation10 + $0x3c0] sm:$0xff]
    %v2076 = vld [vmem:[#allocation10 + $0x3c8] sm:$0xff]
    %v2077 = vld [vmem:[#allocation10 + $0x3d0] sm:$0xff]
    %v2078 = vld [vmem:[#allocation10 + $0x3d8] sm:$0xff]
    %v2079 = vld [vmem:[#allocation10 + $0x3e0] sm:$0xff]
    %v2080 = vld [vmem:[#allocation10 + $0x3e8] sm:$0xff]
    %v2081 = vld [vmem:[#allocation10 + $0x3f0] sm:$0xff]
    %v2082 = vld [vmem:[#allocation10 + $0x3f8] sm:$0xff]
    %v2083 = vld [vmem:[#allocation12] sm:$0xf]
    %v2085 = vperm.slane %v2083, 0
    %v2086 = vperm.slane %v2083, 1
    %v2087 = vperm.slane %v2083, 2
    %v2088 = vperm.slane %v2083, 3
    %2093 = vmatpush.msra.mxu0 %v2015
    %2094 = vmatpush.msra.mxu0 %v2011
    %2095 = vmatpush.msra.mxu0 %v2007
    %2096 = vmatpush.msra.mxu0 %v2003
    %2097 = vmatpush.msra.mxu0 %v1999
    %2098 = vmatpush.msra.mxu0 %v1995
    %2099 = vmatpush.msra.mxu0 %v1991
    %2100 = vmatpush.msra.mxu0 %v1987
    %2101 = vmatpush.msra.mxu0 %v1983
    %2102 = vmatpush.msra.mxu0 %v1979
    %2103 = vmatpush.msra.mxu0 %v1975
    %2104 = vmatpush.msra.mxu0 %v1971
    %2105 = vmatpush.msra.mxu0 %v1967
    %2106 = vmatpush.msra.mxu0 %v1963
    %2107 = vmatpush.msra.mxu0 %v1959
    %2108 = vmatpush.msra.mxu0 %v1955
    %2109 = vmatmul.f32.gmra.mxu0 %v1950
    %v2110 = vpop.f32.mrf.mxu0
    %v2111 = vadd.f32 %v2085, %v2110
    %2112 = vdwg.mxu0
    %2113 = vmatpush.msra.mxu0 %v2079
    %2114 = vmatpush.msra.mxu0 %v2075
    %2115 = vmatpush.msra.mxu0 %v2071
    %2116 = vmatpush.msra.mxu0 %v2067
    %2117 = vmatpush.msra.mxu0 %v2063
    %2118 = vmatpush.msra.mxu0 %v2059
    %2119 = vmatpush.msra.mxu0 %v2055
    %2120 = vmatpush.msra.mxu0 %v2051
    %2121 = vmatpush.msra.mxu0 %v2047
    %2122 = vmatpush.msra.mxu0 %v2043
    %2123 = vmatpush.msra.mxu0 %v2039
    %2124 = vmatpush.msra.mxu0 %v2035
    %2125 = vmatpush.msra.mxu0 %v2031
    %2126 = vmatpush.msra.mxu0 %v2027
    %2127 = vmatpush.msra.mxu0 %v2023
    %2128 = vmatpush.msra.mxu0 %v2019
    %2129 = vmatmul.f32.gmra.mxu0 %v1953
    %v2130 = vpop.f32.mrf.mxu0
    %v2131 = vadd.f32 %v2111, %v2130
    %2132 = vdwg.mxu0
    %2133 = vmatpush.msra.mxu0 %v2016
    %2134 = vmatpush.msra.mxu0 %v2012
    %2135 = vmatpush.msra.mxu0 %v2008
    %2136 = vmatpush.msra.mxu0 %v2004
    %2137 = vmatpush.msra.mxu0 %v2000
    %2138 = vmatpush.msra.mxu0 %v1996
    %2139 = vmatpush.msra.mxu0 %v1992
    %2140 = vmatpush.msra.mxu0 %v1988
    %2141 = vmatpush.msra.mxu0 %v1984
    %2142 = vmatpush.msra.mxu0 %v1980
    %2143 = vmatpush.msra.mxu0 %v1976
    %2144 = vmatpush.msra.mxu0 %v1972
    %2145 = vmatpush.msra.mxu0 %v1968
    %2146 = vmatpush.msra.mxu0 %v1964
    %2147 = vmatpush.msra.mxu0 %v1960
    %2148 = vmatpush.msra.mxu0 %v1956
    %2149 = vmatmul.f32.gmra.mxu0 %v1950
    %v2150 = vpop.f32.mrf.mxu0
    %v2151 = vadd.f32 %v2086, %v2150
    %2152 = vdwg.mxu0
    %2153 = vmatpush.msra.mxu0 %v2080
    %2154 = vmatpush.msra.mxu0 %v2076
    %2155 = vmatpush.msra.mxu0 %v2072
    %2156 = vmatpush.msra.mxu0 %v2068
    %2157 = vmatpush.msra.mxu0 %v2064
    %2158 = vmatpush.msra.mxu0 %v2060
    %2159 = vmatpush.msra.mxu0 %v2056
    %2160 = vmatpush.msra.mxu0 %v2052
    %2161 = vmatpush.msra.mxu0 %v2048
    %2162 = vmatpush.msra.mxu0 %v2044
    %2163 = vmatpush.msra.mxu0 %v2040
    %2164 = vmatpush.msra.mxu0 %v2036
    %2165 = vmatpush.msra.mxu0 %v2032
    %2166 = vmatpush.msra.mxu0 %v2028
    %2167 = vmatpush.msra.mxu0 %v2024
    %2168 = vmatpush.msra.mxu0 %v2020
    %2169 = vmatmul.f32.gmra.mxu0 %v1953
    %v2170 = vpop.f32.mrf.mxu0
    %v2171 = vadd.f32 %v2151, %v2170
    %2172 = vdwg.mxu0
    %2173 = vmatpush.msra.mxu0 %v2017
    %2174 = vmatpush.msra.mxu0 %v2013
    %2175 = vmatpush.msra.mxu0 %v2009
    %2176 = vmatpush.msra.mxu0 %v2005
    %2177 = vmatpush.msra.mxu0 %v2001
    %2178 = vmatpush.msra.mxu0 %v1997
    %2179 = vmatpush.msra.mxu0 %v1993
    %2180 = vmatpush.msra.mxu0 %v1989
    %2181 = vmatpush.msra.mxu0 %v1985
    %2182 = vmatpush.msra.mxu0 %v1981
    %2183 = vmatpush.msra.mxu0 %v1977
    %2184 = vmatpush.msra.mxu0 %v1973
    %2185 = vmatpush.msra.mxu0 %v1969
    %2186 = vmatpush.msra.mxu0 %v1965
    %2187 = vmatpush.msra.mxu0 %v1961
    %2188 = vmatpush.msra.mxu0 %v1957
    %2189 = vmatmul.f32.gmra.mxu0 %v1950
    %v2190 = vpop.f32.mrf.mxu0
    %v2191 = vadd.f32 %v2087, %v2190
    %2192 = vdwg.mxu0
    %2193 = vmatpush.msra.mxu0 %v2081
    %2194 = vmatpush.msra.mxu0 %v2077
    %2195 = vmatpush.msra.mxu0 %v2073
    %2196 = vmatpush.msra.mxu0 %v2069
    %2197 = vmatpush.msra.mxu0 %v2065
    %2198 = vmatpush.msra.mxu0 %v2061
    %2199 = vmatpush.msra.mxu0 %v2057
    %2200 = vmatpush.msra.mxu0 %v2053
    %2201 = vmatpush.msra.mxu0 %v2049
    %2202 = vmatpush.msra.mxu0 %v2045
    %2203 = vmatpush.msra.mxu0 %v2041
    %2204 = vmatpush.msra.mxu0 %v2037
    %2205 = vmatpush.msra.mxu0 %v2033
    %2206 = vmatpush.msra.mxu0 %v2029
    %2207 = vmatpush.msra.mxu0 %v2025
    %2208 = vmatpush.msra.mxu0 %v2021
    %2209 = vmatmul.f32.gmra.mxu0 %v1953
    %v2210 = vpop.f32.mrf.mxu0
    %v2211 = vadd.f32 %v2191, %v2210
    %2212 = vdwg.mxu0
    %2213 = vmatpush.msra.mxu0 %v2018
    %2214 = vmatpush.msra.mxu0 %v2014
    %2215 = vmatpush.msra.mxu0 %v2010
    %2216 = vmatpush.msra.mxu0 %v2006
    %2217 = vmatpush.msra.mxu0 %v2002
    %2218 = vmatpush.msra.mxu0 %v1998
    %2219 = vmatpush.msra.mxu0 %v1994
    %2220 = vmatpush.msra.mxu0 %v1990
    %2221 = vmatpush.msra.mxu0 %v1986
    %2222 = vmatpush.msra.mxu0 %v1982
    %2223 = vmatpush.msra.mxu0 %v1978
    %2224 = vmatpush.msra.mxu0 %v1974
    %2225 = vmatpush.msra.mxu0 %v1970
    %2226 = vmatpush.msra.mxu0 %v1966
    %2227 = vmatpush.msra.mxu0 %v1962
    %2228 = vmatpush.msra.mxu0 %v1958
    %2229 = vmatmul.f32.gmra.mxu0 %v1950
    %v2230 = vpop.f32.mrf.mxu0
    %v2231 = vadd.f32 %v2088, %v2230
    %2232 = vdwg.mxu0
    %2233 = vmatpush.msra.mxu0 %v2082
    %2234 = vmatpush.msra.mxu0 %v2078
    %2235 = vmatpush.msra.mxu0 %v2074
    %2236 = vmatpush.msra.mxu0 %v2070
    %2237 = vmatpush.msra.mxu0 %v2066
    %2238 = vmatpush.msra.mxu0 %v2062
    %2239 = vmatpush.msra.mxu0 %v2058
    %2240 = vmatpush.msra.mxu0 %v2054
    %2241 = vmatpush.msra.mxu0 %v2050
    %2242 = vmatpush.msra.mxu0 %v2046
    %2243 = vmatpush.msra.mxu0 %v2042
    %2244 = vmatpush.msra.mxu0 %v2038
    %2245 = vmatpush.msra.mxu0 %v2034
    %2246 = vmatpush.msra.mxu0 %v2030
    %2247 = vmatpush.msra.mxu0 %v2026
    %2248 = vmatpush.msra.mxu0 %v2022
    %2249 = vmatmul.f32.gmra.mxu0 %v1953
    %v2250 = vpop.f32.mrf.mxu0
    %v2251 = vadd.f32 %v2231, %v2250
    %2252 = vdwg.mxu0
    %v2253 = vxor.u32 %v2131, 2147483648
    %v2254 = vmul.f32 %v2253, 1.442695
    %v2255 = vpow.pop %v2254
    %v2256 = vadd.f32 %v2255, 1.0
    %v2257 = vrcp.pop %v2256
    %v2258 = vmul.f32 %v2256, %v2257
    %v2259 = vsub.f32 1.0, %v2258
    %v2260 = vmul.f32 %v2257, %v2259
    %v2261 = vadd.f32 %v2257, %v2260
    %vm2262 = vweird.f32 %v2256
    %vm2263 = vweird.f32 %v2257
    %vm2264 = vmor %vm2262, %vm2263
    %v2265 = vsel %vm2264, %v2257, %v2261
    %v2266 = vand.u32 2147483647, %v2256
    %vm2267 = vcmp.eq.f32.partialorder %v2266, 8.507059e+37
    %v2268 = vand.u32 %v2256, 2147483648
    %v2269 = vor.u32 1.1754944e-38, %v2268
    %v2270 = vsel %vm2267, %v2269, %v2265
    %v2271 = vmul.f32 1.0, %v2270
    %v2272 = vxor.u32 %v2171, 2147483648
    %v2273 = vmul.f32 %v2272, 1.442695
    %v2274 = vpow.pop %v2273
    %v2275 = vadd.f32 %v2274, 1.0
    %v2276 = vrcp.pop %v2275
    %v2277 = vmul.f32 %v2275, %v2276
    %v2278 = vsub.f32 1.0, %v2277
    %v2279 = vmul.f32 %v2276, %v2278
    %v2280 = vadd.f32 %v2276, %v2279
    %vm2281 = vweird.f32 %v2275
    %vm2282 = vweird.f32 %v2276
    %vm2283 = vmor %vm2281, %vm2282
    %v2284 = vsel %vm2283, %v2276, %v2280
    %v2285 = vand.u32 2147483647, %v2275
    %vm2286 = vcmp.eq.f32.partialorder %v2285, 8.507059e+37
    %v2287 = vand.u32 %v2275, 2147483648
    %v2288 = vor.u32 1.1754944e-38, %v2287
    %v2289 = vsel %vm2286, %v2288, %v2284
    %v2290 = vmul.f32 1.0, %v2289
    %v2291 = vtanh.pop %v2211
    %v2292 = vxor.u32 %v2251, 2147483648
    %v2293 = vmul.f32 %v2292, 1.442695
    %v2294 = vpow.pop %v2293
    %v2295 = vadd.f32 %v2294, 1.0
    %v2296 = vrcp.pop %v2295
    %v2297 = vmul.f32 %v2295, %v2296
    %v2298 = vsub.f32 1.0, %v2297
    %v2299 = vmul.f32 %v2296, %v2298
    %v2300 = vadd.f32 %v2296, %v2299
    %vm2301 = vweird.f32 %v2295
    %vm2302 = vweird.f32 %v2296
    %vm2303 = vmor %vm2301, %vm2302
    %v2304 = vsel %vm2303, %v2296, %v2300
    %v2305 = vand.u32 2147483647, %v2295
    %vm2306 = vcmp.eq.f32.partialorder %v2305, 8.507059e+37
    %v2307 = vand.u32 %v2295, 2147483648
    %v2308 = vor.u32 1.1754944e-38, %v2307
    %v2309 = vsel %vm2306, %v2308, %v2304
    %v2310 = vmul.f32 1.0, %v2309
    %v2311 = vmul.f32 %v2290, %v1954
    %v2312 = vmul.f32 %v2271, %v2291
    %v2313 = vadd.f32 %v2311, %v2312
    %v2314 = vtanh.pop %v2313
    %v2315 = vmul.f32 %v2310, %v2314
    %2316 = vst [vmem:[%s487] sm:$0x3] %v2315
    %2317 = vst [vmem:[%s489] sm:$0x3] %v2313
    %s2318 = scalar_lea.vmem [#allocation4], 6
    %v2319 = vld [vmem:[%s2318] sm:$0x3]
    %v2320 = vld [vmem:[#allocation2] sm:$0x3]
    %v2321 = vld [vmem:[#allocation3] sm:$0x3]
    %v2322 = vld [vmem:[#allocation7] sm:$0xff]
    %v2323 = vld [vmem:[#allocation7 + $0x8] sm:$0xff]
    %v2324 = vld [vmem:[#allocation7 + $0x10] sm:$0xff]
    %v2325 = vld [vmem:[#allocation7 + $0x18] sm:$0xff]
    %v2326 = vld [vmem:[#allocation7 + $0x20] sm:$0xff]
    %v2327 = vld [vmem:[#allocation7 + $0x28] sm:$0xff]
    %v2328 = vld [vmem:[#allocation7 + $0x30] sm:$0xff]
    %v2329 = vld [vmem:[#allocation7 + $0x38] sm:$0xff]
    %v2330 = vld [vmem:[#allocation7 + $0x40] sm:$0xff]
    %v2331 = vld [vmem:[#allocation7 + $0x48] sm:$0xff]
    %v2332 = vld [vmem:[#allocation7 + $0x50] sm:$0xff]
    %v2333 = vld [vmem:[#allocation7 + $0x58] sm:$0xff]
    %v2334 = vld [vmem:[#allocation7 + $0x60] sm:$0xff]
    %v2335 = vld [vmem:[#allocation7 + $0x68] sm:$0xff]
    %v2336 = vld [vmem:[#allocation7 + $0x70] sm:$0xff]
    %v2337 = vld [vmem:[#allocation7 + $0x78] sm:$0xff]
    %v2338 = vld [vmem:[#allocation7 + $0x80] sm:$0xff]
    %v2339 = vld [vmem:[#allocation7 + $0x88] sm:$0xff]
    %v2340 = vld [vmem:[#allocation7 + $0x90] sm:$0xff]
    %v2341 = vld [vmem:[#allocation7 + $0x98] sm:$0xff]
    %v2342 = vld [vmem:[#allocation7 + $0xa0] sm:$0xff]
    %v2343 = vld [vmem:[#allocation7 + $0xa8] sm:$0xff]
    %v2344 = vld [vmem:[#allocation7 + $0xb0] sm:$0xff]
    %v2345 = vld [vmem:[#allocation7 + $0xb8] sm:$0xff]
    %v2346 = vld [vmem:[#allocation7 + $0xc0] sm:$0xff]
    %v2347 = vld [vmem:[#allocation7 + $0xc8] sm:$0xff]
    %v2348 = vld [vmem:[#allocation7 + $0xd0] sm:$0xff]
    %v2349 = vld [vmem:[#allocation7 + $0xd8] sm:$0xff]
    %v2350 = vld [vmem:[#allocation7 + $0xe0] sm:$0xff]
    %v2351 = vld [vmem:[#allocation7 + $0xe8] sm:$0xff]
    %v2352 = vld [vmem:[#allocation7 + $0xf0] sm:$0xff]
    %v2353 = vld [vmem:[#allocation7 + $0xf8] sm:$0xff]
    %v2354 = vld [vmem:[#allocation7 + $0x100] sm:$0xff]
    %v2355 = vld [vmem:[#allocation7 + $0x108] sm:$0xff]
    %v2356 = vld [vmem:[#allocation7 + $0x110] sm:$0xff]
    %v2357 = vld [vmem:[#allocation7 + $0x118] sm:$0xff]
    %v2358 = vld [vmem:[#allocation7 + $0x120] sm:$0xff]
    %v2359 = vld [vmem:[#allocation7 + $0x128] sm:$0xff]
    %v2360 = vld [vmem:[#allocation7 + $0x130] sm:$0xff]
    %v2361 = vld [vmem:[#allocation7 + $0x138] sm:$0xff]
    %v2362 = vld [vmem:[#allocation7 + $0x140] sm:$0xff]
    %v2363 = vld [vmem:[#allocation7 + $0x148] sm:$0xff]
    %v2364 = vld [vmem:[#allocation7 + $0x150] sm:$0xff]
    %v2365 = vld [vmem:[#allocation7 + $0x158] sm:$0xff]
    %v2366 = vld [vmem:[#allocation7 + $0x160] sm:$0xff]
    %v2367 = vld [vmem:[#allocation7 + $0x168] sm:$0xff]
    %v2368 = vld [vmem:[#allocation7 + $0x170] sm:$0xff]
    %v2369 = vld [vmem:[#allocation7 + $0x178] sm:$0xff]
    %v2370 = vld [vmem:[#allocation7 + $0x180] sm:$0xff]
    %v2371 = vld [vmem:[#allocation7 + $0x188] sm:$0xff]
    %v2372 = vld [vmem:[#allocation7 + $0x190] sm:$0xff]
    %v2373 = vld [vmem:[#allocation7 + $0x198] sm:$0xff]
    %v2374 = vld [vmem:[#allocation7 + $0x1a0] sm:$0xff]
    %v2375 = vld [vmem:[#allocation7 + $0x1a8] sm:$0xff]
    %v2376 = vld [vmem:[#allocation7 + $0x1b0] sm:$0xff]
    %v2377 = vld [vmem:[#allocation7 + $0x1b8] sm:$0xff]
    %v2378 = vld [vmem:[#allocation7 + $0x1c0] sm:$0xff]
    %v2379 = vld [vmem:[#allocation7 + $0x1c8] sm:$0xff]
    %v2380 = vld [vmem:[#allocation7 + $0x1d0] sm:$0xff]
    %v2381 = vld [vmem:[#allocation7 + $0x1d8] sm:$0xff]
    %v2382 = vld [vmem:[#allocation7 + $0x1e0] sm:$0xff]
    %v2383 = vld [vmem:[#allocation7 + $0x1e8] sm:$0xff]
    %v2384 = vld [vmem:[#allocation7 + $0x1f0] sm:$0xff]
    %v2385 = vld [vmem:[#allocation7 + $0x1f8] sm:$0xff]
    %v2386 = vld [vmem:[#allocation7 + $0x200] sm:$0xff]
    %v2387 = vld [vmem:[#allocation7 + $0x208] sm:$0xff]
    %v2388 = vld [vmem:[#allocation7 + $0x210] sm:$0xff]
    %v2389 = vld [vmem:[#allocation7 + $0x218] sm:$0xff]
    %v2390 = vld [vmem:[#allocation7 + $0x220] sm:$0xff]
    %v2391 = vld [vmem:[#allocation7 + $0x228] sm:$0xff]
    %v2392 = vld [vmem:[#allocation7 + $0x230] sm:$0xff]
    %v2393 = vld [vmem:[#allocation7 + $0x238] sm:$0xff]
    %v2394 = vld [vmem:[#allocation7 + $0x240] sm:$0xff]
    %v2395 = vld [vmem:[#allocation7 + $0x248] sm:$0xff]
    %v2396 = vld [vmem:[#allocation7 + $0x250] sm:$0xff]
    %v2397 = vld [vmem:[#allocation7 + $0x258] sm:$0xff]
    %v2398 = vld [vmem:[#allocation7 + $0x260] sm:$0xff]
    %v2399 = vld [vmem:[#allocation7 + $0x268] sm:$0xff]
    %v2400 = vld [vmem:[#allocation7 + $0x270] sm:$0xff]
    %v2401 = vld [vmem:[#allocation7 + $0x278] sm:$0xff]
    %v2402 = vld [vmem:[#allocation7 + $0x280] sm:$0xff]
    %v2403 = vld [vmem:[#allocation7 + $0x288] sm:$0xff]
    %v2404 = vld [vmem:[#allocation7 + $0x290] sm:$0xff]
    %v2405 = vld [vmem:[#allocation7 + $0x298] sm:$0xff]
    %v2406 = vld [vmem:[#allocation7 + $0x2a0] sm:$0xff]
    %v2407 = vld [vmem:[#allocation7 + $0x2a8] sm:$0xff]
    %v2408 = vld [vmem:[#allocation7 + $0x2b0] sm:$0xff]
    %v2409 = vld [vmem:[#allocation7 + $0x2b8] sm:$0xff]
    %v2410 = vld [vmem:[#allocation7 + $0x2c0] sm:$0xff]
    %v2411 = vld [vmem:[#allocation7 + $0x2c8] sm:$0xff]
    %v2412 = vld [vmem:[#allocation7 + $0x2d0] sm:$0xff]
    %v2413 = vld [vmem:[#allocation7 + $0x2d8] sm:$0xff]
    %v2414 = vld [vmem:[#allocation7 + $0x2e0] sm:$0xff]
    %v2415 = vld [vmem:[#allocation7 + $0x2e8] sm:$0xff]
    %v2416 = vld [vmem:[#allocation7 + $0x2f0] sm:$0xff]
    %v2417 = vld [vmem:[#allocation7 + $0x2f8] sm:$0xff]
    %v2418 = vld [vmem:[#allocation7 + $0x300] sm:$0xff]
    %v2419 = vld [vmem:[#allocation7 + $0x308] sm:$0xff]
    %v2420 = vld [vmem:[#allocation7 + $0x310] sm:$0xff]
    %v2421 = vld [vmem:[#allocation7 + $0x318] sm:$0xff]
    %v2422 = vld [vmem:[#allocation7 + $0x320] sm:$0xff]
    %v2423 = vld [vmem:[#allocation7 + $0x328] sm:$0xff]
    %v2424 = vld [vmem:[#allocation7 + $0x330] sm:$0xff]
    %v2425 = vld [vmem:[#allocation7 + $0x338] sm:$0xff]
    %v2426 = vld [vmem:[#allocation7 + $0x340] sm:$0xff]
    %v2427 = vld [vmem:[#allocation7 + $0x348] sm:$0xff]
    %v2428 = vld [vmem:[#allocation7 + $0x350] sm:$0xff]
    %v2429 = vld [vmem:[#allocation7 + $0x358] sm:$0xff]
    %v2430 = vld [vmem:[#allocation7 + $0x360] sm:$0xff]
    %v2431 = vld [vmem:[#allocation7 + $0x368] sm:$0xff]
    %v2432 = vld [vmem:[#allocation7 + $0x370] sm:$0xff]
    %v2433 = vld [vmem:[#allocation7 + $0x378] sm:$0xff]
    %v2434 = vld [vmem:[#allocation7 + $0x380] sm:$0xff]
    %v2435 = vld [vmem:[#allocation7 + $0x388] sm:$0xff]
    %v2436 = vld [vmem:[#allocation7 + $0x390] sm:$0xff]
    %v2437 = vld [vmem:[#allocation7 + $0x398] sm:$0xff]
    %v2438 = vld [vmem:[#allocation7 + $0x3a0] sm:$0xff]
    %v2439 = vld [vmem:[#allocation7 + $0x3a8] sm:$0xff]
    %v2440 = vld [vmem:[#allocation7 + $0x3b0] sm:$0xff]
    %v2441 = vld [vmem:[#allocation7 + $0x3b8] sm:$0xff]
    %v2442 = vld [vmem:[#allocation7 + $0x3c0] sm:$0xff]
    %v2443 = vld [vmem:[#allocation7 + $0x3c8] sm:$0xff]
    %v2444 = vld [vmem:[#allocation7 + $0x3d0] sm:$0xff]
    %v2445 = vld [vmem:[#allocation7 + $0x3d8] sm:$0xff]
    %v2446 = vld [vmem:[#allocation7 + $0x3e0] sm:$0xff]
    %v2447 = vld [vmem:[#allocation7 + $0x3e8] sm:$0xff]
    %v2448 = vld [vmem:[#allocation7 + $0x3f0] sm:$0xff]
    %v2449 = vld [vmem:[#allocation7 + $0x3f8] sm:$0xff]
    %v2450 = vld [vmem:[#allocation9] sm:$0xf]
    %v2452 = vperm.slane %v2450, 0
    %v2453 = vperm.slane %v2450, 1
    %v2454 = vperm.slane %v2450, 2
    %v2455 = vperm.slane %v2450, 3
    %2460 = vmatpush.msra.mxu0 %v2382
    %2461 = vmatpush.msra.mxu0 %v2378
    %2462 = vmatpush.msra.mxu0 %v2374
    %2463 = vmatpush.msra.mxu0 %v2370
    %2464 = vmatpush.msra.mxu0 %v2366
    %2465 = vmatpush.msra.mxu0 %v2362
    %2466 = vmatpush.msra.mxu0 %v2358
    %2467 = vmatpush.msra.mxu0 %v2354
    %2468 = vmatpush.msra.mxu0 %v2350
    %2469 = vmatpush.msra.mxu0 %v2346
    %2470 = vmatpush.msra.mxu0 %v2342
    %2471 = vmatpush.msra.mxu0 %v2338
    %2472 = vmatpush.msra.mxu0 %v2334
    %2473 = vmatpush.msra.mxu0 %v2330
    %2474 = vmatpush.msra.mxu0 %v2326
    %2475 = vmatpush.msra.mxu0 %v2322
    %2476 = vmatmul.f32.gmra.mxu0 %v2319
    %v2477 = vpop.f32.mrf.mxu0
    %v2478 = vadd.f32 %v2452, %v2477
    %2479 = vdwg.mxu0
    %2480 = vmatpush.msra.mxu0 %v2446
    %2481 = vmatpush.msra.mxu0 %v2442
    %2482 = vmatpush.msra.mxu0 %v2438
    %2483 = vmatpush.msra.mxu0 %v2434
    %2484 = vmatpush.msra.mxu0 %v2430
    %2485 = vmatpush.msra.mxu0 %v2426
    %2486 = vmatpush.msra.mxu0 %v2422
    %2487 = vmatpush.msra.mxu0 %v2418
    %2488 = vmatpush.msra.mxu0 %v2414
    %2489 = vmatpush.msra.mxu0 %v2410
    %2490 = vmatpush.msra.mxu0 %v2406
    %2491 = vmatpush.msra.mxu0 %v2402
    %2492 = vmatpush.msra.mxu0 %v2398
    %2493 = vmatpush.msra.mxu0 %v2394
    %2494 = vmatpush.msra.mxu0 %v2390
    %2495 = vmatpush.msra.mxu0 %v2386
    %2496 = vmatmul.f32.gmra.mxu0 %v2320
    %v2497 = vpop.f32.mrf.mxu0
    %v2498 = vadd.f32 %v2478, %v2497
    %2499 = vdwg.mxu0
    %2500 = vmatpush.msra.mxu0 %v2383
    %2501 = vmatpush.msra.mxu0 %v2379
    %2502 = vmatpush.msra.mxu0 %v2375
    %2503 = vmatpush.msra.mxu0 %v2371
    %2504 = vmatpush.msra.mxu0 %v2367
    %2505 = vmatpush.msra.mxu0 %v2363
    %2506 = vmatpush.msra.mxu0 %v2359
    %2507 = vmatpush.msra.mxu0 %v2355
    %2508 = vmatpush.msra.mxu0 %v2351
    %2509 = vmatpush.msra.mxu0 %v2347
    %2510 = vmatpush.msra.mxu0 %v2343
    %2511 = vmatpush.msra.mxu0 %v2339
    %2512 = vmatpush.msra.mxu0 %v2335
    %2513 = vmatpush.msra.mxu0 %v2331
    %2514 = vmatpush.msra.mxu0 %v2327
    %2515 = vmatpush.msra.mxu0 %v2323
    %2516 = vmatmul.f32.gmra.mxu0 %v2319
    %v2517 = vpop.f32.mrf.mxu0
    %v2518 = vadd.f32 %v2453, %v2517
    %2519 = vdwg.mxu0
    %2520 = vmatpush.msra.mxu0 %v2447
    %2521 = vmatpush.msra.mxu0 %v2443
    %2522 = vmatpush.msra.mxu0 %v2439
    %2523 = vmatpush.msra.mxu0 %v2435
    %2524 = vmatpush.msra.mxu0 %v2431
    %2525 = vmatpush.msra.mxu0 %v2427
    %2526 = vmatpush.msra.mxu0 %v2423
    %2527 = vmatpush.msra.mxu0 %v2419
    %2528 = vmatpush.msra.mxu0 %v2415
    %2529 = vmatpush.msra.mxu0 %v2411
    %2530 = vmatpush.msra.mxu0 %v2407
    %2531 = vmatpush.msra.mxu0 %v2403
    %2532 = vmatpush.msra.mxu0 %v2399
    %2533 = vmatpush.msra.mxu0 %v2395
    %2534 = vmatpush.msra.mxu0 %v2391
    %2535 = vmatpush.msra.mxu0 %v2387
    %2536 = vmatmul.f32.gmra.mxu0 %v2320
    %v2537 = vpop.f32.mrf.mxu0
    %v2538 = vadd.f32 %v2518, %v2537
    %2539 = vdwg.mxu0
    %2540 = vmatpush.msra.mxu0 %v2384
    %2541 = vmatpush.msra.mxu0 %v2380
    %2542 = vmatpush.msra.mxu0 %v2376
    %2543 = vmatpush.msra.mxu0 %v2372
    %2544 = vmatpush.msra.mxu0 %v2368
    %2545 = vmatpush.msra.mxu0 %v2364
    %2546 = vmatpush.msra.mxu0 %v2360
    %2547 = vmatpush.msra.mxu0 %v2356
    %2548 = vmatpush.msra.mxu0 %v2352
    %2549 = vmatpush.msra.mxu0 %v2348
    %2550 = vmatpush.msra.mxu0 %v2344
    %2551 = vmatpush.msra.mxu0 %v2340
    %2552 = vmatpush.msra.mxu0 %v2336
    %2553 = vmatpush.msra.mxu0 %v2332
    %2554 = vmatpush.msra.mxu0 %v2328
    %2555 = vmatpush.msra.mxu0 %v2324
    %2556 = vmatmul.f32.gmra.mxu0 %v2319
    %v2557 = vpop.f32.mrf.mxu0
    %v2558 = vadd.f32 %v2454, %v2557
    %2559 = vdwg.mxu0
    %2560 = vmatpush.msra.mxu0 %v2448
    %2561 = vmatpush.msra.mxu0 %v2444
    %2562 = vmatpush.msra.mxu0 %v2440
    %2563 = vmatpush.msra.mxu0 %v2436
    %2564 = vmatpush.msra.mxu0 %v2432
    %2565 = vmatpush.msra.mxu0 %v2428
    %2566 = vmatpush.msra.mxu0 %v2424
    %2567 = vmatpush.msra.mxu0 %v2420
    %2568 = vmatpush.msra.mxu0 %v2416
    %2569 = vmatpush.msra.mxu0 %v2412
    %2570 = vmatpush.msra.mxu0 %v2408
    %2571 = vmatpush.msra.mxu0 %v2404
    %2572 = vmatpush.msra.mxu0 %v2400
    %2573 = vmatpush.msra.mxu0 %v2396
    %2574 = vmatpush.msra.mxu0 %v2392
    %2575 = vmatpush.msra.mxu0 %v2388
    %2576 = vmatmul.f32.gmra.mxu0 %v2320
    %v2577 = vpop.f32.mrf.mxu0
    %v2578 = vadd.f32 %v2558, %v2577
    %2579 = vdwg.mxu0
    %2580 = vmatpush.msra.mxu0 %v2385
    %2581 = vmatpush.msra.mxu0 %v2381
    %2582 = vmatpush.msra.mxu0 %v2377
    %2583 = vmatpush.msra.mxu0 %v2373
    %2584 = vmatpush.msra.mxu0 %v2369
    %2585 = vmatpush.msra.mxu0 %v2365
    %2586 = vmatpush.msra.mxu0 %v2361
    %2587 = vmatpush.msra.mxu0 %v2357
    %2588 = vmatpush.msra.mxu0 %v2353
    %2589 = vmatpush.msra.mxu0 %v2349
    %2590 = vmatpush.msra.mxu0 %v2345
    %2591 = vmatpush.msra.mxu0 %v2341
    %2592 = vmatpush.msra.mxu0 %v2337
    %2593 = vmatpush.msra.mxu0 %v2333
    %2594 = vmatpush.msra.mxu0 %v2329
    %2595 = vmatpush.msra.mxu0 %v2325
    %2596 = vmatmul.f32.gmra.mxu0 %v2319
    %v2597 = vpop.f32.mrf.mxu0
    %v2598 = vadd.f32 %v2455, %v2597
    %2599 = vdwg.mxu0
    %2600 = vmatpush.msra.mxu0 %v2449
    %2601 = vmatpush.msra.mxu0 %v2445
    %2602 = vmatpush.msra.mxu0 %v2441
    %2603 = vmatpush.msra.mxu0 %v2437
    %2604 = vmatpush.msra.mxu0 %v2433
    %2605 = vmatpush.msra.mxu0 %v2429
    %2606 = vmatpush.msra.mxu0 %v2425
    %2607 = vmatpush.msra.mxu0 %v2421
    %2608 = vmatpush.msra.mxu0 %v2417
    %2609 = vmatpush.msra.mxu0 %v2413
    %2610 = vmatpush.msra.mxu0 %v2409
    %2611 = vmatpush.msra.mxu0 %v2405
    %2612 = vmatpush.msra.mxu0 %v2401
    %2613 = vmatpush.msra.mxu0 %v2397
    %2614 = vmatpush.msra.mxu0 %v2393
    %2615 = vmatpush.msra.mxu0 %v2389
    %2616 = vmatmul.f32.gmra.mxu0 %v2320
    %v2617 = vpop.f32.mrf.mxu0
    %v2618 = vadd.f32 %v2598, %v2617
    %2619 = vdwg.mxu0
    %v2620 = vxor.u32 %v2498, 2147483648
    %v2621 = vmul.f32 %v2620, 1.442695
    %v2622 = vpow.pop %v2621
    %v2623 = vadd.f32 %v2622, 1.0
    %v2624 = vrcp.pop %v2623
    %v2625 = vmul.f32 %v2623, %v2624
    %v2626 = vsub.f32 1.0, %v2625
    %v2627 = vmul.f32 %v2624, %v2626
    %v2628 = vadd.f32 %v2624, %v2627
    %vm2629 = vweird.f32 %v2623
    %vm2630 = vweird.f32 %v2624
    %vm2631 = vmor %vm2629, %vm2630
    %v2632 = vsel %vm2631, %v2624, %v2628
    %v2633 = vand.u32 2147483647, %v2623
    %vm2634 = vcmp.eq.f32.partialorder %v2633, 8.507059e+37
    %v2635 = vand.u32 %v2623, 2147483648
    %v2636 = vor.u32 1.1754944e-38, %v2635
    %v2637 = vsel %vm2634, %v2636, %v2632
    %v2638 = vmul.f32 1.0, %v2637
    %v2639 = vxor.u32 %v2538, 2147483648
    %v2640 = vmul.f32 %v2639, 1.442695
    %v2641 = vpow.pop %v2640
    %v2642 = vadd.f32 %v2641, 1.0
    %v2643 = vrcp.pop %v2642
    %v2644 = vmul.f32 %v2642, %v2643
    %v2645 = vsub.f32 1.0, %v2644
    %v2646 = vmul.f32 %v2643, %v2645
    %v2647 = vadd.f32 %v2643, %v2646
    %vm2648 = vweird.f32 %v2642
    %vm2649 = vweird.f32 %v2643
    %vm2650 = vmor %vm2648, %vm2649
    %v2651 = vsel %vm2650, %v2643, %v2647
    %v2652 = vand.u32 2147483647, %v2642
    %vm2653 = vcmp.eq.f32.partialorder %v2652, 8.507059e+37
    %v2654 = vand.u32 %v2642, 2147483648
    %v2655 = vor.u32 1.1754944e-38, %v2654
    %v2656 = vsel %vm2653, %v2655, %v2651
    %v2657 = vmul.f32 1.0, %v2656
    %v2658 = vtanh.pop %v2578
    %v2659 = vxor.u32 %v2618, 2147483648
    %v2660 = vmul.f32 %v2659, 1.442695
    %v2661 = vpow.pop %v2660
    %v2662 = vadd.f32 %v2661, 1.0
    %v2663 = vrcp.pop %v2662
    %v2664 = vmul.f32 %v2662, %v2663
    %v2665 = vsub.f32 1.0, %v2664
    %v2666 = vmul.f32 %v2663, %v2665
    %v2667 = vadd.f32 %v2663, %v2666
    %vm2668 = vweird.f32 %v2662
    %vm2669 = vweird.f32 %v2663
    %vm2670 = vmor %vm2668, %vm2669
    %v2671 = vsel %vm2670, %v2663, %v2667
    %v2672 = vand.u32 2147483647, %v2662
    %vm2673 = vcmp.eq.f32.partialorder %v2672, 8.507059e+37
    %v2674 = vand.u32 %v2662, 2147483648
    %v2675 = vor.u32 1.1754944e-38, %v2674
    %v2676 = vsel %vm2673, %v2675, %v2671
    %v2677 = vmul.f32 1.0, %v2676
    %v2678 = vmul.f32 %v2657, %v2321
    %v2679 = vmul.f32 %v2638, %v2658
    %v2680 = vadd.f32 %v2678, %v2679
    %v2681 = vtanh.pop %v2680
    %v2682 = vmul.f32 %v2677, %v2681
    %2683 = vst [vmem:[#allocation2] sm:$0x3] %v2682
    %2684 = vst [vmem:[#allocation3] sm:$0x3] %v2680
    %v2685 = vld [vmem:[%s487] sm:$0x3]
    %v2686 = vld [vmem:[%s489] sm:$0x3]
    %v2687 = vld [vmem:[#allocation10] sm:$0xff]
    %v2688 = vld [vmem:[#allocation10 + $0x8] sm:$0xff]
    %v2689 = vld [vmem:[#allocation10 + $0x10] sm:$0xff]
    %v2690 = vld [vmem:[#allocation10 + $0x18] sm:$0xff]
    %v2691 = vld [vmem:[#allocation10 + $0x20] sm:$0xff]
    %v2692 = vld [vmem:[#allocation10 + $0x28] sm:$0xff]
    %v2693 = vld [vmem:[#allocation10 + $0x30] sm:$0xff]
    %v2694 = vld [vmem:[#allocation10 + $0x38] sm:$0xff]
    %v2695 = vld [vmem:[#allocation10 + $0x40] sm:$0xff]
    %v2696 = vld [vmem:[#allocation10 + $0x48] sm:$0xff]
    %v2697 = vld [vmem:[#allocation10 + $0x50] sm:$0xff]
    %v2698 = vld [vmem:[#allocation10 + $0x58] sm:$0xff]
    %v2699 = vld [vmem:[#allocation10 + $0x60] sm:$0xff]
    %v2700 = vld [vmem:[#allocation10 + $0x68] sm:$0xff]
    %v2701 = vld [vmem:[#allocation10 + $0x70] sm:$0xff]
    %v2702 = vld [vmem:[#allocation10 + $0x78] sm:$0xff]
    %v2703 = vld [vmem:[#allocation10 + $0x80] sm:$0xff]
    %v2704 = vld [vmem:[#allocation10 + $0x88] sm:$0xff]
    %v2705 = vld [vmem:[#allocation10 + $0x90] sm:$0xff]
    %v2706 = vld [vmem:[#allocation10 + $0x98] sm:$0xff]
    %v2707 = vld [vmem:[#allocation10 + $0xa0] sm:$0xff]
    %v2708 = vld [vmem:[#allocation10 + $0xa8] sm:$0xff]
    %v2709 = vld [vmem:[#allocation10 + $0xb0] sm:$0xff]
    %v2710 = vld [vmem:[#allocation10 + $0xb8] sm:$0xff]
    %v2711 = vld [vmem:[#allocation10 + $0xc0] sm:$0xff]
    %v2712 = vld [vmem:[#allocation10 + $0xc8] sm:$0xff]
    %v2713 = vld [vmem:[#allocation10 + $0xd0] sm:$0xff]
    %v2714 = vld [vmem:[#allocation10 + $0xd8] sm:$0xff]
    %v2715 = vld [vmem:[#allocation10 + $0xe0] sm:$0xff]
    %v2716 = vld [vmem:[#allocation10 + $0xe8] sm:$0xff]
    %v2717 = vld [vmem:[#allocation10 + $0xf0] sm:$0xff]
    %v2718 = vld [vmem:[#allocation10 + $0xf8] sm:$0xff]
    %v2719 = vld [vmem:[#allocation10 + $0x100] sm:$0xff]
    %v2720 = vld [vmem:[#allocation10 + $0x108] sm:$0xff]
    %v2721 = vld [vmem:[#allocation10 + $0x110] sm:$0xff]
    %v2722 = vld [vmem:[#allocation10 + $0x118] sm:$0xff]
    %v2723 = vld [vmem:[#allocation10 + $0x120] sm:$0xff]
    %v2724 = vld [vmem:[#allocation10 + $0x128] sm:$0xff]
    %v2725 = vld [vmem:[#allocation10 + $0x130] sm:$0xff]
    %v2726 = vld [vmem:[#allocation10 + $0x138] sm:$0xff]
    %v2727 = vld [vmem:[#allocation10 + $0x140] sm:$0xff]
    %v2728 = vld [vmem:[#allocation10 + $0x148] sm:$0xff]
    %v2729 = vld [vmem:[#allocation10 + $0x150] sm:$0xff]
    %v2730 = vld [vmem:[#allocation10 + $0x158] sm:$0xff]
    %v2731 = vld [vmem:[#allocation10 + $0x160] sm:$0xff]
    %v2732 = vld [vmem:[#allocation10 + $0x168] sm:$0xff]
    %v2733 = vld [vmem:[#allocation10 + $0x170] sm:$0xff]
    %v2734 = vld [vmem:[#allocation10 + $0x178] sm:$0xff]
    %v2735 = vld [vmem:[#allocation10 + $0x180] sm:$0xff]
    %v2736 = vld [vmem:[#allocation10 + $0x188] sm:$0xff]
    %v2737 = vld [vmem:[#allocation10 + $0x190] sm:$0xff]
    %v2738 = vld [vmem:[#allocation10 + $0x198] sm:$0xff]
    %v2739 = vld [vmem:[#allocation10 + $0x1a0] sm:$0xff]
    %v2740 = vld [vmem:[#allocation10 + $0x1a8] sm:$0xff]
    %v2741 = vld [vmem:[#allocation10 + $0x1b0] sm:$0xff]
    %v2742 = vld [vmem:[#allocation10 + $0x1b8] sm:$0xff]
    %v2743 = vld [vmem:[#allocation10 + $0x1c0] sm:$0xff]
    %v2744 = vld [vmem:[#allocation10 + $0x1c8] sm:$0xff]
    %v2745 = vld [vmem:[#allocation10 + $0x1d0] sm:$0xff]
    %v2746 = vld [vmem:[#allocation10 + $0x1d8] sm:$0xff]
    %v2747 = vld [vmem:[#allocation10 + $0x1e0] sm:$0xff]
    %v2748 = vld [vmem:[#allocation10 + $0x1e8] sm:$0xff]
    %v2749 = vld [vmem:[#allocation10 + $0x1f0] sm:$0xff]
    %v2750 = vld [vmem:[#allocation10 + $0x1f8] sm:$0xff]
    %v2751 = vld [vmem:[#allocation10 + $0x200] sm:$0xff]
    %v2752 = vld [vmem:[#allocation10 + $0x208] sm:$0xff]
    %v2753 = vld [vmem:[#allocation10 + $0x210] sm:$0xff]
    %v2754 = vld [vmem:[#allocation10 + $0x218] sm:$0xff]
    %v2755 = vld [vmem:[#allocation10 + $0x220] sm:$0xff]
    %v2756 = vld [vmem:[#allocation10 + $0x228] sm:$0xff]
    %v2757 = vld [vmem:[#allocation10 + $0x230] sm:$0xff]
    %v2758 = vld [vmem:[#allocation10 + $0x238] sm:$0xff]
    %v2759 = vld [vmem:[#allocation10 + $0x240] sm:$0xff]
    %v2760 = vld [vmem:[#allocation10 + $0x248] sm:$0xff]
    %v2761 = vld [vmem:[#allocation10 + $0x250] sm:$0xff]
    %v2762 = vld [vmem:[#allocation10 + $0x258] sm:$0xff]
    %v2763 = vld [vmem:[#allocation10 + $0x260] sm:$0xff]
    %v2764 = vld [vmem:[#allocation10 + $0x268] sm:$0xff]
    %v2765 = vld [vmem:[#allocation10 + $0x270] sm:$0xff]
    %v2766 = vld [vmem:[#allocation10 + $0x278] sm:$0xff]
    %v2767 = vld [vmem:[#allocation10 + $0x280] sm:$0xff]
    %v2768 = vld [vmem:[#allocation10 + $0x288] sm:$0xff]
    %v2769 = vld [vmem:[#allocation10 + $0x290] sm:$0xff]
    %v2770 = vld [vmem:[#allocation10 + $0x298] sm:$0xff]
    %v2771 = vld [vmem:[#allocation10 + $0x2a0] sm:$0xff]
    %v2772 = vld [vmem:[#allocation10 + $0x2a8] sm:$0xff]
    %v2773 = vld [vmem:[#allocation10 + $0x2b0] sm:$0xff]
    %v2774 = vld [vmem:[#allocation10 + $0x2b8] sm:$0xff]
    %v2775 = vld [vmem:[#allocation10 + $0x2c0] sm:$0xff]
    %v2776 = vld [vmem:[#allocation10 + $0x2c8] sm:$0xff]
    %v2777 = vld [vmem:[#allocation10 + $0x2d0] sm:$0xff]
    %v2778 = vld [vmem:[#allocation10 + $0x2d8] sm:$0xff]
    %v2779 = vld [vmem:[#allocation10 + $0x2e0] sm:$0xff]
    %v2780 = vld [vmem:[#allocation10 + $0x2e8] sm:$0xff]
    %v2781 = vld [vmem:[#allocation10 + $0x2f0] sm:$0xff]
    %v2782 = vld [vmem:[#allocation10 + $0x2f8] sm:$0xff]
    %v2783 = vld [vmem:[#allocation10 + $0x300] sm:$0xff]
    %v2784 = vld [vmem:[#allocation10 + $0x308] sm:$0xff]
    %v2785 = vld [vmem:[#allocation10 + $0x310] sm:$0xff]
    %v2786 = vld [vmem:[#allocation10 + $0x318] sm:$0xff]
    %v2787 = vld [vmem:[#allocation10 + $0x320] sm:$0xff]
    %v2788 = vld [vmem:[#allocation10 + $0x328] sm:$0xff]
    %v2789 = vld [vmem:[#allocation10 + $0x330] sm:$0xff]
    %v2790 = vld [vmem:[#allocation10 + $0x338] sm:$0xff]
    %v2791 = vld [vmem:[#allocation10 + $0x340] sm:$0xff]
    %v2792 = vld [vmem:[#allocation10 + $0x348] sm:$0xff]
    %v2793 = vld [vmem:[#allocation10 + $0x350] sm:$0xff]
    %v2794 = vld [vmem:[#allocation10 + $0x358] sm:$0xff]
    %v2795 = vld [vmem:[#allocation10 + $0x360] sm:$0xff]
    %v2796 = vld [vmem:[#allocation10 + $0x368] sm:$0xff]
    %v2797 = vld [vmem:[#allocation10 + $0x370] sm:$0xff]
    %v2798 = vld [vmem:[#allocation10 + $0x378] sm:$0xff]
    %v2799 = vld [vmem:[#allocation10 + $0x380] sm:$0xff]
    %v2800 = vld [vmem:[#allocation10 + $0x388] sm:$0xff]
    %v2801 = vld [vmem:[#allocation10 + $0x390] sm:$0xff]
    %v2802 = vld [vmem:[#allocation10 + $0x398] sm:$0xff]
    %v2803 = vld [vmem:[#allocation10 + $0x3a0] sm:$0xff]
    %v2804 = vld [vmem:[#allocation10 + $0x3a8] sm:$0xff]
    %v2805 = vld [vmem:[#allocation10 + $0x3b0] sm:$0xff]
    %v2806 = vld [vmem:[#allocation10 + $0x3b8] sm:$0xff]
    %v2807 = vld [vmem:[#allocation10 + $0x3c0] sm:$0xff]
    %v2808 = vld [vmem:[#allocation10 + $0x3c8] sm:$0xff]
    %v2809 = vld [vmem:[#allocation10 + $0x3d0] sm:$0xff]
    %v2810 = vld [vmem:[#allocation10 + $0x3d8] sm:$0xff]
    %v2811 = vld [vmem:[#allocation10 + $0x3e0] sm:$0xff]
    %v2812 = vld [vmem:[#allocation10 + $0x3e8] sm:$0xff]
    %v2813 = vld [vmem:[#allocation10 + $0x3f0] sm:$0xff]
    %v2814 = vld [vmem:[#allocation10 + $0x3f8] sm:$0xff]
    %v2815 = vld [vmem:[#allocation12] sm:$0xf]
    %v2817 = vperm.slane %v2815, 0
    %v2818 = vperm.slane %v2815, 1
    %v2819 = vperm.slane %v2815, 2
    %v2820 = vperm.slane %v2815, 3
    %2825 = vmatpush.msra.mxu0 %v2747
    %2826 = vmatpush.msra.mxu0 %v2743
    %2827 = vmatpush.msra.mxu0 %v2739
    %2828 = vmatpush.msra.mxu0 %v2735
    %2829 = vmatpush.msra.mxu0 %v2731
    %2830 = vmatpush.msra.mxu0 %v2727
    %2831 = vmatpush.msra.mxu0 %v2723
    %2832 = vmatpush.msra.mxu0 %v2719
    %2833 = vmatpush.msra.mxu0 %v2715
    %2834 = vmatpush.msra.mxu0 %v2711
    %2835 = vmatpush.msra.mxu0 %v2707
    %2836 = vmatpush.msra.mxu0 %v2703
    %2837 = vmatpush.msra.mxu0 %v2699
    %2838 = vmatpush.msra.mxu0 %v2695
    %2839 = vmatpush.msra.mxu0 %v2691
    %2840 = vmatpush.msra.mxu0 %v2687
    %2841 = vmatmul.f32.gmra.mxu0 %v2682
    %v2842 = vpop.f32.mrf.mxu0
    %v2843 = vadd.f32 %v2817, %v2842
    %2844 = vdwg.mxu0
    %2845 = vmatpush.msra.mxu0 %v2811
    %2846 = vmatpush.msra.mxu0 %v2807
    %2847 = vmatpush.msra.mxu0 %v2803
    %2848 = vmatpush.msra.mxu0 %v2799
    %2849 = vmatpush.msra.mxu0 %v2795
    %2850 = vmatpush.msra.mxu0 %v2791
    %2851 = vmatpush.msra.mxu0 %v2787
    %2852 = vmatpush.msra.mxu0 %v2783
    %2853 = vmatpush.msra.mxu0 %v2779
    %2854 = vmatpush.msra.mxu0 %v2775
    %2855 = vmatpush.msra.mxu0 %v2771
    %2856 = vmatpush.msra.mxu0 %v2767
    %2857 = vmatpush.msra.mxu0 %v2763
    %2858 = vmatpush.msra.mxu0 %v2759
    %2859 = vmatpush.msra.mxu0 %v2755
    %2860 = vmatpush.msra.mxu0 %v2751
    %2861 = vmatmul.f32.gmra.mxu0 %v2685
    %v2862 = vpop.f32.mrf.mxu0
    %v2863 = vadd.f32 %v2843, %v2862
    %2864 = vdwg.mxu0
    %2865 = vmatpush.msra.mxu0 %v2748
    %2866 = vmatpush.msra.mxu0 %v2744
    %2867 = vmatpush.msra.mxu0 %v2740
    %2868 = vmatpush.msra.mxu0 %v2736
    %2869 = vmatpush.msra.mxu0 %v2732
    %2870 = vmatpush.msra.mxu0 %v2728
    %2871 = vmatpush.msra.mxu0 %v2724
    %2872 = vmatpush.msra.mxu0 %v2720
    %2873 = vmatpush.msra.mxu0 %v2716
    %2874 = vmatpush.msra.mxu0 %v2712
    %2875 = vmatpush.msra.mxu0 %v2708
    %2876 = vmatpush.msra.mxu0 %v2704
    %2877 = vmatpush.msra.mxu0 %v2700
    %2878 = vmatpush.msra.mxu0 %v2696
    %2879 = vmatpush.msra.mxu0 %v2692
    %2880 = vmatpush.msra.mxu0 %v2688
    %2881 = vmatmul.f32.gmra.mxu0 %v2682
    %v2882 = vpop.f32.mrf.mxu0
    %v2883 = vadd.f32 %v2818, %v2882
    %2884 = vdwg.mxu0
    %2885 = vmatpush.msra.mxu0 %v2812
    %2886 = vmatpush.msra.mxu0 %v2808
    %2887 = vmatpush.msra.mxu0 %v2804
    %2888 = vmatpush.msra.mxu0 %v2800
    %2889 = vmatpush.msra.mxu0 %v2796
    %2890 = vmatpush.msra.mxu0 %v2792
    %2891 = vmatpush.msra.mxu0 %v2788
    %2892 = vmatpush.msra.mxu0 %v2784
    %2893 = vmatpush.msra.mxu0 %v2780
    %2894 = vmatpush.msra.mxu0 %v2776
    %2895 = vmatpush.msra.mxu0 %v2772
    %2896 = vmatpush.msra.mxu0 %v2768
    %2897 = vmatpush.msra.mxu0 %v2764
    %2898 = vmatpush.msra.mxu0 %v2760
    %2899 = vmatpush.msra.mxu0 %v2756
    %2900 = vmatpush.msra.mxu0 %v2752
    %2901 = vmatmul.f32.gmra.mxu0 %v2685
    %v2902 = vpop.f32.mrf.mxu0
    %v2903 = vadd.f32 %v2883, %v2902
    %2904 = vdwg.mxu0
    %2905 = vmatpush.msra.mxu0 %v2749
    %2906 = vmatpush.msra.mxu0 %v2745
    %2907 = vmatpush.msra.mxu0 %v2741
    %2908 = vmatpush.msra.mxu0 %v2737
    %2909 = vmatpush.msra.mxu0 %v2733
    %2910 = vmatpush.msra.mxu0 %v2729
    %2911 = vmatpush.msra.mxu0 %v2725
    %2912 = vmatpush.msra.mxu0 %v2721
    %2913 = vmatpush.msra.mxu0 %v2717
    %2914 = vmatpush.msra.mxu0 %v2713
    %2915 = vmatpush.msra.mxu0 %v2709
    %2916 = vmatpush.msra.mxu0 %v2705
    %2917 = vmatpush.msra.mxu0 %v2701
    %2918 = vmatpush.msra.mxu0 %v2697
    %2919 = vmatpush.msra.mxu0 %v2693
    %2920 = vmatpush.msra.mxu0 %v2689
    %2921 = vmatmul.f32.gmra.mxu0 %v2682
    %v2922 = vpop.f32.mrf.mxu0
    %v2923 = vadd.f32 %v2819, %v2922
    %2924 = vdwg.mxu0
    %2925 = vmatpush.msra.mxu0 %v2813
    %2926 = vmatpush.msra.mxu0 %v2809
    %2927 = vmatpush.msra.mxu0 %v2805
    %2928 = vmatpush.msra.mxu0 %v2801
    %2929 = vmatpush.msra.mxu0 %v2797
    %2930 = vmatpush.msra.mxu0 %v2793
    %2931 = vmatpush.msra.mxu0 %v2789
    %2932 = vmatpush.msra.mxu0 %v2785
    %2933 = vmatpush.msra.mxu0 %v2781
    %2934 = vmatpush.msra.mxu0 %v2777
    %2935 = vmatpush.msra.mxu0 %v2773
    %2936 = vmatpush.msra.mxu0 %v2769
    %2937 = vmatpush.msra.mxu0 %v2765
    %2938 = vmatpush.msra.mxu0 %v2761
    %2939 = vmatpush.msra.mxu0 %v2757
    %2940 = vmatpush.msra.mxu0 %v2753
    %2941 = vmatmul.f32.gmra.mxu0 %v2685
    %v2942 = vpop.f32.mrf.mxu0
    %v2943 = vadd.f32 %v2923, %v2942
    %2944 = vdwg.mxu0
    %2945 = vmatpush.msra.mxu0 %v2750
    %2946 = vmatpush.msra.mxu0 %v2746
    %2947 = vmatpush.msra.mxu0 %v2742
    %2948 = vmatpush.msra.mxu0 %v2738
    %2949 = vmatpush.msra.mxu0 %v2734
    %2950 = vmatpush.msra.mxu0 %v2730
    %2951 = vmatpush.msra.mxu0 %v2726
    %2952 = vmatpush.msra.mxu0 %v2722
    %2953 = vmatpush.msra.mxu0 %v2718
    %2954 = vmatpush.msra.mxu0 %v2714
    %2955 = vmatpush.msra.mxu0 %v2710
    %2956 = vmatpush.msra.mxu0 %v2706
    %2957 = vmatpush.msra.mxu0 %v2702
    %2958 = vmatpush.msra.mxu0 %v2698
    %2959 = vmatpush.msra.mxu0 %v2694
    %2960 = vmatpush.msra.mxu0 %v2690
    %2961 = vmatmul.f32.gmra.mxu0 %v2682
    %v2962 = vpop.f32.mrf.mxu0
    %v2963 = vadd.f32 %v2820, %v2962
    %2964 = vdwg.mxu0
    %2965 = vmatpush.msra.mxu0 %v2814
    %2966 = vmatpush.msra.mxu0 %v2810
    %2967 = vmatpush.msra.mxu0 %v2806
    %2968 = vmatpush.msra.mxu0 %v2802
    %2969 = vmatpush.msra.mxu0 %v2798
    %2970 = vmatpush.msra.mxu0 %v2794
    %2971 = vmatpush.msra.mxu0 %v2790
    %2972 = vmatpush.msra.mxu0 %v2786
    %2973 = vmatpush.msra.mxu0 %v2782
    %2974 = vmatpush.msra.mxu0 %v2778
    %2975 = vmatpush.msra.mxu0 %v2774
    %2976 = vmatpush.msra.mxu0 %v2770
    %2977 = vmatpush.msra.mxu0 %v2766
    %2978 = vmatpush.msra.mxu0 %v2762
    %2979 = vmatpush.msra.mxu0 %v2758
    %2980 = vmatpush.msra.mxu0 %v2754
    %2981 = vmatmul.f32.gmra.mxu0 %v2685
    %v2982 = vpop.f32.mrf.mxu0
    %v2983 = vadd.f32 %v2963, %v2982
    %2984 = vdwg.mxu0
    %v2985 = vxor.u32 %v2863, 2147483648
    %v2986 = vmul.f32 %v2985, 1.442695
    %v2987 = vpow.pop %v2986
    %v2988 = vadd.f32 %v2987, 1.0
    %v2989 = vrcp.pop %v2988
    %v2990 = vmul.f32 %v2988, %v2989
    %v2991 = vsub.f32 1.0, %v2990
    %v2992 = vmul.f32 %v2989, %v2991
    %v2993 = vadd.f32 %v2989, %v2992
    %vm2994 = vweird.f32 %v2988
    %vm2995 = vweird.f32 %v2989
    %vm2996 = vmor %vm2994, %vm2995
    %v2997 = vsel %vm2996, %v2989, %v2993
    %v2998 = vand.u32 2147483647, %v2988
    %vm2999 = vcmp.eq.f32.partialorder %v2998, 8.507059e+37
    %v3000 = vand.u32 %v2988, 2147483648
    %v3001 = vor.u32 1.1754944e-38, %v3000
    %v3002 = vsel %vm2999, %v3001, %v2997
    %v3003 = vmul.f32 1.0, %v3002
    %v3004 = vxor.u32 %v2903, 2147483648
    %v3005 = vmul.f32 %v3004, 1.442695
    %v3006 = vpow.pop %v3005
    %v3007 = vadd.f32 %v3006, 1.0
    %v3008 = vrcp.pop %v3007
    %v3009 = vmul.f32 %v3007, %v3008
    %v3010 = vsub.f32 1.0, %v3009
    %v3011 = vmul.f32 %v3008, %v3010
    %v3012 = vadd.f32 %v3008, %v3011
    %vm3013 = vweird.f32 %v3007
    %vm3014 = vweird.f32 %v3008
    %vm3015 = vmor %vm3013, %vm3014
    %v3016 = vsel %vm3015, %v3008, %v3012
    %v3017 = vand.u32 2147483647, %v3007
    %vm3018 = vcmp.eq.f32.partialorder %v3017, 8.507059e+37
    %v3019 = vand.u32 %v3007, 2147483648
    %v3020 = vor.u32 1.1754944e-38, %v3019
    %v3021 = vsel %vm3018, %v3020, %v3016
    %v3022 = vmul.f32 1.0, %v3021
    %v3023 = vtanh.pop %v2943
    %v3024 = vxor.u32 %v2983, 2147483648
    %v3025 = vmul.f32 %v3024, 1.442695
    %v3026 = vpow.pop %v3025
    %v3027 = vadd.f32 %v3026, 1.0
    %v3028 = vrcp.pop %v3027
    %v3029 = vmul.f32 %v3027, %v3028
    %v3030 = vsub.f32 1.0, %v3029
    %v3031 = vmul.f32 %v3028, %v3030
    %v3032 = vadd.f32 %v3028, %v3031
    %vm3033 = vweird.f32 %v3027
    %vm3034 = vweird.f32 %v3028
    %vm3035 = vmor %vm3033, %vm3034
    %v3036 = vsel %vm3035, %v3028, %v3032
    %v3037 = vand.u32 2147483647, %v3027
    %vm3038 = vcmp.eq.f32.partialorder %v3037, 8.507059e+37
    %v3039 = vand.u32 %v3027, 2147483648
    %v3040 = vor.u32 1.1754944e-38, %v3039
    %v3041 = vsel %vm3038, %v3040, %v3036
    %v3042 = vmul.f32 1.0, %v3041
    %v3043 = vmul.f32 %v3022, %v2686
    %v3044 = vmul.f32 %v3003, %v3023
    %v3045 = vadd.f32 %v3043, %v3044
    %v3046 = vtanh.pop %v3045
    %v3047 = vmul.f32 %v3042, %v3046
    %3048 = vst [vmem:[%s487] sm:$0x3] %v3047
    %3049 = vst [vmem:[%s489] sm:$0x3] %v3045
    %s3050 = scalar_lea.vmem [#allocation4], 8
    %v3051 = vld [vmem:[%s3050] sm:$0x3]
    %v3052 = vld [vmem:[#allocation2] sm:$0x3]
    %v3053 = vld [vmem:[#allocation3] sm:$0x3]
    %v3054 = vld [vmem:[#allocation7] sm:$0xff]
    %v3055 = vld [vmem:[#allocation7 + $0x8] sm:$0xff]
    %v3056 = vld [vmem:[#allocation7 + $0x10] sm:$0xff]
    %v3057 = vld [vmem:[#allocation7 + $0x18] sm:$0xff]
    %v3058 = vld [vmem:[#allocation7 + $0x20] sm:$0xff]
    %v3059 = vld [vmem:[#allocation7 + $0x28] sm:$0xff]
    %v3060 = vld [vmem:[#allocation7 + $0x30] sm:$0xff]
    %v3061 = vld [vmem:[#allocation7 + $0x38] sm:$0xff]
    %v3062 = vld [vmem:[#allocation7 + $0x40] sm:$0xff]
    %v3063 = vld [vmem:[#allocation7 + $0x48] sm:$0xff]
    %v3064 = vld [vmem:[#allocation7 + $0x50] sm:$0xff]
    %v3065 = vld [vmem:[#allocation7 + $0x58] sm:$0xff]
    %v3066 = vld [vmem:[#allocation7 + $0x60] sm:$0xff]
    %v3067 = vld [vmem:[#allocation7 + $0x68] sm:$0xff]
    %v3068 = vld [vmem:[#allocation7 + $0x70] sm:$0xff]
    %v3069 = vld [vmem:[#allocation7 + $0x78] sm:$0xff]
    %v3070 = vld [vmem:[#allocation7 + $0x80] sm:$0xff]
    %v3071 = vld [vmem:[#allocation7 + $0x88] sm:$0xff]
    %v3072 = vld [vmem:[#allocation7 + $0x90] sm:$0xff]
    %v3073 = vld [vmem:[#allocation7 + $0x98] sm:$0xff]
    %v3074 = vld [vmem:[#allocation7 + $0xa0] sm:$0xff]
    %v3075 = vld [vmem:[#allocation7 + $0xa8] sm:$0xff]
    %v3076 = vld [vmem:[#allocation7 + $0xb0] sm:$0xff]
    %v3077 = vld [vmem:[#allocation7 + $0xb8] sm:$0xff]
    %v3078 = vld [vmem:[#allocation7 + $0xc0] sm:$0xff]
    %v3079 = vld [vmem:[#allocation7 + $0xc8] sm:$0xff]
    %v3080 = vld [vmem:[#allocation7 + $0xd0] sm:$0xff]
    %v3081 = vld [vmem:[#allocation7 + $0xd8] sm:$0xff]
    %v3082 = vld [vmem:[#allocation7 + $0xe0] sm:$0xff]
    %v3083 = vld [vmem:[#allocation7 + $0xe8] sm:$0xff]
    %v3084 = vld [vmem:[#allocation7 + $0xf0] sm:$0xff]
    %v3085 = vld [vmem:[#allocation7 + $0xf8] sm:$0xff]
    %v3086 = vld [vmem:[#allocation7 + $0x100] sm:$0xff]
    %v3087 = vld [vmem:[#allocation7 + $0x108] sm:$0xff]
    %v3088 = vld [vmem:[#allocation7 + $0x110] sm:$0xff]
    %v3089 = vld [vmem:[#allocation7 + $0x118] sm:$0xff]
    %v3090 = vld [vmem:[#allocation7 + $0x120] sm:$0xff]
    %v3091 = vld [vmem:[#allocation7 + $0x128] sm:$0xff]
    %v3092 = vld [vmem:[#allocation7 + $0x130] sm:$0xff]
    %v3093 = vld [vmem:[#allocation7 + $0x138] sm:$0xff]
    %v3094 = vld [vmem:[#allocation7 + $0x140] sm:$0xff]
    %v3095 = vld [vmem:[#allocation7 + $0x148] sm:$0xff]
    %v3096 = vld [vmem:[#allocation7 + $0x150] sm:$0xff]
    %v3097 = vld [vmem:[#allocation7 + $0x158] sm:$0xff]
    %v3098 = vld [vmem:[#allocation7 + $0x160] sm:$0xff]
    %v3099 = vld [vmem:[#allocation7 + $0x168] sm:$0xff]
    %v3100 = vld [vmem:[#allocation7 + $0x170] sm:$0xff]
    %v3101 = vld [vmem:[#allocation7 + $0x178] sm:$0xff]
    %v3102 = vld [vmem:[#allocation7 + $0x180] sm:$0xff]
    %v3103 = vld [vmem:[#allocation7 + $0x188] sm:$0xff]
    %v3104 = vld [vmem:[#allocation7 + $0x190] sm:$0xff]
    %v3105 = vld [vmem:[#allocation7 + $0x198] sm:$0xff]
    %v3106 = vld [vmem:[#allocation7 + $0x1a0] sm:$0xff]
    %v3107 = vld [vmem:[#allocation7 + $0x1a8] sm:$0xff]
    %v3108 = vld [vmem:[#allocation7 + $0x1b0] sm:$0xff]
    %v3109 = vld [vmem:[#allocation7 + $0x1b8] sm:$0xff]
    %v3110 = vld [vmem:[#allocation7 + $0x1c0] sm:$0xff]
    %v3111 = vld [vmem:[#allocation7 + $0x1c8] sm:$0xff]
    %v3112 = vld [vmem:[#allocation7 + $0x1d0] sm:$0xff]
    %v3113 = vld [vmem:[#allocation7 + $0x1d8] sm:$0xff]
    %v3114 = vld [vmem:[#allocation7 + $0x1e0] sm:$0xff]
    %v3115 = vld [vmem:[#allocation7 + $0x1e8] sm:$0xff]
    %v3116 = vld [vmem:[#allocation7 + $0x1f0] sm:$0xff]
    %v3117 = vld [vmem:[#allocation7 + $0x1f8] sm:$0xff]
    %v3118 = vld [vmem:[#allocation7 + $0x200] sm:$0xff]
    %v3119 = vld [vmem:[#allocation7 + $0x208] sm:$0xff]
    %v3120 = vld [vmem:[#allocation7 + $0x210] sm:$0xff]
    %v3121 = vld [vmem:[#allocation7 + $0x218] sm:$0xff]
    %v3122 = vld [vmem:[#allocation7 + $0x220] sm:$0xff]
    %v3123 = vld [vmem:[#allocation7 + $0x228] sm:$0xff]
    %v3124 = vld [vmem:[#allocation7 + $0x230] sm:$0xff]
    %v3125 = vld [vmem:[#allocation7 + $0x238] sm:$0xff]
    %v3126 = vld [vmem:[#allocation7 + $0x240] sm:$0xff]
    %v3127 = vld [vmem:[#allocation7 + $0x248] sm:$0xff]
    %v3128 = vld [vmem:[#allocation7 + $0x250] sm:$0xff]
    %v3129 = vld [vmem:[#allocation7 + $0x258] sm:$0xff]
    %v3130 = vld [vmem:[#allocation7 + $0x260] sm:$0xff]
    %v3131 = vld [vmem:[#allocation7 + $0x268] sm:$0xff]
    %v3132 = vld [vmem:[#allocation7 + $0x270] sm:$0xff]
    %v3133 = vld [vmem:[#allocation7 + $0x278] sm:$0xff]
    %v3134 = vld [vmem:[#allocation7 + $0x280] sm:$0xff]
    %v3135 = vld [vmem:[#allocation7 + $0x288] sm:$0xff]
    %v3136 = vld [vmem:[#allocation7 + $0x290] sm:$0xff]
    %v3137 = vld [vmem:[#allocation7 + $0x298] sm:$0xff]
    %v3138 = vld [vmem:[#allocation7 + $0x2a0] sm:$0xff]
    %v3139 = vld [vmem:[#allocation7 + $0x2a8] sm:$0xff]
    %v3140 = vld [vmem:[#allocation7 + $0x2b0] sm:$0xff]
    %v3141 = vld [vmem:[#allocation7 + $0x2b8] sm:$0xff]
    %v3142 = vld [vmem:[#allocation7 + $0x2c0] sm:$0xff]
    %v3143 = vld [vmem:[#allocation7 + $0x2c8] sm:$0xff]
    %v3144 = vld [vmem:[#allocation7 + $0x2d0] sm:$0xff]
    %v3145 = vld [vmem:[#allocation7 + $0x2d8] sm:$0xff]
    %v3146 = vld [vmem:[#allocation7 + $0x2e0] sm:$0xff]
    %v3147 = vld [vmem:[#allocation7 + $0x2e8] sm:$0xff]
    %v3148 = vld [vmem:[#allocation7 + $0x2f0] sm:$0xff]
    %v3149 = vld [vmem:[#allocation7 + $0x2f8] sm:$0xff]
    %v3150 = vld [vmem:[#allocation7 + $0x300] sm:$0xff]
    %v3151 = vld [vmem:[#allocation7 + $0x308] sm:$0xff]
    %v3152 = vld [vmem:[#allocation7 + $0x310] sm:$0xff]
    %v3153 = vld [vmem:[#allocation7 + $0x318] sm:$0xff]
    %v3154 = vld [vmem:[#allocation7 + $0x320] sm:$0xff]
    %v3155 = vld [vmem:[#allocation7 + $0x328] sm:$0xff]
    %v3156 = vld [vmem:[#allocation7 + $0x330] sm:$0xff]
    %v3157 = vld [vmem:[#allocation7 + $0x338] sm:$0xff]
    %v3158 = vld [vmem:[#allocation7 + $0x340] sm:$0xff]
    %v3159 = vld [vmem:[#allocation7 + $0x348] sm:$0xff]
    %v3160 = vld [vmem:[#allocation7 + $0x350] sm:$0xff]
    %v3161 = vld [vmem:[#allocation7 + $0x358] sm:$0xff]
    %v3162 = vld [vmem:[#allocation7 + $0x360] sm:$0xff]
    %v3163 = vld [vmem:[#allocation7 + $0x368] sm:$0xff]
    %v3164 = vld [vmem:[#allocation7 + $0x370] sm:$0xff]
    %v3165 = vld [vmem:[#allocation7 + $0x378] sm:$0xff]
    %v3166 = vld [vmem:[#allocation7 + $0x380] sm:$0xff]
    %v3167 = vld [vmem:[#allocation7 + $0x388] sm:$0xff]
    %v3168 = vld [vmem:[#allocation7 + $0x390] sm:$0xff]
    %v3169 = vld [vmem:[#allocation7 + $0x398] sm:$0xff]
    %v3170 = vld [vmem:[#allocation7 + $0x3a0] sm:$0xff]
    %v3171 = vld [vmem:[#allocation7 + $0x3a8] sm:$0xff]
    %v3172 = vld [vmem:[#allocation7 + $0x3b0] sm:$0xff]
    %v3173 = vld [vmem:[#allocation7 + $0x3b8] sm:$0xff]
    %v3174 = vld [vmem:[#allocation7 + $0x3c0] sm:$0xff]
    %v3175 = vld [vmem:[#allocation7 + $0x3c8] sm:$0xff]
    %v3176 = vld [vmem:[#allocation7 + $0x3d0] sm:$0xff]
    %v3177 = vld [vmem:[#allocation7 + $0x3d8] sm:$0xff]
    %v3178 = vld [vmem:[#allocation7 + $0x3e0] sm:$0xff]
    %v3179 = vld [vmem:[#allocation7 + $0x3e8] sm:$0xff]
    %v3180 = vld [vmem:[#allocation7 + $0x3f0] sm:$0xff]
    %v3181 = vld [vmem:[#allocation7 + $0x3f8] sm:$0xff]
    %v3182 = vld [vmem:[#allocation9] sm:$0xf]
    %v3184 = vperm.slane %v3182, 0
    %v3185 = vperm.slane %v3182, 1
    %v3186 = vperm.slane %v3182, 2
    %v3187 = vperm.slane %v3182, 3
    %3192 = vmatpush.msra.mxu0 %v3114
    %3193 = vmatpush.msra.mxu0 %v3110
    %3194 = vmatpush.msra.mxu0 %v3106
    %3195 = vmatpush.msra.mxu0 %v3102
    %3196 = vmatpush.msra.mxu0 %v3098
    %3197 = vmatpush.msra.mxu0 %v3094
    %3198 = vmatpush.msra.mxu0 %v3090
    %3199 = vmatpush.msra.mxu0 %v3086
    %3200 = vmatpush.msra.mxu0 %v3082
    %3201 = vmatpush.msra.mxu0 %v3078
    %3202 = vmatpush.msra.mxu0 %v3074
    %3203 = vmatpush.msra.mxu0 %v3070
    %3204 = vmatpush.msra.mxu0 %v3066
    %3205 = vmatpush.msra.mxu0 %v3062
    %3206 = vmatpush.msra.mxu0 %v3058
    %3207 = vmatpush.msra.mxu0 %v3054
    %3208 = vmatmul.f32.gmra.mxu0 %v3051
    %v3209 = vpop.f32.mrf.mxu0
    %v3210 = vadd.f32 %v3184, %v3209
    %3211 = vdwg.mxu0
    %3212 = vmatpush.msra.mxu0 %v3178
    %3213 = vmatpush.msra.mxu0 %v3174
    %3214 = vmatpush.msra.mxu0 %v3170
    %3215 = vmatpush.msra.mxu0 %v3166
    %3216 = vmatpush.msra.mxu0 %v3162
    %3217 = vmatpush.msra.mxu0 %v3158
    %3218 = vmatpush.msra.mxu0 %v3154
    %3219 = vmatpush.msra.mxu0 %v3150
    %3220 = vmatpush.msra.mxu0 %v3146
    %3221 = vmatpush.msra.mxu0 %v3142
    %3222 = vmatpush.msra.mxu0 %v3138
    %3223 = vmatpush.msra.mxu0 %v3134
    %3224 = vmatpush.msra.mxu0 %v3130
    %3225 = vmatpush.msra.mxu0 %v3126
    %3226 = vmatpush.msra.mxu0 %v3122
    %3227 = vmatpush.msra.mxu0 %v3118
    %3228 = vmatmul.f32.gmra.mxu0 %v3052
    %v3229 = vpop.f32.mrf.mxu0
    %v3230 = vadd.f32 %v3210, %v3229
    %3231 = vdwg.mxu0
    %3232 = vmatpush.msra.mxu0 %v3115
    %3233 = vmatpush.msra.mxu0 %v3111
    %3234 = vmatpush.msra.mxu0 %v3107
    %3235 = vmatpush.msra.mxu0 %v3103
    %3236 = vmatpush.msra.mxu0 %v3099
    %3237 = vmatpush.msra.mxu0 %v3095
    %3238 = vmatpush.msra.mxu0 %v3091
    %3239 = vmatpush.msra.mxu0 %v3087
    %3240 = vmatpush.msra.mxu0 %v3083
    %3241 = vmatpush.msra.mxu0 %v3079
    %3242 = vmatpush.msra.mxu0 %v3075
    %3243 = vmatpush.msra.mxu0 %v3071
    %3244 = vmatpush.msra.mxu0 %v3067
    %3245 = vmatpush.msra.mxu0 %v3063
    %3246 = vmatpush.msra.mxu0 %v3059
    %3247 = vmatpush.msra.mxu0 %v3055
    %3248 = vmatmul.f32.gmra.mxu0 %v3051
    %v3249 = vpop.f32.mrf.mxu0
    %v3250 = vadd.f32 %v3185, %v3249
    %3251 = vdwg.mxu0
    %3252 = vmatpush.msra.mxu0 %v3179
    %3253 = vmatpush.msra.mxu0 %v3175
    %3254 = vmatpush.msra.mxu0 %v3171
    %3255 = vmatpush.msra.mxu0 %v3167
    %3256 = vmatpush.msra.mxu0 %v3163
    %3257 = vmatpush.msra.mxu0 %v3159
    %3258 = vmatpush.msra.mxu0 %v3155
    %3259 = vmatpush.msra.mxu0 %v3151
    %3260 = vmatpush.msra.mxu0 %v3147
    %3261 = vmatpush.msra.mxu0 %v3143
    %3262 = vmatpush.msra.mxu0 %v3139
    %3263 = vmatpush.msra.mxu0 %v3135
    %3264 = vmatpush.msra.mxu0 %v3131
    %3265 = vmatpush.msra.mxu0 %v3127
    %3266 = vmatpush.msra.mxu0 %v3123
    %3267 = vmatpush.msra.mxu0 %v3119
    %3268 = vmatmul.f32.gmra.mxu0 %v3052
    %v3269 = vpop.f32.mrf.mxu0
    %v3270 = vadd.f32 %v3250, %v3269
    %3271 = vdwg.mxu0
    %3272 = vmatpush.msra.mxu0 %v3116
    %3273 = vmatpush.msra.mxu0 %v3112
    %3274 = vmatpush.msra.mxu0 %v3108
    %3275 = vmatpush.msra.mxu0 %v3104
    %3276 = vmatpush.msra.mxu0 %v3100
    %3277 = vmatpush.msra.mxu0 %v3096
    %3278 = vmatpush.msra.mxu0 %v3092
    %3279 = vmatpush.msra.mxu0 %v3088
    %3280 = vmatpush.msra.mxu0 %v3084
    %3281 = vmatpush.msra.mxu0 %v3080
    %3282 = vmatpush.msra.mxu0 %v3076
    %3283 = vmatpush.msra.mxu0 %v3072
    %3284 = vmatpush.msra.mxu0 %v3068
    %3285 = vmatpush.msra.mxu0 %v3064
    %3286 = vmatpush.msra.mxu0 %v3060
    %3287 = vmatpush.msra.mxu0 %v3056
    %3288 = vmatmul.f32.gmra.mxu0 %v3051
    %v3289 = vpop.f32.mrf.mxu0
    %v3290 = vadd.f32 %v3186, %v3289
    %3291 = vdwg.mxu0
    %3292 = vmatpush.msra.mxu0 %v3180
    %3293 = vmatpush.msra.mxu0 %v3176
    %3294 = vmatpush.msra.mxu0 %v3172
    %3295 = vmatpush.msra.mxu0 %v3168
    %3296 = vmatpush.msra.mxu0 %v3164
    %3297 = vmatpush.msra.mxu0 %v3160
    %3298 = vmatpush.msra.mxu0 %v3156
    %3299 = vmatpush.msra.mxu0 %v3152
    %3300 = vmatpush.msra.mxu0 %v3148
    %3301 = vmatpush.msra.mxu0 %v3144
    %3302 = vmatpush.msra.mxu0 %v3140
    %3303 = vmatpush.msra.mxu0 %v3136
    %3304 = vmatpush.msra.mxu0 %v3132
    %3305 = vmatpush.msra.mxu0 %v3128
    %3306 = vmatpush.msra.mxu0 %v3124
    %3307 = vmatpush.msra.mxu0 %v3120
    %3308 = vmatmul.f32.gmra.mxu0 %v3052
    %v3309 = vpop.f32.mrf.mxu0
    %v3310 = vadd.f32 %v3290, %v3309
    %3311 = vdwg.mxu0
    %3312 = vmatpush.msra.mxu0 %v3117
    %3313 = vmatpush.msra.mxu0 %v3113
    %3314 = vmatpush.msra.mxu0 %v3109
    %3315 = vmatpush.msra.mxu0 %v3105
    %3316 = vmatpush.msra.mxu0 %v3101
    %3317 = vmatpush.msra.mxu0 %v3097
    %3318 = vmatpush.msra.mxu0 %v3093
    %3319 = vmatpush.msra.mxu0 %v3089
    %3320 = vmatpush.msra.mxu0 %v3085
    %3321 = vmatpush.msra.mxu0 %v3081
    %3322 = vmatpush.msra.mxu0 %v3077
    %3323 = vmatpush.msra.mxu0 %v3073
    %3324 = vmatpush.msra.mxu0 %v3069
    %3325 = vmatpush.msra.mxu0 %v3065
    %3326 = vmatpush.msra.mxu0 %v3061
    %3327 = vmatpush.msra.mxu0 %v3057
    %3328 = vmatmul.f32.gmra.mxu0 %v3051
    %v3329 = vpop.f32.mrf.mxu0
    %v3330 = vadd.f32 %v3187, %v3329
    %3331 = vdwg.mxu0
    %3332 = vmatpush.msra.mxu0 %v3181
    %3333 = vmatpush.msra.mxu0 %v3177
    %3334 = vmatpush.msra.mxu0 %v3173
    %3335 = vmatpush.msra.mxu0 %v3169
    %3336 = vmatpush.msra.mxu0 %v3165
    %3337 = vmatpush.msra.mxu0 %v3161
    %3338 = vmatpush.msra.mxu0 %v3157
    %3339 = vmatpush.msra.mxu0 %v3153
    %3340 = vmatpush.msra.mxu0 %v3149
    %3341 = vmatpush.msra.mxu0 %v3145
    %3342 = vmatpush.msra.mxu0 %v3141
    %3343 = vmatpush.msra.mxu0 %v3137
    %3344 = vmatpush.msra.mxu0 %v3133
    %3345 = vmatpush.msra.mxu0 %v3129
    %3346 = vmatpush.msra.mxu0 %v3125
    %3347 = vmatpush.msra.mxu0 %v3121
    %3348 = vmatmul.f32.gmra.mxu0 %v3052
    %v3349 = vpop.f32.mrf.mxu0
    %v3350 = vadd.f32 %v3330, %v3349
    %3351 = vdwg.mxu0
    %v3352 = vxor.u32 %v3230, 2147483648
    %v3353 = vmul.f32 %v3352, 1.442695
    %v3354 = vpow.pop %v3353
    %v3355 = vadd.f32 %v3354, 1.0
    %v3356 = vrcp.pop %v3355
    %v3357 = vmul.f32 %v3355, %v3356
    %v3358 = vsub.f32 1.0, %v3357
    %v3359 = vmul.f32 %v3356, %v3358
    %v3360 = vadd.f32 %v3356, %v3359
    %vm3361 = vweird.f32 %v3355
    %vm3362 = vweird.f32 %v3356
    %vm3363 = vmor %vm3361, %vm3362
    %v3364 = vsel %vm3363, %v3356, %v3360
    %v3365 = vand.u32 2147483647, %v3355
    %vm3366 = vcmp.eq.f32.partialorder %v3365, 8.507059e+37
    %v3367 = vand.u32 %v3355, 2147483648
    %v3368 = vor.u32 1.1754944e-38, %v3367
    %v3369 = vsel %vm3366, %v3368, %v3364
    %v3370 = vmul.f32 1.0, %v3369
    %v3371 = vxor.u32 %v3270, 2147483648
    %v3372 = vmul.f32 %v3371, 1.442695
    %v3373 = vpow.pop %v3372
    %v3374 = vadd.f32 %v3373, 1.0
    %v3375 = vrcp.pop %v3374
    %v3376 = vmul.f32 %v3374, %v3375
    %v3377 = vsub.f32 1.0, %v3376
    %v3378 = vmul.f32 %v3375, %v3377
    %v3379 = vadd.f32 %v3375, %v3378
    %vm3380 = vweird.f32 %v3374
    %vm3381 = vweird.f32 %v3375
    %vm3382 = vmor %vm3380, %vm3381
    %v3383 = vsel %vm3382, %v3375, %v3379
    %v3384 = vand.u32 2147483647, %v3374
    %vm3385 = vcmp.eq.f32.partialorder %v3384, 8.507059e+37
    %v3386 = vand.u32 %v3374, 2147483648
    %v3387 = vor.u32 1.1754944e-38, %v3386
    %v3388 = vsel %vm3385, %v3387, %v3383
    %v3389 = vmul.f32 1.0, %v3388
    %v3390 = vtanh.pop %v3310
    %v3391 = vxor.u32 %v3350, 2147483648
    %v3392 = vmul.f32 %v3391, 1.442695
    %v3393 = vpow.pop %v3392
    %v3394 = vadd.f32 %v3393, 1.0
    %v3395 = vrcp.pop %v3394
    %v3396 = vmul.f32 %v3394, %v3395
    %v3397 = vsub.f32 1.0, %v3396
    %v3398 = vmul.f32 %v3395, %v3397
    %v3399 = vadd.f32 %v3395, %v3398
    %vm3400 = vweird.f32 %v3394
    %vm3401 = vweird.f32 %v3395
    %vm3402 = vmor %vm3400, %vm3401
    %v3403 = vsel %vm3402, %v3395, %v3399
    %v3404 = vand.u32 2147483647, %v3394
    %vm3405 = vcmp.eq.f32.partialorder %v3404, 8.507059e+37
    %v3406 = vand.u32 %v3394, 2147483648
    %v3407 = vor.u32 1.1754944e-38, %v3406
    %v3408 = vsel %vm3405, %v3407, %v3403
    %v3409 = vmul.f32 1.0, %v3408
    %v3410 = vmul.f32 %v3389, %v3053
    %v3411 = vmul.f32 %v3370, %v3390
    %v3412 = vadd.f32 %v3410, %v3411
    %v3413 = vtanh.pop %v3412
    %v3414 = vmul.f32 %v3409, %v3413
    %3415 = vst [vmem:[#allocation2] sm:$0x3] %v3414
    %3416 = vst [vmem:[#allocation3] sm:$0x3] %v3412
    %v3417 = vld [vmem:[%s487] sm:$0x3]
    %v3418 = vld [vmem:[%s489] sm:$0x3]
    %v3419 = vld [vmem:[#allocation10] sm:$0xff]
    %v3420 = vld [vmem:[#allocation10 + $0x8] sm:$0xff]
    %v3421 = vld [vmem:[#allocation10 + $0x10] sm:$0xff]
    %v3422 = vld [vmem:[#allocation10 + $0x18] sm:$0xff]
    %v3423 = vld [vmem:[#allocation10 + $0x20] sm:$0xff]
    %v3424 = vld [vmem:[#allocation10 + $0x28] sm:$0xff]
    %v3425 = vld [vmem:[#allocation10 + $0x30] sm:$0xff]
    %v3426 = vld [vmem:[#allocation10 + $0x38] sm:$0xff]
    %v3427 = vld [vmem:[#allocation10 + $0x40] sm:$0xff]
    %v3428 = vld [vmem:[#allocation10 + $0x48] sm:$0xff]
    %v3429 = vld [vmem:[#allocation10 + $0x50] sm:$0xff]
    %v3430 = vld [vmem:[#allocation10 + $0x58] sm:$0xff]
    %v3431 = vld [vmem:[#allocation10 + $0x60] sm:$0xff]
    %v3432 = vld [vmem:[#allocation10 + $0x68] sm:$0xff]
    %v3433 = vld [vmem:[#allocation10 + $0x70] sm:$0xff]
    %v3434 = vld [vmem:[#allocation10 + $0x78] sm:$0xff]
    %v3435 = vld [vmem:[#allocation10 + $0x80] sm:$0xff]
    %v3436 = vld [vmem:[#allocation10 + $0x88] sm:$0xff]
    %v3437 = vld [vmem:[#allocation10 + $0x90] sm:$0xff]
    %v3438 = vld [vmem:[#allocation10 + $0x98] sm:$0xff]
    %v3439 = vld [vmem:[#allocation10 + $0xa0] sm:$0xff]
    %v3440 = vld [vmem:[#allocation10 + $0xa8] sm:$0xff]
    %v3441 = vld [vmem:[#allocation10 + $0xb0] sm:$0xff]
    %v3442 = vld [vmem:[#allocation10 + $0xb8] sm:$0xff]
    %v3443 = vld [vmem:[#allocation10 + $0xc0] sm:$0xff]
    %v3444 = vld [vmem:[#allocation10 + $0xc8] sm:$0xff]
    %v3445 = vld [vmem:[#allocation10 + $0xd0] sm:$0xff]
    %v3446 = vld [vmem:[#allocation10 + $0xd8] sm:$0xff]
    %v3447 = vld [vmem:[#allocation10 + $0xe0] sm:$0xff]
    %v3448 = vld [vmem:[#allocation10 + $0xe8] sm:$0xff]
    %v3449 = vld [vmem:[#allocation10 + $0xf0] sm:$0xff]
    %v3450 = vld [vmem:[#allocation10 + $0xf8] sm:$0xff]
    %v3451 = vld [vmem:[#allocation10 + $0x100] sm:$0xff]
    %v3452 = vld [vmem:[#allocation10 + $0x108] sm:$0xff]
    %v3453 = vld [vmem:[#allocation10 + $0x110] sm:$0xff]
    %v3454 = vld [vmem:[#allocation10 + $0x118] sm:$0xff]
    %v3455 = vld [vmem:[#allocation10 + $0x120] sm:$0xff]
    %v3456 = vld [vmem:[#allocation10 + $0x128] sm:$0xff]
    %v3457 = vld [vmem:[#allocation10 + $0x130] sm:$0xff]
    %v3458 = vld [vmem:[#allocation10 + $0x138] sm:$0xff]
    %v3459 = vld [vmem:[#allocation10 + $0x140] sm:$0xff]
    %v3460 = vld [vmem:[#allocation10 + $0x148] sm:$0xff]
    %v3461 = vld [vmem:[#allocation10 + $0x150] sm:$0xff]
    %v3462 = vld [vmem:[#allocation10 + $0x158] sm:$0xff]
    %v3463 = vld [vmem:[#allocation10 + $0x160] sm:$0xff]
    %v3464 = vld [vmem:[#allocation10 + $0x168] sm:$0xff]
    %v3465 = vld [vmem:[#allocation10 + $0x170] sm:$0xff]
    %v3466 = vld [vmem:[#allocation10 + $0x178] sm:$0xff]
    %v3467 = vld [vmem:[#allocation10 + $0x180] sm:$0xff]
    %v3468 = vld [vmem:[#allocation10 + $0x188] sm:$0xff]
    %v3469 = vld [vmem:[#allocation10 + $0x190] sm:$0xff]
    %v3470 = vld [vmem:[#allocation10 + $0x198] sm:$0xff]
    %v3471 = vld [vmem:[#allocation10 + $0x1a0] sm:$0xff]
    %v3472 = vld [vmem:[#allocation10 + $0x1a8] sm:$0xff]
    %v3473 = vld [vmem:[#allocation10 + $0x1b0] sm:$0xff]
    %v3474 = vld [vmem:[#allocation10 + $0x1b8] sm:$0xff]
    %v3475 = vld [vmem:[#allocation10 + $0x1c0] sm:$0xff]
    %v3476 = vld [vmem:[#allocation10 + $0x1c8] sm:$0xff]
    %v3477 = vld [vmem:[#allocation10 + $0x1d0] sm:$0xff]
    %v3478 = vld [vmem:[#allocation10 + $0x1d8] sm:$0xff]
    %v3479 = vld [vmem:[#allocation10 + $0x1e0] sm:$0xff]
    %v3480 = vld [vmem:[#allocation10 + $0x1e8] sm:$0xff]
    %v3481 = vld [vmem:[#allocation10 + $0x1f0] sm:$0xff]
    %v3482 = vld [vmem:[#allocation10 + $0x1f8] sm:$0xff]
    %v3483 = vld [vmem:[#allocation10 + $0x200] sm:$0xff]
    %v3484 = vld [vmem:[#allocation10 + $0x208] sm:$0xff]
    %v3485 = vld [vmem:[#allocation10 + $0x210] sm:$0xff]
    %v3486 = vld [vmem:[#allocation10 + $0x218] sm:$0xff]
    %v3487 = vld [vmem:[#allocation10 + $0x220] sm:$0xff]
    %v3488 = vld [vmem:[#allocation10 + $0x228] sm:$0xff]
    %v3489 = vld [vmem:[#allocation10 + $0x230] sm:$0xff]
    %v3490 = vld [vmem:[#allocation10 + $0x238] sm:$0xff]
    %v3491 = vld [vmem:[#allocation10 + $0x240] sm:$0xff]
    %v3492 = vld [vmem:[#allocation10 + $0x248] sm:$0xff]
    %v3493 = vld [vmem:[#allocation10 + $0x250] sm:$0xff]
    %v3494 = vld [vmem:[#allocation10 + $0x258] sm:$0xff]
    %v3495 = vld [vmem:[#allocation10 + $0x260] sm:$0xff]
    %v3496 = vld [vmem:[#allocation10 + $0x268] sm:$0xff]
    %v3497 = vld [vmem:[#allocation10 + $0x270] sm:$0xff]
    %v3498 = vld [vmem:[#allocation10 + $0x278] sm:$0xff]
    %v3499 = vld [vmem:[#allocation10 + $0x280] sm:$0xff]
    %v3500 = vld [vmem:[#allocation10 + $0x288] sm:$0xff]
    %v3501 = vld [vmem:[#allocation10 + $0x290] sm:$0xff]
    %v3502 = vld [vmem:[#allocation10 + $0x298] sm:$0xff]
    %v3503 = vld [vmem:[#allocation10 + $0x2a0] sm:$0xff]
    %v3504 = vld [vmem:[#allocation10 + $0x2a8] sm:$0xff]
    %v3505 = vld [vmem:[#allocation10 + $0x2b0] sm:$0xff]
    %v3506 = vld [vmem:[#allocation10 + $0x2b8] sm:$0xff]
    %v3507 = vld [vmem:[#allocation10 + $0x2c0] sm:$0xff]
    %v3508 = vld [vmem:[#allocation10 + $0x2c8] sm:$0xff]
    %v3509 = vld [vmem:[#allocation10 + $0x2d0] sm:$0xff]
    %v3510 = vld [vmem:[#allocation10 + $0x2d8] sm:$0xff]
    %v3511 = vld [vmem:[#allocation10 + $0x2e0] sm:$0xff]
    %v3512 = vld [vmem:[#allocation10 + $0x2e8] sm:$0xff]
    %v3513 = vld [vmem:[#allocation10 + $0x2f0] sm:$0xff]
    %v3514 = vld [vmem:[#allocation10 + $0x2f8] sm:$0xff]
    %v3515 = vld [vmem:[#allocation10 + $0x300] sm:$0xff]
    %v3516 = vld [vmem:[#allocation10 + $0x308] sm:$0xff]
    %v3517 = vld [vmem:[#allocation10 + $0x310] sm:$0xff]
    %v3518 = vld [vmem:[#allocation10 + $0x318] sm:$0xff]
    %v3519 = vld [vmem:[#allocation10 + $0x320] sm:$0xff]
    %v3520 = vld [vmem:[#allocation10 + $0x328] sm:$0xff]
    %v3521 = vld [vmem:[#allocation10 + $0x330] sm:$0xff]
    %v3522 = vld [vmem:[#allocation10 + $0x338] sm:$0xff]
    %v3523 = vld [vmem:[#allocation10 + $0x340] sm:$0xff]
    %v3524 = vld [vmem:[#allocation10 + $0x348] sm:$0xff]
    %v3525 = vld [vmem:[#allocation10 + $0x350] sm:$0xff]
    %v3526 = vld [vmem:[#allocation10 + $0x358] sm:$0xff]
    %v3527 = vld [vmem:[#allocation10 + $0x360] sm:$0xff]
    %v3528 = vld [vmem:[#allocation10 + $0x368] sm:$0xff]
    %v3529 = vld [vmem:[#allocation10 + $0x370] sm:$0xff]
    %v3530 = vld [vmem:[#allocation10 + $0x378] sm:$0xff]
    %v3531 = vld [vmem:[#allocation10 + $0x380] sm:$0xff]
    %v3532 = vld [vmem:[#allocation10 + $0x388] sm:$0xff]
    %v3533 = vld [vmem:[#allocation10 + $0x390] sm:$0xff]
    %v3534 = vld [vmem:[#allocation10 + $0x398] sm:$0xff]
    %v3535 = vld [vmem:[#allocation10 + $0x3a0] sm:$0xff]
    %v3536 = vld [vmem:[#allocation10 + $0x3a8] sm:$0xff]
    %v3537 = vld [vmem:[#allocation10 + $0x3b0] sm:$0xff]
    %v3538 = vld [vmem:[#allocation10 + $0x3b8] sm:$0xff]
    %v3539 = vld [vmem:[#allocation10 + $0x3c0] sm:$0xff]
    %v3540 = vld [vmem:[#allocation10 + $0x3c8] sm:$0xff]
    %v3541 = vld [vmem:[#allocation10 + $0x3d0] sm:$0xff]
    %v3542 = vld [vmem:[#allocation10 + $0x3d8] sm:$0xff]
    %v3543 = vld [vmem:[#allocation10 + $0x3e0] sm:$0xff]
    %v3544 = vld [vmem:[#allocation10 + $0x3e8] sm:$0xff]
    %v3545 = vld [vmem:[#allocation10 + $0x3f0] sm:$0xff]
    %v3546 = vld [vmem:[#allocation10 + $0x3f8] sm:$0xff]
    %v3547 = vld [vmem:[#allocation12] sm:$0xf]
    %v3549 = vperm.slane %v3547, 0
    %v3550 = vperm.slane %v3547, 1
    %v3551 = vperm.slane %v3547, 2
    %v3552 = vperm.slane %v3547, 3
    %3557 = vmatpush.msra.mxu0 %v3479
    %3558 = vmatpush.msra.mxu0 %v3475
    %3559 = vmatpush.msra.mxu0 %v3471
    %3560 = vmatpush.msra.mxu0 %v3467
    %3561 = vmatpush.msra.mxu0 %v3463
    %3562 = vmatpush.msra.mxu0 %v3459
    %3563 = vmatpush.msra.mxu0 %v3455
    %3564 = vmatpush.msra.mxu0 %v3451
    %3565 = vmatpush.msra.mxu0 %v3447
    %3566 = vmatpush.msra.mxu0 %v3443
    %3567 = vmatpush.msra.mxu0 %v3439
    %3568 = vmatpush.msra.mxu0 %v3435
    %3569 = vmatpush.msra.mxu0 %v3431
    %3570 = vmatpush.msra.mxu0 %v3427
    %3571 = vmatpush.msra.mxu0 %v3423
    %3572 = vmatpush.msra.mxu0 %v3419
    %3573 = vmatmul.f32.gmra.mxu0 %v3414
    %v3574 = vpop.f32.mrf.mxu0
    %v3575 = vadd.f32 %v3549, %v3574
    %3576 = vdwg.mxu0
    %3577 = vmatpush.msra.mxu0 %v3543
    %3578 = vmatpush.msra.mxu0 %v3539
    %3579 = vmatpush.msra.mxu0 %v3535
    %3580 = vmatpush.msra.mxu0 %v3531
    %3581 = vmatpush.msra.mxu0 %v3527
    %3582 = vmatpush.msra.mxu0 %v3523
    %3583 = vmatpush.msra.mxu0 %v3519
    %3584 = vmatpush.msra.mxu0 %v3515
    %3585 = vmatpush.msra.mxu0 %v3511
    %3586 = vmatpush.msra.mxu0 %v3507
    %3587 = vmatpush.msra.mxu0 %v3503
    %3588 = vmatpush.msra.mxu0 %v3499
    %3589 = vmatpush.msra.mxu0 %v3495
    %3590 = vmatpush.msra.mxu0 %v3491
    %3591 = vmatpush.msra.mxu0 %v3487
    %3592 = vmatpush.msra.mxu0 %v3483
    %3593 = vmatmul.f32.gmra.mxu0 %v3417
    %v3594 = vpop.f32.mrf.mxu0
    %v3595 = vadd.f32 %v3575, %v3594
    %3596 = vdwg.mxu0
    %3597 = vmatpush.msra.mxu0 %v3480
    %3598 = vmatpush.msra.mxu0 %v3476
    %3599 = vmatpush.msra.mxu0 %v3472
    %3600 = vmatpush.msra.mxu0 %v3468
    %3601 = vmatpush.msra.mxu0 %v3464
    %3602 = vmatpush.msra.mxu0 %v3460
    %3603 = vmatpush.msra.mxu0 %v3456
    %3604 = vmatpush.msra.mxu0 %v3452
    %3605 = vmatpush.msra.mxu0 %v3448
    %3606 = vmatpush.msra.mxu0 %v3444
    %3607 = vmatpush.msra.mxu0 %v3440
    %3608 = vmatpush.msra.mxu0 %v3436
    %3609 = vmatpush.msra.mxu0 %v3432
    %3610 = vmatpush.msra.mxu0 %v3428
    %3611 = vmatpush.msra.mxu0 %v3424
    %3612 = vmatpush.msra.mxu0 %v3420
    %3613 = vmatmul.f32.gmra.mxu0 %v3414
    %v3614 = vpop.f32.mrf.mxu0
    %v3615 = vadd.f32 %v3550, %v3614
    %3616 = vdwg.mxu0
    %3617 = vmatpush.msra.mxu0 %v3544
    %3618 = vmatpush.msra.mxu0 %v3540
    %3619 = vmatpush.msra.mxu0 %v3536
    %3620 = vmatpush.msra.mxu0 %v3532
    %3621 = vmatpush.msra.mxu0 %v3528
    %3622 = vmatpush.msra.mxu0 %v3524
    %3623 = vmatpush.msra.mxu0 %v3520
    %3624 = vmatpush.msra.mxu0 %v3516
    %3625 = vmatpush.msra.mxu0 %v3512
    %3626 = vmatpush.msra.mxu0 %v3508
    %3627 = vmatpush.msra.mxu0 %v3504
    %3628 = vmatpush.msra.mxu0 %v3500
    %3629 = vmatpush.msra.mxu0 %v3496
    %3630 = vmatpush.msra.mxu0 %v3492
    %3631 = vmatpush.msra.mxu0 %v3488
    %3632 = vmatpush.msra.mxu0 %v3484
    %3633 = vmatmul.f32.gmra.mxu0 %v3417
    %v3634 = vpop.f32.mrf.mxu0
    %v3635 = vadd.f32 %v3615, %v3634
    %3636 = vdwg.mxu0
    %3637 = vmatpush.msra.mxu0 %v3481
    %3638 = vmatpush.msra.mxu0 %v3477
    %3639 = vmatpush.msra.mxu0 %v3473
    %3640 = vmatpush.msra.mxu0 %v3469
    %3641 = vmatpush.msra.mxu0 %v3465
    %3642 = vmatpush.msra.mxu0 %v3461
    %3643 = vmatpush.msra.mxu0 %v3457
    %3644 = vmatpush.msra.mxu0 %v3453
    %3645 = vmatpush.msra.mxu0 %v3449
    %3646 = vmatpush.msra.mxu0 %v3445
    %3647 = vmatpush.msra.mxu0 %v3441
    %3648 = vmatpush.msra.mxu0 %v3437
    %3649 = vmatpush.msra.mxu0 %v3433
    %3650 = vmatpush.msra.mxu0 %v3429
    %3651 = vmatpush.msra.mxu0 %v3425
    %3652 = vmatpush.msra.mxu0 %v3421
    %3653 = vmatmul.f32.gmra.mxu0 %v3414
    %v3654 = vpop.f32.mrf.mxu0
    %v3655 = vadd.f32 %v3551, %v3654
    %3656 = vdwg.mxu0
    %3657 = vmatpush.msra.mxu0 %v3545
    %3658 = vmatpush.msra.mxu0 %v3541
    %3659 = vmatpush.msra.mxu0 %v3537
    %3660 = vmatpush.msra.mxu0 %v3533
    %3661 = vmatpush.msra.mxu0 %v3529
    %3662 = vmatpush.msra.mxu0 %v3525
    %3663 = vmatpush.msra.mxu0 %v3521
    %3664 = vmatpush.msra.mxu0 %v3517
    %3665 = vmatpush.msra.mxu0 %v3513
    %3666 = vmatpush.msra.mxu0 %v3509
    %3667 = vmatpush.msra.mxu0 %v3505
    %3668 = vmatpush.msra.mxu0 %v3501
    %3669 = vmatpush.msra.mxu0 %v3497
    %3670 = vmatpush.msra.mxu0 %v3493
    %3671 = vmatpush.msra.mxu0 %v3489
    %3672 = vmatpush.msra.mxu0 %v3485
    %3673 = vmatmul.f32.gmra.mxu0 %v3417
    %v3674 = vpop.f32.mrf.mxu0
    %v3675 = vadd.f32 %v3655, %v3674
    %3676 = vdwg.mxu0
    %3677 = vmatpush.msra.mxu0 %v3482
    %3678 = vmatpush.msra.mxu0 %v3478
    %3679 = vmatpush.msra.mxu0 %v3474
    %3680 = vmatpush.msra.mxu0 %v3470
    %3681 = vmatpush.msra.mxu0 %v3466
    %3682 = vmatpush.msra.mxu0 %v3462
    %3683 = vmatpush.msra.mxu0 %v3458
    %3684 = vmatpush.msra.mxu0 %v3454
    %3685 = vmatpush.msra.mxu0 %v3450
    %3686 = vmatpush.msra.mxu0 %v3446
    %3687 = vmatpush.msra.mxu0 %v3442
    %3688 = vmatpush.msra.mxu0 %v3438
    %3689 = vmatpush.msra.mxu0 %v3434
    %3690 = vmatpush.msra.mxu0 %v3430
    %3691 = vmatpush.msra.mxu0 %v3426
    %3692 = vmatpush.msra.mxu0 %v3422
    %3693 = vmatmul.f32.gmra.mxu0 %v3414
    %v3694 = vpop.f32.mrf.mxu0
    %v3695 = vadd.f32 %v3552, %v3694
    %3696 = vdwg.mxu0
    %3697 = vmatpush.msra.mxu0 %v3546
    %3698 = vmatpush.msra.mxu0 %v3542
    %3699 = vmatpush.msra.mxu0 %v3538
    %3700 = vmatpush.msra.mxu0 %v3534
    %3701 = vmatpush.msra.mxu0 %v3530
    %3702 = vmatpush.msra.mxu0 %v3526
    %3703 = vmatpush.msra.mxu0 %v3522
    %3704 = vmatpush.msra.mxu0 %v3518
    %3705 = vmatpush.msra.mxu0 %v3514
    %3706 = vmatpush.msra.mxu0 %v3510
    %3707 = vmatpush.msra.mxu0 %v3506
    %3708 = vmatpush.msra.mxu0 %v3502
    %3709 = vmatpush.msra.mxu0 %v3498
    %3710 = vmatpush.msra.mxu0 %v3494
    %3711 = vmatpush.msra.mxu0 %v3490
    %3712 = vmatpush.msra.mxu0 %v3486
    %3713 = vmatmul.f32.gmra.mxu0 %v3417
    %v3714 = vpop.f32.mrf.mxu0
    %v3715 = vadd.f32 %v3695, %v3714
    %3716 = vdwg.mxu0
    %v3717 = vxor.u32 %v3595, 2147483648
    %v3718 = vmul.f32 %v3717, 1.442695
    %v3719 = vpow.pop %v3718
    %v3720 = vadd.f32 %v3719, 1.0
    %v3721 = vrcp.pop %v3720
    %v3722 = vmul.f32 %v3720, %v3721
    %v3723 = vsub.f32 1.0, %v3722
    %v3724 = vmul.f32 %v3721, %v3723
    %v3725 = vadd.f32 %v3721, %v3724
    %vm3726 = vweird.f32 %v3720
    %vm3727 = vweird.f32 %v3721
    %vm3728 = vmor %vm3726, %vm3727
    %v3729 = vsel %vm3728, %v3721, %v3725
    %v3730 = vand.u32 2147483647, %v3720
    %vm3731 = vcmp.eq.f32.partialorder %v3730, 8.507059e+37
    %v3732 = vand.u32 %v3720, 2147483648
    %v3733 = vor.u32 1.1754944e-38, %v3732
    %v3734 = vsel %vm3731, %v3733, %v3729
    %v3735 = vmul.f32 1.0, %v3734
    %v3736 = vxor.u32 %v3635, 2147483648
    %v3737 = vmul.f32 %v3736, 1.442695
    %v3738 = vpow.pop %v3737
    %v3739 = vadd.f32 %v3738, 1.0
    %v3740 = vrcp.pop %v3739
    %v3741 = vmul.f32 %v3739, %v3740
    %v3742 = vsub.f32 1.0, %v3741
    %v3743 = vmul.f32 %v3740, %v3742
    %v3744 = vadd.f32 %v3740, %v3743
    %vm3745 = vweird.f32 %v3739
    %vm3746 = vweird.f32 %v3740
    %vm3747 = vmor %vm3745, %vm3746
    %v3748 = vsel %vm3747, %v3740, %v3744
    %v3749 = vand.u32 2147483647, %v3739
    %vm3750 = vcmp.eq.f32.partialorder %v3749, 8.507059e+37
    %v3751 = vand.u32 %v3739, 2147483648
    %v3752 = vor.u32 1.1754944e-38, %v3751
    %v3753 = vsel %vm3750, %v3752, %v3748
    %v3754 = vmul.f32 1.0, %v3753
    %v3755 = vtanh.pop %v3675
    %v3756 = vxor.u32 %v3715, 2147483648
    %v3757 = vmul.f32 %v3756, 1.442695
    %v3758 = vpow.pop %v3757
    %v3759 = vadd.f32 %v3758, 1.0
    %v3760 = vrcp.pop %v3759
    %v3761 = vmul.f32 %v3759, %v3760
    %v3762 = vsub.f32 1.0, %v3761
    %v3763 = vmul.f32 %v3760, %v3762
    %v3764 = vadd.f32 %v3760, %v3763
    %vm3765 = vweird.f32 %v3759
    %vm3766 = vweird.f32 %v3760
    %vm3767 = vmor %vm3765, %vm3766
    %v3768 = vsel %vm3767, %v3760, %v3764
    %v3769 = vand.u32 2147483647, %v3759
    %vm3770 = vcmp.eq.f32.partialorder %v3769, 8.507059e+37
    %v3771 = vand.u32 %v3759, 2147483648
    %v3772 = vor.u32 1.1754944e-38, %v3771
    %v3773 = vsel %vm3770, %v3772, %v3768
    %v3774 = vmul.f32 1.0, %v3773
    %v3775 = vmul.f32 %v3754, %v3418
    %v3776 = vmul.f32 %v3735, %v3755
    %v3777 = vadd.f32 %v3775, %v3776
    %v3778 = vtanh.pop %v3777
    %v3779 = vmul.f32 %v3774, %v3778
    %3780 = vst [vmem:[%s487] sm:$0x3] %v3779
    %3781 = vst [vmem:[%s489] sm:$0x3] %v3777
    %s3782 = scalar_lea.vmem [#allocation4], 10
    %v3783 = vld [vmem:[%s3782] sm:$0x3]
    %v3784 = vld [vmem:[#allocation2] sm:$0x3]
    %v3785 = vld [vmem:[#allocation3] sm:$0x3]
    %v3786 = vld [vmem:[#allocation7] sm:$0xff]
    %v3787 = vld [vmem:[#allocation7 + $0x8] sm:$0xff]
    %v3788 = vld [vmem:[#allocation7 + $0x10] sm:$0xff]
    %v3789 = vld [vmem:[#allocation7 + $0x18] sm:$0xff]
    %v3790 = vld [vmem:[#allocation7 + $0x20] sm:$0xff]
    %v3791 = vld [vmem:[#allocation7 + $0x28] sm:$0xff]
    %v3792 = vld [vmem:[#allocation7 + $0x30] sm:$0xff]
    %v3793 = vld [vmem:[#allocation7 + $0x38] sm:$0xff]
    %v3794 = vld [vmem:[#allocation7 + $0x40] sm:$0xff]
    %v3795 = vld [vmem:[#allocation7 + $0x48] sm:$0xff]
    %v3796 = vld [vmem:[#allocation7 + $0x50] sm:$0xff]
    %v3797 = vld [vmem:[#allocation7 + $0x58] sm:$0xff]
    %v3798 = vld [vmem:[#allocation7 + $0x60] sm:$0xff]
    %v3799 = vld [vmem:[#allocation7 + $0x68] sm:$0xff]
    %v3800 = vld [vmem:[#allocation7 + $0x70] sm:$0xff]
    %v3801 = vld [vmem:[#allocation7 + $0x78] sm:$0xff]
    %v3802 = vld [vmem:[#allocation7 + $0x80] sm:$0xff]
    %v3803 = vld [vmem:[#allocation7 + $0x88] sm:$0xff]
    %v3804 = vld [vmem:[#allocation7 + $0x90] sm:$0xff]
    %v3805 = vld [vmem:[#allocation7 + $0x98] sm:$0xff]
    %v3806 = vld [vmem:[#allocation7 + $0xa0] sm:$0xff]
    %v3807 = vld [vmem:[#allocation7 + $0xa8] sm:$0xff]
    %v3808 = vld [vmem:[#allocation7 + $0xb0] sm:$0xff]
    %v3809 = vld [vmem:[#allocation7 + $0xb8] sm:$0xff]
    %v3810 = vld [vmem:[#allocation7 + $0xc0] sm:$0xff]
    %v3811 = vld [vmem:[#allocation7 + $0xc8] sm:$0xff]
    %v3812 = vld [vmem:[#allocation7 + $0xd0] sm:$0xff]
    %v3813 = vld [vmem:[#allocation7 + $0xd8] sm:$0xff]
    %v3814 = vld [vmem:[#allocation7 + $0xe0] sm:$0xff]
    %v3815 = vld [vmem:[#allocation7 + $0xe8] sm:$0xff]
    %v3816 = vld [vmem:[#allocation7 + $0xf0] sm:$0xff]
    %v3817 = vld [vmem:[#allocation7 + $0xf8] sm:$0xff]
    %v3818 = vld [vmem:[#allocation7 + $0x100] sm:$0xff]
    %v3819 = vld [vmem:[#allocation7 + $0x108] sm:$0xff]
    %v3820 = vld [vmem:[#allocation7 + $0x110] sm:$0xff]
    %v3821 = vld [vmem:[#allocation7 + $0x118] sm:$0xff]
    %v3822 = vld [vmem:[#allocation7 + $0x120] sm:$0xff]
    %v3823 = vld [vmem:[#allocation7 + $0x128] sm:$0xff]
    %v3824 = vld [vmem:[#allocation7 + $0x130] sm:$0xff]
    %v3825 = vld [vmem:[#allocation7 + $0x138] sm:$0xff]
    %v3826 = vld [vmem:[#allocation7 + $0x140] sm:$0xff]
    %v3827 = vld [vmem:[#allocation7 + $0x148] sm:$0xff]
    %v3828 = vld [vmem:[#allocation7 + $0x150] sm:$0xff]
    %v3829 = vld [vmem:[#allocation7 + $0x158] sm:$0xff]
    %v3830 = vld [vmem:[#allocation7 + $0x160] sm:$0xff]
    %v3831 = vld [vmem:[#allocation7 + $0x168] sm:$0xff]
    %v3832 = vld [vmem:[#allocation7 + $0x170] sm:$0xff]
    %v3833 = vld [vmem:[#allocation7 + $0x178] sm:$0xff]
    %v3834 = vld [vmem:[#allocation7 + $0x180] sm:$0xff]
    %v3835 = vld [vmem:[#allocation7 + $0x188] sm:$0xff]
    %v3836 = vld [vmem:[#allocation7 + $0x190] sm:$0xff]
    %v3837 = vld [vmem:[#allocation7 + $0x198] sm:$0xff]
    %v3838 = vld [vmem:[#allocation7 + $0x1a0] sm:$0xff]
    %v3839 = vld [vmem:[#allocation7 + $0x1a8] sm:$0xff]
    %v3840 = vld [vmem:[#allocation7 + $0x1b0] sm:$0xff]
    %v3841 = vld [vmem:[#allocation7 + $0x1b8] sm:$0xff]
    %v3842 = vld [vmem:[#allocation7 + $0x1c0] sm:$0xff]
    %v3843 = vld [vmem:[#allocation7 + $0x1c8] sm:$0xff]
    %v3844 = vld [vmem:[#allocation7 + $0x1d0] sm:$0xff]
    %v3845 = vld [vmem:[#allocation7 + $0x1d8] sm:$0xff]
    %v3846 = vld [vmem:[#allocation7 + $0x1e0] sm:$0xff]
    %v3847 = vld [vmem:[#allocation7 + $0x1e8] sm:$0xff]
    %v3848 = vld [vmem:[#allocation7 + $0x1f0] sm:$0xff]
    %v3849 = vld [vmem:[#allocation7 + $0x1f8] sm:$0xff]
    %v3850 = vld [vmem:[#allocation7 + $0x200] sm:$0xff]
    %v3851 = vld [vmem:[#allocation7 + $0x208] sm:$0xff]
    %v3852 = vld [vmem:[#allocation7 + $0x210] sm:$0xff]
    %v3853 = vld [vmem:[#allocation7 + $0x218] sm:$0xff]
    %v3854 = vld [vmem:[#allocation7 + $0x220] sm:$0xff]
    %v3855 = vld [vmem:[#allocation7 + $0x228] sm:$0xff]
    %v3856 = vld [vmem:[#allocation7 + $0x230] sm:$0xff]
    %v3857 = vld [vmem:[#allocation7 + $0x238] sm:$0xff]
    %v3858 = vld [vmem:[#allocation7 + $0x240] sm:$0xff]
    %v3859 = vld [vmem:[#allocation7 + $0x248] sm:$0xff]
    %v3860 = vld [vmem:[#allocation7 + $0x250] sm:$0xff]
    %v3861 = vld [vmem:[#allocation7 + $0x258] sm:$0xff]
    %v3862 = vld [vmem:[#allocation7 + $0x260] sm:$0xff]
    %v3863 = vld [vmem:[#allocation7 + $0x268] sm:$0xff]
    %v3864 = vld [vmem:[#allocation7 + $0x270] sm:$0xff]
    %v3865 = vld [vmem:[#allocation7 + $0x278] sm:$0xff]
    %v3866 = vld [vmem:[#allocation7 + $0x280] sm:$0xff]
    %v3867 = vld [vmem:[#allocation7 + $0x288] sm:$0xff]
    %v3868 = vld [vmem:[#allocation7 + $0x290] sm:$0xff]
    %v3869 = vld [vmem:[#allocation7 + $0x298] sm:$0xff]
    %v3870 = vld [vmem:[#allocation7 + $0x2a0] sm:$0xff]
    %v3871 = vld [vmem:[#allocation7 + $0x2a8] sm:$0xff]
    %v3872 = vld [vmem:[#allocation7 + $0x2b0] sm:$0xff]
    %v3873 = vld [vmem:[#allocation7 + $0x2b8] sm:$0xff]
    %v3874 = vld [vmem:[#allocation7 + $0x2c0] sm:$0xff]
    %v3875 = vld [vmem:[#allocation7 + $0x2c8] sm:$0xff]
    %v3876 = vld [vmem:[#allocation7 + $0x2d0] sm:$0xff]
    %v3877 = vld [vmem:[#allocation7 + $0x2d8] sm:$0xff]
    %v3878 = vld [vmem:[#allocation7 + $0x2e0] sm:$0xff]
    %v3879 = vld [vmem:[#allocation7 + $0x2e8] sm:$0xff]
    %v3880 = vld [vmem:[#allocation7 + $0x2f0] sm:$0xff]
    %v3881 = vld [vmem:[#allocation7 + $0x2f8] sm:$0xff]
    %v3882 = vld [vmem:[#allocation7 + $0x300] sm:$0xff]
    %v3883 = vld [vmem:[#allocation7 + $0x308] sm:$0xff]
    %v3884 = vld [vmem:[#allocation7 + $0x310] sm:$0xff]
    %v3885 = vld [vmem:[#allocation7 + $0x318] sm:$0xff]
    %v3886 = vld [vmem:[#allocation7 + $0x320] sm:$0xff]
    %v3887 = vld [vmem:[#allocation7 + $0x328] sm:$0xff]
    %v3888 = vld [vmem:[#allocation7 + $0x330] sm:$0xff]
    %v3889 = vld [vmem:[#allocation7 + $0x338] sm:$0xff]
    %v3890 = vld [vmem:[#allocation7 + $0x340] sm:$0xff]
    %v3891 = vld [vmem:[#allocation7 + $0x348] sm:$0xff]
    %v3892 = vld [vmem:[#allocation7 + $0x350] sm:$0xff]
    %v3893 = vld [vmem:[#allocation7 + $0x358] sm:$0xff]
    %v3894 = vld [vmem:[#allocation7 + $0x360] sm:$0xff]
    %v3895 = vld [vmem:[#allocation7 + $0x368] sm:$0xff]
    %v3896 = vld [vmem:[#allocation7 + $0x370] sm:$0xff]
    %v3897 = vld [vmem:[#allocation7 + $0x378] sm:$0xff]
    %v3898 = vld [vmem:[#allocation7 + $0x380] sm:$0xff]
    %v3899 = vld [vmem:[#allocation7 + $0x388] sm:$0xff]
    %v3900 = vld [vmem:[#allocation7 + $0x390] sm:$0xff]
    %v3901 = vld [vmem:[#allocation7 + $0x398] sm:$0xff]
    %v3902 = vld [vmem:[#allocation7 + $0x3a0] sm:$0xff]
    %v3903 = vld [vmem:[#allocation7 + $0x3a8] sm:$0xff]
    %v3904 = vld [vmem:[#allocation7 + $0x3b0] sm:$0xff]
    %v3905 = vld [vmem:[#allocation7 + $0x3b8] sm:$0xff]
    %v3906 = vld [vmem:[#allocation7 + $0x3c0] sm:$0xff]
    %v3907 = vld [vmem:[#allocation7 + $0x3c8] sm:$0xff]
    %v3908 = vld [vmem:[#allocation7 + $0x3d0] sm:$0xff]
    %v3909 = vld [vmem:[#allocation7 + $0x3d8] sm:$0xff]
    %v3910 = vld [vmem:[#allocation7 + $0x3e0] sm:$0xff]
    %v3911 = vld [vmem:[#allocation7 + $0x3e8] sm:$0xff]
    %v3912 = vld [vmem:[#allocation7 + $0x3f0] sm:$0xff]
    %v3913 = vld [vmem:[#allocation7 + $0x3f8] sm:$0xff]
    %v3914 = vld [vmem:[#allocation9] sm:$0xf]
    %v3916 = vperm.slane %v3914, 0
    %v3917 = vperm.slane %v3914, 1
    %v3918 = vperm.slane %v3914, 2
    %v3919 = vperm.slane %v3914, 3
    %3924 = vmatpush.msra.mxu0 %v3846
    %3925 = vmatpush.msra.mxu0 %v3842
    %3926 = vmatpush.msra.mxu0 %v3838
    %3927 = vmatpush.msra.mxu0 %v3834
    %3928 = vmatpush.msra.mxu0 %v3830
    %3929 = vmatpush.msra.mxu0 %v3826
    %3930 = vmatpush.msra.mxu0 %v3822
    %3931 = vmatpush.msra.mxu0 %v3818
    %3932 = vmatpush.msra.mxu0 %v3814
    %3933 = vmatpush.msra.mxu0 %v3810
    %3934 = vmatpush.msra.mxu0 %v3806
    %3935 = vmatpush.msra.mxu0 %v3802
    %3936 = vmatpush.msra.mxu0 %v3798
    %3937 = vmatpush.msra.mxu0 %v3794
    %3938 = vmatpush.msra.mxu0 %v3790
    %3939 = vmatpush.msra.mxu0 %v3786
    %3940 = vmatmul.f32.gmra.mxu0 %v3783
    %v3941 = vpop.f32.mrf.mxu0
    %v3942 = vadd.f32 %v3916, %v3941
    %3943 = vdwg.mxu0
    %3944 = vmatpush.msra.mxu0 %v3910
    %3945 = vmatpush.msra.mxu0 %v3906
    %3946 = vmatpush.msra.mxu0 %v3902
    %3947 = vmatpush.msra.mxu0 %v3898
    %3948 = vmatpush.msra.mxu0 %v3894
    %3949 = vmatpush.msra.mxu0 %v3890
    %3950 = vmatpush.msra.mxu0 %v3886
    %3951 = vmatpush.msra.mxu0 %v3882
    %3952 = vmatpush.msra.mxu0 %v3878
    %3953 = vmatpush.msra.mxu0 %v3874
    %3954 = vmatpush.msra.mxu0 %v3870
    %3955 = vmatpush.msra.mxu0 %v3866
    %3956 = vmatpush.msra.mxu0 %v3862
    %3957 = vmatpush.msra.mxu0 %v3858
    %3958 = vmatpush.msra.mxu0 %v3854
    %3959 = vmatpush.msra.mxu0 %v3850
    %3960 = vmatmul.f32.gmra.mxu0 %v3784
    %v3961 = vpop.f32.mrf.mxu0
    %v3962 = vadd.f32 %v3942, %v3961
    %3963 = vdwg.mxu0
    %3964 = vmatpush.msra.mxu0 %v3847
    %3965 = vmatpush.msra.mxu0 %v3843
    %3966 = vmatpush.msra.mxu0 %v3839
    %3967 = vmatpush.msra.mxu0 %v3835
    %3968 = vmatpush.msra.mxu0 %v3831
    %3969 = vmatpush.msra.mxu0 %v3827
    %3970 = vmatpush.msra.mxu0 %v3823
    %3971 = vmatpush.msra.mxu0 %v3819
    %3972 = vmatpush.msra.mxu0 %v3815
    %3973 = vmatpush.msra.mxu0 %v3811
    %3974 = vmatpush.msra.mxu0 %v3807
    %3975 = vmatpush.msra.mxu0 %v3803
    %3976 = vmatpush.msra.mxu0 %v3799
    %3977 = vmatpush.msra.mxu0 %v3795
    %3978 = vmatpush.msra.mxu0 %v3791
    %3979 = vmatpush.msra.mxu0 %v3787
    %3980 = vmatmul.f32.gmra.mxu0 %v3783
    %v3981 = vpop.f32.mrf.mxu0
    %v3982 = vadd.f32 %v3917, %v3981
    %3983 = vdwg.mxu0
    %3984 = vmatpush.msra.mxu0 %v3911
    %3985 = vmatpush.msra.mxu0 %v3907
    %3986 = vmatpush.msra.mxu0 %v3903
    %3987 = vmatpush.msra.mxu0 %v3899
    %3988 = vmatpush.msra.mxu0 %v3895
    %3989 = vmatpush.msra.mxu0 %v3891
    %3990 = vmatpush.msra.mxu0 %v3887
    %3991 = vmatpush.msra.mxu0 %v3883
    %3992 = vmatpush.msra.mxu0 %v3879
    %3993 = vmatpush.msra.mxu0 %v3875
    %3994 = vmatpush.msra.mxu0 %v3871
    %3995 = vmatpush.msra.mxu0 %v3867
    %3996 = vmatpush.msra.mxu0 %v3863
    %3997 = vmatpush.msra.mxu0 %v3859
    %3998 = vmatpush.msra.mxu0 %v3855
    %3999 = vmatpush.msra.mxu0 %v3851
    %4000 = vmatmul.f32.gmra.mxu0 %v3784
    %v4001 = vpop.f32.mrf.mxu0
    %v4002 = vadd.f32 %v3982, %v4001
    %4003 = vdwg.mxu0
    %4004 = vmatpush.msra.mxu0 %v3848
    %4005 = vmatpush.msra.mxu0 %v3844
    %4006 = vmatpush.msra.mxu0 %v3840
    %4007 = vmatpush.msra.mxu0 %v3836
    %4008 = vmatpush.msra.mxu0 %v3832
    %4009 = vmatpush.msra.mxu0 %v3828
    %4010 = vmatpush.msra.mxu0 %v3824
    %4011 = vmatpush.msra.mxu0 %v3820
    %4012 = vmatpush.msra.mxu0 %v3816
    %4013 = vmatpush.msra.mxu0 %v3812
    %4014 = vmatpush.msra.mxu0 %v3808
    %4015 = vmatpush.msra.mxu0 %v3804
    %4016 = vmatpush.msra.mxu0 %v3800
    %4017 = vmatpush.msra.mxu0 %v3796
    %4018 = vmatpush.msra.mxu0 %v3792
    %4019 = vmatpush.msra.mxu0 %v3788
    %4020 = vmatmul.f32.gmra.mxu0 %v3783
    %v4021 = vpop.f32.mrf.mxu0
    %v4022 = vadd.f32 %v3918, %v4021
    %4023 = vdwg.mxu0
    %4024 = vmatpush.msra.mxu0 %v3912
    %4025 = vmatpush.msra.mxu0 %v3908
    %4026 = vmatpush.msra.mxu0 %v3904
    %4027 = vmatpush.msra.mxu0 %v3900
    %4028 = vmatpush.msra.mxu0 %v3896
    %4029 = vmatpush.msra.mxu0 %v3892
    %4030 = vmatpush.msra.mxu0 %v3888
    %4031 = vmatpush.msra.mxu0 %v3884
    %4032 = vmatpush.msra.mxu0 %v3880
    %4033 = vmatpush.msra.mxu0 %v3876
    %4034 = vmatpush.msra.mxu0 %v3872
    %4035 = vmatpush.msra.mxu0 %v3868
    %4036 = vmatpush.msra.mxu0 %v3864
    %4037 = vmatpush.msra.mxu0 %v3860
    %4038 = vmatpush.msra.mxu0 %v3856
    %4039 = vmatpush.msra.mxu0 %v3852
    %4040 = vmatmul.f32.gmra.mxu0 %v3784
    %v4041 = vpop.f32.mrf.mxu0
    %v4042 = vadd.f32 %v4022, %v4041
    %4043 = vdwg.mxu0
    %4044 = vmatpush.msra.mxu0 %v3849
    %4045 = vmatpush.msra.mxu0 %v3845
    %4046 = vmatpush.msra.mxu0 %v3841
    %4047 = vmatpush.msra.mxu0 %v3837
    %4048 = vmatpush.msra.mxu0 %v3833
    %4049 = vmatpush.msra.mxu0 %v3829
    %4050 = vmatpush.msra.mxu0 %v3825
    %4051 = vmatpush.msra.mxu0 %v3821
    %4052 = vmatpush.msra.mxu0 %v3817
    %4053 = vmatpush.msra.mxu0 %v3813
    %4054 = vmatpush.msra.mxu0 %v3809
    %4055 = vmatpush.msra.mxu0 %v3805
    %4056 = vmatpush.msra.mxu0 %v3801
    %4057 = vmatpush.msra.mxu0 %v3797
    %4058 = vmatpush.msra.mxu0 %v3793
    %4059 = vmatpush.msra.mxu0 %v3789
    %4060 = vmatmul.f32.gmra.mxu0 %v3783
    %v4061 = vpop.f32.mrf.mxu0
    %v4062 = vadd.f32 %v3919, %v4061
    %4063 = vdwg.mxu0
    %4064 = vmatpush.msra.mxu0 %v3913
    %4065 = vmatpush.msra.mxu0 %v3909
    %4066 = vmatpush.msra.mxu0 %v3905
    %4067 = vmatpush.msra.mxu0 %v3901
    %4068 = vmatpush.msra.mxu0 %v3897
    %4069 = vmatpush.msra.mxu0 %v3893
    %4070 = vmatpush.msra.mxu0 %v3889
    %4071 = vmatpush.msra.mxu0 %v3885
    %4072 = vmatpush.msra.mxu0 %v3881
    %4073 = vmatpush.msra.mxu0 %v3877
    %4074 = vmatpush.msra.mxu0 %v3873
    %4075 = vmatpush.msra.mxu0 %v3869
    %4076 = vmatpush.msra.mxu0 %v3865
    %4077 = vmatpush.msra.mxu0 %v3861
    %4078 = vmatpush.msra.mxu0 %v3857
    %4079 = vmatpush.msra.mxu0 %v3853
    %4080 = vmatmul.f32.gmra.mxu0 %v3784
    %v4081 = vpop.f32.mrf.mxu0
    %v4082 = vadd.f32 %v4062, %v4081
    %4083 = vdwg.mxu0
    %v4084 = vxor.u32 %v3962, 2147483648
    %v4085 = vmul.f32 %v4084, 1.442695
    %v4086 = vpow.pop %v4085
    %v4087 = vadd.f32 %v4086, 1.0
    %v4088 = vrcp.pop %v4087
    %v4089 = vmul.f32 %v4087, %v4088
    %v4090 = vsub.f32 1.0, %v4089
    %v4091 = vmul.f32 %v4088, %v4090
    %v4092 = vadd.f32 %v4088, %v4091
    %vm4093 = vweird.f32 %v4087
    %vm4094 = vweird.f32 %v4088
    %vm4095 = vmor %vm4093, %vm4094
    %v4096 = vsel %vm4095, %v4088, %v4092
    %v4097 = vand.u32 2147483647, %v4087
    %vm4098 = vcmp.eq.f32.partialorder %v4097, 8.507059e+37
    %v4099 = vand.u32 %v4087, 2147483648
    %v4100 = vor.u32 1.1754944e-38, %v4099
    %v4101 = vsel %vm4098, %v4100, %v4096
    %v4102 = vmul.f32 1.0, %v4101
    %v4103 = vxor.u32 %v4002, 2147483648
    %v4104 = vmul.f32 %v4103, 1.442695
    %v4105 = vpow.pop %v4104
    %v4106 = vadd.f32 %v4105, 1.0
    %v4107 = vrcp.pop %v4106
    %v4108 = vmul.f32 %v4106, %v4107
    %v4109 = vsub.f32 1.0, %v4108
    %v4110 = vmul.f32 %v4107, %v4109
    %v4111 = vadd.f32 %v4107, %v4110
    %vm4112 = vweird.f32 %v4106
    %vm4113 = vweird.f32 %v4107
    %vm4114 = vmor %vm4112, %vm4113
    %v4115 = vsel %vm4114, %v4107, %v4111
    %v4116 = vand.u32 2147483647, %v4106
    %vm4117 = vcmp.eq.f32.partialorder %v4116, 8.507059e+37
    %v4118 = vand.u32 %v4106, 2147483648
    %v4119 = vor.u32 1.1754944e-38, %v4118
    %v4120 = vsel %vm4117, %v4119, %v4115
    %v4121 = vmul.f32 1.0, %v4120
    %v4122 = vtanh.pop %v4042
    %v4123 = vxor.u32 %v4082, 2147483648
    %v4124 = vmul.f32 %v4123, 1.442695
    %v4125 = vpow.pop %v4124
    %v4126 = vadd.f32 %v4125, 1.0
    %v4127 = vrcp.pop %v4126
    %v4128 = vmul.f32 %v4126, %v4127
    %v4129 = vsub.f32 1.0, %v4128
    %v4130 = vmul.f32 %v4127, %v4129
    %v4131 = vadd.f32 %v4127, %v4130
    %vm4132 = vweird.f32 %v4126
    %vm4133 = vweird.f32 %v4127
    %vm4134 = vmor %vm4132, %vm4133
    %v4135 = vsel %vm4134, %v4127, %v4131
    %v4136 = vand.u32 2147483647, %v4126
    %vm4137 = vcmp.eq.f32.partialorder %v4136, 8.507059e+37
    %v4138 = vand.u32 %v4126, 2147483648
    %v4139 = vor.u32 1.1754944e-38, %v4138
    %v4140 = vsel %vm4137, %v4139, %v4135
    %v4141 = vmul.f32 1.0, %v4140
    %v4142 = vmul.f32 %v4121, %v3785
    %v4143 = vmul.f32 %v4102, %v4122
    %v4144 = vadd.f32 %v4142, %v4143
    %v4145 = vtanh.pop %v4144
    %v4146 = vmul.f32 %v4141, %v4145
    %4147 = vst [vmem:[#allocation2] sm:$0x3] %v4146
    %4148 = vst [vmem:[#allocation3] sm:$0x3] %v4144
    %v4149 = vld [vmem:[%s487] sm:$0x3]
    %v4150 = vld [vmem:[%s489] sm:$0x3]
    %v4151 = vld [vmem:[#allocation10] sm:$0xff]
    %v4152 = vld [vmem:[#allocation10 + $0x8] sm:$0xff]
    %v4153 = vld [vmem:[#allocation10 + $0x10] sm:$0xff]
    %v4154 = vld [vmem:[#allocation10 + $0x18] sm:$0xff]
    %v4155 = vld [vmem:[#allocation10 + $0x20] sm:$0xff]
    %v4156 = vld [vmem:[#allocation10 + $0x28] sm:$0xff]
    %v4157 = vld [vmem:[#allocation10 + $0x30] sm:$0xff]
    %v4158 = vld [vmem:[#allocation10 + $0x38] sm:$0xff]
    %v4159 = vld [vmem:[#allocation10 + $0x40] sm:$0xff]
    %v4160 = vld [vmem:[#allocation10 + $0x48] sm:$0xff]
    %v4161 = vld [vmem:[#allocation10 + $0x50] sm:$0xff]
    %v4162 = vld [vmem:[#allocation10 + $0x58] sm:$0xff]
    %v4163 = vld [vmem:[#allocation10 + $0x60] sm:$0xff]
    %v4164 = vld [vmem:[#allocation10 + $0x68] sm:$0xff]
    %v4165 = vld [vmem:[#allocation10 + $0x70] sm:$0xff]
    %v4166 = vld [vmem:[#allocation10 + $0x78] sm:$0xff]
    %v4167 = vld [vmem:[#allocation10 + $0x80] sm:$0xff]
    %v4168 = vld [vmem:[#allocation10 + $0x88] sm:$0xff]
    %v4169 = vld [vmem:[#allocation10 + $0x90] sm:$0xff]
    %v4170 = vld [vmem:[#allocation10 + $0x98] sm:$0xff]
    %v4171 = vld [vmem:[#allocation10 + $0xa0] sm:$0xff]
    %v4172 = vld [vmem:[#allocation10 + $0xa8] sm:$0xff]
    %v4173 = vld [vmem:[#allocation10 + $0xb0] sm:$0xff]
    %v4174 = vld [vmem:[#allocation10 + $0xb8] sm:$0xff]
    %v4175 = vld [vmem:[#allocation10 + $0xc0] sm:$0xff]
    %v4176 = vld [vmem:[#allocation10 + $0xc8] sm:$0xff]
    %v4177 = vld [vmem:[#allocation10 + $0xd0] sm:$0xff]
    %v4178 = vld [vmem:[#allocation10 + $0xd8] sm:$0xff]
    %v4179 = vld [vmem:[#allocation10 + $0xe0] sm:$0xff]
    %v4180 = vld [vmem:[#allocation10 + $0xe8] sm:$0xff]
    %v4181 = vld [vmem:[#allocation10 + $0xf0] sm:$0xff]
    %v4182 = vld [vmem:[#allocation10 + $0xf8] sm:$0xff]
    %v4183 = vld [vmem:[#allocation10 + $0x100] sm:$0xff]
    %v4184 = vld [vmem:[#allocation10 + $0x108] sm:$0xff]
    %v4185 = vld [vmem:[#allocation10 + $0x110] sm:$0xff]
    %v4186 = vld [vmem:[#allocation10 + $0x118] sm:$0xff]
    %v4187 = vld [vmem:[#allocation10 + $0x120] sm:$0xff]
    %v4188 = vld [vmem:[#allocation10 + $0x128] sm:$0xff]
    %v4189 = vld [vmem:[#allocation10 + $0x130] sm:$0xff]
    %v4190 = vld [vmem:[#allocation10 + $0x138] sm:$0xff]
    %v4191 = vld [vmem:[#allocation10 + $0x140] sm:$0xff]
    %v4192 = vld [vmem:[#allocation10 + $0x148] sm:$0xff]
    %v4193 = vld [vmem:[#allocation10 + $0x150] sm:$0xff]
    %v4194 = vld [vmem:[#allocation10 + $0x158] sm:$0xff]
    %v4195 = vld [vmem:[#allocation10 + $0x160] sm:$0xff]
    %v4196 = vld [vmem:[#allocation10 + $0x168] sm:$0xff]
    %v4197 = vld [vmem:[#allocation10 + $0x170] sm:$0xff]
    %v4198 = vld [vmem:[#allocation10 + $0x178] sm:$0xff]
    %v4199 = vld [vmem:[#allocation10 + $0x180] sm:$0xff]
    %v4200 = vld [vmem:[#allocation10 + $0x188] sm:$0xff]
    %v4201 = vld [vmem:[#allocation10 + $0x190] sm:$0xff]
    %v4202 = vld [vmem:[#allocation10 + $0x198] sm:$0xff]
    %v4203 = vld [vmem:[#allocation10 + $0x1a0] sm:$0xff]
    %v4204 = vld [vmem:[#allocation10 + $0x1a8] sm:$0xff]
    %v4205 = vld [vmem:[#allocation10 + $0x1b0] sm:$0xff]
    %v4206 = vld [vmem:[#allocation10 + $0x1b8] sm:$0xff]
    %v4207 = vld [vmem:[#allocation10 + $0x1c0] sm:$0xff]
    %v4208 = vld [vmem:[#allocation10 + $0x1c8] sm:$0xff]
    %v4209 = vld [vmem:[#allocation10 + $0x1d0] sm:$0xff]
    %v4210 = vld [vmem:[#allocation10 + $0x1d8] sm:$0xff]
    %v4211 = vld [vmem:[#allocation10 + $0x1e0] sm:$0xff]
    %v4212 = vld [vmem:[#allocation10 + $0x1e8] sm:$0xff]
    %v4213 = vld [vmem:[#allocation10 + $0x1f0] sm:$0xff]
    %v4214 = vld [vmem:[#allocation10 + $0x1f8] sm:$0xff]
    %v4215 = vld [vmem:[#allocation10 + $0x200] sm:$0xff]
    %v4216 = vld [vmem:[#allocation10 + $0x208] sm:$0xff]
    %v4217 = vld [vmem:[#allocation10 + $0x210] sm:$0xff]
    %v4218 = vld [vmem:[#allocation10 + $0x218] sm:$0xff]
    %v4219 = vld [vmem:[#allocation10 + $0x220] sm:$0xff]
    %v4220 = vld [vmem:[#allocation10 + $0x228] sm:$0xff]
    %v4221 = vld [vmem:[#allocation10 + $0x230] sm:$0xff]
    %v4222 = vld [vmem:[#allocation10 + $0x238] sm:$0xff]
    %v4223 = vld [vmem:[#allocation10 + $0x240] sm:$0xff]
    %v4224 = vld [vmem:[#allocation10 + $0x248] sm:$0xff]
    %v4225 = vld [vmem:[#allocation10 + $0x250] sm:$0xff]
    %v4226 = vld [vmem:[#allocation10 + $0x258] sm:$0xff]
    %v4227 = vld [vmem:[#allocation10 + $0x260] sm:$0xff]
    %v4228 = vld [vmem:[#allocation10 + $0x268] sm:$0xff]
    %v4229 = vld [vmem:[#allocation10 + $0x270] sm:$0xff]
    %v4230 = vld [vmem:[#allocation10 + $0x278] sm:$0xff]
    %v4231 = vld [vmem:[#allocation10 + $0x280] sm:$0xff]
    %v4232 = vld [vmem:[#allocation10 + $0x288] sm:$0xff]
    %v4233 = vld [vmem:[#allocation10 + $0x290] sm:$0xff]
    %v4234 = vld [vmem:[#allocation10 + $0x298] sm:$0xff]
    %v4235 = vld [vmem:[#allocation10 + $0x2a0] sm:$0xff]
    %v4236 = vld [vmem:[#allocation10 + $0x2a8] sm:$0xff]
    %v4237 = vld [vmem:[#allocation10 + $0x2b0] sm:$0xff]
    %v4238 = vld [vmem:[#allocation10 + $0x2b8] sm:$0xff]
    %v4239 = vld [vmem:[#allocation10 + $0x2c0] sm:$0xff]
    %v4240 = vld [vmem:[#allocation10 + $0x2c8] sm:$0xff]
    %v4241 = vld [vmem:[#allocation10 + $0x2d0] sm:$0xff]
    %v4242 = vld [vmem:[#allocation10 + $0x2d8] sm:$0xff]
    %v4243 = vld [vmem:[#allocation10 + $0x2e0] sm:$0xff]
    %v4244 = vld [vmem:[#allocation10 + $0x2e8] sm:$0xff]
    %v4245 = vld [vmem:[#allocation10 + $0x2f0] sm:$0xff]
    %v4246 = vld [vmem:[#allocation10 + $0x2f8] sm:$0xff]
    %v4247 = vld [vmem:[#allocation10 + $0x300] sm:$0xff]
    %v4248 = vld [vmem:[#allocation10 + $0x308] sm:$0xff]
    %v4249 = vld [vmem:[#allocation10 + $0x310] sm:$0xff]
    %v4250 = vld [vmem:[#allocation10 + $0x318] sm:$0xff]
    %v4251 = vld [vmem:[#allocation10 + $0x320] sm:$0xff]
    %v4252 = vld [vmem:[#allocation10 + $0x328] sm:$0xff]
    %v4253 = vld [vmem:[#allocation10 + $0x330] sm:$0xff]
    %v4254 = vld [vmem:[#allocation10 + $0x338] sm:$0xff]
    %v4255 = vld [vmem:[#allocation10 + $0x340] sm:$0xff]
    %v4256 = vld [vmem:[#allocation10 + $0x348] sm:$0xff]
    %v4257 = vld [vmem:[#allocation10 + $0x350] sm:$0xff]
    %v4258 = vld [vmem:[#allocation10 + $0x358] sm:$0xff]
    %v4259 = vld [vmem:[#allocation10 + $0x360] sm:$0xff]
    %v4260 = vld [vmem:[#allocation10 + $0x368] sm:$0xff]
    %v4261 = vld [vmem:[#allocation10 + $0x370] sm:$0xff]
    %v4262 = vld [vmem:[#allocation10 + $0x378] sm:$0xff]
    %v4263 = vld [vmem:[#allocation10 + $0x380] sm:$0xff]
    %v4264 = vld [vmem:[#allocation10 + $0x388] sm:$0xff]
    %v4265 = vld [vmem:[#allocation10 + $0x390] sm:$0xff]
    %v4266 = vld [vmem:[#allocation10 + $0x398] sm:$0xff]
    %v4267 = vld [vmem:[#allocation10 + $0x3a0] sm:$0xff]
    %v4268 = vld [vmem:[#allocation10 + $0x3a8] sm:$0xff]
    %v4269 = vld [vmem:[#allocation10 + $0x3b0] sm:$0xff]
    %v4270 = vld [vmem:[#allocation10 + $0x3b8] sm:$0xff]
    %v4271 = vld [vmem:[#allocation10 + $0x3c0] sm:$0xff]
    %v4272 = vld [vmem:[#allocation10 + $0x3c8] sm:$0xff]
    %v4273 = vld [vmem:[#allocation10 + $0x3d0] sm:$0xff]
    %v4274 = vld [vmem:[#allocation10 + $0x3d8] sm:$0xff]
    %v4275 = vld [vmem:[#allocation10 + $0x3e0] sm:$0xff]
    %v4276 = vld [vmem:[#allocation10 + $0x3e8] sm:$0xff]
    %v4277 = vld [vmem:[#allocation10 + $0x3f0] sm:$0xff]
    %v4278 = vld [vmem:[#allocation10 + $0x3f8] sm:$0xff]
    %v4279 = vld [vmem:[#allocation12] sm:$0xf]
    %v4281 = vperm.slane %v4279, 0
    %v4282 = vperm.slane %v4279, 1
    %v4283 = vperm.slane %v4279, 2
    %v4284 = vperm.slane %v4279, 3
    %4289 = vmatpush.msra.mxu0 %v4211
    %4290 = vmatpush.msra.mxu0 %v4207
    %4291 = vmatpush.msra.mxu0 %v4203
    %4292 = vmatpush.msra.mxu0 %v4199
    %4293 = vmatpush.msra.mxu0 %v4195
    %4294 = vmatpush.msra.mxu0 %v4191
    %4295 = vmatpush.msra.mxu0 %v4187
    %4296 = vmatpush.msra.mxu0 %v4183
    %4297 = vmatpush.msra.mxu0 %v4179
    %4298 = vmatpush.msra.mxu0 %v4175
    %4299 = vmatpush.msra.mxu0 %v4171
    %4300 = vmatpush.msra.mxu0 %v4167
    %4301 = vmatpush.msra.mxu0 %v4163
    %4302 = vmatpush.msra.mxu0 %v4159
    %4303 = vmatpush.msra.mxu0 %v4155
    %4304 = vmatpush.msra.mxu0 %v4151
    %4305 = vmatmul.f32.gmra.mxu0 %v4146
    %v4306 = vpop.f32.mrf.mxu0
    %v4307 = vadd.f32 %v4281, %v4306
    %4308 = vdwg.mxu0
    %4309 = vmatpush.msra.mxu0 %v4275
    %4310 = vmatpush.msra.mxu0 %v4271
    %4311 = vmatpush.msra.mxu0 %v4267
    %4312 = vmatpush.msra.mxu0 %v4263
    %4313 = vmatpush.msra.mxu0 %v4259
    %4314 = vmatpush.msra.mxu0 %v4255
    %4315 = vmatpush.msra.mxu0 %v4251
    %4316 = vmatpush.msra.mxu0 %v4247
    %4317 = vmatpush.msra.mxu0 %v4243
    %4318 = vmatpush.msra.mxu0 %v4239
    %4319 = vmatpush.msra.mxu0 %v4235
    %4320 = vmatpush.msra.mxu0 %v4231
    %4321 = vmatpush.msra.mxu0 %v4227
    %4322 = vmatpush.msra.mxu0 %v4223
    %4323 = vmatpush.msra.mxu0 %v4219
    %4324 = vmatpush.msra.mxu0 %v4215
    %4325 = vmatmul.f32.gmra.mxu0 %v4149
    %v4326 = vpop.f32.mrf.mxu0
    %v4327 = vadd.f32 %v4307, %v4326
    %4328 = vdwg.mxu0
    %4329 = vmatpush.msra.mxu0 %v4212
    %4330 = vmatpush.msra.mxu0 %v4208
    %4331 = vmatpush.msra.mxu0 %v4204
    %4332 = vmatpush.msra.mxu0 %v4200
    %4333 = vmatpush.msra.mxu0 %v4196
    %4334 = vmatpush.msra.mxu0 %v4192
    %4335 = vmatpush.msra.mxu0 %v4188
    %4336 = vmatpush.msra.mxu0 %v4184
    %4337 = vmatpush.msra.mxu0 %v4180
    %4338 = vmatpush.msra.mxu0 %v4176
    %4339 = vmatpush.msra.mxu0 %v4172
    %4340 = vmatpush.msra.mxu0 %v4168
    %4341 = vmatpush.msra.mxu0 %v4164
    %4342 = vmatpush.msra.mxu0 %v4160
    %4343 = vmatpush.msra.mxu0 %v4156
    %4344 = vmatpush.msra.mxu0 %v4152
    %4345 = vmatmul.f32.gmra.mxu0 %v4146
    %v4346 = vpop.f32.mrf.mxu0
    %v4347 = vadd.f32 %v4282, %v4346
    %4348 = vdwg.mxu0
    %4349 = vmatpush.msra.mxu0 %v4276
    %4350 = vmatpush.msra.mxu0 %v4272
    %4351 = vmatpush.msra.mxu0 %v4268
    %4352 = vmatpush.msra.mxu0 %v4264
    %4353 = vmatpush.msra.mxu0 %v4260
    %4354 = vmatpush.msra.mxu0 %v4256
    %4355 = vmatpush.msra.mxu0 %v4252
    %4356 = vmatpush.msra.mxu0 %v4248
    %4357 = vmatpush.msra.mxu0 %v4244
    %4358 = vmatpush.msra.mxu0 %v4240
    %4359 = vmatpush.msra.mxu0 %v4236
    %4360 = vmatpush.msra.mxu0 %v4232
    %4361 = vmatpush.msra.mxu0 %v4228
    %4362 = vmatpush.msra.mxu0 %v4224
    %4363 = vmatpush.msra.mxu0 %v4220
    %4364 = vmatpush.msra.mxu0 %v4216
    %4365 = vmatmul.f32.gmra.mxu0 %v4149
    %v4366 = vpop.f32.mrf.mxu0
    %v4367 = vadd.f32 %v4347, %v4366
    %4368 = vdwg.mxu0
    %4369 = vmatpush.msra.mxu0 %v4213
    %4370 = vmatpush.msra.mxu0 %v4209
    %4371 = vmatpush.msra.mxu0 %v4205
    %4372 = vmatpush.msra.mxu0 %v4201
    %4373 = vmatpush.msra.mxu0 %v4197
    %4374 = vmatpush.msra.mxu0 %v4193
    %4375 = vmatpush.msra.mxu0 %v4189
    %4376 = vmatpush.msra.mxu0 %v4185
    %4377 = vmatpush.msra.mxu0 %v4181
    %4378 = vmatpush.msra.mxu0 %v4177
    %4379 = vmatpush.msra.mxu0 %v4173
    %4380 = vmatpush.msra.mxu0 %v4169
    %4381 = vmatpush.msra.mxu0 %v4165
    %4382 = vmatpush.msra.mxu0 %v4161
    %4383 = vmatpush.msra.mxu0 %v4157
    %4384 = vmatpush.msra.mxu0 %v4153
    %4385 = vmatmul.f32.gmra.mxu0 %v4146
    %v4386 = vpop.f32.mrf.mxu0
    %v4387 = vadd.f32 %v4283, %v4386
    %4388 = vdwg.mxu0
    %4389 = vmatpush.msra.mxu0 %v4277
    %4390 = vmatpush.msra.mxu0 %v4273
    %4391 = vmatpush.msra.mxu0 %v4269
    %4392 = vmatpush.msra.mxu0 %v4265
    %4393 = vmatpush.msra.mxu0 %v4261
    %4394 = vmatpush.msra.mxu0 %v4257
    %4395 = vmatpush.msra.mxu0 %v4253
    %4396 = vmatpush.msra.mxu0 %v4249
    %4397 = vmatpush.msra.mxu0 %v4245
    %4398 = vmatpush.msra.mxu0 %v4241
    %4399 = vmatpush.msra.mxu0 %v4237
    %4400 = vmatpush.msra.mxu0 %v4233
    %4401 = vmatpush.msra.mxu0 %v4229
    %4402 = vmatpush.msra.mxu0 %v4225
    %4403 = vmatpush.msra.mxu0 %v4221
    %4404 = vmatpush.msra.mxu0 %v4217
    %4405 = vmatmul.f32.gmra.mxu0 %v4149
    %v4406 = vpop.f32.mrf.mxu0
    %v4407 = vadd.f32 %v4387, %v4406
    %4408 = vdwg.mxu0
    %4409 = vmatpush.msra.mxu0 %v4214
    %4410 = vmatpush.msra.mxu0 %v4210
    %4411 = vmatpush.msra.mxu0 %v4206
    %4412 = vmatpush.msra.mxu0 %v4202
    %4413 = vmatpush.msra.mxu0 %v4198
    %4414 = vmatpush.msra.mxu0 %v4194
    %4415 = vmatpush.msra.mxu0 %v4190
    %4416 = vmatpush.msra.mxu0 %v4186
    %4417 = vmatpush.msra.mxu0 %v4182
    %4418 = vmatpush.msra.mxu0 %v4178
    %4419 = vmatpush.msra.mxu0 %v4174
    %4420 = vmatpush.msra.mxu0 %v4170
    %4421 = vmatpush.msra.mxu0 %v4166
    %4422 = vmatpush.msra.mxu0 %v4162
    %4423 = vmatpush.msra.mxu0 %v4158
    %4424 = vmatpush.msra.mxu0 %v4154
    %4425 = vmatmul.f32.gmra.mxu0 %v4146
    %v4426 = vpop.f32.mrf.mxu0
    %v4427 = vadd.f32 %v4284, %v4426
    %4428 = vdwg.mxu0
    %4429 = vmatpush.msra.mxu0 %v4278
    %4430 = vmatpush.msra.mxu0 %v4274
    %4431 = vmatpush.msra.mxu0 %v4270
    %4432 = vmatpush.msra.mxu0 %v4266
    %4433 = vmatpush.msra.mxu0 %v4262
    %4434 = vmatpush.msra.mxu0 %v4258
    %4435 = vmatpush.msra.mxu0 %v4254
    %4436 = vmatpush.msra.mxu0 %v4250
    %4437 = vmatpush.msra.mxu0 %v4246
    %4438 = vmatpush.msra.mxu0 %v4242
    %4439 = vmatpush.msra.mxu0 %v4238
    %4440 = vmatpush.msra.mxu0 %v4234
    %4441 = vmatpush.msra.mxu0 %v4230
    %4442 = vmatpush.msra.mxu0 %v4226
    %4443 = vmatpush.msra.mxu0 %v4222
    %4444 = vmatpush.msra.mxu0 %v4218
    %4445 = vmatmul.f32.gmra.mxu0 %v4149
    %v4446 = vpop.f32.mrf.mxu0
    %v4447 = vadd.f32 %v4427, %v4446
    %4448 = vdwg.mxu0
    %v4449 = vxor.u32 %v4327, 2147483648
    %v4450 = vmul.f32 %v4449, 1.442695
    %v4451 = vpow.pop %v4450
    %v4452 = vadd.f32 %v4451, 1.0
    %v4453 = vrcp.pop %v4452
    %v4454 = vmul.f32 %v4452, %v4453
    %v4455 = vsub.f32 1.0, %v4454
    %v4456 = vmul.f32 %v4453, %v4455
    %v4457 = vadd.f32 %v4453, %v4456
    %vm4458 = vweird.f32 %v4452
    %vm4459 = vweird.f32 %v4453
    %vm4460 = vmor %vm4458, %vm4459
    %v4461 = vsel %vm4460, %v4453, %v4457
    %v4462 = vand.u32 2147483647, %v4452
    %vm4463 = vcmp.eq.f32.partialorder %v4462, 8.507059e+37
    %v4464 = vand.u32 %v4452, 2147483648
    %v4465 = vor.u32 1.1754944e-38, %v4464
    %v4466 = vsel %vm4463, %v4465, %v4461
    %v4467 = vmul.f32 1.0, %v4466
    %v4468 = vxor.u32 %v4367, 2147483648
    %v4469 = vmul.f32 %v4468, 1.442695
    %v4470 = vpow.pop %v4469
    %v4471 = vadd.f32 %v4470, 1.0
    %v4472 = vrcp.pop %v4471
    %v4473 = vmul.f32 %v4471, %v4472
    %v4474 = vsub.f32 1.0, %v4473
    %v4475 = vmul.f32 %v4472, %v4474
    %v4476 = vadd.f32 %v4472, %v4475
    %vm4477 = vweird.f32 %v4471
    %vm4478 = vweird.f32 %v4472
    %vm4479 = vmor %vm4477, %vm4478
    %v4480 = vsel %vm4479, %v4472, %v4476
    %v4481 = vand.u32 2147483647, %v4471
    %vm4482 = vcmp.eq.f32.partialorder %v4481, 8.507059e+37
    %v4483 = vand.u32 %v4471, 2147483648
    %v4484 = vor.u32 1.1754944e-38, %v4483
    %v4485 = vsel %vm4482, %v4484, %v4480
    %v4486 = vmul.f32 1.0, %v4485
    %v4487 = vtanh.pop %v4407
    %v4488 = vxor.u32 %v4447, 2147483648
    %v4489 = vmul.f32 %v4488, 1.442695
    %v4490 = vpow.pop %v4489
    %v4491 = vadd.f32 %v4490, 1.0
    %v4492 = vrcp.pop %v4491
    %v4493 = vmul.f32 %v4491, %v4492
    %v4494 = vsub.f32 1.0, %v4493
    %v4495 = vmul.f32 %v4492, %v4494
    %v4496 = vadd.f32 %v4492, %v4495
    %vm4497 = vweird.f32 %v4491
    %vm4498 = vweird.f32 %v4492
    %vm4499 = vmor %vm4497, %vm4498
    %v4500 = vsel %vm4499, %v4492, %v4496
    %v4501 = vand.u32 2147483647, %v4491
    %vm4502 = vcmp.eq.f32.partialorder %v4501, 8.507059e+37
    %v4503 = vand.u32 %v4491, 2147483648
    %v4504 = vor.u32 1.1754944e-38, %v4503
    %v4505 = vsel %vm4502, %v4504, %v4500
    %v4506 = vmul.f32 1.0, %v4505
    %v4507 = vmul.f32 %v4486, %v4150
    %v4508 = vmul.f32 %v4467, %v4487
    %v4509 = vadd.f32 %v4507, %v4508
    %v4510 = vtanh.pop %v4509
    %v4511 = vmul.f32 %v4506, %v4510
    %4512 = vst [vmem:[%s487] sm:$0x3] %v4511
    %4513 = vst [vmem:[%s489] sm:$0x3] %v4509
    %s4514 = scalar_lea.vmem [#allocation4], 12
    %v4515 = vld [vmem:[%s4514] sm:$0x3]
    %v4516 = vld [vmem:[#allocation2] sm:$0x3]
    %v4517 = vld [vmem:[#allocation3] sm:$0x3]
    %v4518 = vld [vmem:[#allocation7] sm:$0xff]
    %v4519 = vld [vmem:[#allocation7 + $0x8] sm:$0xff]
    %v4520 = vld [vmem:[#allocation7 + $0x10] sm:$0xff]
    %v4521 = vld [vmem:[#allocation7 + $0x18] sm:$0xff]
    %v4522 = vld [vmem:[#allocation7 + $0x20] sm:$0xff]
    %v4523 = vld [vmem:[#allocation7 + $0x28] sm:$0xff]
    %v4524 = vld [vmem:[#allocation7 + $0x30] sm:$0xff]
    %v4525 = vld [vmem:[#allocation7 + $0x38] sm:$0xff]
    %v4526 = vld [vmem:[#allocation7 + $0x40] sm:$0xff]
    %v4527 = vld [vmem:[#allocation7 + $0x48] sm:$0xff]
    %v4528 = vld [vmem:[#allocation7 + $0x50] sm:$0xff]
    %v4529 = vld [vmem:[#allocation7 + $0x58] sm:$0xff]
    %v4530 = vld [vmem:[#allocation7 + $0x60] sm:$0xff]
    %v4531 = vld [vmem:[#allocation7 + $0x68] sm:$0xff]
    %v4532 = vld [vmem:[#allocation7 + $0x70] sm:$0xff]
    %v4533 = vld [vmem:[#allocation7 + $0x78] sm:$0xff]
    %v4534 = vld [vmem:[#allocation7 + $0x80] sm:$0xff]
    %v4535 = vld [vmem:[#allocation7 + $0x88] sm:$0xff]
    %v4536 = vld [vmem:[#allocation7 + $0x90] sm:$0xff]
    %v4537 = vld [vmem:[#allocation7 + $0x98] sm:$0xff]
    %v4538 = vld [vmem:[#allocation7 + $0xa0] sm:$0xff]
    %v4539 = vld [vmem:[#allocation7 + $0xa8] sm:$0xff]
    %v4540 = vld [vmem:[#allocation7 + $0xb0] sm:$0xff]
    %v4541 = vld [vmem:[#allocation7 + $0xb8] sm:$0xff]
    %v4542 = vld [vmem:[#allocation7 + $0xc0] sm:$0xff]
    %v4543 = vld [vmem:[#allocation7 + $0xc8] sm:$0xff]
    %v4544 = vld [vmem:[#allocation7 + $0xd0] sm:$0xff]
    %v4545 = vld [vmem:[#allocation7 + $0xd8] sm:$0xff]
    %v4546 = vld [vmem:[#allocation7 + $0xe0] sm:$0xff]
    %v4547 = vld [vmem:[#allocation7 + $0xe8] sm:$0xff]
    %v4548 = vld [vmem:[#allocation7 + $0xf0] sm:$0xff]
    %v4549 = vld [vmem:[#allocation7 + $0xf8] sm:$0xff]
    %v4550 = vld [vmem:[#allocation7 + $0x100] sm:$0xff]
    %v4551 = vld [vmem:[#allocation7 + $0x108] sm:$0xff]
    %v4552 = vld [vmem:[#allocation7 + $0x110] sm:$0xff]
    %v4553 = vld [vmem:[#allocation7 + $0x118] sm:$0xff]
    %v4554 = vld [vmem:[#allocation7 + $0x120] sm:$0xff]
    %v4555 = vld [vmem:[#allocation7 + $0x128] sm:$0xff]
    %v4556 = vld [vmem:[#allocation7 + $0x130] sm:$0xff]
    %v4557 = vld [vmem:[#allocation7 + $0x138] sm:$0xff]
    %v4558 = vld [vmem:[#allocation7 + $0x140] sm:$0xff]
    %v4559 = vld [vmem:[#allocation7 + $0x148] sm:$0xff]
    %v4560 = vld [vmem:[#allocation7 + $0x150] sm:$0xff]
    %v4561 = vld [vmem:[#allocation7 + $0x158] sm:$0xff]
    %v4562 = vld [vmem:[#allocation7 + $0x160] sm:$0xff]
    %v4563 = vld [vmem:[#allocation7 + $0x168] sm:$0xff]
    %v4564 = vld [vmem:[#allocation7 + $0x170] sm:$0xff]
    %v4565 = vld [vmem:[#allocation7 + $0x178] sm:$0xff]
    %v4566 = vld [vmem:[#allocation7 + $0x180] sm:$0xff]
    %v4567 = vld [vmem:[#allocation7 + $0x188] sm:$0xff]
    %v4568 = vld [vmem:[#allocation7 + $0x190] sm:$0xff]
    %v4569 = vld [vmem:[#allocation7 + $0x198] sm:$0xff]
    %v4570 = vld [vmem:[#allocation7 + $0x1a0] sm:$0xff]
    %v4571 = vld [vmem:[#allocation7 + $0x1a8] sm:$0xff]
    %v4572 = vld [vmem:[#allocation7 + $0x1b0] sm:$0xff]
    %v4573 = vld [vmem:[#allocation7 + $0x1b8] sm:$0xff]
    %v4574 = vld [vmem:[#allocation7 + $0x1c0] sm:$0xff]
    %v4575 = vld [vmem:[#allocation7 + $0x1c8] sm:$0xff]
    %v4576 = vld [vmem:[#allocation7 + $0x1d0] sm:$0xff]
    %v4577 = vld [vmem:[#allocation7 + $0x1d8] sm:$0xff]
    %v4578 = vld [vmem:[#allocation7 + $0x1e0] sm:$0xff]
    %v4579 = vld [vmem:[#allocation7 + $0x1e8] sm:$0xff]
    %v4580 = vld [vmem:[#allocation7 + $0x1f0] sm:$0xff]
    %v4581 = vld [vmem:[#allocation7 + $0x1f8] sm:$0xff]
    %v4582 = vld [vmem:[#allocation7 + $0x200] sm:$0xff]
    %v4583 = vld [vmem:[#allocation7 + $0x208] sm:$0xff]
    %v4584 = vld [vmem:[#allocation7 + $0x210] sm:$0xff]
    %v4585 = vld [vmem:[#allocation7 + $0x218] sm:$0xff]
    %v4586 = vld [vmem:[#allocation7 + $0x220] sm:$0xff]
    %v4587 = vld [vmem:[#allocation7 + $0x228] sm:$0xff]
    %v4588 = vld [vmem:[#allocation7 + $0x230] sm:$0xff]
    %v4589 = vld [vmem:[#allocation7 + $0x238] sm:$0xff]
    %v4590 = vld [vmem:[#allocation7 + $0x240] sm:$0xff]
    %v4591 = vld [vmem:[#allocation7 + $0x248] sm:$0xff]
    %v4592 = vld [vmem:[#allocation7 + $0x250] sm:$0xff]
    %v4593 = vld [vmem:[#allocation7 + $0x258] sm:$0xff]
    %v4594 = vld [vmem:[#allocation7 + $0x260] sm:$0xff]
    %v4595 = vld [vmem:[#allocation7 + $0x268] sm:$0xff]
    %v4596 = vld [vmem:[#allocation7 + $0x270] sm:$0xff]
    %v4597 = vld [vmem:[#allocation7 + $0x278] sm:$0xff]
    %v4598 = vld [vmem:[#allocation7 + $0x280] sm:$0xff]
    %v4599 = vld [vmem:[#allocation7 + $0x288] sm:$0xff]
    %v4600 = vld [vmem:[#allocation7 + $0x290] sm:$0xff]
    %v4601 = vld [vmem:[#allocation7 + $0x298] sm:$0xff]
    %v4602 = vld [vmem:[#allocation7 + $0x2a0] sm:$0xff]
    %v4603 = vld [vmem:[#allocation7 + $0x2a8] sm:$0xff]
    %v4604 = vld [vmem:[#allocation7 + $0x2b0] sm:$0xff]
    %v4605 = vld [vmem:[#allocation7 + $0x2b8] sm:$0xff]
    %v4606 = vld [vmem:[#allocation7 + $0x2c0] sm:$0xff]
    %v4607 = vld [vmem:[#allocation7 + $0x2c8] sm:$0xff]
    %v4608 = vld [vmem:[#allocation7 + $0x2d0] sm:$0xff]
    %v4609 = vld [vmem:[#allocation7 + $0x2d8] sm:$0xff]
    %v4610 = vld [vmem:[#allocation7 + $0x2e0] sm:$0xff]
    %v4611 = vld [vmem:[#allocation7 + $0x2e8] sm:$0xff]
    %v4612 = vld [vmem:[#allocation7 + $0x2f0] sm:$0xff]
    %v4613 = vld [vmem:[#allocation7 + $0x2f8] sm:$0xff]
    %v4614 = vld [vmem:[#allocation7 + $0x300] sm:$0xff]
    %v4615 = vld [vmem:[#allocation7 + $0x308] sm:$0xff]
    %v4616 = vld [vmem:[#allocation7 + $0x310] sm:$0xff]
    %v4617 = vld [vmem:[#allocation7 + $0x318] sm:$0xff]
    %v4618 = vld [vmem:[#allocation7 + $0x320] sm:$0xff]
    %v4619 = vld [vmem:[#allocation7 + $0x328] sm:$0xff]
    %v4620 = vld [vmem:[#allocation7 + $0x330] sm:$0xff]
    %v4621 = vld [vmem:[#allocation7 + $0x338] sm:$0xff]
    %v4622 = vld [vmem:[#allocation7 + $0x340] sm:$0xff]
    %v4623 = vld [vmem:[#allocation7 + $0x348] sm:$0xff]
    %v4624 = vld [vmem:[#allocation7 + $0x350] sm:$0xff]
    %v4625 = vld [vmem:[#allocation7 + $0x358] sm:$0xff]
    %v4626 = vld [vmem:[#allocation7 + $0x360] sm:$0xff]
    %v4627 = vld [vmem:[#allocation7 + $0x368] sm:$0xff]
    %v4628 = vld [vmem:[#allocation7 + $0x370] sm:$0xff]
    %v4629 = vld [vmem:[#allocation7 + $0x378] sm:$0xff]
    %v4630 = vld [vmem:[#allocation7 + $0x380] sm:$0xff]
    %v4631 = vld [vmem:[#allocation7 + $0x388] sm:$0xff]
    %v4632 = vld [vmem:[#allocation7 + $0x390] sm:$0xff]
    %v4633 = vld [vmem:[#allocation7 + $0x398] sm:$0xff]
    %v4634 = vld [vmem:[#allocation7 + $0x3a0] sm:$0xff]
    %v4635 = vld [vmem:[#allocation7 + $0x3a8] sm:$0xff]
    %v4636 = vld [vmem:[#allocation7 + $0x3b0] sm:$0xff]
    %v4637 = vld [vmem:[#allocation7 + $0x3b8] sm:$0xff]
    %v4638 = vld [vmem:[#allocation7 + $0x3c0] sm:$0xff]
    %v4639 = vld [vmem:[#allocation7 + $0x3c8] sm:$0xff]
    %v4640 = vld [vmem:[#allocation7 + $0x3d0] sm:$0xff]
    %v4641 = vld [vmem:[#allocation7 + $0x3d8] sm:$0xff]
    %v4642 = vld [vmem:[#allocation7 + $0x3e0] sm:$0xff]
    %v4643 = vld [vmem:[#allocation7 + $0x3e8] sm:$0xff]
    %v4644 = vld [vmem:[#allocation7 + $0x3f0] sm:$0xff]
    %v4645 = vld [vmem:[#allocation7 + $0x3f8] sm:$0xff]
    %v4646 = vld [vmem:[#allocation9] sm:$0xf]
    %v4648 = vperm.slane %v4646, 0
    %v4649 = vperm.slane %v4646, 1
    %v4650 = vperm.slane %v4646, 2
    %v4651 = vperm.slane %v4646, 3
    %4656 = vmatpush.msra.mxu0 %v4578
    %4657 = vmatpush.msra.mxu0 %v4574
    %4658 = vmatpush.msra.mxu0 %v4570
    %4659 = vmatpush.msra.mxu0 %v4566
    %4660 = vmatpush.msra.mxu0 %v4562
    %4661 = vmatpush.msra.mxu0 %v4558
    %4662 = vmatpush.msra.mxu0 %v4554
    %4663 = vmatpush.msra.mxu0 %v4550
    %4664 = vmatpush.msra.mxu0 %v4546
    %4665 = vmatpush.msra.mxu0 %v4542
    %4666 = vmatpush.msra.mxu0 %v4538
    %4667 = vmatpush.msra.mxu0 %v4534
    %4668 = vmatpush.msra.mxu0 %v4530
    %4669 = vmatpush.msra.mxu0 %v4526
    %4670 = vmatpush.msra.mxu0 %v4522
    %4671 = vmatpush.msra.mxu0 %v4518
    %4672 = vmatmul.f32.gmra.mxu0 %v4515
    %v4673 = vpop.f32.mrf.mxu0
    %v4674 = vadd.f32 %v4648, %v4673
    %4675 = vdwg.mxu0
    %4676 = vmatpush.msra.mxu0 %v4642
    %4677 = vmatpush.msra.mxu0 %v4638
    %4678 = vmatpush.msra.mxu0 %v4634
    %4679 = vmatpush.msra.mxu0 %v4630
    %4680 = vmatpush.msra.mxu0 %v4626
    %4681 = vmatpush.msra.mxu0 %v4622
    %4682 = vmatpush.msra.mxu0 %v4618
    %4683 = vmatpush.msra.mxu0 %v4614
    %4684 = vmatpush.msra.mxu0 %v4610
    %4685 = vmatpush.msra.mxu0 %v4606
    %4686 = vmatpush.msra.mxu0 %v4602
    %4687 = vmatpush.msra.mxu0 %v4598
    %4688 = vmatpush.msra.mxu0 %v4594
    %4689 = vmatpush.msra.mxu0 %v4590
    %4690 = vmatpush.msra.mxu0 %v4586
    %4691 = vmatpush.msra.mxu0 %v4582
    %4692 = vmatmul.f32.gmra.mxu0 %v4516
    %v4693 = vpop.f32.mrf.mxu0
    %v4694 = vadd.f32 %v4674, %v4693
    %4695 = vdwg.mxu0
    %4696 = vmatpush.msra.mxu0 %v4579
    %4697 = vmatpush.msra.mxu0 %v4575
    %4698 = vmatpush.msra.mxu0 %v4571
    %4699 = vmatpush.msra.mxu0 %v4567
    %4700 = vmatpush.msra.mxu0 %v4563
    %4701 = vmatpush.msra.mxu0 %v4559
    %4702 = vmatpush.msra.mxu0 %v4555
    %4703 = vmatpush.msra.mxu0 %v4551
    %4704 = vmatpush.msra.mxu0 %v4547
    %4705 = vmatpush.msra.mxu0 %v4543
    %4706 = vmatpush.msra.mxu0 %v4539
    %4707 = vmatpush.msra.mxu0 %v4535
    %4708 = vmatpush.msra.mxu0 %v4531
    %4709 = vmatpush.msra.mxu0 %v4527
    %4710 = vmatpush.msra.mxu0 %v4523
    %4711 = vmatpush.msra.mxu0 %v4519
    %4712 = vmatmul.f32.gmra.mxu0 %v4515
    %v4713 = vpop.f32.mrf.mxu0
    %v4714 = vadd.f32 %v4649, %v4713
    %4715 = vdwg.mxu0
    %4716 = vmatpush.msra.mxu0 %v4643
    %4717 = vmatpush.msra.mxu0 %v4639
    %4718 = vmatpush.msra.mxu0 %v4635
    %4719 = vmatpush.msra.mxu0 %v4631
    %4720 = vmatpush.msra.mxu0 %v4627
    %4721 = vmatpush.msra.mxu0 %v4623
    %4722 = vmatpush.msra.mxu0 %v4619
    %4723 = vmatpush.msra.mxu0 %v4615
    %4724 = vmatpush.msra.mxu0 %v4611
    %4725 = vmatpush.msra.mxu0 %v4607
    %4726 = vmatpush.msra.mxu0 %v4603
    %4727 = vmatpush.msra.mxu0 %v4599
    %4728 = vmatpush.msra.mxu0 %v4595
    %4729 = vmatpush.msra.mxu0 %v4591
    %4730 = vmatpush.msra.mxu0 %v4587
    %4731 = vmatpush.msra.mxu0 %v4583
    %4732 = vmatmul.f32.gmra.mxu0 %v4516
    %v4733 = vpop.f32.mrf.mxu0
    %v4734 = vadd.f32 %v4714, %v4733
    %4735 = vdwg.mxu0
    %4736 = vmatpush.msra.mxu0 %v4580
    %4737 = vmatpush.msra.mxu0 %v4576
    %4738 = vmatpush.msra.mxu0 %v4572
    %4739 = vmatpush.msra.mxu0 %v4568
    %4740 = vmatpush.msra.mxu0 %v4564
    %4741 = vmatpush.msra.mxu0 %v4560
    %4742 = vmatpush.msra.mxu0 %v4556
    %4743 = vmatpush.msra.mxu0 %v4552
    %4744 = vmatpush.msra.mxu0 %v4548
    %4745 = vmatpush.msra.mxu0 %v4544
    %4746 = vmatpush.msra.mxu0 %v4540
    %4747 = vmatpush.msra.mxu0 %v4536
    %4748 = vmatpush.msra.mxu0 %v4532
    %4749 = vmatpush.msra.mxu0 %v4528
    %4750 = vmatpush.msra.mxu0 %v4524
    %4751 = vmatpush.msra.mxu0 %v4520
    %4752 = vmatmul.f32.gmra.mxu0 %v4515
    %v4753 = vpop.f32.mrf.mxu0
    %v4754 = vadd.f32 %v4650, %v4753
    %4755 = vdwg.mxu0
    %4756 = vmatpush.msra.mxu0 %v4644
    %4757 = vmatpush.msra.mxu0 %v4640
    %4758 = vmatpush.msra.mxu0 %v4636
    %4759 = vmatpush.msra.mxu0 %v4632
    %4760 = vmatpush.msra.mxu0 %v4628
    %4761 = vmatpush.msra.mxu0 %v4624
    %4762 = vmatpush.msra.mxu0 %v4620
    %4763 = vmatpush.msra.mxu0 %v4616
    %4764 = vmatpush.msra.mxu0 %v4612
    %4765 = vmatpush.msra.mxu0 %v4608
    %4766 = vmatpush.msra.mxu0 %v4604
    %4767 = vmatpush.msra.mxu0 %v4600
    %4768 = vmatpush.msra.mxu0 %v4596
    %4769 = vmatpush.msra.mxu0 %v4592
    %4770 = vmatpush.msra.mxu0 %v4588
    %4771 = vmatpush.msra.mxu0 %v4584
    %4772 = vmatmul.f32.gmra.mxu0 %v4516
    %v4773 = vpop.f32.mrf.mxu0
    %v4774 = vadd.f32 %v4754, %v4773
    %4775 = vdwg.mxu0
    %4776 = vmatpush.msra.mxu0 %v4581
    %4777 = vmatpush.msra.mxu0 %v4577
    %4778 = vmatpush.msra.mxu0 %v4573
    %4779 = vmatpush.msra.mxu0 %v4569
    %4780 = vmatpush.msra.mxu0 %v4565
    %4781 = vmatpush.msra.mxu0 %v4561
    %4782 = vmatpush.msra.mxu0 %v4557
    %4783 = vmatpush.msra.mxu0 %v4553
    %4784 = vmatpush.msra.mxu0 %v4549
    %4785 = vmatpush.msra.mxu0 %v4545
    %4786 = vmatpush.msra.mxu0 %v4541
    %4787 = vmatpush.msra.mxu0 %v4537
    %4788 = vmatpush.msra.mxu0 %v4533
    %4789 = vmatpush.msra.mxu0 %v4529
    %4790 = vmatpush.msra.mxu0 %v4525
    %4791 = vmatpush.msra.mxu0 %v4521
    %4792 = vmatmul.f32.gmra.mxu0 %v4515
    %v4793 = vpop.f32.mrf.mxu0
    %v4794 = vadd.f32 %v4651, %v4793
    %4795 = vdwg.mxu0
    %4796 = vmatpush.msra.mxu0 %v4645
    %4797 = vmatpush.msra.mxu0 %v4641
    %4798 = vmatpush.msra.mxu0 %v4637
    %4799 = vmatpush.msra.mxu0 %v4633
    %4800 = vmatpush.msra.mxu0 %v4629
    %4801 = vmatpush.msra.mxu0 %v4625
    %4802 = vmatpush.msra.mxu0 %v4621
    %4803 = vmatpush.msra.mxu0 %v4617
    %4804 = vmatpush.msra.mxu0 %v4613
    %4805 = vmatpush.msra.mxu0 %v4609
    %4806 = vmatpush.msra.mxu0 %v4605
    %4807 = vmatpush.msra.mxu0 %v4601
    %4808 = vmatpush.msra.mxu0 %v4597
    %4809 = vmatpush.msra.mxu0 %v4593
    %4810 = vmatpush.msra.mxu0 %v4589
    %4811 = vmatpush.msra.mxu0 %v4585
    %4812 = vmatmul.f32.gmra.mxu0 %v4516
    %v4813 = vpop.f32.mrf.mxu0
    %v4814 = vadd.f32 %v4794, %v4813
    %4815 = vdwg.mxu0
    %v4816 = vxor.u32 %v4694, 2147483648
    %v4817 = vmul.f32 %v4816, 1.442695
    %v4818 = vpow.pop %v4817
    %v4819 = vadd.f32 %v4818, 1.0
    %v4820 = vrcp.pop %v4819
    %v4821 = vmul.f32 %v4819, %v4820
    %v4822 = vsub.f32 1.0, %v4821
    %v4823 = vmul.f32 %v4820, %v4822
    %v4824 = vadd.f32 %v4820, %v4823
    %vm4825 = vweird.f32 %v4819
    %vm4826 = vweird.f32 %v4820
    %vm4827 = vmor %vm4825, %vm4826
    %v4828 = vsel %vm4827, %v4820, %v4824
    %v4829 = vand.u32 2147483647, %v4819
    %vm4830 = vcmp.eq.f32.partialorder %v4829, 8.507059e+37
    %v4831 = vand.u32 %v4819, 2147483648
    %v4832 = vor.u32 1.1754944e-38, %v4831
    %v4833 = vsel %vm4830, %v4832, %v4828
    %v4834 = vmul.f32 1.0, %v4833
    %v4835 = vxor.u32 %v4734, 2147483648
    %v4836 = vmul.f32 %v4835, 1.442695
    %v4837 = vpow.pop %v4836
    %v4838 = vadd.f32 %v4837, 1.0
    %v4839 = vrcp.pop %v4838
    %v4840 = vmul.f32 %v4838, %v4839
    %v4841 = vsub.f32 1.0, %v4840
    %v4842 = vmul.f32 %v4839, %v4841
    %v4843 = vadd.f32 %v4839, %v4842
    %vm4844 = vweird.f32 %v4838
    %vm4845 = vweird.f32 %v4839
    %vm4846 = vmor %vm4844, %vm4845
    %v4847 = vsel %vm4846, %v4839, %v4843
    %v4848 = vand.u32 2147483647, %v4838
    %vm4849 = vcmp.eq.f32.partialorder %v4848, 8.507059e+37
    %v4850 = vand.u32 %v4838, 2147483648
    %v4851 = vor.u32 1.1754944e-38, %v4850
    %v4852 = vsel %vm4849, %v4851, %v4847
    %v4853 = vmul.f32 1.0, %v4852
    %v4854 = vtanh.pop %v4774
    %v4855 = vxor.u32 %v4814, 2147483648
    %v4856 = vmul.f32 %v4855, 1.442695
    %v4857 = vpow.pop %v4856
    %v4858 = vadd.f32 %v4857, 1.0
    %v4859 = vrcp.pop %v4858
    %v4860 = vmul.f32 %v4858, %v4859
    %v4861 = vsub.f32 1.0, %v4860
    %v4862 = vmul.f32 %v4859, %v4861
    %v4863 = vadd.f32 %v4859, %v4862
    %vm4864 = vweird.f32 %v4858
    %vm4865 = vweird.f32 %v4859
    %vm4866 = vmor %vm4864, %vm4865
    %v4867 = vsel %vm4866, %v4859, %v4863
    %v4868 = vand.u32 2147483647, %v4858
    %vm4869 = vcmp.eq.f32.partialorder %v4868, 8.507059e+37
    %v4870 = vand.u32 %v4858, 2147483648
    %v4871 = vor.u32 1.1754944e-38, %v4870
    %v4872 = vsel %vm4869, %v4871, %v4867
    %v4873 = vmul.f32 1.0, %v4872
    %v4874 = vmul.f32 %v4853, %v4517
    %v4875 = vmul.f32 %v4834, %v4854
    %v4876 = vadd.f32 %v4874, %v4875
    %v4877 = vtanh.pop %v4876
    %v4878 = vmul.f32 %v4873, %v4877
    %4879 = vst [vmem:[#allocation2] sm:$0x3] %v4878
    %4880 = vst [vmem:[#allocation3] sm:$0x3] %v4876
    %v4881 = vld [vmem:[%s487] sm:$0x3]
    %v4882 = vld [vmem:[%s489] sm:$0x3]
    %v4883 = vld [vmem:[#allocation10] sm:$0xff]
    %v4884 = vld [vmem:[#allocation10 + $0x8] sm:$0xff]
    %v4885 = vld [vmem:[#allocation10 + $0x10] sm:$0xff]
    %v4886 = vld [vmem:[#allocation10 + $0x18] sm:$0xff]
    %v4887 = vld [vmem:[#allocation10 + $0x20] sm:$0xff]
    %v4888 = vld [vmem:[#allocation10 + $0x28] sm:$0xff]
    %v4889 = vld [vmem:[#allocation10 + $0x30] sm:$0xff]
    %v4890 = vld [vmem:[#allocation10 + $0x38] sm:$0xff]
    %v4891 = vld [vmem:[#allocation10 + $0x40] sm:$0xff]
    %v4892 = vld [vmem:[#allocation10 + $0x48] sm:$0xff]
    %v4893 = vld [vmem:[#allocation10 + $0x50] sm:$0xff]
    %v4894 = vld [vmem:[#allocation10 + $0x58] sm:$0xff]
    %v4895 = vld [vmem:[#allocation10 + $0x60] sm:$0xff]
    %v4896 = vld [vmem:[#allocation10 + $0x68] sm:$0xff]
    %v4897 = vld [vmem:[#allocation10 + $0x70] sm:$0xff]
    %v4898 = vld [vmem:[#allocation10 + $0x78] sm:$0xff]
    %v4899 = vld [vmem:[#allocation10 + $0x80] sm:$0xff]
    %v4900 = vld [vmem:[#allocation10 + $0x88] sm:$0xff]
    %v4901 = vld [vmem:[#allocation10 + $0x90] sm:$0xff]
    %v4902 = vld [vmem:[#allocation10 + $0x98] sm:$0xff]
    %v4903 = vld [vmem:[#allocation10 + $0xa0] sm:$0xff]
    %v4904 = vld [vmem:[#allocation10 + $0xa8] sm:$0xff]
    %v4905 = vld [vmem:[#allocation10 + $0xb0] sm:$0xff]
    %v4906 = vld [vmem:[#allocation10 + $0xb8] sm:$0xff]
    %v4907 = vld [vmem:[#allocation10 + $0xc0] sm:$0xff]
    %v4908 = vld [vmem:[#allocation10 + $0xc8] sm:$0xff]
    %v4909 = vld [vmem:[#allocation10 + $0xd0] sm:$0xff]
    %v4910 = vld [vmem:[#allocation10 + $0xd8] sm:$0xff]
    %v4911 = vld [vmem:[#allocation10 + $0xe0] sm:$0xff]
    %v4912 = vld [vmem:[#allocation10 + $0xe8] sm:$0xff]
    %v4913 = vld [vmem:[#allocation10 + $0xf0] sm:$0xff]
    %v4914 = vld [vmem:[#allocation10 + $0xf8] sm:$0xff]
    %v4915 = vld [vmem:[#allocation10 + $0x100] sm:$0xff]
    %v4916 = vld [vmem:[#allocation10 + $0x108] sm:$0xff]
    %v4917 = vld [vmem:[#allocation10 + $0x110] sm:$0xff]
    %v4918 = vld [vmem:[#allocation10 + $0x118] sm:$0xff]
    %v4919 = vld [vmem:[#allocation10 + $0x120] sm:$0xff]
    %v4920 = vld [vmem:[#allocation10 + $0x128] sm:$0xff]
    %v4921 = vld [vmem:[#allocation10 + $0x130] sm:$0xff]
    %v4922 = vld [vmem:[#allocation10 + $0x138] sm:$0xff]
    %v4923 = vld [vmem:[#allocation10 + $0x140] sm:$0xff]
    %v4924 = vld [vmem:[#allocation10 + $0x148] sm:$0xff]
    %v4925 = vld [vmem:[#allocation10 + $0x150] sm:$0xff]
    %v4926 = vld [vmem:[#allocation10 + $0x158] sm:$0xff]
    %v4927 = vld [vmem:[#allocation10 + $0x160] sm:$0xff]
    %v4928 = vld [vmem:[#allocation10 + $0x168] sm:$0xff]
    %v4929 = vld [vmem:[#allocation10 + $0x170] sm:$0xff]
    %v4930 = vld [vmem:[#allocation10 + $0x178] sm:$0xff]
    %v4931 = vld [vmem:[#allocation10 + $0x180] sm:$0xff]
    %v4932 = vld [vmem:[#allocation10 + $0x188] sm:$0xff]
    %v4933 = vld [vmem:[#allocation10 + $0x190] sm:$0xff]
    %v4934 = vld [vmem:[#allocation10 + $0x198] sm:$0xff]
    %v4935 = vld [vmem:[#allocation10 + $0x1a0] sm:$0xff]
    %v4936 = vld [vmem:[#allocation10 + $0x1a8] sm:$0xff]
    %v4937 = vld [vmem:[#allocation10 + $0x1b0] sm:$0xff]
    %v4938 = vld [vmem:[#allocation10 + $0x1b8] sm:$0xff]
    %v4939 = vld [vmem:[#allocation10 + $0x1c0] sm:$0xff]
    %v4940 = vld [vmem:[#allocation10 + $0x1c8] sm:$0xff]
    %v4941 = vld [vmem:[#allocation10 + $0x1d0] sm:$0xff]
    %v4942 = vld [vmem:[#allocation10 + $0x1d8] sm:$0xff]
    %v4943 = vld [vmem:[#allocation10 + $0x1e0] sm:$0xff]
    %v4944 = vld [vmem:[#allocation10 + $0x1e8] sm:$0xff]
    %v4945 = vld [vmem:[#allocation10 + $0x1f0] sm:$0xff]
    %v4946 = vld [vmem:[#allocation10 + $0x1f8] sm:$0xff]
    %v4947 = vld [vmem:[#allocation10 + $0x200] sm:$0xff]
    %v4948 = vld [vmem:[#allocation10 + $0x208] sm:$0xff]
    %v4949 = vld [vmem:[#allocation10 + $0x210] sm:$0xff]
    %v4950 = vld [vmem:[#allocation10 + $0x218] sm:$0xff]
    %v4951 = vld [vmem:[#allocation10 + $0x220] sm:$0xff]
    %v4952 = vld [vmem:[#allocation10 + $0x228] sm:$0xff]
    %v4953 = vld [vmem:[#allocation10 + $0x230] sm:$0xff]
    %v4954 = vld [vmem:[#allocation10 + $0x238] sm:$0xff]
    %v4955 = vld [vmem:[#allocation10 + $0x240] sm:$0xff]
    %v4956 = vld [vmem:[#allocation10 + $0x248] sm:$0xff]
    %v4957 = vld [vmem:[#allocation10 + $0x250] sm:$0xff]
    %v4958 = vld [vmem:[#allocation10 + $0x258] sm:$0xff]
    %v4959 = vld [vmem:[#allocation10 + $0x260] sm:$0xff]
    %v4960 = vld [vmem:[#allocation10 + $0x268] sm:$0xff]
    %v4961 = vld [vmem:[#allocation10 + $0x270] sm:$0xff]
    %v4962 = vld [vmem:[#allocation10 + $0x278] sm:$0xff]
    %v4963 = vld [vmem:[#allocation10 + $0x280] sm:$0xff]
    %v4964 = vld [vmem:[#allocation10 + $0x288] sm:$0xff]
    %v4965 = vld [vmem:[#allocation10 + $0x290] sm:$0xff]
    %v4966 = vld [vmem:[#allocation10 + $0x298] sm:$0xff]
    %v4967 = vld [vmem:[#allocation10 + $0x2a0] sm:$0xff]
    %v4968 = vld [vmem:[#allocation10 + $0x2a8] sm:$0xff]
    %v4969 = vld [vmem:[#allocation10 + $0x2b0] sm:$0xff]
    %v4970 = vld [vmem:[#allocation10 + $0x2b8] sm:$0xff]
    %v4971 = vld [vmem:[#allocation10 + $0x2c0] sm:$0xff]
    %v4972 = vld [vmem:[#allocation10 + $0x2c8] sm:$0xff]
    %v4973 = vld [vmem:[#allocation10 + $0x2d0] sm:$0xff]
    %v4974 = vld [vmem:[#allocation10 + $0x2d8] sm:$0xff]
    %v4975 = vld [vmem:[#allocation10 + $0x2e0] sm:$0xff]
    %v4976 = vld [vmem:[#allocation10 + $0x2e8] sm:$0xff]
    %v4977 = vld [vmem:[#allocation10 + $0x2f0] sm:$0xff]
    %v4978 = vld [vmem:[#allocation10 + $0x2f8] sm:$0xff]
    %v4979 = vld [vmem:[#allocation10 + $0x300] sm:$0xff]
    %v4980 = vld [vmem:[#allocation10 + $0x308] sm:$0xff]
    %v4981 = vld [vmem:[#allocation10 + $0x310] sm:$0xff]
    %v4982 = vld [vmem:[#allocation10 + $0x318] sm:$0xff]
    %v4983 = vld [vmem:[#allocation10 + $0x320] sm:$0xff]
    %v4984 = vld [vmem:[#allocation10 + $0x328] sm:$0xff]
    %v4985 = vld [vmem:[#allocation10 + $0x330] sm:$0xff]
    %v4986 = vld [vmem:[#allocation10 + $0x338] sm:$0xff]
    %v4987 = vld [vmem:[#allocation10 + $0x340] sm:$0xff]
    %v4988 = vld [vmem:[#allocation10 + $0x348] sm:$0xff]
    %v4989 = vld [vmem:[#allocation10 + $0x350] sm:$0xff]
    %v4990 = vld [vmem:[#allocation10 + $0x358] sm:$0xff]
    %v4991 = vld [vmem:[#allocation10 + $0x360] sm:$0xff]
    %v4992 = vld [vmem:[#allocation10 + $0x368] sm:$0xff]
    %v4993 = vld [vmem:[#allocation10 + $0x370] sm:$0xff]
    %v4994 = vld [vmem:[#allocation10 + $0x378] sm:$0xff]
    %v4995 = vld [vmem:[#allocation10 + $0x380] sm:$0xff]
    %v4996 = vld [vmem:[#allocation10 + $0x388] sm:$0xff]
    %v4997 = vld [vmem:[#allocation10 + $0x390] sm:$0xff]
    %v4998 = vld [vmem:[#allocation10 + $0x398] sm:$0xff]
    %v4999 = vld [vmem:[#allocation10 + $0x3a0] sm:$0xff]
    %v5000 = vld [vmem:[#allocation10 + $0x3a8] sm:$0xff]
    %v5001 = vld [vmem:[#allocation10 + $0x3b0] sm:$0xff]
    %v5002 = vld [vmem:[#allocation10 + $0x3b8] sm:$0xff]
    %v5003 = vld [vmem:[#allocation10 + $0x3c0] sm:$0xff]
    %v5004 = vld [vmem:[#allocation10 + $0x3c8] sm:$0xff]
    %v5005 = vld [vmem:[#allocation10 + $0x3d0] sm:$0xff]
    %v5006 = vld [vmem:[#allocation10 + $0x3d8] sm:$0xff]
    %v5007 = vld [vmem:[#allocation10 + $0x3e0] sm:$0xff]
    %v5008 = vld [vmem:[#allocation10 + $0x3e8] sm:$0xff]
    %v5009 = vld [vmem:[#allocation10 + $0x3f0] sm:$0xff]
    %v5010 = vld [vmem:[#allocation10 + $0x3f8] sm:$0xff]
    %v5011 = vld [vmem:[#allocation12] sm:$0xf]
    %v5013 = vperm.slane %v5011, 0
    %v5014 = vperm.slane %v5011, 1
    %v5015 = vperm.slane %v5011, 2
    %v5016 = vperm.slane %v5011, 3
    %5021 = vmatpush.msra.mxu0 %v4943
    %5022 = vmatpush.msra.mxu0 %v4939
    %5023 = vmatpush.msra.mxu0 %v4935
    %5024 = vmatpush.msra.mxu0 %v4931
    %5025 = vmatpush.msra.mxu0 %v4927
    %5026 = vmatpush.msra.mxu0 %v4923
    %5027 = vmatpush.msra.mxu0 %v4919
    %5028 = vmatpush.msra.mxu0 %v4915
    %5029 = vmatpush.msra.mxu0 %v4911
    %5030 = vmatpush.msra.mxu0 %v4907
    %5031 = vmatpush.msra.mxu0 %v4903
    %5032 = vmatpush.msra.mxu0 %v4899
    %5033 = vmatpush.msra.mxu0 %v4895
    %5034 = vmatpush.msra.mxu0 %v4891
    %5035 = vmatpush.msra.mxu0 %v4887
    %5036 = vmatpush.msra.mxu0 %v4883
    %5037 = vmatmul.f32.gmra.mxu0 %v4878
    %v5038 = vpop.f32.mrf.mxu0
    %v5039 = vadd.f32 %v5013, %v5038
    %5040 = vdwg.mxu0
    %5041 = vmatpush.msra.mxu0 %v5007
    %5042 = vmatpush.msra.mxu0 %v5003
    %5043 = vmatpush.msra.mxu0 %v4999
    %5044 = vmatpush.msra.mxu0 %v4995
    %5045 = vmatpush.msra.mxu0 %v4991
    %5046 = vmatpush.msra.mxu0 %v4987
    %5047 = vmatpush.msra.mxu0 %v4983
    %5048 = vmatpush.msra.mxu0 %v4979
    %5049 = vmatpush.msra.mxu0 %v4975
    %5050 = vmatpush.msra.mxu0 %v4971
    %5051 = vmatpush.msra.mxu0 %v4967
    %5052 = vmatpush.msra.mxu0 %v4963
    %5053 = vmatpush.msra.mxu0 %v4959
    %5054 = vmatpush.msra.mxu0 %v4955
    %5055 = vmatpush.msra.mxu0 %v4951
    %5056 = vmatpush.msra.mxu0 %v4947
    %5057 = vmatmul.f32.gmra.mxu0 %v4881
    %v5058 = vpop.f32.mrf.mxu0
    %v5059 = vadd.f32 %v5039, %v5058
    %5060 = vdwg.mxu0
    %5061 = vmatpush.msra.mxu0 %v4944
    %5062 = vmatpush.msra.mxu0 %v4940
    %5063 = vmatpush.msra.mxu0 %v4936
    %5064 = vmatpush.msra.mxu0 %v4932
    %5065 = vmatpush.msra.mxu0 %v4928
    %5066 = vmatpush.msra.mxu0 %v4924
    %5067 = vmatpush.msra.mxu0 %v4920
    %5068 = vmatpush.msra.mxu0 %v4916
    %5069 = vmatpush.msra.mxu0 %v4912
    %5070 = vmatpush.msra.mxu0 %v4908
    %5071 = vmatpush.msra.mxu0 %v4904
    %5072 = vmatpush.msra.mxu0 %v4900
    %5073 = vmatpush.msra.mxu0 %v4896
    %5074 = vmatpush.msra.mxu0 %v4892
    %5075 = vmatpush.msra.mxu0 %v4888
    %5076 = vmatpush.msra.mxu0 %v4884
    %5077 = vmatmul.f32.gmra.mxu0 %v4878
    %v5078 = vpop.f32.mrf.mxu0
    %v5079 = vadd.f32 %v5014, %v5078
    %5080 = vdwg.mxu0
    %5081 = vmatpush.msra.mxu0 %v5008
    %5082 = vmatpush.msra.mxu0 %v5004
    %5083 = vmatpush.msra.mxu0 %v5000
    %5084 = vmatpush.msra.mxu0 %v4996
    %5085 = vmatpush.msra.mxu0 %v4992
    %5086 = vmatpush.msra.mxu0 %v4988
    %5087 = vmatpush.msra.mxu0 %v4984
    %5088 = vmatpush.msra.mxu0 %v4980
    %5089 = vmatpush.msra.mxu0 %v4976
    %5090 = vmatpush.msra.mxu0 %v4972
    %5091 = vmatpush.msra.mxu0 %v4968
    %5092 = vmatpush.msra.mxu0 %v4964
    %5093 = vmatpush.msra.mxu0 %v4960
    %5094 = vmatpush.msra.mxu0 %v4956
    %5095 = vmatpush.msra.mxu0 %v4952
    %5096 = vmatpush.msra.mxu0 %v4948
    %5097 = vmatmul.f32.gmra.mxu0 %v4881
    %v5098 = vpop.f32.mrf.mxu0
    %v5099 = vadd.f32 %v5079, %v5098
    %5100 = vdwg.mxu0
    %5101 = vmatpush.msra.mxu0 %v4945
    %5102 = vmatpush.msra.mxu0 %v4941
    %5103 = vmatpush.msra.mxu0 %v4937
    %5104 = vmatpush.msra.mxu0 %v4933
    %5105 = vmatpush.msra.mxu0 %v4929
    %5106 = vmatpush.msra.mxu0 %v4925
    %5107 = vmatpush.msra.mxu0 %v4921
    %5108 = vmatpush.msra.mxu0 %v4917
    %5109 = vmatpush.msra.mxu0 %v4913
    %5110 = vmatpush.msra.mxu0 %v4909
    %5111 = vmatpush.msra.mxu0 %v4905
    %5112 = vmatpush.msra.mxu0 %v4901
    %5113 = vmatpush.msra.mxu0 %v4897
    %5114 = vmatpush.msra.mxu0 %v4893
    %5115 = vmatpush.msra.mxu0 %v4889
    %5116 = vmatpush.msra.mxu0 %v4885
    %5117 = vmatmul.f32.gmra.mxu0 %v4878
    %v5118 = vpop.f32.mrf.mxu0
    %v5119 = vadd.f32 %v5015, %v5118
    %5120 = vdwg.mxu0
    %5121 = vmatpush.msra.mxu0 %v5009
    %5122 = vmatpush.msra.mxu0 %v5005
    %5123 = vmatpush.msra.mxu0 %v5001
    %5124 = vmatpush.msra.mxu0 %v4997
    %5125 = vmatpush.msra.mxu0 %v4993
    %5126 = vmatpush.msra.mxu0 %v4989
    %5127 = vmatpush.msra.mxu0 %v4985
    %5128 = vmatpush.msra.mxu0 %v4981
    %5129 = vmatpush.msra.mxu0 %v4977
    %5130 = vmatpush.msra.mxu0 %v4973
    %5131 = vmatpush.msra.mxu0 %v4969
    %5132 = vmatpush.msra.mxu0 %v4965
    %5133 = vmatpush.msra.mxu0 %v4961
    %5134 = vmatpush.msra.mxu0 %v4957
    %5135 = vmatpush.msra.mxu0 %v4953
    %5136 = vmatpush.msra.mxu0 %v4949
    %5137 = vmatmul.f32.gmra.mxu0 %v4881
    %v5138 = vpop.f32.mrf.mxu0
    %v5139 = vadd.f32 %v5119, %v5138
    %5140 = vdwg.mxu0
    %5141 = vmatpush.msra.mxu0 %v4946
    %5142 = vmatpush.msra.mxu0 %v4942
    %5143 = vmatpush.msra.mxu0 %v4938
    %5144 = vmatpush.msra.mxu0 %v4934
    %5145 = vmatpush.msra.mxu0 %v4930
    %5146 = vmatpush.msra.mxu0 %v4926
    %5147 = vmatpush.msra.mxu0 %v4922
    %5148 = vmatpush.msra.mxu0 %v4918
    %5149 = vmatpush.msra.mxu0 %v4914
    %5150 = vmatpush.msra.mxu0 %v4910
    %5151 = vmatpush.msra.mxu0 %v4906
    %5152 = vmatpush.msra.mxu0 %v4902
    %5153 = vmatpush.msra.mxu0 %v4898
    %5154 = vmatpush.msra.mxu0 %v4894
    %5155 = vmatpush.msra.mxu0 %v4890
    %5156 = vmatpush.msra.mxu0 %v4886
    %5157 = vmatmul.f32.gmra.mxu0 %v4878
    %v5158 = vpop.f32.mrf.mxu0
    %v5159 = vadd.f32 %v5016, %v5158
    %5160 = vdwg.mxu0
    %5161 = vmatpush.msra.mxu0 %v5010
    %5162 = vmatpush.msra.mxu0 %v5006
    %5163 = vmatpush.msra.mxu0 %v5002
    %5164 = vmatpush.msra.mxu0 %v4998
    %5165 = vmatpush.msra.mxu0 %v4994
    %5166 = vmatpush.msra.mxu0 %v4990
    %5167 = vmatpush.msra.mxu0 %v4986
    %5168 = vmatpush.msra.mxu0 %v4982
    %5169 = vmatpush.msra.mxu0 %v4978
    %5170 = vmatpush.msra.mxu0 %v4974
    %5171 = vmatpush.msra.mxu0 %v4970
    %5172 = vmatpush.msra.mxu0 %v4966
    %5173 = vmatpush.msra.mxu0 %v4962
    %5174 = vmatpush.msra.mxu0 %v4958
    %5175 = vmatpush.msra.mxu0 %v4954
    %5176 = vmatpush.msra.mxu0 %v4950
    %5177 = vmatmul.f32.gmra.mxu0 %v4881
    %v5178 = vpop.f32.mrf.mxu0
    %v5179 = vadd.f32 %v5159, %v5178
    %5180 = vdwg.mxu0
    %v5181 = vxor.u32 %v5059, 2147483648
    %v5182 = vmul.f32 %v5181, 1.442695
    %v5183 = vpow.pop %v5182
    %v5184 = vadd.f32 %v5183, 1.0
    %v5185 = vrcp.pop %v5184
    %v5186 = vmul.f32 %v5184, %v5185
    %v5187 = vsub.f32 1.0, %v5186
    %v5188 = vmul.f32 %v5185, %v5187
    %v5189 = vadd.f32 %v5185, %v5188
    %vm5190 = vweird.f32 %v5184
    %vm5191 = vweird.f32 %v5185
    %vm5192 = vmor %vm5190, %vm5191
    %v5193 = vsel %vm5192, %v5185, %v5189
    %v5194 = vand.u32 2147483647, %v5184
    %vm5195 = vcmp.eq.f32.partialorder %v5194, 8.507059e+37
    %v5196 = vand.u32 %v5184, 2147483648
    %v5197 = vor.u32 1.1754944e-38, %v5196
    %v5198 = vsel %vm5195, %v5197, %v5193
    %v5199 = vmul.f32 1.0, %v5198
    %v5200 = vxor.u32 %v5099, 2147483648
    %v5201 = vmul.f32 %v5200, 1.442695
    %v5202 = vpow.pop %v5201
    %v5203 = vadd.f32 %v5202, 1.0
    %v5204 = vrcp.pop %v5203
    %v5205 = vmul.f32 %v5203, %v5204
    %v5206 = vsub.f32 1.0, %v5205
    %v5207 = vmul.f32 %v5204, %v5206
    %v5208 = vadd.f32 %v5204, %v5207
    %vm5209 = vweird.f32 %v5203
    %vm5210 = vweird.f32 %v5204
    %vm5211 = vmor %vm5209, %vm5210
    %v5212 = vsel %vm5211, %v5204, %v5208
    %v5213 = vand.u32 2147483647, %v5203
    %vm5214 = vcmp.eq.f32.partialorder %v5213, 8.507059e+37
    %v5215 = vand.u32 %v5203, 2147483648
    %v5216 = vor.u32 1.1754944e-38, %v5215
    %v5217 = vsel %vm5214, %v5216, %v5212
    %v5218 = vmul.f32 1.0, %v5217
    %v5219 = vtanh.pop %v5139
    %v5220 = vxor.u32 %v5179, 2147483648
    %v5221 = vmul.f32 %v5220, 1.442695
    %v5222 = vpow.pop %v5221
    %v5223 = vadd.f32 %v5222, 1.0
    %v5224 = vrcp.pop %v5223
    %v5225 = vmul.f32 %v5223, %v5224
    %v5226 = vsub.f32 1.0, %v5225
    %v5227 = vmul.f32 %v5224, %v5226
    %v5228 = vadd.f32 %v5224, %v5227
    %vm5229 = vweird.f32 %v5223
    %vm5230 = vweird.f32 %v5224
    %vm5231 = vmor %vm5229, %vm5230
    %v5232 = vsel %vm5231, %v5224, %v5228
    %v5233 = vand.u32 2147483647, %v5223
    %vm5234 = vcmp.eq.f32.partialorder %v5233, 8.507059e+37
    %v5235 = vand.u32 %v5223, 2147483648
    %v5236 = vor.u32 1.1754944e-38, %v5235
    %v5237 = vsel %vm5234, %v5236, %v5232
    %v5238 = vmul.f32 1.0, %v5237
    %v5239 = vmul.f32 %v5218, %v4882
    %v5240 = vmul.f32 %v5199, %v5219
    %v5241 = vadd.f32 %v5239, %v5240
    %v5242 = vtanh.pop %v5241
    %v5243 = vmul.f32 %v5238, %v5242
    %5244 = vst [vmem:[%s487] sm:$0x3] %v5243
    %5245 = vst [vmem:[%s489] sm:$0x3] %v5241
    %s5246 = scalar_lea.vmem [#allocation4], 14
    %v5247 = vld [vmem:[%s5246] sm:$0x3]
    %v5248 = vld [vmem:[#allocation2] sm:$0x3]
    %v5249 = vld [vmem:[#allocation3] sm:$0x3]
    %v5250 = vld [vmem:[#allocation7] sm:$0xff]
    %v5251 = vld [vmem:[#allocation7 + $0x8] sm:$0xff]
    %v5252 = vld [vmem:[#allocation7 + $0x10] sm:$0xff]
    %v5253 = vld [vmem:[#allocation7 + $0x18] sm:$0xff]
    %v5254 = vld [vmem:[#allocation7 + $0x20] sm:$0xff]
    %v5255 = vld [vmem:[#allocation7 + $0x28] sm:$0xff]
    %v5256 = vld [vmem:[#allocation7 + $0x30] sm:$0xff]
    %v5257 = vld [vmem:[#allocation7 + $0x38] sm:$0xff]
    %v5258 = vld [vmem:[#allocation7 + $0x40] sm:$0xff]
    %v5259 = vld [vmem:[#allocation7 + $0x48] sm:$0xff]
    %v5260 = vld [vmem:[#allocation7 + $0x50] sm:$0xff]
    %v5261 = vld [vmem:[#allocation7 + $0x58] sm:$0xff]
    %v5262 = vld [vmem:[#allocation7 + $0x60] sm:$0xff]
    %v5263 = vld [vmem:[#allocation7 + $0x68] sm:$0xff]
    %v5264 = vld [vmem:[#allocation7 + $0x70] sm:$0xff]
    %v5265 = vld [vmem:[#allocation7 + $0x78] sm:$0xff]
    %v5266 = vld [vmem:[#allocation7 + $0x80] sm:$0xff]
    %v5267 = vld [vmem:[#allocation7 + $0x88] sm:$0xff]
    %v5268 = vld [vmem:[#allocation7 + $0x90] sm:$0xff]
    %v5269 = vld [vmem:[#allocation7 + $0x98] sm:$0xff]
    %v5270 = vld [vmem:[#allocation7 + $0xa0] sm:$0xff]
    %v5271 = vld [vmem:[#allocation7 + $0xa8] sm:$0xff]
    %v5272 = vld [vmem:[#allocation7 + $0xb0] sm:$0xff]
    %v5273 = vld [vmem:[#allocation7 + $0xb8] sm:$0xff]
    %v5274 = vld [vmem:[#allocation7 + $0xc0] sm:$0xff]
    %v5275 = vld [vmem:[#allocation7 + $0xc8] sm:$0xff]
    %v5276 = vld [vmem:[#allocation7 + $0xd0] sm:$0xff]
    %v5277 = vld [vmem:[#allocation7 + $0xd8] sm:$0xff]
    %v5278 = vld [vmem:[#allocation7 + $0xe0] sm:$0xff]
    %v5279 = vld [vmem:[#allocation7 + $0xe8] sm:$0xff]
    %v5280 = vld [vmem:[#allocation7 + $0xf0] sm:$0xff]
    %v5281 = vld [vmem:[#allocation7 + $0xf8] sm:$0xff]
    %v5282 = vld [vmem:[#allocation7 + $0x100] sm:$0xff]
    %v5283 = vld [vmem:[#allocation7 + $0x108] sm:$0xff]
    %v5284 = vld [vmem:[#allocation7 + $0x110] sm:$0xff]
    %v5285 = vld [vmem:[#allocation7 + $0x118] sm:$0xff]
    %v5286 = vld [vmem:[#allocation7 + $0x120] sm:$0xff]
    %v5287 = vld [vmem:[#allocation7 + $0x128] sm:$0xff]
    %v5288 = vld [vmem:[#allocation7 + $0x130] sm:$0xff]
    %v5289 = vld [vmem:[#allocation7 + $0x138] sm:$0xff]
    %v5290 = vld [vmem:[#allocation7 + $0x140] sm:$0xff]
    %v5291 = vld [vmem:[#allocation7 + $0x148] sm:$0xff]
    %v5292 = vld [vmem:[#allocation7 + $0x150] sm:$0xff]
    %v5293 = vld [vmem:[#allocation7 + $0x158] sm:$0xff]
    %v5294 = vld [vmem:[#allocation7 + $0x160] sm:$0xff]
    %v5295 = vld [vmem:[#allocation7 + $0x168] sm:$0xff]
    %v5296 = vld [vmem:[#allocation7 + $0x170] sm:$0xff]
    %v5297 = vld [vmem:[#allocation7 + $0x178] sm:$0xff]
    %v5298 = vld [vmem:[#allocation7 + $0x180] sm:$0xff]
    %v5299 = vld [vmem:[#allocation7 + $0x188] sm:$0xff]
    %v5300 = vld [vmem:[#allocation7 + $0x190] sm:$0xff]
    %v5301 = vld [vmem:[#allocation7 + $0x198] sm:$0xff]
    %v5302 = vld [vmem:[#allocation7 + $0x1a0] sm:$0xff]
    %v5303 = vld [vmem:[#allocation7 + $0x1a8] sm:$0xff]
    %v5304 = vld [vmem:[#allocation7 + $0x1b0] sm:$0xff]
    %v5305 = vld [vmem:[#allocation7 + $0x1b8] sm:$0xff]
    %v5306 = vld [vmem:[#allocation7 + $0x1c0] sm:$0xff]
    %v5307 = vld [vmem:[#allocation7 + $0x1c8] sm:$0xff]
    %v5308 = vld [vmem:[#allocation7 + $0x1d0] sm:$0xff]
    %v5309 = vld [vmem:[#allocation7 + $0x1d8] sm:$0xff]
    %v5310 = vld [vmem:[#allocation7 + $0x1e0] sm:$0xff]
    %v5311 = vld [vmem:[#allocation7 + $0x1e8] sm:$0xff]
    %v5312 = vld [vmem:[#allocation7 + $0x1f0] sm:$0xff]
    %v5313 = vld [vmem:[#allocation7 + $0x1f8] sm:$0xff]
    %v5314 = vld [vmem:[#allocation7 + $0x200] sm:$0xff]
    %v5315 = vld [vmem:[#allocation7 + $0x208] sm:$0xff]
    %v5316 = vld [vmem:[#allocation7 + $0x210] sm:$0xff]
    %v5317 = vld [vmem:[#allocation7 + $0x218] sm:$0xff]
    %v5318 = vld [vmem:[#allocation7 + $0x220] sm:$0xff]
    %v5319 = vld [vmem:[#allocation7 + $0x228] sm:$0xff]
    %v5320 = vld [vmem:[#allocation7 + $0x230] sm:$0xff]
    %v5321 = vld [vmem:[#allocation7 + $0x238] sm:$0xff]
    %v5322 = vld [vmem:[#allocation7 + $0x240] sm:$0xff]
    %v5323 = vld [vmem:[#allocation7 + $0x248] sm:$0xff]
    %v5324 = vld [vmem:[#allocation7 + $0x250] sm:$0xff]
    %v5325 = vld [vmem:[#allocation7 + $0x258] sm:$0xff]
    %v5326 = vld [vmem:[#allocation7 + $0x260] sm:$0xff]
    %v5327 = vld [vmem:[#allocation7 + $0x268] sm:$0xff]
    %v5328 = vld [vmem:[#allocation7 + $0x270] sm:$0xff]
    %v5329 = vld [vmem:[#allocation7 + $0x278] sm:$0xff]
    %v5330 = vld [vmem:[#allocation7 + $0x280] sm:$0xff]
    %v5331 = vld [vmem:[#allocation7 + $0x288] sm:$0xff]
    %v5332 = vld [vmem:[#allocation7 + $0x290] sm:$0xff]
    %v5333 = vld [vmem:[#allocation7 + $0x298] sm:$0xff]
    %v5334 = vld [vmem:[#allocation7 + $0x2a0] sm:$0xff]
    %v5335 = vld [vmem:[#allocation7 + $0x2a8] sm:$0xff]
    %v5336 = vld [vmem:[#allocation7 + $0x2b0] sm:$0xff]
    %v5337 = vld [vmem:[#allocation7 + $0x2b8] sm:$0xff]
    %v5338 = vld [vmem:[#allocation7 + $0x2c0] sm:$0xff]
    %v5339 = vld [vmem:[#allocation7 + $0x2c8] sm:$0xff]
    %v5340 = vld [vmem:[#allocation7 + $0x2d0] sm:$0xff]
    %v5341 = vld [vmem:[#allocation7 + $0x2d8] sm:$0xff]
    %v5342 = vld [vmem:[#allocation7 + $0x2e0] sm:$0xff]
    %v5343 = vld [vmem:[#allocation7 + $0x2e8] sm:$0xff]
    %v5344 = vld [vmem:[#allocation7 + $0x2f0] sm:$0xff]
    %v5345 = vld [vmem:[#allocation7 + $0x2f8] sm:$0xff]
    %v5346 = vld [vmem:[#allocation7 + $0x300] sm:$0xff]
    %v5347 = vld [vmem:[#allocation7 + $0x308] sm:$0xff]
    %v5348 = vld [vmem:[#allocation7 + $0x310] sm:$0xff]
    %v5349 = vld [vmem:[#allocation7 + $0x318] sm:$0xff]
    %v5350 = vld [vmem:[#allocation7 + $0x320] sm:$0xff]
    %v5351 = vld [vmem:[#allocation7 + $0x328] sm:$0xff]
    %v5352 = vld [vmem:[#allocation7 + $0x330] sm:$0xff]
    %v5353 = vld [vmem:[#allocation7 + $0x338] sm:$0xff]
    %v5354 = vld [vmem:[#allocation7 + $0x340] sm:$0xff]
    %v5355 = vld [vmem:[#allocation7 + $0x348] sm:$0xff]
    %v5356 = vld [vmem:[#allocation7 + $0x350] sm:$0xff]
    %v5357 = vld [vmem:[#allocation7 + $0x358] sm:$0xff]
    %v5358 = vld [vmem:[#allocation7 + $0x360] sm:$0xff]
    %v5359 = vld [vmem:[#allocation7 + $0x368] sm:$0xff]
    %v5360 = vld [vmem:[#allocation7 + $0x370] sm:$0xff]
    %v5361 = vld [vmem:[#allocation7 + $0x378] sm:$0xff]
    %v5362 = vld [vmem:[#allocation7 + $0x380] sm:$0xff]
    %v5363 = vld [vmem:[#allocation7 + $0x388] sm:$0xff]
    %v5364 = vld [vmem:[#allocation7 + $0x390] sm:$0xff]
    %v5365 = vld [vmem:[#allocation7 + $0x398] sm:$0xff]
    %v5366 = vld [vmem:[#allocation7 + $0x3a0] sm:$0xff]
    %v5367 = vld [vmem:[#allocation7 + $0x3a8] sm:$0xff]
    %v5368 = vld [vmem:[#allocation7 + $0x3b0] sm:$0xff]
    %v5369 = vld [vmem:[#allocation7 + $0x3b8] sm:$0xff]
    %v5370 = vld [vmem:[#allocation7 + $0x3c0] sm:$0xff]
    %v5371 = vld [vmem:[#allocation7 + $0x3c8] sm:$0xff]
    %v5372 = vld [vmem:[#allocation7 + $0x3d0] sm:$0xff]
    %v5373 = vld [vmem:[#allocation7 + $0x3d8] sm:$0xff]
    %v5374 = vld [vmem:[#allocation7 + $0x3e0] sm:$0xff]
    %v5375 = vld [vmem:[#allocation7 + $0x3e8] sm:$0xff]
    %v5376 = vld [vmem:[#allocation7 + $0x3f0] sm:$0xff]
    %v5377 = vld [vmem:[#allocation7 + $0x3f8] sm:$0xff]
    %v5378 = vld [vmem:[#allocation9] sm:$0xf]
    %v5380 = vperm.slane %v5378, 0
    %v5381 = vperm.slane %v5378, 1
    %v5382 = vperm.slane %v5378, 2
    %v5383 = vperm.slane %v5378, 3
    %5388 = vmatpush.msra.mxu0 %v5310
    %5389 = vmatpush.msra.mxu0 %v5306
    %5390 = vmatpush.msra.mxu0 %v5302
    %5391 = vmatpush.msra.mxu0 %v5298
    %5392 = vmatpush.msra.mxu0 %v5294
    %5393 = vmatpush.msra.mxu0 %v5290
    %5394 = vmatpush.msra.mxu0 %v5286
    %5395 = vmatpush.msra.mxu0 %v5282
    %5396 = vmatpush.msra.mxu0 %v5278
    %5397 = vmatpush.msra.mxu0 %v5274
    %5398 = vmatpush.msra.mxu0 %v5270
    %5399 = vmatpush.msra.mxu0 %v5266
    %5400 = vmatpush.msra.mxu0 %v5262
    %5401 = vmatpush.msra.mxu0 %v5258
    %5402 = vmatpush.msra.mxu0 %v5254
    %5403 = vmatpush.msra.mxu0 %v5250
    %5404 = vmatmul.f32.gmra.mxu0 %v5247
    %v5405 = vpop.f32.mrf.mxu0
    %v5406 = vadd.f32 %v5380, %v5405
    %5407 = vdwg.mxu0
    %5408 = vmatpush.msra.mxu0 %v5374
    %5409 = vmatpush.msra.mxu0 %v5370
    %5410 = vmatpush.msra.mxu0 %v5366
    %5411 = vmatpush.msra.mxu0 %v5362
    %5412 = vmatpush.msra.mxu0 %v5358
    %5413 = vmatpush.msra.mxu0 %v5354
    %5414 = vmatpush.msra.mxu0 %v5350
    %5415 = vmatpush.msra.mxu0 %v5346
    %5416 = vmatpush.msra.mxu0 %v5342
    %5417 = vmatpush.msra.mxu0 %v5338
    %5418 = vmatpush.msra.mxu0 %v5334
    %5419 = vmatpush.msra.mxu0 %v5330
    %5420 = vmatpush.msra.mxu0 %v5326
    %5421 = vmatpush.msra.mxu0 %v5322
    %5422 = vmatpush.msra.mxu0 %v5318
    %5423 = vmatpush.msra.mxu0 %v5314
    %5424 = vmatmul.f32.gmra.mxu0 %v5248
    %v5425 = vpop.f32.mrf.mxu0
    %v5426 = vadd.f32 %v5406, %v5425
    %5427 = vdwg.mxu0
    %5428 = vmatpush.msra.mxu0 %v5311
    %5429 = vmatpush.msra.mxu0 %v5307
    %5430 = vmatpush.msra.mxu0 %v5303
    %5431 = vmatpush.msra.mxu0 %v5299
    %5432 = vmatpush.msra.mxu0 %v5295
    %5433 = vmatpush.msra.mxu0 %v5291
    %5434 = vmatpush.msra.mxu0 %v5287
    %5435 = vmatpush.msra.mxu0 %v5283
    %5436 = vmatpush.msra.mxu0 %v5279
    %5437 = vmatpush.msra.mxu0 %v5275
    %5438 = vmatpush.msra.mxu0 %v5271
    %5439 = vmatpush.msra.mxu0 %v5267
    %5440 = vmatpush.msra.mxu0 %v5263
    %5441 = vmatpush.msra.mxu0 %v5259
    %5442 = vmatpush.msra.mxu0 %v5255
    %5443 = vmatpush.msra.mxu0 %v5251
    %5444 = vmatmul.f32.gmra.mxu0 %v5247
    %v5445 = vpop.f32.mrf.mxu0
    %v5446 = vadd.f32 %v5381, %v5445
    %5447 = vdwg.mxu0
    %5448 = vmatpush.msra.mxu0 %v5375
    %5449 = vmatpush.msra.mxu0 %v5371
    %5450 = vmatpush.msra.mxu0 %v5367
    %5451 = vmatpush.msra.mxu0 %v5363
    %5452 = vmatpush.msra.mxu0 %v5359
    %5453 = vmatpush.msra.mxu0 %v5355
    %5454 = vmatpush.msra.mxu0 %v5351
    %5455 = vmatpush.msra.mxu0 %v5347
    %5456 = vmatpush.msra.mxu0 %v5343
    %5457 = vmatpush.msra.mxu0 %v5339
    %5458 = vmatpush.msra.mxu0 %v5335
    %5459 = vmatpush.msra.mxu0 %v5331
    %5460 = vmatpush.msra.mxu0 %v5327
    %5461 = vmatpush.msra.mxu0 %v5323
    %5462 = vmatpush.msra.mxu0 %v5319
    %5463 = vmatpush.msra.mxu0 %v5315
    %5464 = vmatmul.f32.gmra.mxu0 %v5248
    %v5465 = vpop.f32.mrf.mxu0
    %v5466 = vadd.f32 %v5446, %v5465
    %5467 = vdwg.mxu0
    %5468 = vmatpush.msra.mxu0 %v5312
    %5469 = vmatpush.msra.mxu0 %v5308
    %5470 = vmatpush.msra.mxu0 %v5304
    %5471 = vmatpush.msra.mxu0 %v5300
    %5472 = vmatpush.msra.mxu0 %v5296
    %5473 = vmatpush.msra.mxu0 %v5292
    %5474 = vmatpush.msra.mxu0 %v5288
    %5475 = vmatpush.msra.mxu0 %v5284
    %5476 = vmatpush.msra.mxu0 %v5280
    %5477 = vmatpush.msra.mxu0 %v5276
    %5478 = vmatpush.msra.mxu0 %v5272
    %5479 = vmatpush.msra.mxu0 %v5268
    %5480 = vmatpush.msra.mxu0 %v5264
    %5481 = vmatpush.msra.mxu0 %v5260
    %5482 = vmatpush.msra.mxu0 %v5256
    %5483 = vmatpush.msra.mxu0 %v5252
    %5484 = vmatmul.f32.gmra.mxu0 %v5247
    %v5485 = vpop.f32.mrf.mxu0
    %v5486 = vadd.f32 %v5382, %v5485
    %5487 = vdwg.mxu0
    %5488 = vmatpush.msra.mxu0 %v5376
    %5489 = vmatpush.msra.mxu0 %v5372
    %5490 = vmatpush.msra.mxu0 %v5368
    %5491 = vmatpush.msra.mxu0 %v5364
    %5492 = vmatpush.msra.mxu0 %v5360
    %5493 = vmatpush.msra.mxu0 %v5356
    %5494 = vmatpush.msra.mxu0 %v5352
    %5495 = vmatpush.msra.mxu0 %v5348
    %5496 = vmatpush.msra.mxu0 %v5344
    %5497 = vmatpush.msra.mxu0 %v5340
    %5498 = vmatpush.msra.mxu0 %v5336
    %5499 = vmatpush.msra.mxu0 %v5332
    %5500 = vmatpush.msra.mxu0 %v5328
    %5501 = vmatpush.msra.mxu0 %v5324
    %5502 = vmatpush.msra.mxu0 %v5320
    %5503 = vmatpush.msra.mxu0 %v5316
    %5504 = vmatmul.f32.gmra.mxu0 %v5248
    %v5505 = vpop.f32.mrf.mxu0
    %v5506 = vadd.f32 %v5486, %v5505
    %5507 = vdwg.mxu0
    %5508 = vmatpush.msra.mxu0 %v5313
    %5509 = vmatpush.msra.mxu0 %v5309
    %5510 = vmatpush.msra.mxu0 %v5305
    %5511 = vmatpush.msra.mxu0 %v5301
    %5512 = vmatpush.msra.mxu0 %v5297
    %5513 = vmatpush.msra.mxu0 %v5293
    %5514 = vmatpush.msra.mxu0 %v5289
    %5515 = vmatpush.msra.mxu0 %v5285
    %5516 = vmatpush.msra.mxu0 %v5281
    %5517 = vmatpush.msra.mxu0 %v5277
    %5518 = vmatpush.msra.mxu0 %v5273
    %5519 = vmatpush.msra.mxu0 %v5269
    %5520 = vmatpush.msra.mxu0 %v5265
    %5521 = vmatpush.msra.mxu0 %v5261
    %5522 = vmatpush.msra.mxu0 %v5257
    %5523 = vmatpush.msra.mxu0 %v5253
    %5524 = vmatmul.f32.gmra.mxu0 %v5247
    %v5525 = vpop.f32.mrf.mxu0
    %v5526 = vadd.f32 %v5383, %v5525
    %5527 = vdwg.mxu0
    %5528 = vmatpush.msra.mxu0 %v5377
    %5529 = vmatpush.msra.mxu0 %v5373
    %5530 = vmatpush.msra.mxu0 %v5369
    %5531 = vmatpush.msra.mxu0 %v5365
    %5532 = vmatpush.msra.mxu0 %v5361
    %5533 = vmatpush.msra.mxu0 %v5357
    %5534 = vmatpush.msra.mxu0 %v5353
    %5535 = vmatpush.msra.mxu0 %v5349
    %5536 = vmatpush.msra.mxu0 %v5345
    %5537 = vmatpush.msra.mxu0 %v5341
    %5538 = vmatpush.msra.mxu0 %v5337
    %5539 = vmatpush.msra.mxu0 %v5333
    %5540 = vmatpush.msra.mxu0 %v5329
    %5541 = vmatpush.msra.mxu0 %v5325
    %5542 = vmatpush.msra.mxu0 %v5321
    %5543 = vmatpush.msra.mxu0 %v5317
    %5544 = vmatmul.f32.gmra.mxu0 %v5248
    %v5545 = vpop.f32.mrf.mxu0
    %v5546 = vadd.f32 %v5526, %v5545
    %5547 = vdwg.mxu0
    %v5548 = vxor.u32 %v5426, 2147483648
    %v5549 = vmul.f32 %v5548, 1.442695
    %v5550 = vpow.pop %v5549
    %v5551 = vadd.f32 %v5550, 1.0
    %v5552 = vrcp.pop %v5551
    %v5553 = vmul.f32 %v5551, %v5552
    %v5554 = vsub.f32 1.0, %v5553
    %v5555 = vmul.f32 %v5552, %v5554
    %v5556 = vadd.f32 %v5552, %v5555
    %vm5557 = vweird.f32 %v5551
    %vm5558 = vweird.f32 %v5552
    %vm5559 = vmor %vm5557, %vm5558
    %v5560 = vsel %vm5559, %v5552, %v5556
    %v5561 = vand.u32 2147483647, %v5551
    %vm5562 = vcmp.eq.f32.partialorder %v5561, 8.507059e+37
    %v5563 = vand.u32 %v5551, 2147483648
    %v5564 = vor.u32 1.1754944e-38, %v5563
    %v5565 = vsel %vm5562, %v5564, %v5560
    %v5566 = vmul.f32 1.0, %v5565
    %v5567 = vxor.u32 %v5466, 2147483648
    %v5568 = vmul.f32 %v5567, 1.442695
    %v5569 = vpow.pop %v5568
    %v5570 = vadd.f32 %v5569, 1.0
    %v5571 = vrcp.pop %v5570
    %v5572 = vmul.f32 %v5570, %v5571
    %v5573 = vsub.f32 1.0, %v5572
    %v5574 = vmul.f32 %v5571, %v5573
    %v5575 = vadd.f32 %v5571, %v5574
    %vm5576 = vweird.f32 %v5570
    %vm5577 = vweird.f32 %v5571
    %vm5578 = vmor %vm5576, %vm5577
    %v5579 = vsel %vm5578, %v5571, %v5575
    %v5580 = vand.u32 2147483647, %v5570
    %vm5581 = vcmp.eq.f32.partialorder %v5580, 8.507059e+37
    %v5582 = vand.u32 %v5570, 2147483648
    %v5583 = vor.u32 1.1754944e-38, %v5582
    %v5584 = vsel %vm5581, %v5583, %v5579
    %v5585 = vmul.f32 1.0, %v5584
    %v5586 = vtanh.pop %v5506
    %v5587 = vxor.u32 %v5546, 2147483648
    %v5588 = vmul.f32 %v5587, 1.442695
    %v5589 = vpow.pop %v5588
    %v5590 = vadd.f32 %v5589, 1.0
    %v5591 = vrcp.pop %v5590
    %v5592 = vmul.f32 %v5590, %v5591
    %v5593 = vsub.f32 1.0, %v5592
    %v5594 = vmul.f32 %v5591, %v5593
    %v5595 = vadd.f32 %v5591, %v5594
    %vm5596 = vweird.f32 %v5590
    %vm5597 = vweird.f32 %v5591
    %vm5598 = vmor %vm5596, %vm5597
    %v5599 = vsel %vm5598, %v5591, %v5595
    %v5600 = vand.u32 2147483647, %v5590
    %vm5601 = vcmp.eq.f32.partialorder %v5600, 8.507059e+37
    %v5602 = vand.u32 %v5590, 2147483648
    %v5603 = vor.u32 1.1754944e-38, %v5602
    %v5604 = vsel %vm5601, %v5603, %v5599
    %v5605 = vmul.f32 1.0, %v5604
    %v5606 = vmul.f32 %v5585, %v5249
    %v5607 = vmul.f32 %v5566, %v5586
    %v5608 = vadd.f32 %v5606, %v5607
    %v5609 = vtanh.pop %v5608
    %v5610 = vmul.f32 %v5605, %v5609
    %5611 = vst [vmem:[#allocation2] sm:$0x3] %v5610
    %5612 = vst [vmem:[#allocation3] sm:$0x3] %v5608
    %v5613 = vld [vmem:[%s487] sm:$0x3]
    %v5614 = vld [vmem:[%s489] sm:$0x3]
    %v5615 = vld [vmem:[#allocation10] sm:$0xff]
    %v5616 = vld [vmem:[#allocation10 + $0x8] sm:$0xff]
    %v5617 = vld [vmem:[#allocation10 + $0x10] sm:$0xff]
    %v5618 = vld [vmem:[#allocation10 + $0x18] sm:$0xff]
    %v5619 = vld [vmem:[#allocation10 + $0x20] sm:$0xff]
    %v5620 = vld [vmem:[#allocation10 + $0x28] sm:$0xff]
    %v5621 = vld [vmem:[#allocation10 + $0x30] sm:$0xff]
    %v5622 = vld [vmem:[#allocation10 + $0x38] sm:$0xff]
    %v5623 = vld [vmem:[#allocation10 + $0x40] sm:$0xff]
    %v5624 = vld [vmem:[#allocation10 + $0x48] sm:$0xff]
    %v5625 = vld [vmem:[#allocation10 + $0x50] sm:$0xff]
    %v5626 = vld [vmem:[#allocation10 + $0x58] sm:$0xff]
    %v5627 = vld [vmem:[#allocation10 + $0x60] sm:$0xff]
    %v5628 = vld [vmem:[#allocation10 + $0x68] sm:$0xff]
    %v5629 = vld [vmem:[#allocation10 + $0x70] sm:$0xff]
    %v5630 = vld [vmem:[#allocation10 + $0x78] sm:$0xff]
    %v5631 = vld [vmem:[#allocation10 + $0x80] sm:$0xff]
    %v5632 = vld [vmem:[#allocation10 + $0x88] sm:$0xff]
    %v5633 = vld [vmem:[#allocation10 + $0x90] sm:$0xff]
    %v5634 = vld [vmem:[#allocation10 + $0x98] sm:$0xff]
    %v5635 = vld [vmem:[#allocation10 + $0xa0] sm:$0xff]
    %v5636 = vld [vmem:[#allocation10 + $0xa8] sm:$0xff]
    %v5637 = vld [vmem:[#allocation10 + $0xb0] sm:$0xff]
    %v5638 = vld [vmem:[#allocation10 + $0xb8] sm:$0xff]
    %v5639 = vld [vmem:[#allocation10 + $0xc0] sm:$0xff]
    %v5640 = vld [vmem:[#allocation10 + $0xc8] sm:$0xff]
    %v5641 = vld [vmem:[#allocation10 + $0xd0] sm:$0xff]
    %v5642 = vld [vmem:[#allocation10 + $0xd8] sm:$0xff]
    %v5643 = vld [vmem:[#allocation10 + $0xe0] sm:$0xff]
    %v5644 = vld [vmem:[#allocation10 + $0xe8] sm:$0xff]
    %v5645 = vld [vmem:[#allocation10 + $0xf0] sm:$0xff]
    %v5646 = vld [vmem:[#allocation10 + $0xf8] sm:$0xff]
    %v5647 = vld [vmem:[#allocation10 + $0x100] sm:$0xff]
    %v5648 = vld [vmem:[#allocation10 + $0x108] sm:$0xff]
    %v5649 = vld [vmem:[#allocation10 + $0x110] sm:$0xff]
    %v5650 = vld [vmem:[#allocation10 + $0x118] sm:$0xff]
    %v5651 = vld [vmem:[#allocation10 + $0x120] sm:$0xff]
    %v5652 = vld [vmem:[#allocation10 + $0x128] sm:$0xff]
    %v5653 = vld [vmem:[#allocation10 + $0x130] sm:$0xff]
    %v5654 = vld [vmem:[#allocation10 + $0x138] sm:$0xff]
    %v5655 = vld [vmem:[#allocation10 + $0x140] sm:$0xff]
    %v5656 = vld [vmem:[#allocation10 + $0x148] sm:$0xff]
    %v5657 = vld [vmem:[#allocation10 + $0x150] sm:$0xff]
    %v5658 = vld [vmem:[#allocation10 + $0x158] sm:$0xff]
    %v5659 = vld [vmem:[#allocation10 + $0x160] sm:$0xff]
    %v5660 = vld [vmem:[#allocation10 + $0x168] sm:$0xff]
    %v5661 = vld [vmem:[#allocation10 + $0x170] sm:$0xff]
    %v5662 = vld [vmem:[#allocation10 + $0x178] sm:$0xff]
    %v5663 = vld [vmem:[#allocation10 + $0x180] sm:$0xff]
    %v5664 = vld [vmem:[#allocation10 + $0x188] sm:$0xff]
    %v5665 = vld [vmem:[#allocation10 + $0x190] sm:$0xff]
    %v5666 = vld [vmem:[#allocation10 + $0x198] sm:$0xff]
    %v5667 = vld [vmem:[#allocation10 + $0x1a0] sm:$0xff]
    %v5668 = vld [vmem:[#allocation10 + $0x1a8] sm:$0xff]
    %v5669 = vld [vmem:[#allocation10 + $0x1b0] sm:$0xff]
    %v5670 = vld [vmem:[#allocation10 + $0x1b8] sm:$0xff]
    %v5671 = vld [vmem:[#allocation10 + $0x1c0] sm:$0xff]
    %v5672 = vld [vmem:[#allocation10 + $0x1c8] sm:$0xff]
    %v5673 = vld [vmem:[#allocation10 + $0x1d0] sm:$0xff]
    %v5674 = vld [vmem:[#allocation10 + $0x1d8] sm:$0xff]
    %v5675 = vld [vmem:[#allocation10 + $0x1e0] sm:$0xff]
    %v5676 = vld [vmem:[#allocation10 + $0x1e8] sm:$0xff]
    %v5677 = vld [vmem:[#allocation10 + $0x1f0] sm:$0xff]
    %v5678 = vld [vmem:[#allocation10 + $0x1f8] sm:$0xff]
    %v5679 = vld [vmem:[#allocation10 + $0x200] sm:$0xff]
    %v5680 = vld [vmem:[#allocation10 + $0x208] sm:$0xff]
    %v5681 = vld [vmem:[#allocation10 + $0x210] sm:$0xff]
    %v5682 = vld [vmem:[#allocation10 + $0x218] sm:$0xff]
    %v5683 = vld [vmem:[#allocation10 + $0x220] sm:$0xff]
    %v5684 = vld [vmem:[#allocation10 + $0x228] sm:$0xff]
    %v5685 = vld [vmem:[#allocation10 + $0x230] sm:$0xff]
    %v5686 = vld [vmem:[#allocation10 + $0x238] sm:$0xff]
    %v5687 = vld [vmem:[#allocation10 + $0x240] sm:$0xff]
    %v5688 = vld [vmem:[#allocation10 + $0x248] sm:$0xff]
    %v5689 = vld [vmem:[#allocation10 + $0x250] sm:$0xff]
    %v5690 = vld [vmem:[#allocation10 + $0x258] sm:$0xff]
    %v5691 = vld [vmem:[#allocation10 + $0x260] sm:$0xff]
    %v5692 = vld [vmem:[#allocation10 + $0x268] sm:$0xff]
    %v5693 = vld [vmem:[#allocation10 + $0x270] sm:$0xff]
    %v5694 = vld [vmem:[#allocation10 + $0x278] sm:$0xff]
    %v5695 = vld [vmem:[#allocation10 + $0x280] sm:$0xff]
    %v5696 = vld [vmem:[#allocation10 + $0x288] sm:$0xff]
    %v5697 = vld [vmem:[#allocation10 + $0x290] sm:$0xff]
    %v5698 = vld [vmem:[#allocation10 + $0x298] sm:$0xff]
    %v5699 = vld [vmem:[#allocation10 + $0x2a0] sm:$0xff]
    %v5700 = vld [vmem:[#allocation10 + $0x2a8] sm:$0xff]
    %v5701 = vld [vmem:[#allocation10 + $0x2b0] sm:$0xff]
    %v5702 = vld [vmem:[#allocation10 + $0x2b8] sm:$0xff]
    %v5703 = vld [vmem:[#allocation10 + $0x2c0] sm:$0xff]
    %v5704 = vld [vmem:[#allocation10 + $0x2c8] sm:$0xff]
    %v5705 = vld [vmem:[#allocation10 + $0x2d0] sm:$0xff]
    %v5706 = vld [vmem:[#allocation10 + $0x2d8] sm:$0xff]
    %v5707 = vld [vmem:[#allocation10 + $0x2e0] sm:$0xff]
    %v5708 = vld [vmem:[#allocation10 + $0x2e8] sm:$0xff]
    %v5709 = vld [vmem:[#allocation10 + $0x2f0] sm:$0xff]
    %v5710 = vld [vmem:[#allocation10 + $0x2f8] sm:$0xff]
    %v5711 = vld [vmem:[#allocation10 + $0x300] sm:$0xff]
    %v5712 = vld [vmem:[#allocation10 + $0x308] sm:$0xff]
    %v5713 = vld [vmem:[#allocation10 + $0x310] sm:$0xff]
    %v5714 = vld [vmem:[#allocation10 + $0x318] sm:$0xff]
    %v5715 = vld [vmem:[#allocation10 + $0x320] sm:$0xff]
    %v5716 = vld [vmem:[#allocation10 + $0x328] sm:$0xff]
    %v5717 = vld [vmem:[#allocation10 + $0x330] sm:$0xff]
    %v5718 = vld [vmem:[#allocation10 + $0x338] sm:$0xff]
    %v5719 = vld [vmem:[#allocation10 + $0x340] sm:$0xff]
    %v5720 = vld [vmem:[#allocation10 + $0x348] sm:$0xff]
    %v5721 = vld [vmem:[#allocation10 + $0x350] sm:$0xff]
    %v5722 = vld [vmem:[#allocation10 + $0x358] sm:$0xff]
    %v5723 = vld [vmem:[#allocation10 + $0x360] sm:$0xff]
    %v5724 = vld [vmem:[#allocation10 + $0x368] sm:$0xff]
    %v5725 = vld [vmem:[#allocation10 + $0x370] sm:$0xff]
    %v5726 = vld [vmem:[#allocation10 + $0x378] sm:$0xff]
    %v5727 = vld [vmem:[#allocation10 + $0x380] sm:$0xff]
    %v5728 = vld [vmem:[#allocation10 + $0x388] sm:$0xff]
    %v5729 = vld [vmem:[#allocation10 + $0x390] sm:$0xff]
    %v5730 = vld [vmem:[#allocation10 + $0x398] sm:$0xff]
    %v5731 = vld [vmem:[#allocation10 + $0x3a0] sm:$0xff]
    %v5732 = vld [vmem:[#allocation10 + $0x3a8] sm:$0xff]
    %v5733 = vld [vmem:[#allocation10 + $0x3b0] sm:$0xff]
    %v5734 = vld [vmem:[#allocation10 + $0x3b8] sm:$0xff]
    %v5735 = vld [vmem:[#allocation10 + $0x3c0] sm:$0xff]
    %v5736 = vld [vmem:[#allocation10 + $0x3c8] sm:$0xff]
    %v5737 = vld [vmem:[#allocation10 + $0x3d0] sm:$0xff]
    %v5738 = vld [vmem:[#allocation10 + $0x3d8] sm:$0xff]
    %v5739 = vld [vmem:[#allocation10 + $0x3e0] sm:$0xff]
    %v5740 = vld [vmem:[#allocation10 + $0x3e8] sm:$0xff]
    %v5741 = vld [vmem:[#allocation10 + $0x3f0] sm:$0xff]
    %v5742 = vld [vmem:[#allocation10 + $0x3f8] sm:$0xff]
    %v5743 = vld [vmem:[#allocation12] sm:$0xf]
    %v5745 = vperm.slane %v5743, 0
    %v5746 = vperm.slane %v5743, 1
    %v5747 = vperm.slane %v5743, 2
    %v5748 = vperm.slane %v5743, 3
    %5753 = vmatpush.msra.mxu0 %v5675
    %5754 = vmatpush.msra.mxu0 %v5671
    %5755 = vmatpush.msra.mxu0 %v5667
    %5756 = vmatpush.msra.mxu0 %v5663
    %5757 = vmatpush.msra.mxu0 %v5659
    %5758 = vmatpush.msra.mxu0 %v5655
    %5759 = vmatpush.msra.mxu0 %v5651
    %5760 = vmatpush.msra.mxu0 %v5647
    %5761 = vmatpush.msra.mxu0 %v5643
    %5762 = vmatpush.msra.mxu0 %v5639
    %5763 = vmatpush.msra.mxu0 %v5635
    %5764 = vmatpush.msra.mxu0 %v5631
    %5765 = vmatpush.msra.mxu0 %v5627
    %5766 = vmatpush.msra.mxu0 %v5623
    %5767 = vmatpush.msra.mxu0 %v5619
    %5768 = vmatpush.msra.mxu0 %v5615
    %5769 = vmatmul.f32.gmra.mxu0 %v5610
    %v5770 = vpop.f32.mrf.mxu0
    %v5771 = vadd.f32 %v5745, %v5770
    %5772 = vdwg.mxu0
    %5773 = vmatpush.msra.mxu0 %v5739
    %5774 = vmatpush.msra.mxu0 %v5735
    %5775 = vmatpush.msra.mxu0 %v5731
    %5776 = vmatpush.msra.mxu0 %v5727
    %5777 = vmatpush.msra.mxu0 %v5723
    %5778 = vmatpush.msra.mxu0 %v5719
    %5779 = vmatpush.msra.mxu0 %v5715
    %5780 = vmatpush.msra.mxu0 %v5711
    %5781 = vmatpush.msra.mxu0 %v5707
    %5782 = vmatpush.msra.mxu0 %v5703
    %5783 = vmatpush.msra.mxu0 %v5699
    %5784 = vmatpush.msra.mxu0 %v5695
    %5785 = vmatpush.msra.mxu0 %v5691
    %5786 = vmatpush.msra.mxu0 %v5687
    %5787 = vmatpush.msra.mxu0 %v5683
    %5788 = vmatpush.msra.mxu0 %v5679
    %5789 = vmatmul.f32.gmra.mxu0 %v5613
    %v5790 = vpop.f32.mrf.mxu0
    %v5791 = vadd.f32 %v5771, %v5790
    %5792 = vdwg.mxu0
    %5793 = vmatpush.msra.mxu0 %v5676
    %5794 = vmatpush.msra.mxu0 %v5672
    %5795 = vmatpush.msra.mxu0 %v5668
    %5796 = vmatpush.msra.mxu0 %v5664
    %5797 = vmatpush.msra.mxu0 %v5660
    %5798 = vmatpush.msra.mxu0 %v5656
    %5799 = vmatpush.msra.mxu0 %v5652
    %5800 = vmatpush.msra.mxu0 %v5648
    %5801 = vmatpush.msra.mxu0 %v5644
    %5802 = vmatpush.msra.mxu0 %v5640
    %5803 = vmatpush.msra.mxu0 %v5636
    %5804 = vmatpush.msra.mxu0 %v5632
    %5805 = vmatpush.msra.mxu0 %v5628
    %5806 = vmatpush.msra.mxu0 %v5624
    %5807 = vmatpush.msra.mxu0 %v5620
    %5808 = vmatpush.msra.mxu0 %v5616
    %5809 = vmatmul.f32.gmra.mxu0 %v5610
    %v5810 = vpop.f32.mrf.mxu0
    %v5811 = vadd.f32 %v5746, %v5810
    %5812 = vdwg.mxu0
    %5813 = vmatpush.msra.mxu0 %v5740
    %5814 = vmatpush.msra.mxu0 %v5736
    %5815 = vmatpush.msra.mxu0 %v5732
    %5816 = vmatpush.msra.mxu0 %v5728
    %5817 = vmatpush.msra.mxu0 %v5724
    %5818 = vmatpush.msra.mxu0 %v5720
    %5819 = vmatpush.msra.mxu0 %v5716
    %5820 = vmatpush.msra.mxu0 %v5712
    %5821 = vmatpush.msra.mxu0 %v5708
    %5822 = vmatpush.msra.mxu0 %v5704
    %5823 = vmatpush.msra.mxu0 %v5700
    %5824 = vmatpush.msra.mxu0 %v5696
    %5825 = vmatpush.msra.mxu0 %v5692
    %5826 = vmatpush.msra.mxu0 %v5688
    %5827 = vmatpush.msra.mxu0 %v5684
    %5828 = vmatpush.msra.mxu0 %v5680
    %5829 = vmatmul.f32.gmra.mxu0 %v5613
    %v5830 = vpop.f32.mrf.mxu0
    %v5831 = vadd.f32 %v5811, %v5830
    %5832 = vdwg.mxu0
    %5833 = vmatpush.msra.mxu0 %v5677
    %5834 = vmatpush.msra.mxu0 %v5673
    %5835 = vmatpush.msra.mxu0 %v5669
    %5836 = vmatpush.msra.mxu0 %v5665
    %5837 = vmatpush.msra.mxu0 %v5661
    %5838 = vmatpush.msra.mxu0 %v5657
    %5839 = vmatpush.msra.mxu0 %v5653
    %5840 = vmatpush.msra.mxu0 %v5649
    %5841 = vmatpush.msra.mxu0 %v5645
    %5842 = vmatpush.msra.mxu0 %v5641
    %5843 = vmatpush.msra.mxu0 %v5637
    %5844 = vmatpush.msra.mxu0 %v5633
    %5845 = vmatpush.msra.mxu0 %v5629
    %5846 = vmatpush.msra.mxu0 %v5625
    %5847 = vmatpush.msra.mxu0 %v5621
    %5848 = vmatpush.msra.mxu0 %v5617
    %5849 = vmatmul.f32.gmra.mxu0 %v5610
    %v5850 = vpop.f32.mrf.mxu0
    %v5851 = vadd.f32 %v5747, %v5850
    %5852 = vdwg.mxu0
    %5853 = vmatpush.msra.mxu0 %v5741
    %5854 = vmatpush.msra.mxu0 %v5737
    %5855 = vmatpush.msra.mxu0 %v5733
    %5856 = vmatpush.msra.mxu0 %v5729
    %5857 = vmatpush.msra.mxu0 %v5725
    %5858 = vmatpush.msra.mxu0 %v5721
    %5859 = vmatpush.msra.mxu0 %v5717
    %5860 = vmatpush.msra.mxu0 %v5713
    %5861 = vmatpush.msra.mxu0 %v5709
    %5862 = vmatpush.msra.mxu0 %v5705
    %5863 = vmatpush.msra.mxu0 %v5701
    %5864 = vmatpush.msra.mxu0 %v5697
    %5865 = vmatpush.msra.mxu0 %v5693
    %5866 = vmatpush.msra.mxu0 %v5689
    %5867 = vmatpush.msra.mxu0 %v5685
    %5868 = vmatpush.msra.mxu0 %v5681
    %5869 = vmatmul.f32.gmra.mxu0 %v5613
    %v5870 = vpop.f32.mrf.mxu0
    %v5871 = vadd.f32 %v5851, %v5870
    %5872 = vdwg.mxu0
    %5873 = vmatpush.msra.mxu0 %v5678
    %5874 = vmatpush.msra.mxu0 %v5674
    %5875 = vmatpush.msra.mxu0 %v5670
    %5876 = vmatpush.msra.mxu0 %v5666
    %5877 = vmatpush.msra.mxu0 %v5662
    %5878 = vmatpush.msra.mxu0 %v5658
    %5879 = vmatpush.msra.mxu0 %v5654
    %5880 = vmatpush.msra.mxu0 %v5650
    %5881 = vmatpush.msra.mxu0 %v5646
    %5882 = vmatpush.msra.mxu0 %v5642
    %5883 = vmatpush.msra.mxu0 %v5638
    %5884 = vmatpush.msra.mxu0 %v5634
    %5885 = vmatpush.msra.mxu0 %v5630
    %5886 = vmatpush.msra.mxu0 %v5626
    %5887 = vmatpush.msra.mxu0 %v5622
    %5888 = vmatpush.msra.mxu0 %v5618
    %5889 = vmatmul.f32.gmra.mxu0 %v5610
    %v5890 = vpop.f32.mrf.mxu0
    %v5891 = vadd.f32 %v5748, %v5890
    %5892 = vdwg.mxu0
    %5893 = vmatpush.msra.mxu0 %v5742
    %5894 = vmatpush.msra.mxu0 %v5738
    %5895 = vmatpush.msra.mxu0 %v5734
    %5896 = vmatpush.msra.mxu0 %v5730
    %5897 = vmatpush.msra.mxu0 %v5726
    %5898 = vmatpush.msra.mxu0 %v5722
    %5899 = vmatpush.msra.mxu0 %v5718
    %5900 = vmatpush.msra.mxu0 %v5714
    %5901 = vmatpush.msra.mxu0 %v5710
    %5902 = vmatpush.msra.mxu0 %v5706
    %5903 = vmatpush.msra.mxu0 %v5702
    %5904 = vmatpush.msra.mxu0 %v5698
    %5905 = vmatpush.msra.mxu0 %v5694
    %5906 = vmatpush.msra.mxu0 %v5690
    %5907 = vmatpush.msra.mxu0 %v5686
    %5908 = vmatpush.msra.mxu0 %v5682
    %5909 = vmatmul.f32.gmra.mxu0 %v5613
    %v5910 = vpop.f32.mrf.mxu0
    %v5911 = vadd.f32 %v5891, %v5910
    %5912 = vdwg.mxu0
    %v5913 = vxor.u32 %v5791, 2147483648
    %v5914 = vmul.f32 %v5913, 1.442695
    %v5915 = vpow.pop %v5914
    %v5916 = vadd.f32 %v5915, 1.0
    %v5917 = vrcp.pop %v5916
    %v5918 = vmul.f32 %v5916, %v5917
    %v5919 = vsub.f32 1.0, %v5918
    %v5920 = vmul.f32 %v5917, %v5919
    %v5921 = vadd.f32 %v5917, %v5920
    %vm5922 = vweird.f32 %v5916
    %vm5923 = vweird.f32 %v5917
    %vm5924 = vmor %vm5922, %vm5923
    %v5925 = vsel %vm5924, %v5917, %v5921
    %v5926 = vand.u32 2147483647, %v5916
    %vm5927 = vcmp.eq.f32.partialorder %v5926, 8.507059e+37
    %v5928 = vand.u32 %v5916, 2147483648
    %v5929 = vor.u32 1.1754944e-38, %v5928
    %v5930 = vsel %vm5927, %v5929, %v5925
    %v5931 = vmul.f32 1.0, %v5930
    %v5932 = vxor.u32 %v5831, 2147483648
    %v5933 = vmul.f32 %v5932, 1.442695
    %v5934 = vpow.pop %v5933
    %v5935 = vadd.f32 %v5934, 1.0
    %v5936 = vrcp.pop %v5935
    %v5937 = vmul.f32 %v5935, %v5936
    %v5938 = vsub.f32 1.0, %v5937
    %v5939 = vmul.f32 %v5936, %v5938
    %v5940 = vadd.f32 %v5936, %v5939
    %vm5941 = vweird.f32 %v5935
    %vm5942 = vweird.f32 %v5936
    %vm5943 = vmor %vm5941, %vm5942
    %v5944 = vsel %vm5943, %v5936, %v5940
    %v5945 = vand.u32 2147483647, %v5935
    %vm5946 = vcmp.eq.f32.partialorder %v5945, 8.507059e+37
    %v5947 = vand.u32 %v5935, 2147483648
    %v5948 = vor.u32 1.1754944e-38, %v5947
    %v5949 = vsel %vm5946, %v5948, %v5944
    %v5950 = vmul.f32 1.0, %v5949
    %v5951 = vtanh.pop %v5871
    %v5952 = vxor.u32 %v5911, 2147483648
    %v5953 = vmul.f32 %v5952, 1.442695
    %v5954 = vpow.pop %v5953
    %v5955 = vadd.f32 %v5954, 1.0
    %v5956 = vrcp.pop %v5955
    %v5957 = vmul.f32 %v5955, %v5956
    %v5958 = vsub.f32 1.0, %v5957
    %v5959 = vmul.f32 %v5956, %v5958
    %v5960 = vadd.f32 %v5956, %v5959
    %vm5961 = vweird.f32 %v5955
    %vm5962 = vweird.f32 %v5956
    %vm5963 = vmor %vm5961, %vm5962
    %v5964 = vsel %vm5963, %v5956, %v5960
    %v5965 = vand.u32 2147483647, %v5955
    %vm5966 = vcmp.eq.f32.partialorder %v5965, 8.507059e+37
    %v5967 = vand.u32 %v5955, 2147483648
    %v5968 = vor.u32 1.1754944e-38, %v5967
    %v5969 = vsel %vm5966, %v5968, %v5964
    %v5970 = vmul.f32 1.0, %v5969
    %v5971 = vmul.f32 %v5950, %v5614
    %v5972 = vmul.f32 %v5931, %v5951
    %v5973 = vadd.f32 %v5971, %v5972
    %v5974 = vtanh.pop %v5973
    %v5975 = vmul.f32 %v5970, %v5974
    %5976 = vst [vmem:[%s487] sm:$0x3] %v5975
    %5977 = vst [vmem:[%s489] sm:$0x3] %v5973
    %v5978 = vld [vmem:[%s487] sm:$0x3]
    %v5979 = vld [vmem:[#allocation13] sm:$0xff]
    %v5980 = vld [vmem:[#allocation13 + $0x8] sm:$0xff]
    %v5981 = vld [vmem:[#allocation13 + $0x10] sm:$0xff]
    %v5982 = vld [vmem:[#allocation13 + $0x18] sm:$0xff]
    %v5983 = vld [vmem:[#allocation13 + $0x20] sm:$0xff]
    %v5984 = vld [vmem:[#allocation13 + $0x28] sm:$0xff]
    %v5985 = vld [vmem:[#allocation13 + $0x30] sm:$0xff]
    %v5986 = vld [vmem:[#allocation13 + $0x38] sm:$0xff]
    %v5987 = vld [vmem:[#allocation13 + $0x40] sm:$0xff]
    %v5988 = vld [vmem:[#allocation13 + $0x48] sm:$0xff]
    %v5989 = vld [vmem:[#allocation13 + $0x50] sm:$0xff]
    %v5990 = vld [vmem:[#allocation13 + $0x58] sm:$0xff]
    %v5991 = vld [vmem:[#allocation13 + $0x60] sm:$0xff]
    %v5992 = vld [vmem:[#allocation13 + $0x68] sm:$0xff]
    %v5993 = vld [vmem:[#allocation13 + $0x70] sm:$0xff]
    %v5994 = vld [vmem:[#allocation13 + $0x78] sm:$0xff]
    %v5995 = vld [vmem:[%s6] sm:$0x1]
    %v5997 = vperm.slane %v5995, 0
    %5999 = vmatpush.msra.mxu0 %v5994
    %6000 = vmatpush.msra.mxu0 %v5993
    %6001 = vmatpush.msra.mxu0 %v5992
    %6002 = vmatpush.msra.mxu0 %v5991
    %6003 = vmatpush.msra.mxu0 %v5990
    %6004 = vmatpush.msra.mxu0 %v5989
    %6005 = vmatpush.msra.mxu0 %v5988
    %6006 = vmatpush.msra.mxu0 %v5987
    %6007 = vmatpush.msra.mxu0 %v5986
    %6008 = vmatpush.msra.mxu0 %v5985
    %6009 = vmatpush.msra.mxu0 %v5984
    %6010 = vmatpush.msra.mxu0 %v5983
    %6011 = vmatpush.msra.mxu0 %v5982
    %6012 = vmatpush.msra.mxu0 %v5981
    %6013 = vmatpush.msra.mxu0 %v5980
    %6014 = vmatpush.msra.mxu0 %v5979
    %6015 = vmatmul.f32.gmra.mxu0 %v5978
    %v6016 = vpop.f32.mrf.mxu0
    %v6017 = vadd.f32 %v5997, %v6016
    %6018 = vdwg.mxu0
    %6019 = vst [vmem:[#allocation15] sm:$0x3] %v6017
    // Predicated region
    $region54: #{tpu_custom_call.1} parent=1 // pred_check
      _
    $region55: #{tpu_custom_call.1} parent=1 // pred_check_branch
      %6021 = sbr.rel (0) target = $region57
    $region56: #{tpu_custom_call.1} parent=1 // pred_region
      %6023 = vsyncadd [#allocation6], 0
      %s6025 = sshll.u32 [#allocation15], 4
      %s6026 = int_to_ptr.vmem [resolvable:$true] %s6025
      %s6027 = sshll.u32 %s7, 4
      %s6028 = int_to_ptr.hbm [resolvable:$true] %s6027
      %6030 = dma.vmem_to_hbm [thread:$0]  %s6026, 32, %s6028, [#allocation6]
    $region57: #{tpu_custom_call.1} parent=1 // pred_fallthru
      _
    // Predicated region
    $region58: #{tpu_custom_call.1} parent=1 // pred_check
      _
    $region59: #{tpu_custom_call.1} parent=1 // pred_check_branch
      %6032 = sbr.rel (0) target = $region61
    $region60: #{tpu_custom_call.1} parent=1 // pred_region
      %6034 = dma.done [#allocation6], 32
    $region61: #{tpu_custom_call.1} parent=1 // pred_fallthru
      _
    %6035 = vsyncpa [#allocation5], 1
    %6036 = vsyncpa [#allocation8], 1
    %6037 = vsyncpa [#allocation11], 1
    %6038 = vsyncpa [#allocation14], 1
    %6039 = vsyncpa [#allocation6], 1

</llo_original>
